<compile_context>
chip_gen: v6e
topology: v6e:2x2x1
jax: 0.10.0
libtpu: 0.0.40
codegen_flags: <defaults>
</compile_context>

<pallas_src>
import jax
import jax.numpy as jnp
from jax.experimental import pallas as pl
from jax.experimental.pallas import tpu as pltpu

LEAKY_SLOPE = 0.01   # nn.LeakyReLU default negative_slope
BN_EPS = 1e-5        # nn.BatchNorm2d default eps


# ---------------------------------------------------------------------------
# In-kernel helpers
# ---------------------------------------------------------------------------
def _store_padded(dst_ref, interior):
    """Store `interior` into dst_ref's 1-px inset window; zero ONLY the border frame."""
    nb, hp, wp, c = dst_ref.shape
    h, w = hp - 2, wp - 2
    dt = dst_ref.dtype
    dst_ref[:, 0:1, :, :] = jnp.zeros((nb, 1, wp, c), dt)            # top row
    dst_ref[:, h + 1:h + 2, :, :] = jnp.zeros((nb, 1, wp, c), dt)    # bottom row
    dst_ref[:, :, 0:1, :] = jnp.zeros((nb, hp, 1, c), dt)            # left col
    dst_ref[:, :, w + 1:w + 2, :] = jnp.zeros((nb, hp, 1, c), dt)    # right col
    dst_ref[:, 1:h + 1, 1:w + 1, :] = interior.astype(dt)            # stored once


def _conv3x3(pad_ref, col_ref, wf_ref):
    """3x3 'same' conv via ONE packed-K MXU matmul (K = 9*Cin), bf16 operands,
    f32 accumulation. Returns the f32 accumulator as a flat (nb*h*w, Cout) value."""
    nb, hp, wp, cin = pad_ref.shape
    h, w = hp - 2, wp - 2
    dt = col_ref.dtype
    # im2col: tap t = dy*3+dx lives in lanes [t*cin, (t+1)*cin).
    for dy in range(3):
        for dx in range(3):
            t = dy * 3 + dx
            col_ref[:, :, :, t * cin:(t + 1) * cin] = \
                pad_ref[:, dy:dy + h, dx:dx + w, :].astype(dt)
    return jnp.dot(col_ref[...].reshape(nb * h * w, 9 * cin), wf_ref[...],
                   preferred_element_type=jnp.float32)


def _store_stats(stats_ref, acc):
    """Per-tile BatchNorm partials (one pass over the live acc value)."""
    cout = acc.shape[-1]
    stats_ref[:, 0:1, :] = jnp.sum(acc, axis=0, keepdims=True).reshape(1, 1, cout)
    stats_ref[:, 1:2, :] = jnp.sum(acc * acc, axis=0, keepdims=True).reshape(1, 1, cout)


def _affine_leaky(a_ref, sc_ref, sh_ref):
    """Folded BatchNorm affine + LeakyReLU, in f32."""
    c = a_ref.shape[-1]
    y = a_ref[...] * sc_ref[...].reshape(1, 1, 1, c) + sh_ref[...].reshape(1, 1, 1, c)
    return jnp.where(y >= 0, y, LEAKY_SLOPE * y)


# ---------------------------------------------------------------------------
# Kernels
# ---------------------------------------------------------------------------
def _conv1_stats_kernel(x_ref, wf_ref, acc_ref, stats_ref, xp_ref, col_ref):
    """Stage 1 conv: padded halo in VMEM, conv3x3, f32 acc out + BN partials."""
    nb, h, w, _ = x_ref.shape
    cout = wf_ref.shape[-1]
    _store_padded(xp_ref, x_ref[...])
    acc = _conv3x3(xp_ref, col_ref, wf_ref)               # (nb*h*w, cout) f32
    acc_ref[...] = acc.reshape(nb, h, w, cout)
    _store_stats(stats_ref, acc)


def _bn_act_conv2_stats_kernel(a_ref, sc_ref, sh_ref, wf_ref,
                               acc_ref, stats_ref, ap_ref, col_ref):
    """BN1 apply + LeakyReLU (straight into the halo buffer interior), then
    stage-2 conv: f32 acc out + BN partials."""
    nb, h, w, _ = a_ref.shape
    cout = wf_ref.shape[-1]
    _store_padded(ap_ref, _affine_leaky(a_ref, sc_ref, sh_ref))
    acc = _conv3x3(ap_ref, col_ref, wf_ref)
    acc_ref[...] = acc.reshape(nb, h, w, cout)
    _store_stats(stats_ref, acc)


def _bn_act_pool_kernel(a_ref, sc_ref, sh_ref, o_ref, ph_ref):
    """BN2 apply + LeakyReLU + MaxPool2d(2,2)."""
    nb, h, w, c = a_ref.shape
    y = _affine_leaky(a_ref, sc_ref, sh_ref)
    # H pairs reduced on the live value (major-dim split, cheap); only the W
    # (sublane-stride) pairing uses the half-size scratch with strided reads.
    # At lane-dense C (>=128) do the W pairing on the value and drop ph_ref.
    y = y.reshape(nb, h // 2, 2, w, c)
    ph_ref[...] = jnp.maximum(y[:, :, 0], y[:, :, 1])     # (nb, h/2, w, c)
    o_ref[...] = jnp.maximum(ph_ref[:, :, pl.ds(0, w // 2, 2), :],
                             ph_ref[:, :, pl.ds(1, w // 2, 2), :]).astype(o_ref.dtype)


# ---------------------------------------------------------------------------
# Wrapper
# ---------------------------------------------------------------------------
def _vmem_limit_bytes():
    # Generation-aware: ~75% of physical VMEM (headroom for the double-buffered
    # BlockSpec pipeline). 128 MiB on v5e/v6e -> 96 MiB; 64 MiB on v7x -> 48 MiB.
    try:
        cap = int(pltpu.get_tpu_info().vmem_capacity_bytes)
    except Exception:
        cap = 64 * 1024 * 1024
    return max(32 * 1024 * 1024, min((cap * 3) // 4, 112 * 1024 * 1024))


def _bn_affine(stats, gamma, beta, m):
    """Reduce per-tile partials and fold train-mode BN into y = acc*scale + shift."""
    s = jnp.sum(stats[:, 0, :], axis=0)
    s2 = jnp.sum(stats[:, 1, :], axis=0)
    mean = s / m
    var = jnp.maximum(s2 / m - mean * mean, 0.0)          # clamp: avoid rsqrt(<0)
    scale = gamma.reshape(-1) * jax.lax.rsqrt(var + BN_EPS)
    shift = beta.reshape(-1) - mean * scale
    return (scale.reshape(1, -1).astype(jnp.float32),
            shift.reshape(1, -1).astype(jnp.float32))


def basic_conv_block(x_nchw, p):
    x = jnp.transpose(x_nchw, (0, 2, 3, 1)).astype(jnp.float32)     # NCHW -> NHWC
    n, h, w, cin = x.shape
    c1 = p["w1"].shape[-1]
    c2 = p["w2"].shape[-1]
    m = n * h * w
    cp = pltpu.CompilerParams(dimension_semantics=("parallel",),
                              vmem_limit_bytes=_vmem_limit_bytes())

    # HWIO -> (9*Cin, Cout), bf16 MXU operands (f32 accumulation in-kernel).
    w1f = p["w1"].reshape(9 * cin, c1).astype(jnp.bfloat16)
    w2f = p["w2"].reshape(9 * c1, c2).astype(jnp.bfloat16)

    # ---- call 1: conv1 + BN1 partials -------------------------------------
    acc1, stats1 = pl.pallas_call(
        _conv1_stats_kernel,
        out_shape=(jax.ShapeDtypeStruct((n, h, w, c1), jnp.float32),
                   jax.ShapeDtypeStruct((n, 2, c1), jnp.float32)),
        grid=(n,),
        in_specs=[pl.BlockSpec((1, h, w, cin), lambda i: (i, 0, 0, 0)),
                  pl.BlockSpec((9 * cin, c1), lambda i: (0, 0))],
        out_specs=(pl.BlockSpec((1, h, w, c1), lambda i: (i, 0, 0, 0)),
                   pl.BlockSpec((1, 2, c1), lambda i: (i, 0, 0))),
        scratch_shapes=[pltpu.VMEM((1, h + 2, w + 2, cin), jnp.float32),
                        pltpu.VMEM((1, h, w, 9 * cin), jnp.bfloat16)],
        compiler_params=cp,
    )(x, w1f)
    scale1, shift1 = _bn_affine(stats1, p["g1"], p["bt1"], m)

    # ---- call 2: BN1 apply + act + conv2 + BN2 partials --------------------
    acc2, stats2 = pl.pallas_call(
        _bn_act_conv2_stats_kernel,
        out_shape=(jax.ShapeDtypeStruct((n, h, w, c2), jnp.float32),
                   jax.ShapeDtypeStruct((n, 2, c2), jnp.float32)),
        grid=(n,),
        in_specs=[pl.BlockSpec((1, h, w, c1), lambda i: (i, 0, 0, 0)),
                  pl.BlockSpec((1, c1), lambda i: (0, 0)),
                  pl.BlockSpec((1, c1), lambda i: (0, 0)),
                  pl.BlockSpec((9 * c1, c2), lambda i: (0, 0))],
        out_specs=(pl.BlockSpec((1, h, w, c2), lambda i: (i, 0, 0, 0)),
                   pl.BlockSpec((1, 2, c2), lambda i: (i, 0, 0))),
        scratch_shapes=[pltpu.VMEM((1, h + 2, w + 2, c1), jnp.float32),
                        pltpu.VMEM((1, h, w, 9 * c1), jnp.bfloat16)],
        compiler_params=cp,
    )(acc1, scale1, shift1, w2f)
    scale2, shift2 = _bn_affine(stats2, p["g2"], p["bt2"], m)

    # ---- call 3: BN2 apply + act + MaxPool2d(2,2) ---------------------------
    out = pl.pallas_call(
        _bn_act_pool_kernel,
        out_shape=jax.ShapeDtypeStruct((n, h // 2, w // 2, c2), x_nchw.dtype),
        grid=(n,),
        in_specs=[pl.BlockSpec((1, h, w, c2), lambda i: (i, 0, 0, 0)),
                  pl.BlockSpec((1, c2), lambda i: (0, 0)),
                  pl.BlockSpec((1, c2), lambda i: (0, 0))],
        out_specs=pl.BlockSpec((1, h // 2, w // 2, c2), lambda i: (i, 0, 0, 0)),
        scratch_shapes=[pltpu.VMEM((1, h // 2, w, c2), jnp.float32)],
        compiler_params=cp,
    )(acc2, scale2, shift2)
    return jnp.transpose(out, (0, 3, 1, 2))                          # NHWC -> NCHW


# ---------------------------------------------------------------------------
# Deterministic parameter init (shapes from the PyTorch __init__)
# ---------------------------------------------------------------------------
def init_params(key, cin, cout):
    keys = jax.random.split(key, 8)

    def conv(kw, kb, ci, co):
        bound = 1.0 / (ci * 9) ** 0.5
        w = jax.random.uniform(kw, (3, 3, ci, co), jnp.float32, -bound, bound)
        b = jax.random.uniform(kb, (1, co), jnp.float32, -bound, bound)
        return w, b

    # Biases are kept in the params (and in the reference) only to demonstrate
    # that dropping them inside the kernels is exact under train-mode BN.
    w1, b1 = conv(keys[0], keys[1], cin, cout)
    w2, b2 = conv(keys[2], keys[3], cout, cout)
    g1 = 1.0 + 0.1 * jax.random.normal(keys[4], (1, cout), jnp.float32)
    bt1 = 0.1 * jax.random.normal(keys[5], (1, cout), jnp.float32)
    g2 = 1.0 + 0.1 * jax.random.normal(keys[6], (1, cout), jnp.float32)
    bt2 = 0.1 * jax.random.normal(keys[7], (1, cout), jnp.float32)
    return dict(w1=w1, b1=b1, g1=g1, bt1=bt1, w2=w2, b2=b2, g2=g2, bt2=bt2)


# ---------------------------------------------------------------------------
# Pure-JAX reference (sanity check only; f32 throughout, includes the conv bias)
# ---------------------------------------------------------------------------
def _ref_block(x_nchw, p):
    x = jnp.transpose(x_nchw, (0, 2, 3, 1))

    def stage(x, w, b, g, bt):
        y = jax.lax.conv_general_dilated(
            x, w, (1, 1), "SAME",
            dimension_numbers=("NHWC", "HWIO", "NHWC"),
            precision=jax.lax.Precision.HIGHEST) + b
        mean = jnp.mean(y, axis=(0, 1, 2), keepdims=True)
        var = jnp.mean((y - mean) ** 2, axis=(0, 1, 2), keepdims=True)
        y = (y - mean) * jax.lax.rsqrt(var + BN_EPS) * g + bt
        return jnp.where(y >= 0, y, LEAKY_SLOPE * y)

    x = stage(x, p["w1"], p["b1"], p["g1"], p["bt1"])
    x = stage(x, p["w2"], p["b2"], p["g2"], p["bt2"])
    n, h, w, c = x.shape
    x = x.reshape(n, h // 2, 2, w // 2, 2, c).max(axis=(2, 4))
    return jnp.transpose(x, (0, 3, 1, 2))


if __name__ == "__main__":
    key = jax.random.PRNGKey(0)
    kx, kp = jax.random.split(key)
    N, CIN, COUT, H, W = 2, 4, 8, 16, 16

    x = jax.random.normal(kx, (N, CIN, H, W), jnp.float32)      # NCHW like PyTorch
    params = init_params(kp, CIN, COUT)

    out = jax.jit(basic_conv_block)(x, params)
    out = jax.block_until_ready(out)

    assert out.shape == (N, COUT, H // 2, W // 2), out.shape
    ref = _ref_block(x, params)
    max_err = float(jnp.max(jnp.abs(out - ref)))
    # Loose tolerance: kernel uses bf16 MXU operands (f32 accumulation) vs the
    # f32 HIGHEST-precision XLA reference.
    if max_err > 1e-1:
        raise AssertionError(f"mismatch vs JAX reference: max abs err {max_err}")
    print("KERNEL_OK")
</pallas_src>

<mosaic_0001>
module attributes {stable_mosaic.version = 11 : i64} {
  func.func @_bn_act_conv2_stats_kernel(%arg0: i32, %arg1: memref<1x16x16x8xf32, #tpu.memory_space<vmem>>, %arg2: memref<1x8xf32, #tpu.memory_space<vmem>>, %arg3: memref<1x8xf32, #tpu.memory_space<vmem>>, %arg4: memref<72x8xbf16, #tpu.memory_space<vmem>>, %arg5: memref<1x16x16x8xf32, #tpu.memory_space<vmem>>, %arg6: memref<1x2x8xf32, #tpu.memory_space<vmem>>, %arg7: memref<1x18x18x8xf32, #tpu.memory_space<vmem>>, %arg8: memref<1x16x16x72xbf16, #tpu.memory_space<vmem>>) attributes {dimension_semantics = [#tpu.dimension_semantics<parallel>], iteration_bounds = array<i64: 2>, scalar_prefetch = 0 : i64, scratch_operands = 2 : i64, tpu.core_type = #tpu.core_type<tc>, window_params = [{transform_indices = @transform_0, window_bounds = array<i64: 1, 16, 16, 8>}, {pipeline_mode = #tpu.pipeline_mode<synchronous>, transform_indices = @transform_1, window_bounds = array<i64: 1, 8>}, {pipeline_mode = #tpu.pipeline_mode<synchronous>, transform_indices = @transform_2, window_bounds = array<i64: 1, 8>}, {pipeline_mode = #tpu.pipeline_mode<synchronous>, transform_indices = @transform_3, window_bounds = array<i64: 72, 8>}, {transform_indices = @transform_4, window_bounds = array<i64: 1, 16, 16, 8>}, {transform_indices = @transform_5, window_bounds = array<i64: 1, 2, 8>}]} {
    %c0 = arith.constant 0 : index
    %c0_0 = arith.constant 0 : index
    %c0_1 = arith.constant 0 : index
    %c0_2 = arith.constant 0 : index
    %0 = vector.load %arg1[%c0, %c0_0, %c0_1, %c0_2] : memref<1x16x16x8xf32, #tpu.memory_space<vmem>>, vector<1x16x16x8xf32>
    %c0_3 = arith.constant 0 : index
    %c0_4 = arith.constant 0 : index
    %1 = vector.load %arg2[%c0_3, %c0_4] : memref<1x8xf32, #tpu.memory_space<vmem>>, vector<1x8xf32>
    %2 = vector.shape_cast %1 : vector<1x8xf32> to vector<1x1x1x8xf32>
    %3 = vector.broadcast %2 : vector<1x1x1x8xf32> to vector<1x16x16x8xf32>
    %4 = arith.mulf %0, %3 : vector<1x16x16x8xf32>
    %c0_5 = arith.constant 0 : index
    %c0_6 = arith.constant 0 : index
    %5 = vector.load %arg3[%c0_5, %c0_6] : memref<1x8xf32, #tpu.memory_space<vmem>>, vector<1x8xf32>
    %6 = vector.shape_cast %5 : vector<1x8xf32> to vector<1x1x1x8xf32>
    %7 = vector.broadcast %6 : vector<1x1x1x8xf32> to vector<1x16x16x8xf32>
    %8 = arith.addf %4, %7 : vector<1x16x16x8xf32>
    %cst = arith.constant 0.000000e+00 : f32
    %9 = vector.broadcast %cst : f32 to vector<1x16x16x8xf32>
    %10 = arith.cmpf oge, %8, %9 : vector<1x16x16x8xf32>
    %cst_7 = arith.constant 0.00999999977 : f32
    %11 = vector.broadcast %cst_7 : f32 to vector<1x16x16x8xf32>
    %12 = arith.mulf %11, %8 : vector<1x16x16x8xf32>
    %13 = arith.select %10, %8, %12 : vector<1x16x16x8xi1>, vector<1x16x16x8xf32>
    %cst_8 = arith.constant 0.000000e+00 : f32
    %14 = vector.broadcast %cst_8 : f32 to vector<1x1x18x8xf32>
    %c0_9 = arith.constant 0 : index
    %c0_10 = arith.constant 0 : index
    %c0_11 = arith.constant 0 : index
    %c0_12 = arith.constant 0 : index
    %15 = vector.load %arg7[%c0_9, %c0_10, %c0_11, %c0_12] : memref<1x18x18x8xf32, #tpu.memory_space<vmem>>, vector<1x1x18x8xf32>
    tpu.vector_store %arg7[%c0_9, %c0_10, %c0_11, %c0_12], %14 {strides = array<i32>} : memref<1x18x18x8xf32, #tpu.memory_space<vmem>>, vector<1x1x18x8xf32>,
    %cst_13 = arith.constant 0.000000e+00 : f32
    %16 = vector.broadcast %cst_13 : f32 to vector<1x1x18x8xf32>
    %c0_14 = arith.constant 0 : index
    %c17 = arith.constant 17 : index
    %c0_15 = arith.constant 0 : index
    %c0_16 = arith.constant 0 : index
    %17 = vector.load %arg7[%c0_14, %c17, %c0_15, %c0_16] : memref<1x18x18x8xf32, #tpu.memory_space<vmem>>, vector<1x1x18x8xf32>
    tpu.vector_store %arg7[%c0_14, %c17, %c0_15, %c0_16], %16 {strides = array<i32>} : memref<1x18x18x8xf32, #tpu.memory_space<vmem>>, vector<1x1x18x8xf32>,
    %cst_17 = arith.constant 0.000000e+00 : f32
    %18 = vector.broadcast %cst_17 : f32 to vector<1x18x1x8xf32>
    %c0_18 = arith.constant 0 : index
    %c0_19 = arith.constant 0 : index
    %c0_20 = arith.constant 0 : index
    %c0_21 = arith.constant 0 : index
    %19 = vector.load %arg7[%c0_18, %c0_19, %c0_20, %c0_21] : memref<1x18x18x8xf32, #tpu.memory_space<vmem>>, vector<1x18x1x8xf32>
    tpu.vector_store %arg7[%c0_18, %c0_19, %c0_20, %c0_21], %18 {strides = array<i32>} : memref<1x18x18x8xf32, #tpu.memory_space<vmem>>, vector<1x18x1x8xf32>,
    %cst_22 = arith.constant 0.000000e+00 : f32
    %20 = vector.broadcast %cst_22 : f32 to vector<1x18x1x8xf32>
    %c0_23 = arith.constant 0 : index
    %c0_24 = arith.constant 0 : index
    %c17_25 = arith.constant 17 : index
    %c0_26 = arith.constant 0 : index
    %21 = vector.load %arg7[%c0_23, %c0_24, %c17_25, %c0_26] : memref<1x18x18x8xf32, #tpu.memory_space<vmem>>, vector<1x18x1x8xf32>
    tpu.vector_store %arg7[%c0_23, %c0_24, %c17_25, %c0_26], %20 {strides = array<i32>} : memref<1x18x18x8xf32, #tpu.memory_space<vmem>>, vector<1x18x1x8xf32>,
    %c0_27 = arith.constant 0 : index
    %c1 = arith.constant 1 : index
    %c1_28 = arith.constant 1 : index
    %c0_29 = arith.constant 0 : index
    %22 = vector.load %arg7[%c0_27, %c1, %c1_28, %c0_29] : memref<1x18x18x8xf32, #tpu.memory_space<vmem>>, vector<1x16x16x8xf32>
    tpu.vector_store %arg7[%c0_27, %c1, %c1_28, %c0_29], %13 {strides = array<i32>} : memref<1x18x18x8xf32, #tpu.memory_space<vmem>>, vector<1x16x16x8xf32>,
    %c0_30 = arith.constant 0 : index
    %c0_31 = arith.constant 0 : index
    %c0_32 = arith.constant 0 : index
    %c0_33 = arith.constant 0 : index
    %23 = vector.load %arg7[%c0_30, %c0_31, %c0_32, %c0_33] : memref<1x18x18x8xf32, #tpu.memory_space<vmem>>, vector<1x16x16x8xf32>
    %24 = arith.truncf %23 : vector<1x16x16x8xf32> to vector<1x16x16x8xbf16>
    %c0_34 = arith.constant 0 : index
    %c0_35 = arith.constant 0 : index
    %c0_36 = arith.constant 0 : index
    %c0_37 = arith.constant 0 : index
    %25 = vector.load %arg8[%c0_34, %c0_35, %c0_36, %c0_37] : memref<1x16x16x72xbf16, #tpu.memory_space<vmem>>, vector<1x16x16x8xbf16>
    tpu.vector_store %arg8[%c0_34, %c0_35, %c0_36, %c0_37], %24 {strides = array<i32>} : memref<1x16x16x72xbf16, #tpu.memory_space<vmem>>, vector<1x16x16x8xbf16>,
    %c0_38 = arith.constant 0 : index
    %c0_39 = arith.constant 0 : index
    %c1_40 = arith.constant 1 : index
    %c0_41 = arith.constant 0 : index
    %26 = vector.load %arg7[%c0_38, %c0_39, %c1_40, %c0_41] : memref<1x18x18x8xf32, #tpu.memory_space<vmem>>, vector<1x16x16x8xf32>
    %27 = arith.truncf %26 : vector<1x16x16x8xf32> to vector<1x16x16x8xbf16>
    %c0_42 = arith.constant 0 : index
    %c0_43 = arith.constant 0 : index
    %c0_44 = arith.constant 0 : index
    %c8 = arith.constant 8 : index
    %28 = vector.load %arg8[%c0_42, %c0_43, %c0_44, %c8] : memref<1x16x16x72xbf16, #tpu.memory_space<vmem>>, vector<1x16x16x8xbf16>
    tpu.vector_store %arg8[%c0_42, %c0_43, %c0_44, %c8], %27 {strides = array<i32>} : memref<1x16x16x72xbf16, #tpu.memory_space<vmem>>, vector<1x16x16x8xbf16>,
    %c0_45 = arith.constant 0 : index
    %c0_46 = arith.constant 0 : index
    %c2 = arith.constant 2 : index
    %c0_47 = arith.constant 0 : index
    %29 = vector.load %arg7[%c0_45, %c0_46, %c2, %c0_47] : memref<1x18x18x8xf32, #tpu.memory_space<vmem>>, vector<1x16x16x8xf32>
    %30 = arith.truncf %29 : vector<1x16x16x8xf32> to vector<1x16x16x8xbf16>
    %c0_48 = arith.constant 0 : index
    %c0_49 = arith.constant 0 : index
    %c0_50 = arith.constant 0 : index
    %c16 = arith.constant 16 : index
    %31 = vector.load %arg8[%c0_48, %c0_49, %c0_50, %c16] : memref<1x16x16x72xbf16, #tpu.memory_space<vmem>>, vector<1x16x16x8xbf16>
    tpu.vector_store %arg8[%c0_48, %c0_49, %c0_50, %c16], %30 {strides = array<i32>} : memref<1x16x16x72xbf16, #tpu.memory_space<vmem>>, vector<1x16x16x8xbf16>,
    %c0_51 = arith.constant 0 : index
    %c1_52 = arith.constant 1 : index
    %c0_53 = arith.constant 0 : index
    %c0_54 = arith.constant 0 : index
    %32 = vector.load %arg7[%c0_51, %c1_52, %c0_53, %c0_54] : memref<1x18x18x8xf32, #tpu.memory_space<vmem>>, vector<1x16x16x8xf32>
    %33 = arith.truncf %32 : vector<1x16x16x8xf32> to vector<1x16x16x8xbf16>
    %c0_55 = arith.constant 0 : index
    %c0_56 = arith.constant 0 : index
    %c0_57 = arith.constant 0 : index
    %c24 = arith.constant 24 : index
    %34 = vector.load %arg8[%c0_55, %c0_56, %c0_57, %c24] : memref<1x16x16x72xbf16, #tpu.memory_space<vmem>>, vector<1x16x16x8xbf16>
    tpu.vector_store %arg8[%c0_55, %c0_56, %c0_57, %c24], %33 {strides = array<i32>} : memref<1x16x16x72xbf16, #tpu.memory_space<vmem>>, vector<1x16x16x8xbf16>,
    %c0_58 = arith.constant 0 : index
    %c1_59 = arith.constant 1 : index
    %c1_60 = arith.constant 1 : index
    %c0_61 = arith.constant 0 : index
    %35 = vector.load %arg7[%c0_58, %c1_59, %c1_60, %c0_61] : memref<1x18x18x8xf32, #tpu.memory_space<vmem>>, vector<1x16x16x8xf32>
    %36 = arith.truncf %35 : vector<1x16x16x8xf32> to vector<1x16x16x8xbf16>
    %c0_62 = arith.constant 0 : index
    %c0_63 = arith.constant 0 : index
    %c0_64 = arith.constant 0 : index
    %c32 = arith.constant 32 : index
    %37 = vector.load %arg8[%c0_62, %c0_63, %c0_64, %c32] : memref<1x16x16x72xbf16, #tpu.memory_space<vmem>>, vector<1x16x16x8xbf16>
    tpu.vector_store %arg8[%c0_62, %c0_63, %c0_64, %c32], %36 {strides = array<i32>} : memref<1x16x16x72xbf16, #tpu.memory_space<vmem>>, vector<1x16x16x8xbf16>,
    %c0_65 = arith.constant 0 : index
    %c1_66 = arith.constant 1 : index
    %c2_67 = arith.constant 2 : index
    %c0_68 = arith.constant 0 : index
    %38 = vector.load %arg7[%c0_65, %c1_66, %c2_67, %c0_68] : memref<1x18x18x8xf32, #tpu.memory_space<vmem>>, vector<1x16x16x8xf32>
    %39 = arith.truncf %38 : vector<1x16x16x8xf32> to vector<1x16x16x8xbf16>
    %c0_69 = arith.constant 0 : index
    %c0_70 = arith.constant 0 : index
    %c0_71 = arith.constant 0 : index
    %c40 = arith.constant 40 : index
    %40 = vector.load %arg8[%c0_69, %c0_70, %c0_71, %c40] : memref<1x16x16x72xbf16, #tpu.memory_space<vmem>>, vector<1x16x16x8xbf16>
    tpu.vector_store %arg8[%c0_69, %c0_70, %c0_71, %c40], %39 {strides = array<i32>} : memref<1x16x16x72xbf16, #tpu.memory_space<vmem>>, vector<1x16x16x8xbf16>,
    %c0_72 = arith.constant 0 : index
    %c2_73 = arith.constant 2 : index
    %c0_74 = arith.constant 0 : index
    %c0_75 = arith.constant 0 : index
    %41 = vector.load %arg7[%c0_72, %c2_73, %c0_74, %c0_75] : memref<1x18x18x8xf32, #tpu.memory_space<vmem>>, vector<1x16x16x8xf32>
    %42 = arith.truncf %41 : vector<1x16x16x8xf32> to vector<1x16x16x8xbf16>
    %c0_76 = arith.constant 0 : index
    %c0_77 = arith.constant 0 : index
    %c0_78 = arith.constant 0 : index
    %c48 = arith.constant 48 : index
    %43 = vector.load %arg8[%c0_76, %c0_77, %c0_78, %c48] : memref<1x16x16x72xbf16, #tpu.memory_space<vmem>>, vector<1x16x16x8xbf16>
    tpu.vector_store %arg8[%c0_76, %c0_77, %c0_78, %c48], %42 {strides = array<i32>} : memref<1x16x16x72xbf16, #tpu.memory_space<vmem>>, vector<1x16x16x8xbf16>,
    %c0_79 = arith.constant 0 : index
    %c2_80 = arith.constant 2 : index
    %c1_81 = arith.constant 1 : index
    %c0_82 = arith.constant 0 : index
    %44 = vector.load %arg7[%c0_79, %c2_80, %c1_81, %c0_82] : memref<1x18x18x8xf32, #tpu.memory_space<vmem>>, vector<1x16x16x8xf32>
    %45 = arith.truncf %44 : vector<1x16x16x8xf32> to vector<1x16x16x8xbf16>
    %c0_83 = arith.constant 0 : index
    %c0_84 = arith.constant 0 : index
    %c0_85 = arith.constant 0 : index
    %c56 = arith.constant 56 : index
    %46 = vector.load %arg8[%c0_83, %c0_84, %c0_85, %c56] : memref<1x16x16x72xbf16, #tpu.memory_space<vmem>>, vector<1x16x16x8xbf16>
    tpu.vector_store %arg8[%c0_83, %c0_84, %c0_85, %c56], %45 {strides = array<i32>} : memref<1x16x16x72xbf16, #tpu.memory_space<vmem>>, vector<1x16x16x8xbf16>,
    %c0_86 = arith.constant 0 : index
    %c2_87 = arith.constant 2 : index
    %c2_88 = arith.constant 2 : index
    %c0_89 = arith.constant 0 : index
    %47 = vector.load %arg7[%c0_86, %c2_87, %c2_88, %c0_89] : memref<1x18x18x8xf32, #tpu.memory_space<vmem>>, vector<1x16x16x8xf32>
    %48 = arith.truncf %47 : vector<1x16x16x8xf32> to vector<1x16x16x8xbf16>
    %c0_90 = arith.constant 0 : index
    %c0_91 = arith.constant 0 : index
    %c0_92 = arith.constant 0 : index
    %c64 = arith.constant 64 : index
    %49 = vector.load %arg8[%c0_90, %c0_91, %c0_92, %c64] : memref<1x16x16x72xbf16, #tpu.memory_space<vmem>>, vector<1x16x16x8xbf16>
    tpu.vector_store %arg8[%c0_90, %c0_91, %c0_92, %c64], %48 {strides = array<i32>} : memref<1x16x16x72xbf16, #tpu.memory_space<vmem>>, vector<1x16x16x8xbf16>,
    %c0_93 = arith.constant 0 : index
    %c0_94 = arith.constant 0 : index
    %c0_95 = arith.constant 0 : index
    %c0_96 = arith.constant 0 : index
    %50 = vector.load %arg8[%c0_93, %c0_94, %c0_95, %c0_96] : memref<1x16x16x72xbf16, #tpu.memory_space<vmem>>, vector<1x16x16x72xbf16>
    %51 = vector.shape_cast %50 : vector<1x16x16x72xbf16> to vector<256x72xbf16>
    %c0_97 = arith.constant 0 : index
    %c0_98 = arith.constant 0 : index
    %52 = vector.load %arg4[%c0_97, %c0_98] : memref<72x8xbf16, #tpu.memory_space<vmem>>, vector<72x8xbf16>
    %cst_99 = arith.constant dense<0.000000e+00> : vector<256x8xf32>
    %53 = tpu.matmul %51, %52, %cst_99 {dimension_numbers = #tpu.dot_dimension_numbers<[1], [0], [0], [1], [0, 0, 1, 1], [], []>} : vector<256x72xbf16>, vector<72x8xbf16>, vector<256x8xf32> -> vector<256x8xf32>
    %54 = vector.shape_cast %53 : vector<256x8xf32> to vector<1x16x16x8xf32>
    %c0_100 = arith.constant 0 : index
    %c0_101 = arith.constant 0 : index
    %c0_102 = arith.constant 0 : index
    %c0_103 = arith.constant 0 : index
    %55 = vector.load %arg5[%c0_100, %c0_101, %c0_102, %c0_103] : memref<1x16x16x8xf32, #tpu.memory_space<vmem>>, vector<1x16x16x8xf32>
    tpu.vector_store %arg5[%c0_100, %c0_101, %c0_102, %c0_103], %54 {strides = array<i32>} : memref<1x16x16x8xf32, #tpu.memory_space<vmem>>, vector<1x16x16x8xf32>,
    %cst_104 = arith.constant dense<0.000000e+00> : vector<8xf32>
    %56 = vector.multi_reduction <add>, %53, %cst_104 [0] : vector<256x8xf32> to vector<8xf32>
    %57 = vector.shape_cast %56 : vector<8xf32> to vector<1x8xf32>
    %58 = vector.shape_cast %57 : vector<1x8xf32> to vector<1x1x8xf32>
    %c0_105 = arith.constant 0 : index
    %c0_106 = arith.constant 0 : index
    %c0_107 = arith.constant 0 : index
    %59 = vector.load %arg6[%c0_105, %c0_106, %c0_107] : memref<1x2x8xf32, #tpu.memory_space<vmem>>, vector<1x1x8xf32>
    tpu.vector_store %arg6[%c0_105, %c0_106, %c0_107], %58 {strides = array<i32>} : memref<1x2x8xf32, #tpu.memory_space<vmem>>, vector<1x1x8xf32>,
    %60 = arith.mulf %53, %53 : vector<256x8xf32>
    %cst_108 = arith.constant dense<0.000000e+00> : vector<8xf32>
    %61 = vector.multi_reduction <add>, %60, %cst_108 [0] : vector<256x8xf32> to vector<8xf32>
    %62 = vector.shape_cast %61 : vector<8xf32> to vector<1x8xf32>
    %63 = vector.shape_cast %62 : vector<1x8xf32> to vector<1x1x8xf32>
    %c0_109 = arith.constant 0 : index
    %c1_110 = arith.constant 1 : index
    %c0_111 = arith.constant 0 : index
    %64 = vector.load %arg6[%c0_109, %c1_110, %c0_111] : memref<1x2x8xf32, #tpu.memory_space<vmem>>, vector<1x1x8xf32>
    tpu.vector_store %arg6[%c0_109, %c1_110, %c0_111], %63 {strides = array<i32>} : memref<1x2x8xf32, #tpu.memory_space<vmem>>, vector<1x1x8xf32>,
    return
  }
  func.func @transform_0(%arg0: i32) -> (i32, i32, i32, i32) {
    %c0_i32 = arith.constant 0 : i32
    %c0_i32_0 = arith.constant 0 : i32
    %c0_i32_1 = arith.constant 0 : i32
    %c0_i32_2 = arith.constant 0 : i32
    return %arg0, %c0_i32, %c0_i32_0, %c0_i32_1 : i32, i32, i32, i32
  }
  func.func @transform_1(%arg0: i32) -> (i32, i32) {
    %c0_i32 = arith.constant 0 : i32
    %c0_i32_0 = arith.constant 0 : i32
    %c0_i32_1 = arith.constant 0 : i32
    return %c0_i32, %c0_i32_0 : i32, i32
  }
  func.func @transform_2(%arg0: i32) -> (i32, i32) {
    %c0_i32 = arith.constant 0 : i32
    %c0_i32_0 = arith.constant 0 : i32
    %c0_i32_1 = arith.constant 0 : i32
    return %c0_i32, %c0_i32_0 : i32, i32
  }
  func.func @transform_3(%arg0: i32) -> (i32, i32) {
    %c0_i32 = arith.constant 0 : i32
    %c0_i32_0 = arith.constant 0 : i32
    %c0_i32_1 = arith.constant 0 : i32
    return %c0_i32, %c0_i32_0 : i32, i32
  }
  func.func @transform_4(%arg0: i32) -> (i32, i32, i32, i32) {
    %c0_i32 = arith.constant 0 : i32
    %c0_i32_0 = arith.constant 0 : i32
    %c0_i32_1 = arith.constant 0 : i32
    %c0_i32_2 = arith.constant 0 : i32
    return %arg0, %c0_i32, %c0_i32_0, %c0_i32_1 : i32, i32, i32, i32
  }
  func.func @transform_5(%arg0: i32) -> (i32, i32, i32) {
    %c0_i32 = arith.constant 0 : i32
    %c0_i32_0 = arith.constant 0 : i32
    %c0_i32_1 = arith.constant 0 : i32
    return %arg0, %c0_i32, %c0_i32_0 : i32, i32, i32
  }
}

module attributes {stable_mosaic.version = 11 : i64} {
  func.func @_conv1_stats_kernel(%arg0: i32, %arg1: memref<1x16x16x4xf32, #tpu.memory_space<vmem>>, %arg2: memref<36x8xbf16, #tpu.memory_space<vmem>>, %arg3: memref<1x16x16x8xf32, #tpu.memory_space<vmem>>, %arg4: memref<1x2x8xf32, #tpu.memory_space<vmem>>, %arg5: memref<1x18x18x4xf32, #tpu.memory_space<vmem>>, %arg6: memref<1x16x16x36xbf16, #tpu.memory_space<vmem>>) attributes {dimension_semantics = [#tpu.dimension_semantics<parallel>], iteration_bounds = array<i64: 2>, scalar_prefetch = 0 : i64, scratch_operands = 2 : i64, tpu.core_type = #tpu.core_type<tc>, window_params = [{transform_indices = @transform_0, window_bounds = array<i64: 1, 16, 16, 4>}, {pipeline_mode = #tpu.pipeline_mode<synchronous>, transform_indices = @transform_1, window_bounds = array<i64: 36, 8>}, {transform_indices = @transform_2, window_bounds = array<i64: 1, 16, 16, 8>}, {transform_indices = @transform_3, window_bounds = array<i64: 1, 2, 8>}]} {
    %c0 = arith.constant 0 : index
    %c0_0 = arith.constant 0 : index
    %c0_1 = arith.constant 0 : index
    %c0_2 = arith.constant 0 : index
    %0 = vector.load %arg1[%c0, %c0_0, %c0_1, %c0_2] : memref<1x16x16x4xf32, #tpu.memory_space<vmem>>, vector<1x16x16x4xf32>
    %cst = arith.constant 0.000000e+00 : f32
    %1 = vector.broadcast %cst : f32 to vector<1x1x18x4xf32>
    %c0_3 = arith.constant 0 : index
    %c0_4 = arith.constant 0 : index
    %c0_5 = arith.constant 0 : index
    %c0_6 = arith.constant 0 : index
    %2 = vector.load %arg5[%c0_3, %c0_4, %c0_5, %c0_6] : memref<1x18x18x4xf32, #tpu.memory_space<vmem>>, vector<1x1x18x4xf32>
    tpu.vector_store %arg5[%c0_3, %c0_4, %c0_5, %c0_6], %1 {strides = array<i32>} : memref<1x18x18x4xf32, #tpu.memory_space<vmem>>, vector<1x1x18x4xf32>,
    %cst_7 = arith.constant 0.000000e+00 : f32
    %3 = vector.broadcast %cst_7 : f32 to vector<1x1x18x4xf32>
    %c0_8 = arith.constant 0 : index
    %c17 = arith.constant 17 : index
    %c0_9 = arith.constant 0 : index
    %c0_10 = arith.constant 0 : index
    %4 = vector.load %arg5[%c0_8, %c17, %c0_9, %c0_10] : memref<1x18x18x4xf32, #tpu.memory_space<vmem>>, vector<1x1x18x4xf32>
    tpu.vector_store %arg5[%c0_8, %c17, %c0_9, %c0_10], %3 {strides = array<i32>} : memref<1x18x18x4xf32, #tpu.memory_space<vmem>>, vector<1x1x18x4xf32>,
    %cst_11 = arith.constant 0.000000e+00 : f32
    %5 = vector.broadcast %cst_11 : f32 to vector<1x18x1x4xf32>
    %c0_12 = arith.constant 0 : index
    %c0_13 = arith.constant 0 : index
    %c0_14 = arith.constant 0 : index
    %c0_15 = arith.constant 0 : index
    %6 = vector.load %arg5[%c0_12, %c0_13, %c0_14, %c0_15] : memref<1x18x18x4xf32, #tpu.memory_space<vmem>>, vector<1x18x1x4xf32>
    tpu.vector_store %arg5[%c0_12, %c0_13, %c0_14, %c0_15], %5 {strides = array<i32>} : memref<1x18x18x4xf32, #tpu.memory_space<vmem>>, vector<1x18x1x4xf32>,
    %cst_16 = arith.constant 0.000000e+00 : f32
    %7 = vector.broadcast %cst_16 : f32 to vector<1x18x1x4xf32>
    %c0_17 = arith.constant 0 : index
    %c0_18 = arith.constant 0 : index
    %c17_19 = arith.constant 17 : index
    %c0_20 = arith.constant 0 : index
    %8 = vector.load %arg5[%c0_17, %c0_18, %c17_19, %c0_20] : memref<1x18x18x4xf32, #tpu.memory_space<vmem>>, vector<1x18x1x4xf32>
    tpu.vector_store %arg5[%c0_17, %c0_18, %c17_19, %c0_20], %7 {strides = array<i32>} : memref<1x18x18x4xf32, #tpu.memory_space<vmem>>, vector<1x18x1x4xf32>,
    %c0_21 = arith.constant 0 : index
    %c1 = arith.constant 1 : index
    %c1_22 = arith.constant 1 : index
    %c0_23 = arith.constant 0 : index
    %9 = vector.load %arg5[%c0_21, %c1, %c1_22, %c0_23] : memref<1x18x18x4xf32, #tpu.memory_space<vmem>>, vector<1x16x16x4xf32>
    tpu.vector_store %arg5[%c0_21, %c1, %c1_22, %c0_23], %0 {strides = array<i32>} : memref<1x18x18x4xf32, #tpu.memory_space<vmem>>, vector<1x16x16x4xf32>,
    %c0_24 = arith.constant 0 : index
    %c0_25 = arith.constant 0 : index
    %c0_26 = arith.constant 0 : index
    %c0_27 = arith.constant 0 : index
    %10 = vector.load %arg5[%c0_24, %c0_25, %c0_26, %c0_27] : memref<1x18x18x4xf32, #tpu.memory_space<vmem>>, vector<1x16x16x4xf32>
    %11 = arith.truncf %10 : vector<1x16x16x4xf32> to vector<1x16x16x4xbf16>
    %c0_28 = arith.constant 0 : index
    %c0_29 = arith.constant 0 : index
    %c0_30 = arith.constant 0 : index
    %c0_31 = arith.constant 0 : index
    %12 = vector.load %arg6[%c0_28, %c0_29, %c0_30, %c0_31] : memref<1x16x16x36xbf16, #tpu.memory_space<vmem>>, vector<1x16x16x4xbf16>
    tpu.vector_store %arg6[%c0_28, %c0_29, %c0_30, %c0_31], %11 {strides = array<i32>} : memref<1x16x16x36xbf16, #tpu.memory_space<vmem>>, vector<1x16x16x4xbf16>,
    %c0_32 = arith.constant 0 : index
    %c0_33 = arith.constant 0 : index
    %c1_34 = arith.constant 1 : index
    %c0_35 = arith.constant 0 : index
    %13 = vector.load %arg5[%c0_32, %c0_33, %c1_34, %c0_35] : memref<1x18x18x4xf32, #tpu.memory_space<vmem>>, vector<1x16x16x4xf32>
    %14 = arith.truncf %13 : vector<1x16x16x4xf32> to vector<1x16x16x4xbf16>
    %c0_36 = arith.constant 0 : index
    %c0_37 = arith.constant 0 : index
    %c0_38 = arith.constant 0 : index
    %c4 = arith.constant 4 : index
    %15 = vector.load %arg6[%c0_36, %c0_37, %c0_38, %c4] : memref<1x16x16x36xbf16, #tpu.memory_space<vmem>>, vector<1x16x16x4xbf16>
    tpu.vector_store %arg6[%c0_36, %c0_37, %c0_38, %c4], %14 {strides = array<i32>} : memref<1x16x16x36xbf16, #tpu.memory_space<vmem>>, vector<1x16x16x4xbf16>,
    %c0_39 = arith.constant 0 : index
    %c0_40 = arith.constant 0 : index
    %c2 = arith.constant 2 : index
    %c0_41 = arith.constant 0 : index
    %16 = vector.load %arg5[%c0_39, %c0_40, %c2, %c0_41] : memref<1x18x18x4xf32, #tpu.memory_space<vmem>>, vector<1x16x16x4xf32>
    %17 = arith.truncf %16 : vector<1x16x16x4xf32> to vector<1x16x16x4xbf16>
    %c0_42 = arith.constant 0 : index
    %c0_43 = arith.constant 0 : index
    %c0_44 = arith.constant 0 : index
    %c8 = arith.constant 8 : index
    %18 = vector.load %arg6[%c0_42, %c0_43, %c0_44, %c8] : memref<1x16x16x36xbf16, #tpu.memory_space<vmem>>, vector<1x16x16x4xbf16>
    tpu.vector_store %arg6[%c0_42, %c0_43, %c0_44, %c8], %17 {strides = array<i32>} : memref<1x16x16x36xbf16, #tpu.memory_space<vmem>>, vector<1x16x16x4xbf16>,
    %c0_45 = arith.constant 0 : index
    %c1_46 = arith.constant 1 : index
    %c0_47 = arith.constant 0 : index
    %c0_48 = arith.constant 0 : index
    %19 = vector.load %arg5[%c0_45, %c1_46, %c0_47, %c0_48] : memref<1x18x18x4xf32, #tpu.memory_space<vmem>>, vector<1x16x16x4xf32>
    %20 = arith.truncf %19 : vector<1x16x16x4xf32> to vector<1x16x16x4xbf16>
    %c0_49 = arith.constant 0 : index
    %c0_50 = arith.constant 0 : index
    %c0_51 = arith.constant 0 : index
    %c12 = arith.constant 12 : index
    %21 = vector.load %arg6[%c0_49, %c0_50, %c0_51, %c12] : memref<1x16x16x36xbf16, #tpu.memory_space<vmem>>, vector<1x16x16x4xbf16>
    tpu.vector_store %arg6[%c0_49, %c0_50, %c0_51, %c12], %20 {strides = array<i32>} : memref<1x16x16x36xbf16, #tpu.memory_space<vmem>>, vector<1x16x16x4xbf16>,
    %c0_52 = arith.constant 0 : index
    %c1_53 = arith.constant 1 : index
    %c1_54 = arith.constant 1 : index
    %c0_55 = arith.constant 0 : index
    %22 = vector.load %arg5[%c0_52, %c1_53, %c1_54, %c0_55] : memref<1x18x18x4xf32, #tpu.memory_space<vmem>>, vector<1x16x16x4xf32>
    %23 = arith.truncf %22 : vector<1x16x16x4xf32> to vector<1x16x16x4xbf16>
    %c0_56 = arith.constant 0 : index
    %c0_57 = arith.constant 0 : index
    %c0_58 = arith.constant 0 : index
    %c16 = arith.constant 16 : index
    %24 = vector.load %arg6[%c0_56, %c0_57, %c0_58, %c16] : memref<1x16x16x36xbf16, #tpu.memory_space<vmem>>, vector<1x16x16x4xbf16>
    tpu.vector_store %arg6[%c0_56, %c0_57, %c0_58, %c16], %23 {strides = array<i32>} : memref<1x16x16x36xbf16, #tpu.memory_space<vmem>>, vector<1x16x16x4xbf16>,
    %c0_59 = arith.constant 0 : index
    %c1_60 = arith.constant 1 : index
    %c2_61 = arith.constant 2 : index
    %c0_62 = arith.constant 0 : index
    %25 = vector.load %arg5[%c0_59, %c1_60, %c2_61, %c0_62] : memref<1x18x18x4xf32, #tpu.memory_space<vmem>>, vector<1x16x16x4xf32>
    %26 = arith.truncf %25 : vector<1x16x16x4xf32> to vector<1x16x16x4xbf16>
    %c0_63 = arith.constant 0 : index
    %c0_64 = arith.constant 0 : index
    %c0_65 = arith.constant 0 : index
    %c20 = arith.constant 20 : index
    %27 = vector.load %arg6[%c0_63, %c0_64, %c0_65, %c20] : memref<1x16x16x36xbf16, #tpu.memory_space<vmem>>, vector<1x16x16x4xbf16>
    tpu.vector_store %arg6[%c0_63, %c0_64, %c0_65, %c20], %26 {strides = array<i32>} : memref<1x16x16x36xbf16, #tpu.memory_space<vmem>>, vector<1x16x16x4xbf16>,
    %c0_66 = arith.constant 0 : index
    %c2_67 = arith.constant 2 : index
    %c0_68 = arith.constant 0 : index
    %c0_69 = arith.constant 0 : index
    %28 = vector.load %arg5[%c0_66, %c2_67, %c0_68, %c0_69] : memref<1x18x18x4xf32, #tpu.memory_space<vmem>>, vector<1x16x16x4xf32>
    %29 = arith.truncf %28 : vector<1x16x16x4xf32> to vector<1x16x16x4xbf16>
    %c0_70 = arith.constant 0 : index
    %c0_71 = arith.constant 0 : index
    %c0_72 = arith.constant 0 : index
    %c24 = arith.constant 24 : index
    %30 = vector.load %arg6[%c0_70, %c0_71, %c0_72, %c24] : memref<1x16x16x36xbf16, #tpu.memory_space<vmem>>, vector<1x16x16x4xbf16>
    tpu.vector_store %arg6[%c0_70, %c0_71, %c0_72, %c24], %29 {strides = array<i32>} : memref<1x16x16x36xbf16, #tpu.memory_space<vmem>>, vector<1x16x16x4xbf16>,
    %c0_73 = arith.constant 0 : index
    %c2_74 = arith.constant 2 : index
    %c1_75 = arith.constant 1 : index
    %c0_76 = arith.constant 0 : index
    %31 = vector.load %arg5[%c0_73, %c2_74, %c1_75, %c0_76] : memref<1x18x18x4xf32, #tpu.memory_space<vmem>>, vector<1x16x16x4xf32>
    %32 = arith.truncf %31 : vector<1x16x16x4xf32> to vector<1x16x16x4xbf16>
    %c0_77 = arith.constant 0 : index
    %c0_78 = arith.constant 0 : index
    %c0_79 = arith.constant 0 : index
    %c28 = arith.constant 28 : index
    %33 = vector.load %arg6[%c0_77, %c0_78, %c0_79, %c28] : memref<1x16x16x36xbf16, #tpu.memory_space<vmem>>, vector<1x16x16x4xbf16>
    tpu.vector_store %arg6[%c0_77, %c0_78, %c0_79, %c28], %32 {strides = array<i32>} : memref<1x16x16x36xbf16, #tpu.memory_space<vmem>>, vector<1x16x16x4xbf16>,
    %c0_80 = arith.constant 0 : index
    %c2_81 = arith.constant 2 : index
    %c2_82 = arith.constant 2 : index
    %c0_83 = arith.constant 0 : index
    %34 = vector.load %arg5[%c0_80, %c2_81, %c2_82, %c0_83] : memref<1x18x18x4xf32, #tpu.memory_space<vmem>>, vector<1x16x16x4xf32>
    %35 = arith.truncf %34 : vector<1x16x16x4xf32> to vector<1x16x16x4xbf16>
    %c0_84 = arith.constant 0 : index
    %c0_85 = arith.constant 0 : index
    %c0_86 = arith.constant 0 : index
    %c32 = arith.constant 32 : index
    %36 = vector.load %arg6[%c0_84, %c0_85, %c0_86, %c32] : memref<1x16x16x36xbf16, #tpu.memory_space<vmem>>, vector<1x16x16x4xbf16>
    tpu.vector_store %arg6[%c0_84, %c0_85, %c0_86, %c32], %35 {strides = array<i32>} : memref<1x16x16x36xbf16, #tpu.memory_space<vmem>>, vector<1x16x16x4xbf16>,
    %c0_87 = arith.constant 0 : index
    %c0_88 = arith.constant 0 : index
    %c0_89 = arith.constant 0 : index
    %c0_90 = arith.constant 0 : index
    %37 = vector.load %arg6[%c0_87, %c0_88, %c0_89, %c0_90] : memref<1x16x16x36xbf16, #tpu.memory_space<vmem>>, vector<1x16x16x36xbf16>
    %38 = vector.shape_cast %37 : vector<1x16x16x36xbf16> to vector<256x36xbf16>
    %c0_91 = arith.constant 0 : index
    %c0_92 = arith.constant 0 : index
    %39 = vector.load %arg2[%c0_91, %c0_92] : memref<36x8xbf16, #tpu.memory_space<vmem>>, vector<36x8xbf16>
    %cst_93 = arith.constant dense<0.000000e+00> : vector<256x8xf32>
    %40 = tpu.matmul %38, %39, %cst_93 {dimension_numbers = #tpu.dot_dimension_numbers<[1], [0], [0], [1], [0, 0, 1, 1], [], []>} : vector<256x36xbf16>, vector<36x8xbf16>, vector<256x8xf32> -> vector<256x8xf32>
    %41 = vector.shape_cast %40 : vector<256x8xf32> to vector<1x16x16x8xf32>
    %c0_94 = arith.constant 0 : index
    %c0_95 = arith.constant 0 : index
    %c0_96 = arith.constant 0 : index
    %c0_97 = arith.constant 0 : index
    %42 = vector.load %arg3[%c0_94, %c0_95, %c0_96, %c0_97] : memref<1x16x16x8xf32, #tpu.memory_space<vmem>>, vector<1x16x16x8xf32>
    tpu.vector_store %arg3[%c0_94, %c0_95, %c0_96, %c0_97], %41 {strides = array<i32>} : memref<1x16x16x8xf32, #tpu.memory_space<vmem>>, vector<1x16x16x8xf32>,
    %cst_98 = arith.constant dense<0.000000e+00> : vector<8xf32>
    %43 = vector.multi_reduction <add>, %40, %cst_98 [0] : vector<256x8xf32> to vector<8xf32>
    %44 = vector.shape_cast %43 : vector<8xf32> to vector<1x8xf32>
    %45 = vector.shape_cast %44 : vector<1x8xf32> to vector<1x1x8xf32>
    %c0_99 = arith.constant 0 : index
    %c0_100 = arith.constant 0 : index
    %c0_101 = arith.constant 0 : index
    %46 = vector.load %arg4[%c0_99, %c0_100, %c0_101] : memref<1x2x8xf32, #tpu.memory_space<vmem>>, vector<1x1x8xf32>
    tpu.vector_store %arg4[%c0_99, %c0_100, %c0_101], %45 {strides = array<i32>} : memref<1x2x8xf32, #tpu.memory_space<vmem>>, vector<1x1x8xf32>,
    %47 = arith.mulf %40, %40 : vector<256x8xf32>
    %cst_102 = arith.constant dense<0.000000e+00> : vector<8xf32>
    %48 = vector.multi_reduction <add>, %47, %cst_102 [0] : vector<256x8xf32> to vector<8xf32>
    %49 = vector.shape_cast %48 : vector<8xf32> to vector<1x8xf32>
    %50 = vector.shape_cast %49 : vector<1x8xf32> to vector<1x1x8xf32>
    %c0_103 = arith.constant 0 : index
    %c1_104 = arith.constant 1 : index
    %c0_105 = arith.constant 0 : index
    %51 = vector.load %arg4[%c0_103, %c1_104, %c0_105] : memref<1x2x8xf32, #tpu.memory_space<vmem>>, vector<1x1x8xf32>
    tpu.vector_store %arg4[%c0_103, %c1_104, %c0_105], %50 {strides = array<i32>} : memref<1x2x8xf32, #tpu.memory_space<vmem>>, vector<1x1x8xf32>,
    return
  }
  func.func @transform_0(%arg0: i32) -> (i32, i32, i32, i32) {
    %c0_i32 = arith.constant 0 : i32
    %c0_i32_0 = arith.constant 0 : i32
    %c0_i32_1 = arith.constant 0 : i32
    %c0_i32_2 = arith.constant 0 : i32
    return %arg0, %c0_i32, %c0_i32_0, %c0_i32_1 : i32, i32, i32, i32
  }
  func.func @transform_1(%arg0: i32) -> (i32, i32) {
    %c0_i32 = arith.constant 0 : i32
    %c0_i32_0 = arith.constant 0 : i32
    %c0_i32_1 = arith.constant 0 : i32
    return %c0_i32, %c0_i32_0 : i32, i32
  }
  func.func @transform_2(%arg0: i32) -> (i32, i32, i32, i32) {
    %c0_i32 = arith.constant 0 : i32
    %c0_i32_0 = arith.constant 0 : i32
    %c0_i32_1 = arith.constant 0 : i32
    %c0_i32_2 = arith.constant 0 : i32
    return %arg0, %c0_i32, %c0_i32_0, %c0_i32_1 : i32, i32, i32, i32
  }
  func.func @transform_3(%arg0: i32) -> (i32, i32, i32) {
    %c0_i32 = arith.constant 0 : i32
    %c0_i32_0 = arith.constant 0 : i32
    %c0_i32_1 = arith.constant 0 : i32
    return %arg0, %c0_i32, %c0_i32_0 : i32, i32, i32
  }
}

module attributes {stable_mosaic.version = 11 : i64} {
  func.func @_bn_act_pool_kernel(%arg0: i32, %arg1: memref<1x16x16x8xf32, #tpu.memory_space<vmem>>, %arg2: memref<1x8xf32, #tpu.memory_space<vmem>>, %arg3: memref<1x8xf32, #tpu.memory_space<vmem>>, %arg4: memref<1x8x8x8xf32, #tpu.memory_space<vmem>>, %arg5: memref<1x8x16x8xf32, #tpu.memory_space<vmem>>) attributes {dimension_semantics = [#tpu.dimension_semantics<parallel>], iteration_bounds = array<i64: 2>, scalar_prefetch = 0 : i64, scratch_operands = 1 : i64, tpu.core_type = #tpu.core_type<tc>, window_params = [{transform_indices = @transform_0, window_bounds = array<i64: 1, 16, 16, 8>}, {pipeline_mode = #tpu.pipeline_mode<synchronous>, transform_indices = @transform_1, window_bounds = array<i64: 1, 8>}, {pipeline_mode = #tpu.pipeline_mode<synchronous>, transform_indices = @transform_2, window_bounds = array<i64: 1, 8>}, {transform_indices = @transform_3, window_bounds = array<i64: 1, 8, 8, 8>}]} {
    %c0 = arith.constant 0 : index
    %c0_0 = arith.constant 0 : index
    %c0_1 = arith.constant 0 : index
    %c0_2 = arith.constant 0 : index
    %0 = vector.load %arg1[%c0, %c0_0, %c0_1, %c0_2] : memref<1x16x16x8xf32, #tpu.memory_space<vmem>>, vector<1x16x16x8xf32>
    %c0_3 = arith.constant 0 : index
    %c0_4 = arith.constant 0 : index
    %1 = vector.load %arg2[%c0_3, %c0_4] : memref<1x8xf32, #tpu.memory_space<vmem>>, vector<1x8xf32>
    %2 = vector.shape_cast %1 : vector<1x8xf32> to vector<1x1x1x8xf32>
    %3 = vector.broadcast %2 : vector<1x1x1x8xf32> to vector<1x16x16x8xf32>
    %4 = arith.mulf %0, %3 : vector<1x16x16x8xf32>
    %c0_5 = arith.constant 0 : index
    %c0_6 = arith.constant 0 : index
    %5 = vector.load %arg3[%c0_5, %c0_6] : memref<1x8xf32, #tpu.memory_space<vmem>>, vector<1x8xf32>
    %6 = vector.shape_cast %5 : vector<1x8xf32> to vector<1x1x1x8xf32>
    %7 = vector.broadcast %6 : vector<1x1x1x8xf32> to vector<1x16x16x8xf32>
    %8 = arith.addf %4, %7 : vector<1x16x16x8xf32>
    %cst = arith.constant 0.000000e+00 : f32
    %9 = vector.broadcast %cst : f32 to vector<1x16x16x8xf32>
    %10 = arith.cmpf oge, %8, %9 : vector<1x16x16x8xf32>
    %cst_7 = arith.constant 0.00999999977 : f32
    %11 = vector.broadcast %cst_7 : f32 to vector<1x16x16x8xf32>
    %12 = arith.mulf %11, %8 : vector<1x16x16x8xf32>
    %13 = arith.select %10, %8, %12 : vector<1x16x16x8xi1>, vector<1x16x16x8xf32>
    %14 = vector.shape_cast %13 : vector<1x16x16x8xf32> to vector<1x8x2x16x8xf32>
    %15 = vector.extract_strided_slice %14 {offsets = [0, 0, 0, 0, 0], sizes = [1, 8, 1, 16, 8], strides = [1, 1, 1, 1, 1]} : vector<1x8x2x16x8xf32> to vector<1x8x1x16x8xf32>
    %16 = vector.shape_cast %15 : vector<1x8x1x16x8xf32> to vector<1x8x16x8xf32>
    %17 = vector.extract_strided_slice %14 {offsets = [0, 0, 1, 0, 0], sizes = [1, 8, 1, 16, 8], strides = [1, 1, 1, 1, 1]} : vector<1x8x2x16x8xf32> to vector<1x8x1x16x8xf32>
    %18 = vector.shape_cast %17 : vector<1x8x1x16x8xf32> to vector<1x8x16x8xf32>
    %19 = arith.maximumf %16, %18 : vector<1x8x16x8xf32>
    %c0_8 = arith.constant 0 : index
    %c0_9 = arith.constant 0 : index
    %c0_10 = arith.constant 0 : index
    %c0_11 = arith.constant 0 : index
    %20 = vector.load %arg5[%c0_8, %c0_9, %c0_10, %c0_11] : memref<1x8x16x8xf32, #tpu.memory_space<vmem>>, vector<1x8x16x8xf32>
    tpu.vector_store %arg5[%c0_8, %c0_9, %c0_10, %c0_11], %19 {strides = array<i32>} : memref<1x8x16x8xf32, #tpu.memory_space<vmem>>, vector<1x8x16x8xf32>,
    %c0_12 = arith.constant 0 : index
    %c0_13 = arith.constant 0 : index
    %c0_14 = arith.constant 0 : index
    %c0_15 = arith.constant 0 : index
    %21 = tpu.strided_load %arg5[%c0_12, %c0_13, %c0_14, %c0_15] {strides = array<i32: 1, 1, 2, 1>} : memref<1x8x16x8xf32, #tpu.memory_space<vmem>>, vector<1x8x8x8xf32>
    %c0_16 = arith.constant 0 : index
    %c0_17 = arith.constant 0 : index
    %c1 = arith.constant 1 : index
    %c0_18 = arith.constant 0 : index
    %22 = tpu.strided_load %arg5[%c0_16, %c0_17, %c1, %c0_18] {strides = array<i32: 1, 1, 2, 1>} : memref<1x8x16x8xf32, #tpu.memory_space<vmem>>, vector<1x8x8x8xf32>
    %23 = arith.maximumf %21, %22 : vector<1x8x8x8xf32>
    %c0_19 = arith.constant 0 : index
    %c0_20 = arith.constant 0 : index
    %c0_21 = arith.constant 0 : index
    %c0_22 = arith.constant 0 : index
    %24 = vector.load %arg4[%c0_19, %c0_20, %c0_21, %c0_22] : memref<1x8x8x8xf32, #tpu.memory_space<vmem>>, vector<1x8x8x8xf32>
    tpu.vector_store %arg4[%c0_19, %c0_20, %c0_21, %c0_22], %23 {strides = array<i32>} : memref<1x8x8x8xf32, #tpu.memory_space<vmem>>, vector<1x8x8x8xf32>,
    return
  }
  func.func @transform_0(%arg0: i32) -> (i32, i32, i32, i32) {
    %c0_i32 = arith.constant 0 : i32
    %c0_i32_0 = arith.constant 0 : i32
    %c0_i32_1 = arith.constant 0 : i32
    %c0_i32_2 = arith.constant 0 : i32
    return %arg0, %c0_i32, %c0_i32_0, %c0_i32_1 : i32, i32, i32, i32
  }
  func.func @transform_1(%arg0: i32) -> (i32, i32) {
    %c0_i32 = arith.constant 0 : i32
    %c0_i32_0 = arith.constant 0 : i32
    %c0_i32_1 = arith.constant 0 : i32
    return %c0_i32, %c0_i32_0 : i32, i32
  }
  func.func @transform_2(%arg0: i32) -> (i32, i32) {
    %c0_i32 = arith.constant 0 : i32
    %c0_i32_0 = arith.constant 0 : i32
    %c0_i32_1 = arith.constant 0 : i32
    return %c0_i32, %c0_i32_0 : i32, i32
  }
  func.func @transform_3(%arg0: i32) -> (i32, i32, i32, i32) {
    %c0_i32 = arith.constant 0 : i32
    %c0_i32_0 = arith.constant 0 : i32
    %c0_i32_1 = arith.constant 0 : i32
    %c0_i32_2 = arith.constant 0 : i32
    return %arg0, %c0_i32, %c0_i32_0, %c0_i32_1 : i32, i32, i32, i32
  }
}

</mosaic_0001>

<llo_original>
// kernel: basic_conv_block.5
$region0: #{basic_conv_block.5}
  #allocation0 [shape = 'u32[]', space=smem, size = 0x4, offset = 0x4, fixed_abs, tag = 'smem constant byte address 0x4 - core index']
  #allocation1 [shape = 'u32[144,128]{1,0:T(1,128)}', space=vmem, size = 0x12000, scoped, tag = 'internal scratch']
  #allocation2 [shape = 'f32[1,8,16,8]{3,2,1,0:T(8,128)}', space=vmem, size = 0x10000, scoped, tag = 'scratch operand']
  %s0 = inlined_call_operand.vmem [shape: f32[2,16,16,8], index: 0, kind: input, shape index: {}]
  %s1 = inlined_call_operand.vmem [shape: f32[1,8], index: 1, kind: input, shape index: {}]
  %s2 = inlined_call_operand.vmem [shape: f32[1,8], index: 2, kind: input, shape index: {}]
  %s3 = inlined_call_operand.vmem [shape: f32[2,8,8,8], index: 3, kind: output, shape index: {}]
  %s4 = sld [smem:[#allocation0]]
  $region45: #{basic_conv_block.5} parent=0
    _
  %s6 = ssub.s32 1, %s4
  %s7 = scalar_select 0, %s6, %s4
  loop: start=0, step=1, limit=4
  $region2: #{basic_conv_block.5} parent=0 // loop_pre_header
    _
  $region3: #{basic_conv_block.5} parent=0 // loop_header
    %s9 = sphi 0, %s13
    %p10 = scmp.ge.s32.totalorder %s9, 4
    %s19 = sphi 0, %s21
    %s22 = sphi 0, %s19
    %s23 = sphi 0, %s22
    %s39 = sphi 0, %s23
    %s43 = sphi 0, %s43
    %s45 = sphi 0, %s43
    %s46 = sphi 0, %s45
    %s60 = sphi 0, %s46
    %s64 = sphi 0, %s64
    %s66 = sphi 0, %s64
    %s67 = sphi 0, %s66
    %s81 = sphi 0, %s67
    %s87 = sphi 0, %s89
    %s90 = sphi 0, %s87
    %s91 = sphi 0, %s90
    %s107 = sphi 0, %s91
  $region4: #{basic_conv_block.5} parent=0 // loop_header_branch
    %12 = sbr.rel (%p10) target = $region8
  $region5: #{basic_conv_block.5} parent=0 // loop_body
    %s14 = ssub.s32 %s9, 1
    %s15 = ssub.s32 %s9, 2
    %s16 = sadd.s32 %s9, 1
    %s17 = ssub.s32 %s9, %s16
    %p18 = scmp.eq.s32.totalorder %s17, 0
    %s20 = sadd.s32 %s19, 1
    %s21 = scalar_select %p18, %s19, %s20
    %p24 = pneg %p18
    %p25 = scmp.eq.s32.totalorder %s9, 1
    %p26 = por %p24, %p25
    %p27 = scmp.ne.s32.totalorder %s19, %s22
    %p28 = scmp.eq.s32.totalorder %s9, 0
    %p29 = por %p27, %p28
    %p30 = scmp.ne.s32.totalorder %s19, %s22
    %p31 = scmp.eq.s32.totalorder %s14, 1
    %p32 = por %p30, %p31
    %p33 = scmp.ne.s32.totalorder %s22, %s23
    %p34 = scmp.eq.s32.totalorder %s14, 0
    %p35 = por %p33, %p34
    %p36 = scmp.ne.s32.totalorder %s22, %s23
    %p37 = scmp.eq.s32.totalorder %s15, 1
    %p38 = por %p36, %p37
    %p40 = scmp.ne.s32.totalorder %s23, %s39
    %p41 = scmp.eq.s32.totalorder %s15, 0
    %p42 = por %p40, %p41
    %s44 = sadd.s32 %s43, 1
    %p47 = scmp.eq.s32.totalorder %s9, 1
    %p48 = scmp.ne.s32.totalorder %s43, %s45
    %p49 = scmp.eq.s32.totalorder %s9, 0
    %p50 = por %p48, %p49
    %p51 = scmp.ne.s32.totalorder %s43, %s45
    %p52 = scmp.eq.s32.totalorder %s14, 1
    %p53 = por %p51, %p52
    %p54 = scmp.ne.s32.totalorder %s45, %s46
    %p55 = scmp.eq.s32.totalorder %s14, 0
    %p56 = por %p54, %p55
    %p57 = scmp.ne.s32.totalorder %s45, %s46
    %p58 = scmp.eq.s32.totalorder %s15, 1
    %p59 = por %p57, %p58
    %p61 = scmp.ne.s32.totalorder %s46, %s60
    %p62 = scmp.eq.s32.totalorder %s15, 0
    %p63 = por %p61, %p62
    %s65 = sadd.s32 %s64, 1
    %p68 = scmp.eq.s32.totalorder %s9, 1
    %p69 = scmp.ne.s32.totalorder %s64, %s66
    %p70 = scmp.eq.s32.totalorder %s9, 0
    %p71 = por %p69, %p70
    %p72 = scmp.ne.s32.totalorder %s64, %s66
    %p73 = scmp.eq.s32.totalorder %s14, 1
    %p74 = por %p72, %p73
    %p75 = scmp.ne.s32.totalorder %s66, %s67
    %p76 = scmp.eq.s32.totalorder %s14, 0
    %p77 = por %p75, %p76
    %p78 = scmp.ne.s32.totalorder %s66, %s67
    %p79 = scmp.eq.s32.totalorder %s15, 1
    %p80 = por %p78, %p79
    %p82 = scmp.ne.s32.totalorder %s67, %s81
    %p83 = scmp.eq.s32.totalorder %s15, 0
    %p84 = por %p82, %p83
    %s85 = ssub.s32 %s9, %s16
    %p86 = scmp.eq.s32.totalorder %s85, 0
    %s88 = sadd.s32 %s87, 1
    %s89 = scalar_select %p86, %s87, %s88
    %p92 = pneg %p86
    %p93 = scmp.eq.s32.totalorder %s9, 1
    %p94 = por %p92, %p93
    %p95 = scmp.ne.s32.totalorder %s87, %s90
    %p96 = scmp.eq.s32.totalorder %s9, 0
    %p97 = por %p95, %p96
    %p98 = scmp.ne.s32.totalorder %s87, %s90
    %p99 = scmp.eq.s32.totalorder %s14, 1
    %p100 = por %p98, %p99
    %p101 = scmp.ne.s32.totalorder %s90, %s91
    %p102 = scmp.eq.s32.totalorder %s14, 0
    %p103 = por %p101, %p102
    %p104 = scmp.ne.s32.totalorder %s90, %s91
    %p105 = scmp.eq.s32.totalorder %s15, 1
    %p106 = por %p104, %p105
    %p108 = scmp.ne.s32.totalorder %s91, %s107
    %p109 = scmp.eq.s32.totalorder %s15, 0
    %p110 = por %p108, %p109
    %p111 = scmp.le.s32.totalorder 1, %s9
    %p112 = scmp.lt.s32.totalorder %s9, 3
    %p113 = pnand %p111, %p112
    %p114 = pneg %p113
    // Predicated region
    $region9: #{basic_conv_block.5} parent=5 // pred_check
      _
    $region10: #{basic_conv_block.5} parent=5 // pred_check_branch
      %116 = sbr.rel (%p113) target = $region12
    $region11: #{basic_conv_block.5} parent=5 // pred_region
      %s117 = ssub.s32 %s9, 1
      // Predicated region
      $region13: #{basic_conv_block.5} parent=11 // pred_check
        %p118 = pneg %p56
      $region14: #{basic_conv_block.5} parent=11 // pred_check_branch
        %120 = sbr.rel (%p118) target = $region16
      $region15: #{basic_conv_block.5} parent=11 // pred_region
        _
      $region16: #{basic_conv_block.5} parent=11 // pred_fallthru
        _
      // Predicated region
      $region17: #{basic_conv_block.5} parent=11 // pred_check
        %p121 = pneg %p77
      $region18: #{basic_conv_block.5} parent=11 // pred_check_branch
        %123 = sbr.rel (%p121) target = $region20
      $region19: #{basic_conv_block.5} parent=11 // pred_region
        _
      $region20: #{basic_conv_block.5} parent=11 // pred_fallthru
        _
    $region12: #{basic_conv_block.5} parent=5 // pred_fallthru
      _
    %p124 = scmp.lt.s32.totalorder %s9, 2
    // Predicated region
    $region21: #{basic_conv_block.5} parent=5 // pred_check
      %p125 = pneg %p124
    $region22: #{basic_conv_block.5} parent=5 // pred_check_branch
      %127 = sbr.rel (%p125) target = $region24
    $region23: #{basic_conv_block.5} parent=5 // pred_region
      // Predicated region
      $region25: #{basic_conv_block.5} parent=23 // pred_check
        %p128 = pneg %p29
      $region26: #{basic_conv_block.5} parent=23 // pred_check_branch
        %130 = sbr.rel (%p128) target = $region28
      $region27: #{basic_conv_block.5} parent=23 // pred_region
        %p131 = scmp.lt.s32.totalorder %s9, 1
        %s132 = scalar_select %p131, %s9, 1
        %s133 = smul.addr %s132, 32
        %s134 = smul.addr %s133, 8
        %s135 = scalar_lea.vmem %s0, %s134
      $region28: #{basic_conv_block.5} parent=23 // pred_fallthru
        _
    $region24: #{basic_conv_block.5} parent=5 // pred_fallthru
      _
    %p136 = scmp.le.s32.totalorder 1, %s9
    %p137 = scmp.lt.s32.totalorder %s9, 3
    %p138 = pnand %p136, %p137
    %p139 = pneg %p138
    // Predicated region
    $region29: #{basic_conv_block.5} parent=5 // pred_check
      _
    $region30: #{basic_conv_block.5} parent=5 // pred_check_branch
      %141 = sbr.rel (%p138) target = $region32
    $region31: #{basic_conv_block.5} parent=5 // pred_region
      %s142 = ssub.s32 %s9, 1
      %p143 = scmp.lt.s32.totalorder %s14, 1
      %s144 = scalar_select %p143, %s14, 1
      %s145 = smul.addr %s144, 32
      %s146 = smul.addr %s145, 8
      %s147 = scalar_lea.vmem %s0, %s146
      %p148 = pneg %p35
      %p149 = pneg %p32
      %p150 = pneg %p56
      %p151 = pneg %p53
      %p152 = pneg %p77
      %p153 = pneg %p74
      %p154 = pneg %p103
      %p155 = pneg %p100
      %p156 = scmp.lt.s32.totalorder %s14, 1
      %s157 = scalar_select %p156, %s14, 1
      %s158 = smul.addr %s157, 8
      %s159 = smul.addr %s158, 8
      %s160 = scalar_lea.vmem %s3, %s159
      %p161 = scmp.lt.s32.totalorder %s14, 1
      %s162 = scalar_select %p161, %s14, 1
      %s163 = smul.addr %s162, 32
      %s164 = smul.addr %s163, 8
      %s165 = scalar_lea.vmem %s0, %s164
      %p166 = scmp.lt.s32.totalorder %s14, 1
      %s167 = scalar_select %p166, %s14, 1
      %s168 = smul.addr %s167, 8
      %s169 = smul.addr %s168, 8
      %s170 = scalar_lea.vmem %s3, %s169
      %v171 = vld [vmem:[%s165] sm:$0xff]
      %v172 = vld [vmem:[%s165 + $0x8] sm:$0xff]
      %v173 = vld [vmem:[%s165 + $0x10] sm:$0xff]
      %v174 = vld [vmem:[%s165 + $0x18] sm:$0xff]
      %v175 = vld [vmem:[%s165 + $0x20] sm:$0xff]
      %v176 = vld [vmem:[%s165 + $0x28] sm:$0xff]
      %v177 = vld [vmem:[%s165 + $0x30] sm:$0xff]
      %v178 = vld [vmem:[%s165 + $0x38] sm:$0xff]
      %v179 = vld [vmem:[%s165 + $0x40] sm:$0xff]
      %v180 = vld [vmem:[%s165 + $0x48] sm:$0xff]
      %v181 = vld [vmem:[%s165 + $0x50] sm:$0xff]
      %v182 = vld [vmem:[%s165 + $0x58] sm:$0xff]
      %v183 = vld [vmem:[%s165 + $0x60] sm:$0xff]
      %v184 = vld [vmem:[%s165 + $0x68] sm:$0xff]
      %v185 = vld [vmem:[%s165 + $0x70] sm:$0xff]
      %v186 = vld [vmem:[%s165 + $0x78] sm:$0xff]
      %v187 = vld [vmem:[%s165 + $0x80] sm:$0xff]
      %v188 = vld [vmem:[%s165 + $0x88] sm:$0xff]
      %v189 = vld [vmem:[%s165 + $0x90] sm:$0xff]
      %v190 = vld [vmem:[%s165 + $0x98] sm:$0xff]
      %v191 = vld [vmem:[%s165 + $0xa0] sm:$0xff]
      %v192 = vld [vmem:[%s165 + $0xa8] sm:$0xff]
      %v193 = vld [vmem:[%s165 + $0xb0] sm:$0xff]
      %v194 = vld [vmem:[%s165 + $0xb8] sm:$0xff]
      %v195 = vld [vmem:[%s165 + $0xc0] sm:$0xff]
      %v196 = vld [vmem:[%s165 + $0xc8] sm:$0xff]
      %v197 = vld [vmem:[%s165 + $0xd0] sm:$0xff]
      %v198 = vld [vmem:[%s165 + $0xd8] sm:$0xff]
      %v199 = vld [vmem:[%s165 + $0xe0] sm:$0xff]
      %v200 = vld [vmem:[%s165 + $0xe8] sm:$0xff]
      %v201 = vld [vmem:[%s165 + $0xf0] sm:$0xff]
      %v202 = vld [vmem:[%s165 + $0xf8] sm:$0xff]
      %v203 = vld [vmem:[%s1] sm:$0x1]
      %v205 = vlaneseq
      %v206 = vshrl.u32 %v205, 7
      %v207 = vsub.s32 0, %v206
      %v208 = vrot.slane %v203, %v207
      %v210 = vmul.f32 %v171, %v208
      %v211 = vmul.f32 %v172, %v208
      %v212 = vmul.f32 %v173, %v208
      %v213 = vmul.f32 %v174, %v208
      %v214 = vmul.f32 %v175, %v208
      %v215 = vmul.f32 %v176, %v208
      %v216 = vmul.f32 %v177, %v208
      %v217 = vmul.f32 %v178, %v208
      %v218 = vmul.f32 %v179, %v208
      %v219 = vmul.f32 %v180, %v208
      %v220 = vmul.f32 %v181, %v208
      %v221 = vmul.f32 %v182, %v208
      %v222 = vmul.f32 %v183, %v208
      %v223 = vmul.f32 %v184, %v208
      %v224 = vmul.f32 %v185, %v208
      %v225 = vmul.f32 %v186, %v208
      %v226 = vmul.f32 %v187, %v208
      %v227 = vmul.f32 %v188, %v208
      %v228 = vmul.f32 %v189, %v208
      %v229 = vmul.f32 %v190, %v208
      %v230 = vmul.f32 %v191, %v208
      %v231 = vmul.f32 %v192, %v208
      %v232 = vmul.f32 %v193, %v208
      %v233 = vmul.f32 %v194, %v208
      %v234 = vmul.f32 %v195, %v208
      %v235 = vmul.f32 %v196, %v208
      %v236 = vmul.f32 %v197, %v208
      %v237 = vmul.f32 %v198, %v208
      %v238 = vmul.f32 %v199, %v208
      %v239 = vmul.f32 %v200, %v208
      %v240 = vmul.f32 %v201, %v208
      %v241 = vmul.f32 %v202, %v208
      %v242 = vld [vmem:[%s2] sm:$0x1]
      %v244 = vlaneseq
      %v245 = vshrl.u32 %v244, 7
      %v246 = vsub.s32 0, %v245
      %v247 = vrot.slane %v242, %v246
      %v249 = vadd.f32 %v210, %v247
      %v250 = vadd.f32 %v211, %v247
      %v251 = vadd.f32 %v212, %v247
      %v252 = vadd.f32 %v213, %v247
      %v253 = vadd.f32 %v214, %v247
      %v254 = vadd.f32 %v215, %v247
      %v255 = vadd.f32 %v216, %v247
      %v256 = vadd.f32 %v217, %v247
      %v257 = vadd.f32 %v218, %v247
      %v258 = vadd.f32 %v219, %v247
      %v259 = vadd.f32 %v220, %v247
      %v260 = vadd.f32 %v221, %v247
      %v261 = vadd.f32 %v222, %v247
      %v262 = vadd.f32 %v223, %v247
      %v263 = vadd.f32 %v224, %v247
      %v264 = vadd.f32 %v225, %v247
      %v265 = vadd.f32 %v226, %v247
      %v266 = vadd.f32 %v227, %v247
      %v267 = vadd.f32 %v228, %v247
      %v268 = vadd.f32 %v229, %v247
      %v269 = vadd.f32 %v230, %v247
      %v270 = vadd.f32 %v231, %v247
      %v271 = vadd.f32 %v232, %v247
      %v272 = vadd.f32 %v233, %v247
      %v273 = vadd.f32 %v234, %v247
      %v274 = vadd.f32 %v235, %v247
      %v275 = vadd.f32 %v236, %v247
      %v276 = vadd.f32 %v237, %v247
      %v277 = vadd.f32 %v238, %v247
      %v278 = vadd.f32 %v239, %v247
      %v279 = vadd.f32 %v240, %v247
      %v280 = vadd.f32 %v241, %v247
      %vm281 = vcmp.ge.f32.partialorder %v249, 0.0
      %vm282 = vcmp.ge.f32.partialorder %v250, 0.0
      %vm283 = vcmp.ge.f32.partialorder %v251, 0.0
      %vm284 = vcmp.ge.f32.partialorder %v252, 0.0
      %vm285 = vcmp.ge.f32.partialorder %v253, 0.0
      %vm286 = vcmp.ge.f32.partialorder %v254, 0.0
      %vm287 = vcmp.ge.f32.partialorder %v255, 0.0
      %vm288 = vcmp.ge.f32.partialorder %v256, 0.0
      %vm289 = vcmp.ge.f32.partialorder %v257, 0.0
      %vm290 = vcmp.ge.f32.partialorder %v258, 0.0
      %vm291 = vcmp.ge.f32.partialorder %v259, 0.0
      %vm292 = vcmp.ge.f32.partialorder %v260, 0.0
      %vm293 = vcmp.ge.f32.partialorder %v261, 0.0
      %vm294 = vcmp.ge.f32.partialorder %v262, 0.0
      %vm295 = vcmp.ge.f32.partialorder %v263, 0.0
      %vm296 = vcmp.ge.f32.partialorder %v264, 0.0
      %vm297 = vcmp.ge.f32.partialorder %v265, 0.0
      %vm298 = vcmp.ge.f32.partialorder %v266, 0.0
      %vm299 = vcmp.ge.f32.partialorder %v267, 0.0
      %vm300 = vcmp.ge.f32.partialorder %v268, 0.0
      %vm301 = vcmp.ge.f32.partialorder %v269, 0.0
      %vm302 = vcmp.ge.f32.partialorder %v270, 0.0
      %vm303 = vcmp.ge.f32.partialorder %v271, 0.0
      %vm304 = vcmp.ge.f32.partialorder %v272, 0.0
      %vm305 = vcmp.ge.f32.partialorder %v273, 0.0
      %vm306 = vcmp.ge.f32.partialorder %v274, 0.0
      %vm307 = vcmp.ge.f32.partialorder %v275, 0.0
      %vm308 = vcmp.ge.f32.partialorder %v276, 0.0
      %vm309 = vcmp.ge.f32.partialorder %v277, 0.0
      %vm310 = vcmp.ge.f32.partialorder %v278, 0.0
      %vm311 = vcmp.ge.f32.partialorder %v279, 0.0
      %vm312 = vcmp.ge.f32.partialorder %v280, 0.0
      %v313 = vmul.f32 %v249, 0.01
      %v314 = vmul.f32 %v250, 0.01
      %v315 = vmul.f32 %v251, 0.01
      %v316 = vmul.f32 %v252, 0.01
      %v317 = vmul.f32 %v253, 0.01
      %v318 = vmul.f32 %v254, 0.01
      %v319 = vmul.f32 %v255, 0.01
      %v320 = vmul.f32 %v256, 0.01
      %v321 = vmul.f32 %v257, 0.01
      %v322 = vmul.f32 %v258, 0.01
      %v323 = vmul.f32 %v259, 0.01
      %v324 = vmul.f32 %v260, 0.01
      %v325 = vmul.f32 %v261, 0.01
      %v326 = vmul.f32 %v262, 0.01
      %v327 = vmul.f32 %v263, 0.01
      %v328 = vmul.f32 %v264, 0.01
      %v329 = vmul.f32 %v265, 0.01
      %v330 = vmul.f32 %v266, 0.01
      %v331 = vmul.f32 %v267, 0.01
      %v332 = vmul.f32 %v268, 0.01
      %v333 = vmul.f32 %v269, 0.01
      %v334 = vmul.f32 %v270, 0.01
      %v335 = vmul.f32 %v271, 0.01
      %v336 = vmul.f32 %v272, 0.01
      %v337 = vmul.f32 %v273, 0.01
      %v338 = vmul.f32 %v274, 0.01
      %v339 = vmul.f32 %v275, 0.01
      %v340 = vmul.f32 %v276, 0.01
      %v341 = vmul.f32 %v277, 0.01
      %v342 = vmul.f32 %v278, 0.01
      %v343 = vmul.f32 %v279, 0.01
      %v344 = vmul.f32 %v280, 0.01
      %v345 = vsel %vm281, %v249, %v313
      %v346 = vsel %vm282, %v250, %v314
      %v347 = vsel %vm283, %v251, %v315
      %v348 = vsel %vm284, %v252, %v316
      %v349 = vsel %vm285, %v253, %v317
      %v350 = vsel %vm286, %v254, %v318
      %v351 = vsel %vm287, %v255, %v319
      %v352 = vsel %vm288, %v256, %v320
      %v353 = vsel %vm289, %v257, %v321
      %v354 = vsel %vm290, %v258, %v322
      %v355 = vsel %vm291, %v259, %v323
      %v356 = vsel %vm292, %v260, %v324
      %v357 = vsel %vm293, %v261, %v325
      %v358 = vsel %vm294, %v262, %v326
      %v359 = vsel %vm295, %v263, %v327
      %v360 = vsel %vm296, %v264, %v328
      %v361 = vsel %vm297, %v265, %v329
      %v362 = vsel %vm298, %v266, %v330
      %v363 = vsel %vm299, %v267, %v331
      %v364 = vsel %vm300, %v268, %v332
      %v365 = vsel %vm301, %v269, %v333
      %v366 = vsel %vm302, %v270, %v334
      %v367 = vsel %vm303, %v271, %v335
      %v368 = vsel %vm304, %v272, %v336
      %v369 = vsel %vm305, %v273, %v337
      %v370 = vsel %vm306, %v274, %v338
      %v371 = vsel %vm307, %v275, %v339
      %v372 = vsel %vm308, %v276, %v340
      %v373 = vsel %vm309, %v277, %v341
      %v374 = vsel %vm310, %v278, %v342
      %v375 = vsel %vm311, %v279, %v343
      %v376 = vsel %vm312, %v280, %v344
      %v377 = vmax.f32 %v345, %v347
      %v378 = vmax.f32 %v346, %v348
      %v379 = vmax.f32 %v349, %v351
      %v380 = vmax.f32 %v350, %v352
      %v381 = vmax.f32 %v353, %v355
      %v382 = vmax.f32 %v354, %v356
      %v383 = vmax.f32 %v357, %v359
      %v384 = vmax.f32 %v358, %v360
      %v385 = vmax.f32 %v361, %v363
      %v386 = vmax.f32 %v362, %v364
      %v387 = vmax.f32 %v365, %v367
      %v388 = vmax.f32 %v366, %v368
      %v389 = vmax.f32 %v369, %v371
      %v390 = vmax.f32 %v370, %v372
      %v391 = vmax.f32 %v373, %v375
      %v392 = vmax.f32 %v374, %v376
      %vm393 = vcmask 64512
      %394 = vst.msk [vmem:[#allocation2] sm:$0xff] %vm393, %v377
      %395 = vst.msk [vmem:[#allocation2 + $0x8] sm:$0xff] %vm393, %v378
      %396 = vst.msk [vmem:[#allocation2 + $0x10] sm:$0xff] %vm393, %v379
      %397 = vst.msk [vmem:[#allocation2 + $0x18] sm:$0xff] %vm393, %v380
      %398 = vst.msk [vmem:[#allocation2 + $0x20] sm:$0xff] %vm393, %v381
      %399 = vst.msk [vmem:[#allocation2 + $0x28] sm:$0xff] %vm393, %v382
      %400 = vst.msk [vmem:[#allocation2 + $0x30] sm:$0xff] %vm393, %v383
      %401 = vst.msk [vmem:[#allocation2 + $0x38] sm:$0xff] %vm393, %v384
      %402 = vst.msk [vmem:[#allocation2 + $0x40] sm:$0xff] %vm393, %v385
      %403 = vst.msk [vmem:[#allocation2 + $0x48] sm:$0xff] %vm393, %v386
      %404 = vst.msk [vmem:[#allocation2 + $0x50] sm:$0xff] %vm393, %v387
      %405 = vst.msk [vmem:[#allocation2 + $0x58] sm:$0xff] %vm393, %v388
      %406 = vst.msk [vmem:[#allocation2 + $0x60] sm:$0xff] %vm393, %v389
      %407 = vst.msk [vmem:[#allocation2 + $0x68] sm:$0xff] %vm393, %v390
      %408 = vst.msk [vmem:[#allocation2 + $0x70] sm:$0xff] %vm393, %v391
      %409 = vst.msk [vmem:[#allocation2 + $0x78] sm:$0xff] %vm393, %v392
      %v410 = vld [vmem:[#allocation2] ss:$2 sm:$0xff]
      %s411 = scalar_lea.vmem [#allocation2], 16
      %v412 = vld [vmem:[%s411] ss:$2 sm:$0xff]
      %s413 = scalar_lea.vmem [#allocation2], 32
      %v414 = vld [vmem:[%s413] ss:$2 sm:$0xff]
      %s415 = scalar_lea.vmem [#allocation2], 48
      %v416 = vld [vmem:[%s415] ss:$2 sm:$0xff]
      %s417 = scalar_lea.vmem [#allocation2], 64
      %v418 = vld [vmem:[%s417] ss:$2 sm:$0xff]
      %s419 = scalar_lea.vmem [#allocation2], 80
      %v420 = vld [vmem:[%s419] ss:$2 sm:$0xff]
      %s421 = scalar_lea.vmem [#allocation2], 96
      %v422 = vld [vmem:[%s421] ss:$2 sm:$0xff]
      %s423 = scalar_lea.vmem [#allocation2], 112
      %v424 = vld [vmem:[%s423] ss:$2 sm:$0xff]
      %s425 = scalar_lea.vmem [#allocation2], 1
      %v426 = vld [vmem:[%s425] ss:$2 sm:$0xff]
      %s427 = scalar_lea.vmem [#allocation2], 17
      %v428 = vld [vmem:[%s427] ss:$2 sm:$0xff]
      %s429 = scalar_lea.vmem [#allocation2], 33
      %v430 = vld [vmem:[%s429] ss:$2 sm:$0xff]
      %s431 = scalar_lea.vmem [#allocation2], 49
      %v432 = vld [vmem:[%s431] ss:$2 sm:$0xff]
      %s433 = scalar_lea.vmem [#allocation2], 65
      %v434 = vld [vmem:[%s433] ss:$2 sm:$0xff]
      %s435 = scalar_lea.vmem [#allocation2], 81
      %v436 = vld [vmem:[%s435] ss:$2 sm:$0xff]
      %s437 = scalar_lea.vmem [#allocation2], 97
      %v438 = vld [vmem:[%s437] ss:$2 sm:$0xff]
      %s439 = scalar_lea.vmem [#allocation2], 113
      %v440 = vld [vmem:[%s439] ss:$2 sm:$0xff]
      %v441 = vmax.f32 %v410, %v426
      %v442 = vmax.f32 %v412, %v428
      %v443 = vmax.f32 %v414, %v430
      %v444 = vmax.f32 %v416, %v432
      %v445 = vmax.f32 %v418, %v434
      %v446 = vmax.f32 %v420, %v436
      %v447 = vmax.f32 %v422, %v438
      %v448 = vmax.f32 %v424, %v440
      %449 = vst.msk [vmem:[%s170] sm:$0xff] %vm393, %v441
      %450 = vst.msk [vmem:[%s170 + $0x8] sm:$0xff] %vm393, %v442
      %451 = vst.msk [vmem:[%s170 + $0x10] sm:$0xff] %vm393, %v443
      %452 = vst.msk [vmem:[%s170 + $0x18] sm:$0xff] %vm393, %v444
      %453 = vst.msk [vmem:[%s170 + $0x20] sm:$0xff] %vm393, %v445
      %454 = vst.msk [vmem:[%s170 + $0x28] sm:$0xff] %vm393, %v446
      %455 = vst.msk [vmem:[%s170 + $0x30] sm:$0xff] %vm393, %v447
      %456 = vst.msk [vmem:[%s170 + $0x38] sm:$0xff] %vm393, %v448
      %p457 = scmp.lt.s32.totalorder %s14, 1
      %s458 = scalar_select %p457, %s14, 1
      %s459 = smul.addr %s458, 8
      %s460 = smul.addr %s459, 8
      %s461 = scalar_lea.vmem %s3, %s460
      // Predicated region
      $region33: #{basic_conv_block.5} parent=31 // pred_check
        %p462 = pneg %p100
      $region34: #{basic_conv_block.5} parent=31 // pred_check_branch
        %464 = sbr.rel (%p462) target = $region36
      $region35: #{basic_conv_block.5} parent=31 // pred_region
        _
      $region36: #{basic_conv_block.5} parent=31 // pred_fallthru
        _
    $region32: #{basic_conv_block.5} parent=5 // pred_fallthru
      _
    %p465 = scmp.le.s32.totalorder 2, %s9
    // Predicated region
    $region37: #{basic_conv_block.5} parent=5 // pred_check
      %p466 = pneg %p465
    $region38: #{basic_conv_block.5} parent=5 // pred_check_branch
      %468 = sbr.rel (%p466) target = $region40
    $region39: #{basic_conv_block.5} parent=5 // pred_region
      %s469 = ssub.s32 %s9, 2
      // Predicated region
      $region41: #{basic_conv_block.5} parent=39 // pred_check
        %p470 = pneg %p106
      $region42: #{basic_conv_block.5} parent=39 // pred_check_branch
        %472 = sbr.rel (%p470) target = $region44
      $region43: #{basic_conv_block.5} parent=39 // pred_region
        %p473 = scmp.lt.s32.totalorder %s15, 1
        %s474 = scalar_select %p473, %s15, 1
        %s475 = smul.addr %s474, 8
        %s476 = smul.addr %s475, 8
        %s477 = scalar_lea.vmem %s3, %s476
      $region44: #{basic_conv_block.5} parent=39 // pred_fallthru
        _
    $region40: #{basic_conv_block.5} parent=5 // pred_fallthru
      _
  $region6: #{basic_conv_block.5} parent=0 // loop_footer
    %s13 = sadd.s32 1, %s9
  $region7: #{basic_conv_block.5} parent=0 // loop_footer_branch
    %8 = sbr.rel target = $region3
  $region8: #{basic_conv_block.5} parent=0 // loop_exit
    _

// kernel: basic_conv_block.3
$region0: #{basic_conv_block.3}
  #allocation0 [shape = 'u32[]', space=smem, size = 0x4, offset = 0x4, fixed_abs, tag = 'smem constant byte address 0x4 - core index']
  #allocation1 [shape = 'u32[144,128]{1,0:T(1,128)}', space=vmem, size = 0x12000, scoped, tag = 'internal scratch']
  #allocation2 [shape = 'f32[1,18,18,4]{3,2,1,0:T(8,128)}', space=vmem, size = 0x36000, scoped, tag = 'scratch operand']
  #allocation3 [shape = 'bf16[1,16,16,36]{3,2,1,0:T(8,128)(2,1)}', space=vmem, size = 0x10000, scoped, tag = 'scratch operand']
  %s0 = inlined_call_operand.vmem [shape: f32[2,16,16,4], index: 0, kind: input, shape index: {}]
  %s1 = inlined_call_operand.vmem [shape: bf16[36,8], index: 1, kind: input, shape index: {}]
  %s2 = inlined_call_operand.vmem [shape: f32[2,16,16,8], index: 2, kind: output, shape index: {0}]
  %s3 = inlined_call_operand.vmem [shape: f32[2,2,8], index: 3, kind: output, shape index: {1}]
  %4 = xla_tuple %s2, %s3
  %s5 = sld [smem:[#allocation0]]
  $region49: #{basic_conv_block.3} parent=0
    _
  %s7 = ssub.s32 1, %s5
  %s8 = scalar_select 0, %s7, %s5
  loop: start=0, step=1, limit=4
  $region2: #{basic_conv_block.3} parent=0 // loop_pre_header
    _
  $region3: #{basic_conv_block.3} parent=0 // loop_header
    %s10 = sphi 0, %s14
    %p11 = scmp.ge.s32.totalorder %s10, 4
    %s20 = sphi 0, %s22
    %s23 = sphi 0, %s20
    %s24 = sphi 0, %s23
    %s40 = sphi 0, %s24
    %s44 = sphi 0, %s44
    %s46 = sphi 0, %s44
    %s47 = sphi 0, %s46
    %s61 = sphi 0, %s47
    %s67 = sphi 0, %s69
    %s70 = sphi 0, %s67
    %s71 = sphi 0, %s70
    %s87 = sphi 0, %s71
    %s93 = sphi 0, %s95
    %s96 = sphi 0, %s93
    %s97 = sphi 0, %s96
    %s113 = sphi 0, %s97
  $region4: #{basic_conv_block.3} parent=0 // loop_header_branch
    %13 = sbr.rel (%p11) target = $region8
  $region5: #{basic_conv_block.3} parent=0 // loop_body
    %s15 = ssub.s32 %s10, 1
    %s16 = ssub.s32 %s10, 2
    %s17 = sadd.s32 %s10, 1
    %s18 = ssub.s32 %s10, %s17
    %p19 = scmp.eq.s32.totalorder %s18, 0
    %s21 = sadd.s32 %s20, 1
    %s22 = scalar_select %p19, %s20, %s21
    %p25 = pneg %p19
    %p26 = scmp.eq.s32.totalorder %s10, 1
    %p27 = por %p25, %p26
    %p28 = scmp.ne.s32.totalorder %s20, %s23
    %p29 = scmp.eq.s32.totalorder %s10, 0
    %p30 = por %p28, %p29
    %p31 = scmp.ne.s32.totalorder %s20, %s23
    %p32 = scmp.eq.s32.totalorder %s15, 1
    %p33 = por %p31, %p32
    %p34 = scmp.ne.s32.totalorder %s23, %s24
    %p35 = scmp.eq.s32.totalorder %s15, 0
    %p36 = por %p34, %p35
    %p37 = scmp.ne.s32.totalorder %s23, %s24
    %p38 = scmp.eq.s32.totalorder %s16, 1
    %p39 = por %p37, %p38
    %p41 = scmp.ne.s32.totalorder %s24, %s40
    %p42 = scmp.eq.s32.totalorder %s16, 0
    %p43 = por %p41, %p42
    %s45 = sadd.s32 %s44, 1
    %p48 = scmp.eq.s32.totalorder %s10, 1
    %p49 = scmp.ne.s32.totalorder %s44, %s46
    %p50 = scmp.eq.s32.totalorder %s10, 0
    %p51 = por %p49, %p50
    %p52 = scmp.ne.s32.totalorder %s44, %s46
    %p53 = scmp.eq.s32.totalorder %s15, 1
    %p54 = por %p52, %p53
    %p55 = scmp.ne.s32.totalorder %s46, %s47
    %p56 = scmp.eq.s32.totalorder %s15, 0
    %p57 = por %p55, %p56
    %p58 = scmp.ne.s32.totalorder %s46, %s47
    %p59 = scmp.eq.s32.totalorder %s16, 1
    %p60 = por %p58, %p59
    %p62 = scmp.ne.s32.totalorder %s47, %s61
    %p63 = scmp.eq.s32.totalorder %s16, 0
    %p64 = por %p62, %p63
    %s65 = ssub.s32 %s10, %s17
    %p66 = scmp.eq.s32.totalorder %s65, 0
    %s68 = sadd.s32 %s67, 1
    %s69 = scalar_select %p66, %s67, %s68
    %p72 = pneg %p66
    %p73 = scmp.eq.s32.totalorder %s10, 1
    %p74 = por %p72, %p73
    %p75 = scmp.ne.s32.totalorder %s67, %s70
    %p76 = scmp.eq.s32.totalorder %s10, 0
    %p77 = por %p75, %p76
    %p78 = scmp.ne.s32.totalorder %s67, %s70
    %p79 = scmp.eq.s32.totalorder %s15, 1
    %p80 = por %p78, %p79
    %p81 = scmp.ne.s32.totalorder %s70, %s71
    %p82 = scmp.eq.s32.totalorder %s15, 0
    %p83 = por %p81, %p82
    %p84 = scmp.ne.s32.totalorder %s70, %s71
    %p85 = scmp.eq.s32.totalorder %s16, 1
    %p86 = por %p84, %p85
    %p88 = scmp.ne.s32.totalorder %s71, %s87
    %p89 = scmp.eq.s32.totalorder %s16, 0
    %p90 = por %p88, %p89
    %s91 = ssub.s32 %s10, %s17
    %p92 = scmp.eq.s32.totalorder %s91, 0
    %s94 = sadd.s32 %s93, 1
    %s95 = scalar_select %p92, %s93, %s94
    %p98 = pneg %p92
    %p99 = scmp.eq.s32.totalorder %s10, 1
    %p100 = por %p98, %p99
    %p101 = scmp.ne.s32.totalorder %s93, %s96
    %p102 = scmp.eq.s32.totalorder %s10, 0
    %p103 = por %p101, %p102
    %p104 = scmp.ne.s32.totalorder %s93, %s96
    %p105 = scmp.eq.s32.totalorder %s15, 1
    %p106 = por %p104, %p105
    %p107 = scmp.ne.s32.totalorder %s96, %s97
    %p108 = scmp.eq.s32.totalorder %s15, 0
    %p109 = por %p107, %p108
    %p110 = scmp.ne.s32.totalorder %s96, %s97
    %p111 = scmp.eq.s32.totalorder %s16, 1
    %p112 = por %p110, %p111
    %p114 = scmp.ne.s32.totalorder %s97, %s113
    %p115 = scmp.eq.s32.totalorder %s16, 0
    %p116 = por %p114, %p115
    %p117 = scmp.le.s32.totalorder 1, %s10
    %p118 = scmp.lt.s32.totalorder %s10, 3
    %p119 = pnand %p117, %p118
    %p120 = pneg %p119
    // Predicated region
    $region9: #{basic_conv_block.3} parent=5 // pred_check
      _
    $region10: #{basic_conv_block.3} parent=5 // pred_check_branch
      %122 = sbr.rel (%p119) target = $region12
    $region11: #{basic_conv_block.3} parent=5 // pred_region
      %s123 = ssub.s32 %s10, 1
      // Predicated region
      $region13: #{basic_conv_block.3} parent=11 // pred_check
        %p124 = pneg %p57
      $region14: #{basic_conv_block.3} parent=11 // pred_check_branch
        %126 = sbr.rel (%p124) target = $region16
      $region15: #{basic_conv_block.3} parent=11 // pred_region
        _
      $region16: #{basic_conv_block.3} parent=11 // pred_fallthru
        _
    $region12: #{basic_conv_block.3} parent=5 // pred_fallthru
      _
    %p127 = scmp.lt.s32.totalorder %s10, 2
    // Predicated region
    $region17: #{basic_conv_block.3} parent=5 // pred_check
      %p128 = pneg %p127
    $region18: #{basic_conv_block.3} parent=5 // pred_check_branch
      %130 = sbr.rel (%p128) target = $region20
    $region19: #{basic_conv_block.3} parent=5 // pred_region
      // Predicated region
      $region21: #{basic_conv_block.3} parent=19 // pred_check
        %p131 = pneg %p30
      $region22: #{basic_conv_block.3} parent=19 // pred_check_branch
        %133 = sbr.rel (%p131) target = $region24
      $region23: #{basic_conv_block.3} parent=19 // pred_region
        %p134 = scmp.lt.s32.totalorder %s10, 1
        %s135 = scalar_select %p134, %s10, 1
        %s136 = smul.addr %s135, 32
        %s137 = smul.addr %s136, 8
        %s138 = scalar_lea.vmem %s0, %s137
      $region24: #{basic_conv_block.3} parent=19 // pred_fallthru
        _
    $region20: #{basic_conv_block.3} parent=5 // pred_fallthru
      _
    %p139 = scmp.le.s32.totalorder 1, %s10
    %p140 = scmp.lt.s32.totalorder %s10, 3
    %p141 = pnand %p139, %p140
    %p142 = pneg %p141
    // Predicated region
    $region25: #{basic_conv_block.3} parent=5 // pred_check
      _
    $region26: #{basic_conv_block.3} parent=5 // pred_check_branch
      %144 = sbr.rel (%p141) target = $region28
    $region27: #{basic_conv_block.3} parent=5 // pred_region
      %s145 = ssub.s32 %s10, 1
      %p146 = scmp.lt.s32.totalorder %s15, 1
      %s147 = scalar_select %p146, %s15, 1
      %s148 = smul.addr %s147, 32
      %s149 = smul.addr %s148, 8
      %s150 = scalar_lea.vmem %s0, %s149
      %p151 = pneg %p36
      %p152 = pneg %p33
      %p153 = pneg %p57
      %p154 = pneg %p54
      %p155 = pneg %p83
      %p156 = pneg %p80
      %p157 = scmp.lt.s32.totalorder %s15, 1
      %s158 = scalar_select %p157, %s15, 1
      %s159 = smul.addr %s158, 32
      %s160 = smul.addr %s159, 8
      %s161 = scalar_lea.vmem %s2, %s160
      %p162 = pneg %p109
      %p163 = pneg %p106
      %p164 = scmp.lt.s32.totalorder %s15, 1
      %s165 = scalar_select %p164, %s15, 1
      %s166 = smul.addr %s165, 2
      %s167 = scalar_lea.vmem %s3, %s166
      %p168 = scmp.lt.s32.totalorder %s15, 1
      %s169 = scalar_select %p168, %s15, 1
      %s170 = smul.addr %s169, 32
      %s171 = smul.addr %s170, 8
      %s172 = scalar_lea.vmem %s0, %s171
      %p173 = scmp.lt.s32.totalorder %s15, 1
      %s174 = scalar_select %p173, %s15, 1
      %s175 = smul.addr %s174, 32
      %s176 = smul.addr %s175, 8
      %s177 = scalar_lea.vmem %s2, %s176
      %p178 = scmp.lt.s32.totalorder %s15, 1
      %s179 = scalar_select %p178, %s15, 1
      %s180 = smul.addr %s179, 2
      %s181 = scalar_lea.vmem %s3, %s180
      %v183 = vld [vmem:[%s172] sm:$0xff]
      %v184 = vld [vmem:[%s172 + $0x8] sm:$0xff]
      %v185 = vld [vmem:[%s172 + $0x10] sm:$0xff]
      %v186 = vld [vmem:[%s172 + $0x18] sm:$0xff]
      %v187 = vld [vmem:[%s172 + $0x20] sm:$0xff]
      %v188 = vld [vmem:[%s172 + $0x28] sm:$0xff]
      %v189 = vld [vmem:[%s172 + $0x30] sm:$0xff]
      %v190 = vld [vmem:[%s172 + $0x38] sm:$0xff]
      %v191 = vld [vmem:[%s172 + $0x40] sm:$0xff]
      %v192 = vld [vmem:[%s172 + $0x48] sm:$0xff]
      %v193 = vld [vmem:[%s172 + $0x50] sm:$0xff]
      %v194 = vld [vmem:[%s172 + $0x58] sm:$0xff]
      %v195 = vld [vmem:[%s172 + $0x60] sm:$0xff]
      %v196 = vld [vmem:[%s172 + $0x68] sm:$0xff]
      %v197 = vld [vmem:[%s172 + $0x70] sm:$0xff]
      %v198 = vld [vmem:[%s172 + $0x78] sm:$0xff]
      %v199 = vld [vmem:[%s172 + $0x80] sm:$0xff]
      %v200 = vld [vmem:[%s172 + $0x88] sm:$0xff]
      %v201 = vld [vmem:[%s172 + $0x90] sm:$0xff]
      %v202 = vld [vmem:[%s172 + $0x98] sm:$0xff]
      %v203 = vld [vmem:[%s172 + $0xa0] sm:$0xff]
      %v204 = vld [vmem:[%s172 + $0xa8] sm:$0xff]
      %v205 = vld [vmem:[%s172 + $0xb0] sm:$0xff]
      %v206 = vld [vmem:[%s172 + $0xb8] sm:$0xff]
      %v207 = vld [vmem:[%s172 + $0xc0] sm:$0xff]
      %v208 = vld [vmem:[%s172 + $0xc8] sm:$0xff]
      %v209 = vld [vmem:[%s172 + $0xd0] sm:$0xff]
      %v210 = vld [vmem:[%s172 + $0xd8] sm:$0xff]
      %v211 = vld [vmem:[%s172 + $0xe0] sm:$0xff]
      %v212 = vld [vmem:[%s172 + $0xe8] sm:$0xff]
      %v213 = vld [vmem:[%s172 + $0xf0] sm:$0xff]
      %v214 = vld [vmem:[%s172 + $0xf8] sm:$0xff]
      %vm215 = vcmask 31744
      %216 = vst.msk [vmem:[#allocation2] sm:$0xff] %vm215, 0.0
      %217 = vst.msk [vmem:[#allocation2 + $0x8] sm:$0xff] %vm215, 0.0
      %vm218 = vcmask 25600
      %219 = vst.msk [vmem:[#allocation2 + $0x10] sm:$0x3] %vm218, 0.0
      %s220 = scalar_lea.vmem [#allocation2], 408
      %221 = vst.msk [vmem:[%s220] sm:$0xff] %vm215, 0.0
      %222 = vst.msk [vmem:[%s220 + $0x8] sm:$0xff] %vm215, 0.0
      %223 = vst.msk [vmem:[%s220 + $0x10] sm:$0x3] %vm218, 0.0
      %vm224 = vcmask 24576
      %225 = vst.msk [vmem:[#allocation2] sm:$0x1] %vm224, 0.0
      %226 = vst.msk [vmem:[#allocation2 + $0x18] sm:$0x1] %vm224, 0.0
      %227 = vst.msk [vmem:[#allocation2 + $0x30] sm:$0x1] %vm224, 0.0
      %228 = vst.msk [vmem:[#allocation2 + $0x48] sm:$0x1] %vm224, 0.0
      %229 = vst.msk [vmem:[#allocation2 + $0x60] sm:$0x1] %vm224, 0.0
      %230 = vst.msk [vmem:[#allocation2 + $0x78] sm:$0x1] %vm224, 0.0
      %231 = vst.msk [vmem:[#allocation2 + $0x90] sm:$0x1] %vm224, 0.0
      %232 = vst.msk [vmem:[#allocation2 + $0xa8] sm:$0x1] %vm224, 0.0
      %233 = vst.msk [vmem:[#allocation2 + $0xc0] sm:$0x1] %vm224, 0.0
      %234 = vst.msk [vmem:[#allocation2 + $0xd8] sm:$0x1] %vm224, 0.0
      %235 = vst.msk [vmem:[#allocation2 + $0xf0] sm:$0x1] %vm224, 0.0
      %236 = vst.msk [vmem:[#allocation2 + $0x108] sm:$0x1] %vm224, 0.0
      %237 = vst.msk [vmem:[#allocation2 + $0x120] sm:$0x1] %vm224, 0.0
      %238 = vst.msk [vmem:[#allocation2 + $0x138] sm:$0x1] %vm224, 0.0
      %239 = vst.msk [vmem:[#allocation2 + $0x150] sm:$0x1] %vm224, 0.0
      %240 = vst.msk [vmem:[#allocation2 + $0x168] sm:$0x1] %vm224, 0.0
      %241 = vst.msk [vmem:[#allocation2 + $0x180] sm:$0x1] %vm224, 0.0
      %242 = vst.msk [vmem:[#allocation2 + $0x198] sm:$0x1] %vm224, 0.0
      %243 = vst.msk [vmem:[#allocation2 + $0x11] sm:$0x1] %vm224, 0.0
      %244 = vst.msk [vmem:[#allocation2 + $0x29] sm:$0x1] %vm224, 0.0
      %245 = vst.msk [vmem:[#allocation2 + $0x41] sm:$0x1] %vm224, 0.0
      %246 = vst.msk [vmem:[#allocation2 + $0x59] sm:$0x1] %vm224, 0.0
      %247 = vst.msk [vmem:[#allocation2 + $0x71] sm:$0x1] %vm224, 0.0
      %248 = vst.msk [vmem:[#allocation2 + $0x89] sm:$0x1] %vm224, 0.0
      %249 = vst.msk [vmem:[#allocation2 + $0xa1] sm:$0x1] %vm224, 0.0
      %250 = vst.msk [vmem:[#allocation2 + $0xb9] sm:$0x1] %vm224, 0.0
      %251 = vst.msk [vmem:[#allocation2 + $0xd1] sm:$0x1] %vm224, 0.0
      %252 = vst.msk [vmem:[#allocation2 + $0xe9] sm:$0x1] %vm224, 0.0
      %253 = vst.msk [vmem:[#allocation2 + $0x101] sm:$0x1] %vm224, 0.0
      %254 = vst.msk [vmem:[#allocation2 + $0x119] sm:$0x1] %vm224, 0.0
      %255 = vst.msk [vmem:[#allocation2 + $0x131] sm:$0x1] %vm224, 0.0
      %256 = vst.msk [vmem:[#allocation2 + $0x149] sm:$0x1] %vm224, 0.0
      %257 = vst.msk [vmem:[#allocation2 + $0x161] sm:$0x1] %vm224, 0.0
      %258 = vst.msk [vmem:[#allocation2 + $0x179] sm:$0x1] %vm224, 0.0
      %259 = vst.msk [vmem:[#allocation2 + $0x191] sm:$0x1] %vm224, 0.0
      %260 = vst.msk [vmem:[#allocation2 + $0x1a9] sm:$0x1] %vm224, 0.0
      %s261 = scalar_lea.vmem [#allocation2], 24
      %262 = vst.msk [vmem:[%s261 + $0x1] sm:$0xff] %vm215, %v183
      %263 = vst.msk [vmem:[%s261 + $0x9] sm:$0xff] %vm215, %v184
      %264 = vst.msk [vmem:[%s261 + $0x19] sm:$0xff] %vm215, %v185
      %265 = vst.msk [vmem:[%s261 + $0x21] sm:$0xff] %vm215, %v186
      %266 = vst.msk [vmem:[%s261 + $0x31] sm:$0xff] %vm215, %v187
      %267 = vst.msk [vmem:[%s261 + $0x39] sm:$0xff] %vm215, %v188
      %268 = vst.msk [vmem:[%s261 + $0x49] sm:$0xff] %vm215, %v189
      %269 = vst.msk [vmem:[%s261 + $0x51] sm:$0xff] %vm215, %v190
      %270 = vst.msk [vmem:[%s261 + $0x61] sm:$0xff] %vm215, %v191
      %271 = vst.msk [vmem:[%s261 + $0x69] sm:$0xff] %vm215, %v192
      %272 = vst.msk [vmem:[%s261 + $0x79] sm:$0xff] %vm215, %v193
      %273 = vst.msk [vmem:[%s261 + $0x81] sm:$0xff] %vm215, %v194
      %274 = vst.msk [vmem:[%s261 + $0x91] sm:$0xff] %vm215, %v195
      %275 = vst.msk [vmem:[%s261 + $0x99] sm:$0xff] %vm215, %v196
      %276 = vst.msk [vmem:[%s261 + $0xa9] sm:$0xff] %vm215, %v197
      %277 = vst.msk [vmem:[%s261 + $0xb1] sm:$0xff] %vm215, %v198
      %278 = vst.msk [vmem:[%s261 + $0xc1] sm:$0xff] %vm215, %v199
      %279 = vst.msk [vmem:[%s261 + $0xc9] sm:$0xff] %vm215, %v200
      %280 = vst.msk [vmem:[%s261 + $0xd9] sm:$0xff] %vm215, %v201
      %281 = vst.msk [vmem:[%s261 + $0xe1] sm:$0xff] %vm215, %v202
      %282 = vst.msk [vmem:[%s261 + $0xf1] sm:$0xff] %vm215, %v203
      %283 = vst.msk [vmem:[%s261 + $0xf9] sm:$0xff] %vm215, %v204
      %284 = vst.msk [vmem:[%s261 + $0x109] sm:$0xff] %vm215, %v205
      %285 = vst.msk [vmem:[%s261 + $0x111] sm:$0xff] %vm215, %v206
      %286 = vst.msk [vmem:[%s261 + $0x121] sm:$0xff] %vm215, %v207
      %287 = vst.msk [vmem:[%s261 + $0x129] sm:$0xff] %vm215, %v208
      %288 = vst.msk [vmem:[%s261 + $0x139] sm:$0xff] %vm215, %v209
      %289 = vst.msk [vmem:[%s261 + $0x141] sm:$0xff] %vm215, %v210
      %290 = vst.msk [vmem:[%s261 + $0x151] sm:$0xff] %vm215, %v211
      %291 = vst.msk [vmem:[%s261 + $0x159] sm:$0xff] %vm215, %v212
      %292 = vst.msk [vmem:[%s261 + $0x169] sm:$0xff] %vm215, %v213
      %293 = vst.msk [vmem:[%s261 + $0x171] sm:$0xff] %vm215, %v214
      %v294 = vld [vmem:[#allocation2] sm:$0xff]
      %v295 = vld [vmem:[#allocation2 + $0x8] sm:$0xff]
      %v296 = vld [vmem:[#allocation2 + $0x18] sm:$0xff]
      %v297 = vld [vmem:[#allocation2 + $0x20] sm:$0xff]
      %v298 = vld [vmem:[#allocation2 + $0x30] sm:$0xff]
      %v299 = vld [vmem:[#allocation2 + $0x38] sm:$0xff]
      %v300 = vld [vmem:[#allocation2 + $0x48] sm:$0xff]
      %v301 = vld [vmem:[#allocation2 + $0x50] sm:$0xff]
      %v302 = vld [vmem:[#allocation2 + $0x60] sm:$0xff]
      %v303 = vld [vmem:[#allocation2 + $0x68] sm:$0xff]
      %v304 = vld [vmem:[#allocation2 + $0x78] sm:$0xff]
      %v305 = vld [vmem:[#allocation2 + $0x80] sm:$0xff]
      %v306 = vld [vmem:[#allocation2 + $0x90] sm:$0xff]
      %v307 = vld [vmem:[#allocation2 + $0x98] sm:$0xff]
      %v308 = vld [vmem:[#allocation2 + $0xa8] sm:$0xff]
      %v309 = vld [vmem:[#allocation2 + $0xb0] sm:$0xff]
      %v310 = vld [vmem:[#allocation2 + $0xc0] sm:$0xff]
      %v311 = vld [vmem:[#allocation2 + $0xc8] sm:$0xff]
      %v312 = vld [vmem:[#allocation2 + $0xd8] sm:$0xff]
      %v313 = vld [vmem:[#allocation2 + $0xe0] sm:$0xff]
      %v314 = vld [vmem:[#allocation2 + $0xf0] sm:$0xff]
      %v315 = vld [vmem:[#allocation2 + $0xf8] sm:$0xff]
      %v316 = vld [vmem:[#allocation2 + $0x108] sm:$0xff]
      %v317 = vld [vmem:[#allocation2 + $0x110] sm:$0xff]
      %v318 = vld [vmem:[#allocation2 + $0x120] sm:$0xff]
      %v319 = vld [vmem:[#allocation2 + $0x128] sm:$0xff]
      %v320 = vld [vmem:[#allocation2 + $0x138] sm:$0xff]
      %v321 = vld [vmem:[#allocation2 + $0x140] sm:$0xff]
      %v322 = vld [vmem:[#allocation2 + $0x150] sm:$0xff]
      %v323 = vld [vmem:[#allocation2 + $0x158] sm:$0xff]
      %v324 = vld [vmem:[#allocation2 + $0x168] sm:$0xff]
      %v325 = vld [vmem:[#allocation2 + $0x170] sm:$0xff]
      %v326 = vpack.c.bf16 %v295, %v294
      %v327 = vpack.c.bf16 %v297, %v296
      %v328 = vpack.c.bf16 %v299, %v298
      %v329 = vpack.c.bf16 %v301, %v300
      %v330 = vpack.c.bf16 %v303, %v302
      %v331 = vpack.c.bf16 %v305, %v304
      %v332 = vpack.c.bf16 %v307, %v306
      %v333 = vpack.c.bf16 %v309, %v308
      %v334 = vpack.c.bf16 %v311, %v310
      %v335 = vpack.c.bf16 %v313, %v312
      %v336 = vpack.c.bf16 %v315, %v314
      %v337 = vpack.c.bf16 %v317, %v316
      %v338 = vpack.c.bf16 %v319, %v318
      %v339 = vpack.c.bf16 %v321, %v320
      %v340 = vpack.c.bf16 %v323, %v322
      %v341 = vpack.c.bf16 %v325, %v324
      %v358 = vunpack.c.l.b16 %v326
      %v359 = vunpack.c.h.b16 %v326
      %v360 = vunpack.c.l.b16 %v327
      %v361 = vunpack.c.h.b16 %v327
      %v362 = vunpack.c.l.b16 %v328
      %v363 = vunpack.c.h.b16 %v328
      %v364 = vunpack.c.l.b16 %v329
      %v365 = vunpack.c.h.b16 %v329
      %v366 = vunpack.c.l.b16 %v330
      %v367 = vunpack.c.h.b16 %v330
      %v368 = vunpack.c.l.b16 %v331
      %v369 = vunpack.c.h.b16 %v331
      %v370 = vunpack.c.l.b16 %v332
      %v371 = vunpack.c.h.b16 %v332
      %v372 = vunpack.c.l.b16 %v333
      %v373 = vunpack.c.h.b16 %v333
      %v374 = vunpack.c.l.b16 %v334
      %v375 = vunpack.c.h.b16 %v334
      %v376 = vunpack.c.l.b16 %v335
      %v377 = vunpack.c.h.b16 %v335
      %v378 = vunpack.c.l.b16 %v336
      %v379 = vunpack.c.h.b16 %v336
      %v380 = vunpack.c.l.b16 %v337
      %v381 = vunpack.c.h.b16 %v337
      %v382 = vunpack.c.l.b16 %v338
      %v383 = vunpack.c.h.b16 %v338
      %v384 = vunpack.c.l.b16 %v339
      %v385 = vunpack.c.h.b16 %v339
      %v386 = vunpack.c.l.b16 %v340
      %v387 = vunpack.c.h.b16 %v340
      %v388 = vunpack.c.l.b16 %v341
      %v389 = vunpack.c.h.b16 %v341
      %v390 = vpack.c.b16 %v358, %v358
      %v391 = vpack.c.b16 %v359, %v359
      %v392 = vpack.c.b16 %v360, %v360
      %v393 = vpack.c.b16 %v361, %v361
      %v394 = vpack.c.b16 %v362, %v362
      %v395 = vpack.c.b16 %v363, %v363
      %v396 = vpack.c.b16 %v364, %v364
      %v397 = vpack.c.b16 %v365, %v365
      %v398 = vpack.c.b16 %v366, %v366
      %v399 = vpack.c.b16 %v367, %v367
      %v400 = vpack.c.b16 %v368, %v368
      %v401 = vpack.c.b16 %v369, %v369
      %v402 = vpack.c.b16 %v370, %v370
      %v403 = vpack.c.b16 %v371, %v371
      %v404 = vpack.c.b16 %v372, %v372
      %v405 = vpack.c.b16 %v373, %v373
      %v406 = vpack.c.b16 %v374, %v374
      %v407 = vpack.c.b16 %v375, %v375
      %v408 = vpack.c.b16 %v376, %v376
      %v409 = vpack.c.b16 %v377, %v377
      %v410 = vpack.c.b16 %v378, %v378
      %v411 = vpack.c.b16 %v379, %v379
      %v412 = vpack.c.b16 %v380, %v380
      %v413 = vpack.c.b16 %v381, %v381
      %v414 = vpack.c.b16 %v382, %v382
      %v415 = vpack.c.b16 %v383, %v383
      %v416 = vpack.c.b16 %v384, %v384
      %v417 = vpack.c.b16 %v385, %v385
      %v418 = vpack.c.b16 %v386, %v386
      %v419 = vpack.c.b16 %v387, %v387
      %v420 = vpack.c.b16 %v388, %v388
      %v421 = vpack.c.b16 %v389, %v389
      %vm454 = vcmask 27648
      %455 = vst.msk [vmem:[#allocation3] sm:$0xf] %vm454, %v390
      %456 = vst.msk [vmem:[#allocation3 + $0x4] sm:$0xf] %vm454, %v391
      %457 = vst.msk [vmem:[#allocation3 + $0x8] sm:$0xf] %vm454, %v392
      %458 = vst.msk [vmem:[#allocation3 + $0xc] sm:$0xf] %vm454, %v393
      %459 = vst.msk [vmem:[#allocation3 + $0x10] sm:$0xf] %vm454, %v394
      %460 = vst.msk [vmem:[#allocation3 + $0x14] sm:$0xf] %vm454, %v395
      %461 = vst.msk [vmem:[#allocation3 + $0x18] sm:$0xf] %vm454, %v396
      %462 = vst.msk [vmem:[#allocation3 + $0x1c] sm:$0xf] %vm454, %v397
      %463 = vst.msk [vmem:[#allocation3 + $0x20] sm:$0xf] %vm454, %v398
      %464 = vst.msk [vmem:[#allocation3 + $0x24] sm:$0xf] %vm454, %v399
      %465 = vst.msk [vmem:[#allocation3 + $0x28] sm:$0xf] %vm454, %v400
      %466 = vst.msk [vmem:[#allocation3 + $0x2c] sm:$0xf] %vm454, %v401
      %467 = vst.msk [vmem:[#allocation3 + $0x30] sm:$0xf] %vm454, %v402
      %468 = vst.msk [vmem:[#allocation3 + $0x34] sm:$0xf] %vm454, %v403
      %469 = vst.msk [vmem:[#allocation3 + $0x38] sm:$0xf] %vm454, %v404
      %470 = vst.msk [vmem:[#allocation3 + $0x3c] sm:$0xf] %vm454, %v405
      %471 = vst.msk [vmem:[#allocation3 + $0x40] sm:$0xf] %vm454, %v406
      %472 = vst.msk [vmem:[#allocation3 + $0x44] sm:$0xf] %vm454, %v407
      %473 = vst.msk [vmem:[#allocation3 + $0x48] sm:$0xf] %vm454, %v408
      %474 = vst.msk [vmem:[#allocation3 + $0x4c] sm:$0xf] %vm454, %v409
      %475 = vst.msk [vmem:[#allocation3 + $0x50] sm:$0xf] %vm454, %v410
      %476 = vst.msk [vmem:[#allocation3 + $0x54] sm:$0xf] %vm454, %v411
      %477 = vst.msk [vmem:[#allocation3 + $0x58] sm:$0xf] %vm454, %v412
      %478 = vst.msk [vmem:[#allocation3 + $0x5c] sm:$0xf] %vm454, %v413
      %479 = vst.msk [vmem:[#allocation3 + $0x60] sm:$0xf] %vm454, %v414
      %480 = vst.msk [vmem:[#allocation3 + $0x64] sm:$0xf] %vm454, %v415
      %481 = vst.msk [vmem:[#allocation3 + $0x68] sm:$0xf] %vm454, %v416
      %482 = vst.msk [vmem:[#allocation3 + $0x6c] sm:$0xf] %vm454, %v417
      %483 = vst.msk [vmem:[#allocation3 + $0x70] sm:$0xf] %vm454, %v418
      %484 = vst.msk [vmem:[#allocation3 + $0x74] sm:$0xf] %vm454, %v419
      %485 = vst.msk [vmem:[#allocation3 + $0x78] sm:$0xf] %vm454, %v420
      %486 = vst.msk [vmem:[#allocation3 + $0x7c] sm:$0xf] %vm454, %v421
      %v487 = vld [vmem:[#allocation2 + $0x1] sm:$0xff]
      %v488 = vld [vmem:[#allocation2 + $0x9] sm:$0xff]
      %v489 = vld [vmem:[#allocation2 + $0x19] sm:$0xff]
      %v490 = vld [vmem:[#allocation2 + $0x21] sm:$0xff]
      %v491 = vld [vmem:[#allocation2 + $0x31] sm:$0xff]
      %v492 = vld [vmem:[#allocation2 + $0x39] sm:$0xff]
      %v493 = vld [vmem:[#allocation2 + $0x49] sm:$0xff]
      %v494 = vld [vmem:[#allocation2 + $0x51] sm:$0xff]
      %v495 = vld [vmem:[#allocation2 + $0x61] sm:$0xff]
      %v496 = vld [vmem:[#allocation2 + $0x69] sm:$0xff]
      %v497 = vld [vmem:[#allocation2 + $0x79] sm:$0xff]
      %v498 = vld [vmem:[#allocation2 + $0x81] sm:$0xff]
      %v499 = vld [vmem:[#allocation2 + $0x91] sm:$0xff]
      %v500 = vld [vmem:[#allocation2 + $0x99] sm:$0xff]
      %v501 = vld [vmem:[#allocation2 + $0xa9] sm:$0xff]
      %v502 = vld [vmem:[#allocation2 + $0xb1] sm:$0xff]
      %v503 = vld [vmem:[#allocation2 + $0xc1] sm:$0xff]
      %v504 = vld [vmem:[#allocation2 + $0xc9] sm:$0xff]
      %v505 = vld [vmem:[#allocation2 + $0xd9] sm:$0xff]
      %v506 = vld [vmem:[#allocation2 + $0xe1] sm:$0xff]
      %v507 = vld [vmem:[#allocation2 + $0xf1] sm:$0xff]
      %v508 = vld [vmem:[#allocation2 + $0xf9] sm:$0xff]
      %v509 = vld [vmem:[#allocation2 + $0x109] sm:$0xff]
      %v510 = vld [vmem:[#allocation2 + $0x111] sm:$0xff]
      %v511 = vld [vmem:[#allocation2 + $0x121] sm:$0xff]
      %v512 = vld [vmem:[#allocation2 + $0x129] sm:$0xff]
      %v513 = vld [vmem:[#allocation2 + $0x139] sm:$0xff]
      %v514 = vld [vmem:[#allocation2 + $0x141] sm:$0xff]
      %v515 = vld [vmem:[#allocation2 + $0x151] sm:$0xff]
      %v516 = vld [vmem:[#allocation2 + $0x159] sm:$0xff]
      %v517 = vld [vmem:[#allocation2 + $0x169] sm:$0xff]
      %v518 = vld [vmem:[#allocation2 + $0x171] sm:$0xff]
      %v519 = vpack.c.bf16 %v488, %v487
      %v520 = vpack.c.bf16 %v490, %v489
      %v521 = vpack.c.bf16 %v492, %v491
      %v522 = vpack.c.bf16 %v494, %v493
      %v523 = vpack.c.bf16 %v496, %v495
      %v524 = vpack.c.bf16 %v498, %v497
      %v525 = vpack.c.bf16 %v500, %v499
      %v526 = vpack.c.bf16 %v502, %v501
      %v527 = vpack.c.bf16 %v504, %v503
      %v528 = vpack.c.bf16 %v506, %v505
      %v529 = vpack.c.bf16 %v508, %v507
      %v530 = vpack.c.bf16 %v510, %v509
      %v531 = vpack.c.bf16 %v512, %v511
      %v532 = vpack.c.bf16 %v514, %v513
      %v533 = vpack.c.bf16 %v516, %v515
      %v534 = vpack.c.bf16 %v518, %v517
      %v551 = vunpack.c.l.b16 %v519
      %v552 = vunpack.c.h.b16 %v519
      %v553 = vunpack.c.l.b16 %v520
      %v554 = vunpack.c.h.b16 %v520
      %v555 = vunpack.c.l.b16 %v521
      %v556 = vunpack.c.h.b16 %v521
      %v557 = vunpack.c.l.b16 %v522
      %v558 = vunpack.c.h.b16 %v522
      %v559 = vunpack.c.l.b16 %v523
      %v560 = vunpack.c.h.b16 %v523
      %v561 = vunpack.c.l.b16 %v524
      %v562 = vunpack.c.h.b16 %v524
      %v563 = vunpack.c.l.b16 %v525
      %v564 = vunpack.c.h.b16 %v525
      %v565 = vunpack.c.l.b16 %v526
      %v566 = vunpack.c.h.b16 %v526
      %v567 = vunpack.c.l.b16 %v527
      %v568 = vunpack.c.h.b16 %v527
      %v569 = vunpack.c.l.b16 %v528
      %v570 = vunpack.c.h.b16 %v528
      %v571 = vunpack.c.l.b16 %v529
      %v572 = vunpack.c.h.b16 %v529
      %v573 = vunpack.c.l.b16 %v530
      %v574 = vunpack.c.h.b16 %v530
      %v575 = vunpack.c.l.b16 %v531
      %v576 = vunpack.c.h.b16 %v531
      %v577 = vunpack.c.l.b16 %v532
      %v578 = vunpack.c.h.b16 %v532
      %v579 = vunpack.c.l.b16 %v533
      %v580 = vunpack.c.h.b16 %v533
      %v581 = vunpack.c.l.b16 %v534
      %v582 = vunpack.c.h.b16 %v534
      %v583 = vpack.c.b16 %v551, %v551
      %v584 = vpack.c.b16 %v552, %v552
      %v585 = vpack.c.b16 %v553, %v553
      %v586 = vpack.c.b16 %v554, %v554
      %v587 = vpack.c.b16 %v555, %v555
      %v588 = vpack.c.b16 %v556, %v556
      %v589 = vpack.c.b16 %v557, %v557
      %v590 = vpack.c.b16 %v558, %v558
      %v591 = vpack.c.b16 %v559, %v559
      %v592 = vpack.c.b16 %v560, %v560
      %v593 = vpack.c.b16 %v561, %v561
      %v594 = vpack.c.b16 %v562, %v562
      %v595 = vpack.c.b16 %v563, %v563
      %v596 = vpack.c.b16 %v564, %v564
      %v597 = vpack.c.b16 %v565, %v565
      %v598 = vpack.c.b16 %v566, %v566
      %v599 = vpack.c.b16 %v567, %v567
      %v600 = vpack.c.b16 %v568, %v568
      %v601 = vpack.c.b16 %v569, %v569
      %v602 = vpack.c.b16 %v570, %v570
      %v603 = vpack.c.b16 %v571, %v571
      %v604 = vpack.c.b16 %v572, %v572
      %v605 = vpack.c.b16 %v573, %v573
      %v606 = vpack.c.b16 %v574, %v574
      %v607 = vpack.c.b16 %v575, %v575
      %v608 = vpack.c.b16 %v576, %v576
      %v609 = vpack.c.b16 %v577, %v577
      %v610 = vpack.c.b16 %v578, %v578
      %v611 = vpack.c.b16 %v579, %v579
      %v612 = vpack.c.b16 %v580, %v580
      %v613 = vpack.c.b16 %v581, %v581
      %v614 = vpack.c.b16 %v582, %v582
      %615 = vrot.lane.b32.xlu0 %v583, 4
      %v616 = vpop.permute.xlu0 %615
      %617 = vrot.lane.b32.xlu0 %v584, 4
      %v618 = vpop.permute.xlu0 %617
      %619 = vrot.lane.b32.xlu0 %v585, 4
      %v620 = vpop.permute.xlu0 %619
      %621 = vrot.lane.b32.xlu0 %v586, 4
      %v622 = vpop.permute.xlu0 %621
      %623 = vrot.lane.b32.xlu0 %v587, 4
      %v624 = vpop.permute.xlu0 %623
      %625 = vrot.lane.b32.xlu0 %v588, 4
      %v626 = vpop.permute.xlu0 %625
      %627 = vrot.lane.b32.xlu0 %v589, 4
      %v628 = vpop.permute.xlu0 %627
      %629 = vrot.lane.b32.xlu0 %v590, 4
      %v630 = vpop.permute.xlu0 %629
      %631 = vrot.lane.b32.xlu0 %v591, 4
      %v632 = vpop.permute.xlu0 %631
      %633 = vrot.lane.b32.xlu0 %v592, 4
      %v634 = vpop.permute.xlu0 %633
      %635 = vrot.lane.b32.xlu0 %v593, 4
      %v636 = vpop.permute.xlu0 %635
      %637 = vrot.lane.b32.xlu0 %v594, 4
      %v638 = vpop.permute.xlu0 %637
      %639 = vrot.lane.b32.xlu0 %v595, 4
      %v640 = vpop.permute.xlu0 %639
      %641 = vrot.lane.b32.xlu0 %v596, 4
      %v642 = vpop.permute.xlu0 %641
      %643 = vrot.lane.b32.xlu0 %v597, 4
      %v644 = vpop.permute.xlu0 %643
      %645 = vrot.lane.b32.xlu0 %v598, 4
      %v646 = vpop.permute.xlu0 %645
      %647 = vrot.lane.b32.xlu0 %v599, 4
      %v648 = vpop.permute.xlu0 %647
      %649 = vrot.lane.b32.xlu0 %v600, 4
      %v650 = vpop.permute.xlu0 %649
      %651 = vrot.lane.b32.xlu0 %v601, 4
      %v652 = vpop.permute.xlu0 %651
      %653 = vrot.lane.b32.xlu0 %v602, 4
      %v654 = vpop.permute.xlu0 %653
      %655 = vrot.lane.b32.xlu0 %v603, 4
      %v656 = vpop.permute.xlu0 %655
      %657 = vrot.lane.b32.xlu0 %v604, 4
      %v658 = vpop.permute.xlu0 %657
      %659 = vrot.lane.b32.xlu0 %v605, 4
      %v660 = vpop.permute.xlu0 %659
      %661 = vrot.lane.b32.xlu0 %v606, 4
      %v662 = vpop.permute.xlu0 %661
      %663 = vrot.lane.b32.xlu0 %v607, 4
      %v664 = vpop.permute.xlu0 %663
      %665 = vrot.lane.b32.xlu0 %v608, 4
      %v666 = vpop.permute.xlu0 %665
      %667 = vrot.lane.b32.xlu0 %v609, 4
      %v668 = vpop.permute.xlu0 %667
      %669 = vrot.lane.b32.xlu0 %v610, 4
      %v670 = vpop.permute.xlu0 %669
      %671 = vrot.lane.b32.xlu0 %v611, 4
      %v672 = vpop.permute.xlu0 %671
      %673 = vrot.lane.b32.xlu0 %v612, 4
      %v674 = vpop.permute.xlu0 %673
      %675 = vrot.lane.b32.xlu0 %v613, 4
      %v676 = vpop.permute.xlu0 %675
      %677 = vrot.lane.b32.xlu0 %v614, 4
      %v678 = vpop.permute.xlu0 %677
      %vm711 = vcmask 60448
      %712 = vst.msk [vmem:[#allocation3] sm:$0xf] %vm711, %v616
      %713 = vst.msk [vmem:[#allocation3 + $0x4] sm:$0xf] %vm711, %v618
      %714 = vst.msk [vmem:[#allocation3 + $0x8] sm:$0xf] %vm711, %v620
      %715 = vst.msk [vmem:[#allocation3 + $0xc] sm:$0xf] %vm711, %v622
      %716 = vst.msk [vmem:[#allocation3 + $0x10] sm:$0xf] %vm711, %v624
      %717 = vst.msk [vmem:[#allocation3 + $0x14] sm:$0xf] %vm711, %v626
      %718 = vst.msk [vmem:[#allocation3 + $0x18] sm:$0xf] %vm711, %v628
      %719 = vst.msk [vmem:[#allocation3 + $0x1c] sm:$0xf] %vm711, %v630
      %720 = vst.msk [vmem:[#allocation3 + $0x20] sm:$0xf] %vm711, %v632
      %721 = vst.msk [vmem:[#allocation3 + $0x24] sm:$0xf] %vm711, %v634
      %722 = vst.msk [vmem:[#allocation3 + $0x28] sm:$0xf] %vm711, %v636
      %723 = vst.msk [vmem:[#allocation3 + $0x2c] sm:$0xf] %vm711, %v638
      %724 = vst.msk [vmem:[#allocation3 + $0x30] sm:$0xf] %vm711, %v640
      %725 = vst.msk [vmem:[#allocation3 + $0x34] sm:$0xf] %vm711, %v642
      %726 = vst.msk [vmem:[#allocation3 + $0x38] sm:$0xf] %vm711, %v644
      %727 = vst.msk [vmem:[#allocation3 + $0x3c] sm:$0xf] %vm711, %v646
      %728 = vst.msk [vmem:[#allocation3 + $0x40] sm:$0xf] %vm711, %v648
      %729 = vst.msk [vmem:[#allocation3 + $0x44] sm:$0xf] %vm711, %v650
      %730 = vst.msk [vmem:[#allocation3 + $0x48] sm:$0xf] %vm711, %v652
      %731 = vst.msk [vmem:[#allocation3 + $0x4c] sm:$0xf] %vm711, %v654
      %732 = vst.msk [vmem:[#allocation3 + $0x50] sm:$0xf] %vm711, %v656
      %733 = vst.msk [vmem:[#allocation3 + $0x54] sm:$0xf] %vm711, %v658
      %734 = vst.msk [vmem:[#allocation3 + $0x58] sm:$0xf] %vm711, %v660
      %735 = vst.msk [vmem:[#allocation3 + $0x5c] sm:$0xf] %vm711, %v662
      %736 = vst.msk [vmem:[#allocation3 + $0x60] sm:$0xf] %vm711, %v664
      %737 = vst.msk [vmem:[#allocation3 + $0x64] sm:$0xf] %vm711, %v666
      %738 = vst.msk [vmem:[#allocation3 + $0x68] sm:$0xf] %vm711, %v668
      %739 = vst.msk [vmem:[#allocation3 + $0x6c] sm:$0xf] %vm711, %v670
      %740 = vst.msk [vmem:[#allocation3 + $0x70] sm:$0xf] %vm711, %v672
      %741 = vst.msk [vmem:[#allocation3 + $0x74] sm:$0xf] %vm711, %v674
      %742 = vst.msk [vmem:[#allocation3 + $0x78] sm:$0xf] %vm711, %v676
      %743 = vst.msk [vmem:[#allocation3 + $0x7c] sm:$0xf] %vm711, %v678
      %v744 = vld [vmem:[#allocation2 + $0x2] sm:$0xff]
      %v745 = vld [vmem:[#allocation2 + $0xa] sm:$0xff]
      %v746 = vld [vmem:[#allocation2 + $0x1a] sm:$0xff]
      %v747 = vld [vmem:[#allocation2 + $0x22] sm:$0xff]
      %v748 = vld [vmem:[#allocation2 + $0x32] sm:$0xff]
      %v749 = vld [vmem:[#allocation2 + $0x3a] sm:$0xff]
      %v750 = vld [vmem:[#allocation2 + $0x4a] sm:$0xff]
      %v751 = vld [vmem:[#allocation2 + $0x52] sm:$0xff]
      %v752 = vld [vmem:[#allocation2 + $0x62] sm:$0xff]
      %v753 = vld [vmem:[#allocation2 + $0x6a] sm:$0xff]
      %v754 = vld [vmem:[#allocation2 + $0x7a] sm:$0xff]
      %v755 = vld [vmem:[#allocation2 + $0x82] sm:$0xff]
      %v756 = vld [vmem:[#allocation2 + $0x92] sm:$0xff]
      %v757 = vld [vmem:[#allocation2 + $0x9a] sm:$0xff]
      %v758 = vld [vmem:[#allocation2 + $0xaa] sm:$0xff]
      %v759 = vld [vmem:[#allocation2 + $0xb2] sm:$0xff]
      %v760 = vld [vmem:[#allocation2 + $0xc2] sm:$0xff]
      %v761 = vld [vmem:[#allocation2 + $0xca] sm:$0xff]
      %v762 = vld [vmem:[#allocation2 + $0xda] sm:$0xff]
      %v763 = vld [vmem:[#allocation2 + $0xe2] sm:$0xff]
      %v764 = vld [vmem:[#allocation2 + $0xf2] sm:$0xff]
      %v765 = vld [vmem:[#allocation2 + $0xfa] sm:$0xff]
      %v766 = vld [vmem:[#allocation2 + $0x10a] sm:$0xff]
      %v767 = vld [vmem:[#allocation2 + $0x112] sm:$0xff]
      %v768 = vld [vmem:[#allocation2 + $0x122] sm:$0xff]
      %v769 = vld [vmem:[#allocation2 + $0x12a] sm:$0xff]
      %v770 = vld [vmem:[#allocation2 + $0x13a] sm:$0xff]
      %v771 = vld [vmem:[#allocation2 + $0x142] sm:$0xff]
      %v772 = vld [vmem:[#allocation2 + $0x152] sm:$0xff]
      %v773 = vld [vmem:[#allocation2 + $0x15a] sm:$0xff]
      %v774 = vld [vmem:[#allocation2 + $0x16a] sm:$0xff]
      %v775 = vld [vmem:[#allocation2 + $0x172] sm:$0xff]
      %v776 = vpack.c.bf16 %v745, %v744
      %v777 = vpack.c.bf16 %v747, %v746
      %v778 = vpack.c.bf16 %v749, %v748
      %v779 = vpack.c.bf16 %v751, %v750
      %v780 = vpack.c.bf16 %v753, %v752
      %v781 = vpack.c.bf16 %v755, %v754
      %v782 = vpack.c.bf16 %v757, %v756
      %v783 = vpack.c.bf16 %v759, %v758
      %v784 = vpack.c.bf16 %v761, %v760
      %v785 = vpack.c.bf16 %v763, %v762
      %v786 = vpack.c.bf16 %v765, %v764
      %v787 = vpack.c.bf16 %v767, %v766
      %v788 = vpack.c.bf16 %v769, %v768
      %v789 = vpack.c.bf16 %v771, %v770
      %v790 = vpack.c.bf16 %v773, %v772
      %v791 = vpack.c.bf16 %v775, %v774
      %v808 = vunpack.c.l.b16 %v776
      %v809 = vunpack.c.h.b16 %v776
      %v810 = vunpack.c.l.b16 %v777
      %v811 = vunpack.c.h.b16 %v777
      %v812 = vunpack.c.l.b16 %v778
      %v813 = vunpack.c.h.b16 %v778
      %v814 = vunpack.c.l.b16 %v779
      %v815 = vunpack.c.h.b16 %v779
      %v816 = vunpack.c.l.b16 %v780
      %v817 = vunpack.c.h.b16 %v780
      %v818 = vunpack.c.l.b16 %v781
      %v819 = vunpack.c.h.b16 %v781
      %v820 = vunpack.c.l.b16 %v782
      %v821 = vunpack.c.h.b16 %v782
      %v822 = vunpack.c.l.b16 %v783
      %v823 = vunpack.c.h.b16 %v783
      %v824 = vunpack.c.l.b16 %v784
      %v825 = vunpack.c.h.b16 %v784
      %v826 = vunpack.c.l.b16 %v785
      %v827 = vunpack.c.h.b16 %v785
      %v828 = vunpack.c.l.b16 %v786
      %v829 = vunpack.c.h.b16 %v786
      %v830 = vunpack.c.l.b16 %v787
      %v831 = vunpack.c.h.b16 %v787
      %v832 = vunpack.c.l.b16 %v788
      %v833 = vunpack.c.h.b16 %v788
      %v834 = vunpack.c.l.b16 %v789
      %v835 = vunpack.c.h.b16 %v789
      %v836 = vunpack.c.l.b16 %v790
      %v837 = vunpack.c.h.b16 %v790
      %v838 = vunpack.c.l.b16 %v791
      %v839 = vunpack.c.h.b16 %v791
      %v840 = vpack.c.b16 %v808, %v808
      %v841 = vpack.c.b16 %v809, %v809
      %v842 = vpack.c.b16 %v810, %v810
      %v843 = vpack.c.b16 %v811, %v811
      %v844 = vpack.c.b16 %v812, %v812
      %v845 = vpack.c.b16 %v813, %v813
      %v846 = vpack.c.b16 %v814, %v814
      %v847 = vpack.c.b16 %v815, %v815
      %v848 = vpack.c.b16 %v816, %v816
      %v849 = vpack.c.b16 %v817, %v817
      %v850 = vpack.c.b16 %v818, %v818
      %v851 = vpack.c.b16 %v819, %v819
      %v852 = vpack.c.b16 %v820, %v820
      %v853 = vpack.c.b16 %v821, %v821
      %v854 = vpack.c.b16 %v822, %v822
      %v855 = vpack.c.b16 %v823, %v823
      %v856 = vpack.c.b16 %v824, %v824
      %v857 = vpack.c.b16 %v825, %v825
      %v858 = vpack.c.b16 %v826, %v826
      %v859 = vpack.c.b16 %v827, %v827
      %v860 = vpack.c.b16 %v828, %v828
      %v861 = vpack.c.b16 %v829, %v829
      %v862 = vpack.c.b16 %v830, %v830
      %v863 = vpack.c.b16 %v831, %v831
      %v864 = vpack.c.b16 %v832, %v832
      %v865 = vpack.c.b16 %v833, %v833
      %v866 = vpack.c.b16 %v834, %v834
      %v867 = vpack.c.b16 %v835, %v835
      %v868 = vpack.c.b16 %v836, %v836
      %v869 = vpack.c.b16 %v837, %v837
      %v870 = vpack.c.b16 %v838, %v838
      %v871 = vpack.c.b16 %v839, %v839
      %872 = vrot.lane.b32.xlu0 %v840, 8
      %v873 = vpop.permute.xlu0 %872
      %874 = vrot.lane.b32.xlu0 %v841, 8
      %v875 = vpop.permute.xlu0 %874
      %876 = vrot.lane.b32.xlu0 %v842, 8
      %v877 = vpop.permute.xlu0 %876
      %878 = vrot.lane.b32.xlu0 %v843, 8
      %v879 = vpop.permute.xlu0 %878
      %880 = vrot.lane.b32.xlu0 %v844, 8
      %v881 = vpop.permute.xlu0 %880
      %882 = vrot.lane.b32.xlu0 %v845, 8
      %v883 = vpop.permute.xlu0 %882
      %884 = vrot.lane.b32.xlu0 %v846, 8
      %v885 = vpop.permute.xlu0 %884
      %886 = vrot.lane.b32.xlu0 %v847, 8
      %v887 = vpop.permute.xlu0 %886
      %888 = vrot.lane.b32.xlu0 %v848, 8
      %v889 = vpop.permute.xlu0 %888
      %890 = vrot.lane.b32.xlu0 %v849, 8
      %v891 = vpop.permute.xlu0 %890
      %892 = vrot.lane.b32.xlu0 %v850, 8
      %v893 = vpop.permute.xlu0 %892
      %894 = vrot.lane.b32.xlu0 %v851, 8
      %v895 = vpop.permute.xlu0 %894
      %896 = vrot.lane.b32.xlu0 %v852, 8
      %v897 = vpop.permute.xlu0 %896
      %898 = vrot.lane.b32.xlu0 %v853, 8
      %v899 = vpop.permute.xlu0 %898
      %900 = vrot.lane.b32.xlu0 %v854, 8
      %v901 = vpop.permute.xlu0 %900
      %902 = vrot.lane.b32.xlu0 %v855, 8
      %v903 = vpop.permute.xlu0 %902
      %904 = vrot.lane.b32.xlu0 %v856, 8
      %v905 = vpop.permute.xlu0 %904
      %906 = vrot.lane.b32.xlu0 %v857, 8
      %v907 = vpop.permute.xlu0 %906
      %908 = vrot.lane.b32.xlu0 %v858, 8
      %v909 = vpop.permute.xlu0 %908
      %910 = vrot.lane.b32.xlu0 %v859, 8
      %v911 = vpop.permute.xlu0 %910
      %912 = vrot.lane.b32.xlu0 %v860, 8
      %v913 = vpop.permute.xlu0 %912
      %914 = vrot.lane.b32.xlu0 %v861, 8
      %v915 = vpop.permute.xlu0 %914
      %916 = vrot.lane.b32.xlu0 %v862, 8
      %v917 = vpop.permute.xlu0 %916
      %918 = vrot.lane.b32.xlu0 %v863, 8
      %v919 = vpop.permute.xlu0 %918
      %920 = vrot.lane.b32.xlu0 %v864, 8
      %v921 = vpop.permute.xlu0 %920
      %922 = vrot.lane.b32.xlu0 %v865, 8
      %v923 = vpop.permute.xlu0 %922
      %924 = vrot.lane.b32.xlu0 %v866, 8
      %v925 = vpop.permute.xlu0 %924
      %926 = vrot.lane.b32.xlu0 %v867, 8
      %v927 = vpop.permute.xlu0 %926
      %928 = vrot.lane.b32.xlu0 %v868, 8
      %v929 = vpop.permute.xlu0 %928
      %930 = vrot.lane.b32.xlu0 %v869, 8
      %v931 = vpop.permute.xlu0 %930
      %932 = vrot.lane.b32.xlu0 %v870, 8
      %v933 = vpop.permute.xlu0 %932
      %934 = vrot.lane.b32.xlu0 %v871, 8
      %v935 = vpop.permute.xlu0 %934
      %vm968 = vcmask 93248
      %969 = vst.msk [vmem:[#allocation3] sm:$0xf] %vm968, %v873
      %970 = vst.msk [vmem:[#allocation3 + $0x4] sm:$0xf] %vm968, %v875
      %971 = vst.msk [vmem:[#allocation3 + $0x8] sm:$0xf] %vm968, %v877
      %972 = vst.msk [vmem:[#allocation3 + $0xc] sm:$0xf] %vm968, %v879
      %973 = vst.msk [vmem:[#allocation3 + $0x10] sm:$0xf] %vm968, %v881
      %974 = vst.msk [vmem:[#allocation3 + $0x14] sm:$0xf] %vm968, %v883
      %975 = vst.msk [vmem:[#allocation3 + $0x18] sm:$0xf] %vm968, %v885
      %976 = vst.msk [vmem:[#allocation3 + $0x1c] sm:$0xf] %vm968, %v887
      %977 = vst.msk [vmem:[#allocation3 + $0x20] sm:$0xf] %vm968, %v889
      %978 = vst.msk [vmem:[#allocation3 + $0x24] sm:$0xf] %vm968, %v891
      %979 = vst.msk [vmem:[#allocation3 + $0x28] sm:$0xf] %vm968, %v893
      %980 = vst.msk [vmem:[#allocation3 + $0x2c] sm:$0xf] %vm968, %v895
      %981 = vst.msk [vmem:[#allocation3 + $0x30] sm:$0xf] %vm968, %v897
      %982 = vst.msk [vmem:[#allocation3 + $0x34] sm:$0xf] %vm968, %v899
      %983 = vst.msk [vmem:[#allocation3 + $0x38] sm:$0xf] %vm968, %v901
      %984 = vst.msk [vmem:[#allocation3 + $0x3c] sm:$0xf] %vm968, %v903
      %985 = vst.msk [vmem:[#allocation3 + $0x40] sm:$0xf] %vm968, %v905
      %986 = vst.msk [vmem:[#allocation3 + $0x44] sm:$0xf] %vm968, %v907
      %987 = vst.msk [vmem:[#allocation3 + $0x48] sm:$0xf] %vm968, %v909
      %988 = vst.msk [vmem:[#allocation3 + $0x4c] sm:$0xf] %vm968, %v911
      %989 = vst.msk [vmem:[#allocation3 + $0x50] sm:$0xf] %vm968, %v913
      %990 = vst.msk [vmem:[#allocation3 + $0x54] sm:$0xf] %vm968, %v915
      %991 = vst.msk [vmem:[#allocation3 + $0x58] sm:$0xf] %vm968, %v917
      %992 = vst.msk [vmem:[#allocation3 + $0x5c] sm:$0xf] %vm968, %v919
      %993 = vst.msk [vmem:[#allocation3 + $0x60] sm:$0xf] %vm968, %v921
      %994 = vst.msk [vmem:[#allocation3 + $0x64] sm:$0xf] %vm968, %v923
      %995 = vst.msk [vmem:[#allocation3 + $0x68] sm:$0xf] %vm968, %v925
      %996 = vst.msk [vmem:[#allocation3 + $0x6c] sm:$0xf] %vm968, %v927
      %997 = vst.msk [vmem:[#allocation3 + $0x70] sm:$0xf] %vm968, %v929
      %998 = vst.msk [vmem:[#allocation3 + $0x74] sm:$0xf] %vm968, %v931
      %999 = vst.msk [vmem:[#allocation3 + $0x78] sm:$0xf] %vm968, %v933
      %1000 = vst.msk [vmem:[#allocation3 + $0x7c] sm:$0xf] %vm968, %v935
      %v1001 = vld [vmem:[%s261] sm:$0xff]
      %v1002 = vld [vmem:[%s261 + $0x8] sm:$0xff]
      %v1003 = vld [vmem:[%s261 + $0x18] sm:$0xff]
      %v1004 = vld [vmem:[%s261 + $0x20] sm:$0xff]
      %v1005 = vld [vmem:[%s261 + $0x30] sm:$0xff]
      %v1006 = vld [vmem:[%s261 + $0x38] sm:$0xff]
      %v1007 = vld [vmem:[%s261 + $0x48] sm:$0xff]
      %v1008 = vld [vmem:[%s261 + $0x50] sm:$0xff]
      %v1009 = vld [vmem:[%s261 + $0x60] sm:$0xff]
      %v1010 = vld [vmem:[%s261 + $0x68] sm:$0xff]
      %v1011 = vld [vmem:[%s261 + $0x78] sm:$0xff]
      %v1012 = vld [vmem:[%s261 + $0x80] sm:$0xff]
      %v1013 = vld [vmem:[%s261 + $0x90] sm:$0xff]
      %v1014 = vld [vmem:[%s261 + $0x98] sm:$0xff]
      %v1015 = vld [vmem:[%s261 + $0xa8] sm:$0xff]
      %v1016 = vld [vmem:[%s261 + $0xb0] sm:$0xff]
      %v1017 = vld [vmem:[%s261 + $0xc0] sm:$0xff]
      %v1018 = vld [vmem:[%s261 + $0xc8] sm:$0xff]
      %v1019 = vld [vmem:[%s261 + $0xd8] sm:$0xff]
      %v1020 = vld [vmem:[%s261 + $0xe0] sm:$0xff]
      %v1021 = vld [vmem:[%s261 + $0xf0] sm:$0xff]
      %v1022 = vld [vmem:[%s261 + $0xf8] sm:$0xff]
      %v1023 = vld [vmem:[%s261 + $0x108] sm:$0xff]
      %v1024 = vld [vmem:[%s261 + $0x110] sm:$0xff]
      %v1025 = vld [vmem:[%s261 + $0x120] sm:$0xff]
      %v1026 = vld [vmem:[%s261 + $0x128] sm:$0xff]
      %v1027 = vld [vmem:[%s261 + $0x138] sm:$0xff]
      %v1028 = vld [vmem:[%s261 + $0x140] sm:$0xff]
      %v1029 = vld [vmem:[%s261 + $0x150] sm:$0xff]
      %v1030 = vld [vmem:[%s261 + $0x158] sm:$0xff]
      %v1031 = vld [vmem:[%s261 + $0x168] sm:$0xff]
      %v1032 = vld [vmem:[%s261 + $0x170] sm:$0xff]
      %v1033 = vpack.c.bf16 %v1002, %v1001
      %v1034 = vpack.c.bf16 %v1004, %v1003
      %v1035 = vpack.c.bf16 %v1006, %v1005
      %v1036 = vpack.c.bf16 %v1008, %v1007
      %v1037 = vpack.c.bf16 %v1010, %v1009
      %v1038 = vpack.c.bf16 %v1012, %v1011
      %v1039 = vpack.c.bf16 %v1014, %v1013
      %v1040 = vpack.c.bf16 %v1016, %v1015
      %v1041 = vpack.c.bf16 %v1018, %v1017
      %v1042 = vpack.c.bf16 %v1020, %v1019
      %v1043 = vpack.c.bf16 %v1022, %v1021
      %v1044 = vpack.c.bf16 %v1024, %v1023
      %v1045 = vpack.c.bf16 %v1026, %v1025
      %v1046 = vpack.c.bf16 %v1028, %v1027
      %v1047 = vpack.c.bf16 %v1030, %v1029
      %v1048 = vpack.c.bf16 %v1032, %v1031
      %v1065 = vunpack.c.l.b16 %v1033
      %v1066 = vunpack.c.h.b16 %v1033
      %v1067 = vunpack.c.l.b16 %v1034
      %v1068 = vunpack.c.h.b16 %v1034
      %v1069 = vunpack.c.l.b16 %v1035
      %v1070 = vunpack.c.h.b16 %v1035
      %v1071 = vunpack.c.l.b16 %v1036
      %v1072 = vunpack.c.h.b16 %v1036
      %v1073 = vunpack.c.l.b16 %v1037
      %v1074 = vunpack.c.h.b16 %v1037
      %v1075 = vunpack.c.l.b16 %v1038
      %v1076 = vunpack.c.h.b16 %v1038
      %v1077 = vunpack.c.l.b16 %v1039
      %v1078 = vunpack.c.h.b16 %v1039
      %v1079 = vunpack.c.l.b16 %v1040
      %v1080 = vunpack.c.h.b16 %v1040
      %v1081 = vunpack.c.l.b16 %v1041
      %v1082 = vunpack.c.h.b16 %v1041
      %v1083 = vunpack.c.l.b16 %v1042
      %v1084 = vunpack.c.h.b16 %v1042
      %v1085 = vunpack.c.l.b16 %v1043
      %v1086 = vunpack.c.h.b16 %v1043
      %v1087 = vunpack.c.l.b16 %v1044
      %v1088 = vunpack.c.h.b16 %v1044
      %v1089 = vunpack.c.l.b16 %v1045
      %v1090 = vunpack.c.h.b16 %v1045
      %v1091 = vunpack.c.l.b16 %v1046
      %v1092 = vunpack.c.h.b16 %v1046
      %v1093 = vunpack.c.l.b16 %v1047
      %v1094 = vunpack.c.h.b16 %v1047
      %v1095 = vunpack.c.l.b16 %v1048
      %v1096 = vunpack.c.h.b16 %v1048
      %v1097 = vpack.c.b16 %v1065, %v1065
      %v1098 = vpack.c.b16 %v1066, %v1066
      %v1099 = vpack.c.b16 %v1067, %v1067
      %v1100 = vpack.c.b16 %v1068, %v1068
      %v1101 = vpack.c.b16 %v1069, %v1069
      %v1102 = vpack.c.b16 %v1070, %v1070
      %v1103 = vpack.c.b16 %v1071, %v1071
      %v1104 = vpack.c.b16 %v1072, %v1072
      %v1105 = vpack.c.b16 %v1073, %v1073
      %v1106 = vpack.c.b16 %v1074, %v1074
      %v1107 = vpack.c.b16 %v1075, %v1075
      %v1108 = vpack.c.b16 %v1076, %v1076
      %v1109 = vpack.c.b16 %v1077, %v1077
      %v1110 = vpack.c.b16 %v1078, %v1078
      %v1111 = vpack.c.b16 %v1079, %v1079
      %v1112 = vpack.c.b16 %v1080, %v1080
      %v1113 = vpack.c.b16 %v1081, %v1081
      %v1114 = vpack.c.b16 %v1082, %v1082
      %v1115 = vpack.c.b16 %v1083, %v1083
      %v1116 = vpack.c.b16 %v1084, %v1084
      %v1117 = vpack.c.b16 %v1085, %v1085
      %v1118 = vpack.c.b16 %v1086, %v1086
      %v1119 = vpack.c.b16 %v1087, %v1087
      %v1120 = vpack.c.b16 %v1088, %v1088
      %v1121 = vpack.c.b16 %v1089, %v1089
      %v1122 = vpack.c.b16 %v1090, %v1090
      %v1123 = vpack.c.b16 %v1091, %v1091
      %v1124 = vpack.c.b16 %v1092, %v1092
      %v1125 = vpack.c.b16 %v1093, %v1093
      %v1126 = vpack.c.b16 %v1094, %v1094
      %v1127 = vpack.c.b16 %v1095, %v1095
      %v1128 = vpack.c.b16 %v1096, %v1096
      %1129 = vrot.lane.b32.xlu0 %v1097, 12
      %v1130 = vpop.permute.xlu0 %1129
      %1131 = vrot.lane.b32.xlu0 %v1098, 12
      %v1132 = vpop.permute.xlu0 %1131
      %1133 = vrot.lane.b32.xlu0 %v1099, 12
      %v1134 = vpop.permute.xlu0 %1133
      %1135 = vrot.lane.b32.xlu0 %v1100, 12
      %v1136 = vpop.permute.xlu0 %1135
      %1137 = vrot.lane.b32.xlu0 %v1101, 12
      %v1138 = vpop.permute.xlu0 %1137
      %1139 = vrot.lane.b32.xlu0 %v1102, 12
      %v1140 = vpop.permute.xlu0 %1139
      %1141 = vrot.lane.b32.xlu0 %v1103, 12
      %v1142 = vpop.permute.xlu0 %1141
      %1143 = vrot.lane.b32.xlu0 %v1104, 12
      %v1144 = vpop.permute.xlu0 %1143
      %1145 = vrot.lane.b32.xlu0 %v1105, 12
      %v1146 = vpop.permute.xlu0 %1145
      %1147 = vrot.lane.b32.xlu0 %v1106, 12
      %v1148 = vpop.permute.xlu0 %1147
      %1149 = vrot.lane.b32.xlu0 %v1107, 12
      %v1150 = vpop.permute.xlu0 %1149
      %1151 = vrot.lane.b32.xlu0 %v1108, 12
      %v1152 = vpop.permute.xlu0 %1151
      %1153 = vrot.lane.b32.xlu0 %v1109, 12
      %v1154 = vpop.permute.xlu0 %1153
      %1155 = vrot.lane.b32.xlu0 %v1110, 12
      %v1156 = vpop.permute.xlu0 %1155
      %1157 = vrot.lane.b32.xlu0 %v1111, 12
      %v1158 = vpop.permute.xlu0 %1157
      %1159 = vrot.lane.b32.xlu0 %v1112, 12
      %v1160 = vpop.permute.xlu0 %1159
      %1161 = vrot.lane.b32.xlu0 %v1113, 12
      %v1162 = vpop.permute.xlu0 %1161
      %1163 = vrot.lane.b32.xlu0 %v1114, 12
      %v1164 = vpop.permute.xlu0 %1163
      %1165 = vrot.lane.b32.xlu0 %v1115, 12
      %v1166 = vpop.permute.xlu0 %1165
      %1167 = vrot.lane.b32.xlu0 %v1116, 12
      %v1168 = vpop.permute.xlu0 %1167
      %1169 = vrot.lane.b32.xlu0 %v1117, 12
      %v1170 = vpop.permute.xlu0 %1169
      %1171 = vrot.lane.b32.xlu0 %v1118, 12
      %v1172 = vpop.permute.xlu0 %1171
      %1173 = vrot.lane.b32.xlu0 %v1119, 12
      %v1174 = vpop.permute.xlu0 %1173
      %1175 = vrot.lane.b32.xlu0 %v1120, 12
      %v1176 = vpop.permute.xlu0 %1175
      %1177 = vrot.lane.b32.xlu0 %v1121, 12
      %v1178 = vpop.permute.xlu0 %1177
      %1179 = vrot.lane.b32.xlu0 %v1122, 12
      %v1180 = vpop.permute.xlu0 %1179
      %1181 = vrot.lane.b32.xlu0 %v1123, 12
      %v1182 = vpop.permute.xlu0 %1181
      %1183 = vrot.lane.b32.xlu0 %v1124, 12
      %v1184 = vpop.permute.xlu0 %1183
      %1185 = vrot.lane.b32.xlu0 %v1125, 12
      %v1186 = vpop.permute.xlu0 %1185
      %1187 = vrot.lane.b32.xlu0 %v1126, 12
      %v1188 = vpop.permute.xlu0 %1187
      %1189 = vrot.lane.b32.xlu0 %v1127, 12
      %v1190 = vpop.permute.xlu0 %1189
      %1191 = vrot.lane.b32.xlu0 %v1128, 12
      %v1192 = vpop.permute.xlu0 %1191
      %vm1225 = vcmask 126048
      %1226 = vst.msk [vmem:[#allocation3] sm:$0xf] %vm1225, %v1130
      %1227 = vst.msk [vmem:[#allocation3 + $0x4] sm:$0xf] %vm1225, %v1132
      %1228 = vst.msk [vmem:[#allocation3 + $0x8] sm:$0xf] %vm1225, %v1134
      %1229 = vst.msk [vmem:[#allocation3 + $0xc] sm:$0xf] %vm1225, %v1136
      %1230 = vst.msk [vmem:[#allocation3 + $0x10] sm:$0xf] %vm1225, %v1138
      %1231 = vst.msk [vmem:[#allocation3 + $0x14] sm:$0xf] %vm1225, %v1140
      %1232 = vst.msk [vmem:[#allocation3 + $0x18] sm:$0xf] %vm1225, %v1142
      %1233 = vst.msk [vmem:[#allocation3 + $0x1c] sm:$0xf] %vm1225, %v1144
      %1234 = vst.msk [vmem:[#allocation3 + $0x20] sm:$0xf] %vm1225, %v1146
      %1235 = vst.msk [vmem:[#allocation3 + $0x24] sm:$0xf] %vm1225, %v1148
      %1236 = vst.msk [vmem:[#allocation3 + $0x28] sm:$0xf] %vm1225, %v1150
      %1237 = vst.msk [vmem:[#allocation3 + $0x2c] sm:$0xf] %vm1225, %v1152
      %1238 = vst.msk [vmem:[#allocation3 + $0x30] sm:$0xf] %vm1225, %v1154
      %1239 = vst.msk [vmem:[#allocation3 + $0x34] sm:$0xf] %vm1225, %v1156
      %1240 = vst.msk [vmem:[#allocation3 + $0x38] sm:$0xf] %vm1225, %v1158
      %1241 = vst.msk [vmem:[#allocation3 + $0x3c] sm:$0xf] %vm1225, %v1160
      %1242 = vst.msk [vmem:[#allocation3 + $0x40] sm:$0xf] %vm1225, %v1162
      %1243 = vst.msk [vmem:[#allocation3 + $0x44] sm:$0xf] %vm1225, %v1164
      %1244 = vst.msk [vmem:[#allocation3 + $0x48] sm:$0xf] %vm1225, %v1166
      %1245 = vst.msk [vmem:[#allocation3 + $0x4c] sm:$0xf] %vm1225, %v1168
      %1246 = vst.msk [vmem:[#allocation3 + $0x50] sm:$0xf] %vm1225, %v1170
      %1247 = vst.msk [vmem:[#allocation3 + $0x54] sm:$0xf] %vm1225, %v1172
      %1248 = vst.msk [vmem:[#allocation3 + $0x58] sm:$0xf] %vm1225, %v1174
      %1249 = vst.msk [vmem:[#allocation3 + $0x5c] sm:$0xf] %vm1225, %v1176
      %1250 = vst.msk [vmem:[#allocation3 + $0x60] sm:$0xf] %vm1225, %v1178
      %1251 = vst.msk [vmem:[#allocation3 + $0x64] sm:$0xf] %vm1225, %v1180
      %1252 = vst.msk [vmem:[#allocation3 + $0x68] sm:$0xf] %vm1225, %v1182
      %1253 = vst.msk [vmem:[#allocation3 + $0x6c] sm:$0xf] %vm1225, %v1184
      %1254 = vst.msk [vmem:[#allocation3 + $0x70] sm:$0xf] %vm1225, %v1186
      %1255 = vst.msk [vmem:[#allocation3 + $0x74] sm:$0xf] %vm1225, %v1188
      %1256 = vst.msk [vmem:[#allocation3 + $0x78] sm:$0xf] %vm1225, %v1190
      %1257 = vst.msk [vmem:[#allocation3 + $0x7c] sm:$0xf] %vm1225, %v1192
      %v1258 = vld [vmem:[%s261 + $0x1] sm:$0xff]
      %v1259 = vld [vmem:[%s261 + $0x9] sm:$0xff]
      %v1260 = vld [vmem:[%s261 + $0x19] sm:$0xff]
      %v1261 = vld [vmem:[%s261 + $0x21] sm:$0xff]
      %v1262 = vld [vmem:[%s261 + $0x31] sm:$0xff]
      %v1263 = vld [vmem:[%s261 + $0x39] sm:$0xff]
      %v1264 = vld [vmem:[%s261 + $0x49] sm:$0xff]
      %v1265 = vld [vmem:[%s261 + $0x51] sm:$0xff]
      %v1266 = vld [vmem:[%s261 + $0x61] sm:$0xff]
      %v1267 = vld [vmem:[%s261 + $0x69] sm:$0xff]
      %v1268 = vld [vmem:[%s261 + $0x79] sm:$0xff]
      %v1269 = vld [vmem:[%s261 + $0x81] sm:$0xff]
      %v1270 = vld [vmem:[%s261 + $0x91] sm:$0xff]
      %v1271 = vld [vmem:[%s261 + $0x99] sm:$0xff]
      %v1272 = vld [vmem:[%s261 + $0xa9] sm:$0xff]
      %v1273 = vld [vmem:[%s261 + $0xb1] sm:$0xff]
      %v1274 = vld [vmem:[%s261 + $0xc1] sm:$0xff]
      %v1275 = vld [vmem:[%s261 + $0xc9] sm:$0xff]
      %v1276 = vld [vmem:[%s261 + $0xd9] sm:$0xff]
      %v1277 = vld [vmem:[%s261 + $0xe1] sm:$0xff]
      %v1278 = vld [vmem:[%s261 + $0xf1] sm:$0xff]
      %v1279 = vld [vmem:[%s261 + $0xf9] sm:$0xff]
      %v1280 = vld [vmem:[%s261 + $0x109] sm:$0xff]
      %v1281 = vld [vmem:[%s261 + $0x111] sm:$0xff]
      %v1282 = vld [vmem:[%s261 + $0x121] sm:$0xff]
      %v1283 = vld [vmem:[%s261 + $0x129] sm:$0xff]
      %v1284 = vld [vmem:[%s261 + $0x139] sm:$0xff]
      %v1285 = vld [vmem:[%s261 + $0x141] sm:$0xff]
      %v1286 = vld [vmem:[%s261 + $0x151] sm:$0xff]
      %v1287 = vld [vmem:[%s261 + $0x159] sm:$0xff]
      %v1288 = vld [vmem:[%s261 + $0x169] sm:$0xff]
      %v1289 = vld [vmem:[%s261 + $0x171] sm:$0xff]
      %v1290 = vpack.c.bf16 %v1259, %v1258
      %v1291 = vpack.c.bf16 %v1261, %v1260
      %v1292 = vpack.c.bf16 %v1263, %v1262
      %v1293 = vpack.c.bf16 %v1265, %v1264
      %v1294 = vpack.c.bf16 %v1267, %v1266
      %v1295 = vpack.c.bf16 %v1269, %v1268
      %v1296 = vpack.c.bf16 %v1271, %v1270
      %v1297 = vpack.c.bf16 %v1273, %v1272
      %v1298 = vpack.c.bf16 %v1275, %v1274
      %v1299 = vpack.c.bf16 %v1277, %v1276
      %v1300 = vpack.c.bf16 %v1279, %v1278
      %v1301 = vpack.c.bf16 %v1281, %v1280
      %v1302 = vpack.c.bf16 %v1283, %v1282
      %v1303 = vpack.c.bf16 %v1285, %v1284
      %v1304 = vpack.c.bf16 %v1287, %v1286
      %v1305 = vpack.c.bf16 %v1289, %v1288
      %v1322 = vunpack.c.l.b16 %v1290
      %v1323 = vunpack.c.h.b16 %v1290
      %v1324 = vunpack.c.l.b16 %v1291
      %v1325 = vunpack.c.h.b16 %v1291
      %v1326 = vunpack.c.l.b16 %v1292
      %v1327 = vunpack.c.h.b16 %v1292
      %v1328 = vunpack.c.l.b16 %v1293
      %v1329 = vunpack.c.h.b16 %v1293
      %v1330 = vunpack.c.l.b16 %v1294
      %v1331 = vunpack.c.h.b16 %v1294
      %v1332 = vunpack.c.l.b16 %v1295
      %v1333 = vunpack.c.h.b16 %v1295
      %v1334 = vunpack.c.l.b16 %v1296
      %v1335 = vunpack.c.h.b16 %v1296
      %v1336 = vunpack.c.l.b16 %v1297
      %v1337 = vunpack.c.h.b16 %v1297
      %v1338 = vunpack.c.l.b16 %v1298
      %v1339 = vunpack.c.h.b16 %v1298
      %v1340 = vunpack.c.l.b16 %v1299
      %v1341 = vunpack.c.h.b16 %v1299
      %v1342 = vunpack.c.l.b16 %v1300
      %v1343 = vunpack.c.h.b16 %v1300
      %v1344 = vunpack.c.l.b16 %v1301
      %v1345 = vunpack.c.h.b16 %v1301
      %v1346 = vunpack.c.l.b16 %v1302
      %v1347 = vunpack.c.h.b16 %v1302
      %v1348 = vunpack.c.l.b16 %v1303
      %v1349 = vunpack.c.h.b16 %v1303
      %v1350 = vunpack.c.l.b16 %v1304
      %v1351 = vunpack.c.h.b16 %v1304
      %v1352 = vunpack.c.l.b16 %v1305
      %v1353 = vunpack.c.h.b16 %v1305
      %v1354 = vpack.c.b16 %v1322, %v1322
      %v1355 = vpack.c.b16 %v1323, %v1323
      %v1356 = vpack.c.b16 %v1324, %v1324
      %v1357 = vpack.c.b16 %v1325, %v1325
      %v1358 = vpack.c.b16 %v1326, %v1326
      %v1359 = vpack.c.b16 %v1327, %v1327
      %v1360 = vpack.c.b16 %v1328, %v1328
      %v1361 = vpack.c.b16 %v1329, %v1329
      %v1362 = vpack.c.b16 %v1330, %v1330
      %v1363 = vpack.c.b16 %v1331, %v1331
      %v1364 = vpack.c.b16 %v1332, %v1332
      %v1365 = vpack.c.b16 %v1333, %v1333
      %v1366 = vpack.c.b16 %v1334, %v1334
      %v1367 = vpack.c.b16 %v1335, %v1335
      %v1368 = vpack.c.b16 %v1336, %v1336
      %v1369 = vpack.c.b16 %v1337, %v1337
      %v1370 = vpack.c.b16 %v1338, %v1338
      %v1371 = vpack.c.b16 %v1339, %v1339
      %v1372 = vpack.c.b16 %v1340, %v1340
      %v1373 = vpack.c.b16 %v1341, %v1341
      %v1374 = vpack.c.b16 %v1342, %v1342
      %v1375 = vpack.c.b16 %v1343, %v1343
      %v1376 = vpack.c.b16 %v1344, %v1344
      %v1377 = vpack.c.b16 %v1345, %v1345
      %v1378 = vpack.c.b16 %v1346, %v1346
      %v1379 = vpack.c.b16 %v1347, %v1347
      %v1380 = vpack.c.b16 %v1348, %v1348
      %v1381 = vpack.c.b16 %v1349, %v1349
      %v1382 = vpack.c.b16 %v1350, %v1350
      %v1383 = vpack.c.b16 %v1351, %v1351
      %v1384 = vpack.c.b16 %v1352, %v1352
      %v1385 = vpack.c.b16 %v1353, %v1353
      %1386 = vrot.lane.b32.xlu0 %v1354, 16
      %v1387 = vpop.permute.xlu0 %1386
      %1388 = vrot.lane.b32.xlu0 %v1355, 16
      %v1389 = vpop.permute.xlu0 %1388
      %1390 = vrot.lane.b32.xlu0 %v1356, 16
      %v1391 = vpop.permute.xlu0 %1390
      %1392 = vrot.lane.b32.xlu0 %v1357, 16
      %v1393 = vpop.permute.xlu0 %1392
      %1394 = vrot.lane.b32.xlu0 %v1358, 16
      %v1395 = vpop.permute.xlu0 %1394
      %1396 = vrot.lane.b32.xlu0 %v1359, 16
      %v1397 = vpop.permute.xlu0 %1396
      %1398 = vrot.lane.b32.xlu0 %v1360, 16
      %v1399 = vpop.permute.xlu0 %1398
      %1400 = vrot.lane.b32.xlu0 %v1361, 16
      %v1401 = vpop.permute.xlu0 %1400
      %1402 = vrot.lane.b32.xlu0 %v1362, 16
      %v1403 = vpop.permute.xlu0 %1402
      %1404 = vrot.lane.b32.xlu0 %v1363, 16
      %v1405 = vpop.permute.xlu0 %1404
      %1406 = vrot.lane.b32.xlu0 %v1364, 16
      %v1407 = vpop.permute.xlu0 %1406
      %1408 = vrot.lane.b32.xlu0 %v1365, 16
      %v1409 = vpop.permute.xlu0 %1408
      %1410 = vrot.lane.b32.xlu0 %v1366, 16
      %v1411 = vpop.permute.xlu0 %1410
      %1412 = vrot.lane.b32.xlu0 %v1367, 16
      %v1413 = vpop.permute.xlu0 %1412
      %1414 = vrot.lane.b32.xlu0 %v1368, 16
      %v1415 = vpop.permute.xlu0 %1414
      %1416 = vrot.lane.b32.xlu0 %v1369, 16
      %v1417 = vpop.permute.xlu0 %1416
      %1418 = vrot.lane.b32.xlu0 %v1370, 16
      %v1419 = vpop.permute.xlu0 %1418
      %1420 = vrot.lane.b32.xlu0 %v1371, 16
      %v1421 = vpop.permute.xlu0 %1420
      %1422 = vrot.lane.b32.xlu0 %v1372, 16
      %v1423 = vpop.permute.xlu0 %1422
      %1424 = vrot.lane.b32.xlu0 %v1373, 16
      %v1425 = vpop.permute.xlu0 %1424
      %1426 = vrot.lane.b32.xlu0 %v1374, 16
      %v1427 = vpop.permute.xlu0 %1426
      %1428 = vrot.lane.b32.xlu0 %v1375, 16
      %v1429 = vpop.permute.xlu0 %1428
      %1430 = vrot.lane.b32.xlu0 %v1376, 16
      %v1431 = vpop.permute.xlu0 %1430
      %1432 = vrot.lane.b32.xlu0 %v1377, 16
      %v1433 = vpop.permute.xlu0 %1432
      %1434 = vrot.lane.b32.xlu0 %v1378, 16
      %v1435 = vpop.permute.xlu0 %1434
      %1436 = vrot.lane.b32.xlu0 %v1379, 16
      %v1437 = vpop.permute.xlu0 %1436
      %1438 = vrot.lane.b32.xlu0 %v1380, 16
      %v1439 = vpop.permute.xlu0 %1438
      %1440 = vrot.lane.b32.xlu0 %v1381, 16
      %v1441 = vpop.permute.xlu0 %1440
      %1442 = vrot.lane.b32.xlu0 %v1382, 16
      %v1443 = vpop.permute.xlu0 %1442
      %1444 = vrot.lane.b32.xlu0 %v1383, 16
      %v1445 = vpop.permute.xlu0 %1444
      %1446 = vrot.lane.b32.xlu0 %v1384, 16
      %v1447 = vpop.permute.xlu0 %1446
      %1448 = vrot.lane.b32.xlu0 %v1385, 16
      %v1449 = vpop.permute.xlu0 %1448
      %vm1482 = vcmask 158848
      %1483 = vst.msk [vmem:[#allocation3] sm:$0xf] %vm1482, %v1387
      %1484 = vst.msk [vmem:[#allocation3 + $0x4] sm:$0xf] %vm1482, %v1389
      %1485 = vst.msk [vmem:[#allocation3 + $0x8] sm:$0xf] %vm1482, %v1391
      %1486 = vst.msk [vmem:[#allocation3 + $0xc] sm:$0xf] %vm1482, %v1393
      %1487 = vst.msk [vmem:[#allocation3 + $0x10] sm:$0xf] %vm1482, %v1395
      %1488 = vst.msk [vmem:[#allocation3 + $0x14] sm:$0xf] %vm1482, %v1397
      %1489 = vst.msk [vmem:[#allocation3 + $0x18] sm:$0xf] %vm1482, %v1399
      %1490 = vst.msk [vmem:[#allocation3 + $0x1c] sm:$0xf] %vm1482, %v1401
      %1491 = vst.msk [vmem:[#allocation3 + $0x20] sm:$0xf] %vm1482, %v1403
      %1492 = vst.msk [vmem:[#allocation3 + $0x24] sm:$0xf] %vm1482, %v1405
      %1493 = vst.msk [vmem:[#allocation3 + $0x28] sm:$0xf] %vm1482, %v1407
      %1494 = vst.msk [vmem:[#allocation3 + $0x2c] sm:$0xf] %vm1482, %v1409
      %1495 = vst.msk [vmem:[#allocation3 + $0x30] sm:$0xf] %vm1482, %v1411
      %1496 = vst.msk [vmem:[#allocation3 + $0x34] sm:$0xf] %vm1482, %v1413
      %1497 = vst.msk [vmem:[#allocation3 + $0x38] sm:$0xf] %vm1482, %v1415
      %1498 = vst.msk [vmem:[#allocation3 + $0x3c] sm:$0xf] %vm1482, %v1417
      %1499 = vst.msk [vmem:[#allocation3 + $0x40] sm:$0xf] %vm1482, %v1419
      %1500 = vst.msk [vmem:[#allocation3 + $0x44] sm:$0xf] %vm1482, %v1421
      %1501 = vst.msk [vmem:[#allocation3 + $0x48] sm:$0xf] %vm1482, %v1423
      %1502 = vst.msk [vmem:[#allocation3 + $0x4c] sm:$0xf] %vm1482, %v1425
      %1503 = vst.msk [vmem:[#allocation3 + $0x50] sm:$0xf] %vm1482, %v1427
      %1504 = vst.msk [vmem:[#allocation3 + $0x54] sm:$0xf] %vm1482, %v1429
      %1505 = vst.msk [vmem:[#allocation3 + $0x58] sm:$0xf] %vm1482, %v1431
      %1506 = vst.msk [vmem:[#allocation3 + $0x5c] sm:$0xf] %vm1482, %v1433
      %1507 = vst.msk [vmem:[#allocation3 + $0x60] sm:$0xf] %vm1482, %v1435
      %1508 = vst.msk [vmem:[#allocation3 + $0x64] sm:$0xf] %vm1482, %v1437
      %1509 = vst.msk [vmem:[#allocation3 + $0x68] sm:$0xf] %vm1482, %v1439
      %1510 = vst.msk [vmem:[#allocation3 + $0x6c] sm:$0xf] %vm1482, %v1441
      %1511 = vst.msk [vmem:[#allocation3 + $0x70] sm:$0xf] %vm1482, %v1443
      %1512 = vst.msk [vmem:[#allocation3 + $0x74] sm:$0xf] %vm1482, %v1445
      %1513 = vst.msk [vmem:[#allocation3 + $0x78] sm:$0xf] %vm1482, %v1447
      %1514 = vst.msk [vmem:[#allocation3 + $0x7c] sm:$0xf] %vm1482, %v1449
      %v1515 = vld [vmem:[%s261 + $0x2] sm:$0xff]
      %v1516 = vld [vmem:[%s261 + $0xa] sm:$0xff]
      %v1517 = vld [vmem:[%s261 + $0x1a] sm:$0xff]
      %v1518 = vld [vmem:[%s261 + $0x22] sm:$0xff]
      %v1519 = vld [vmem:[%s261 + $0x32] sm:$0xff]
      %v1520 = vld [vmem:[%s261 + $0x3a] sm:$0xff]
      %v1521 = vld [vmem:[%s261 + $0x4a] sm:$0xff]
      %v1522 = vld [vmem:[%s261 + $0x52] sm:$0xff]
      %v1523 = vld [vmem:[%s261 + $0x62] sm:$0xff]
      %v1524 = vld [vmem:[%s261 + $0x6a] sm:$0xff]
      %v1525 = vld [vmem:[%s261 + $0x7a] sm:$0xff]
      %v1526 = vld [vmem:[%s261 + $0x82] sm:$0xff]
      %v1527 = vld [vmem:[%s261 + $0x92] sm:$0xff]
      %v1528 = vld [vmem:[%s261 + $0x9a] sm:$0xff]
      %v1529 = vld [vmem:[%s261 + $0xaa] sm:$0xff]
      %v1530 = vld [vmem:[%s261 + $0xb2] sm:$0xff]
      %v1531 = vld [vmem:[%s261 + $0xc2] sm:$0xff]
      %v1532 = vld [vmem:[%s261 + $0xca] sm:$0xff]
      %v1533 = vld [vmem:[%s261 + $0xda] sm:$0xff]
      %v1534 = vld [vmem:[%s261 + $0xe2] sm:$0xff]
      %v1535 = vld [vmem:[%s261 + $0xf2] sm:$0xff]
      %v1536 = vld [vmem:[%s261 + $0xfa] sm:$0xff]
      %v1537 = vld [vmem:[%s261 + $0x10a] sm:$0xff]
      %v1538 = vld [vmem:[%s261 + $0x112] sm:$0xff]
      %v1539 = vld [vmem:[%s261 + $0x122] sm:$0xff]
      %v1540 = vld [vmem:[%s261 + $0x12a] sm:$0xff]
      %v1541 = vld [vmem:[%s261 + $0x13a] sm:$0xff]
      %v1542 = vld [vmem:[%s261 + $0x142] sm:$0xff]
      %v1543 = vld [vmem:[%s261 + $0x152] sm:$0xff]
      %v1544 = vld [vmem:[%s261 + $0x15a] sm:$0xff]
      %v1545 = vld [vmem:[%s261 + $0x16a] sm:$0xff]
      %v1546 = vld [vmem:[%s261 + $0x172] sm:$0xff]
      %v1547 = vpack.c.bf16 %v1516, %v1515
      %v1548 = vpack.c.bf16 %v1518, %v1517
      %v1549 = vpack.c.bf16 %v1520, %v1519
      %v1550 = vpack.c.bf16 %v1522, %v1521
      %v1551 = vpack.c.bf16 %v1524, %v1523
      %v1552 = vpack.c.bf16 %v1526, %v1525
      %v1553 = vpack.c.bf16 %v1528, %v1527
      %v1554 = vpack.c.bf16 %v1530, %v1529
      %v1555 = vpack.c.bf16 %v1532, %v1531
      %v1556 = vpack.c.bf16 %v1534, %v1533
      %v1557 = vpack.c.bf16 %v1536, %v1535
      %v1558 = vpack.c.bf16 %v1538, %v1537
      %v1559 = vpack.c.bf16 %v1540, %v1539
      %v1560 = vpack.c.bf16 %v1542, %v1541
      %v1561 = vpack.c.bf16 %v1544, %v1543
      %v1562 = vpack.c.bf16 %v1546, %v1545
      %v1579 = vunpack.c.l.b16 %v1547
      %v1580 = vunpack.c.h.b16 %v1547
      %v1581 = vunpack.c.l.b16 %v1548
      %v1582 = vunpack.c.h.b16 %v1548
      %v1583 = vunpack.c.l.b16 %v1549
      %v1584 = vunpack.c.h.b16 %v1549
      %v1585 = vunpack.c.l.b16 %v1550
      %v1586 = vunpack.c.h.b16 %v1550
      %v1587 = vunpack.c.l.b16 %v1551
      %v1588 = vunpack.c.h.b16 %v1551
      %v1589 = vunpack.c.l.b16 %v1552
      %v1590 = vunpack.c.h.b16 %v1552
      %v1591 = vunpack.c.l.b16 %v1553
      %v1592 = vunpack.c.h.b16 %v1553
      %v1593 = vunpack.c.l.b16 %v1554
      %v1594 = vunpack.c.h.b16 %v1554
      %v1595 = vunpack.c.l.b16 %v1555
      %v1596 = vunpack.c.h.b16 %v1555
      %v1597 = vunpack.c.l.b16 %v1556
      %v1598 = vunpack.c.h.b16 %v1556
      %v1599 = vunpack.c.l.b16 %v1557
      %v1600 = vunpack.c.h.b16 %v1557
      %v1601 = vunpack.c.l.b16 %v1558
      %v1602 = vunpack.c.h.b16 %v1558
      %v1603 = vunpack.c.l.b16 %v1559
      %v1604 = vunpack.c.h.b16 %v1559
      %v1605 = vunpack.c.l.b16 %v1560
      %v1606 = vunpack.c.h.b16 %v1560
      %v1607 = vunpack.c.l.b16 %v1561
      %v1608 = vunpack.c.h.b16 %v1561
      %v1609 = vunpack.c.l.b16 %v1562
      %v1610 = vunpack.c.h.b16 %v1562
      %v1611 = vpack.c.b16 %v1579, %v1579
      %v1612 = vpack.c.b16 %v1580, %v1580
      %v1613 = vpack.c.b16 %v1581, %v1581
      %v1614 = vpack.c.b16 %v1582, %v1582
      %v1615 = vpack.c.b16 %v1583, %v1583
      %v1616 = vpack.c.b16 %v1584, %v1584
      %v1617 = vpack.c.b16 %v1585, %v1585
      %v1618 = vpack.c.b16 %v1586, %v1586
      %v1619 = vpack.c.b16 %v1587, %v1587
      %v1620 = vpack.c.b16 %v1588, %v1588
      %v1621 = vpack.c.b16 %v1589, %v1589
      %v1622 = vpack.c.b16 %v1590, %v1590
      %v1623 = vpack.c.b16 %v1591, %v1591
      %v1624 = vpack.c.b16 %v1592, %v1592
      %v1625 = vpack.c.b16 %v1593, %v1593
      %v1626 = vpack.c.b16 %v1594, %v1594
      %v1627 = vpack.c.b16 %v1595, %v1595
      %v1628 = vpack.c.b16 %v1596, %v1596
      %v1629 = vpack.c.b16 %v1597, %v1597
      %v1630 = vpack.c.b16 %v1598, %v1598
      %v1631 = vpack.c.b16 %v1599, %v1599
      %v1632 = vpack.c.b16 %v1600, %v1600
      %v1633 = vpack.c.b16 %v1601, %v1601
      %v1634 = vpack.c.b16 %v1602, %v1602
      %v1635 = vpack.c.b16 %v1603, %v1603
      %v1636 = vpack.c.b16 %v1604, %v1604
      %v1637 = vpack.c.b16 %v1605, %v1605
      %v1638 = vpack.c.b16 %v1606, %v1606
      %v1639 = vpack.c.b16 %v1607, %v1607
      %v1640 = vpack.c.b16 %v1608, %v1608
      %v1641 = vpack.c.b16 %v1609, %v1609
      %v1642 = vpack.c.b16 %v1610, %v1610
      %1643 = vrot.lane.b32.xlu0 %v1611, 20
      %v1644 = vpop.permute.xlu0 %1643
      %1645 = vrot.lane.b32.xlu0 %v1612, 20
      %v1646 = vpop.permute.xlu0 %1645
      %1647 = vrot.lane.b32.xlu0 %v1613, 20
      %v1648 = vpop.permute.xlu0 %1647
      %1649 = vrot.lane.b32.xlu0 %v1614, 20
      %v1650 = vpop.permute.xlu0 %1649
      %1651 = vrot.lane.b32.xlu0 %v1615, 20
      %v1652 = vpop.permute.xlu0 %1651
      %1653 = vrot.lane.b32.xlu0 %v1616, 20
      %v1654 = vpop.permute.xlu0 %1653
      %1655 = vrot.lane.b32.xlu0 %v1617, 20
      %v1656 = vpop.permute.xlu0 %1655
      %1657 = vrot.lane.b32.xlu0 %v1618, 20
      %v1658 = vpop.permute.xlu0 %1657
      %1659 = vrot.lane.b32.xlu0 %v1619, 20
      %v1660 = vpop.permute.xlu0 %1659
      %1661 = vrot.lane.b32.xlu0 %v1620, 20
      %v1662 = vpop.permute.xlu0 %1661
      %1663 = vrot.lane.b32.xlu0 %v1621, 20
      %v1664 = vpop.permute.xlu0 %1663
      %1665 = vrot.lane.b32.xlu0 %v1622, 20
      %v1666 = vpop.permute.xlu0 %1665
      %1667 = vrot.lane.b32.xlu0 %v1623, 20
      %v1668 = vpop.permute.xlu0 %1667
      %1669 = vrot.lane.b32.xlu0 %v1624, 20
      %v1670 = vpop.permute.xlu0 %1669
      %1671 = vrot.lane.b32.xlu0 %v1625, 20
      %v1672 = vpop.permute.xlu0 %1671
      %1673 = vrot.lane.b32.xlu0 %v1626, 20
      %v1674 = vpop.permute.xlu0 %1673
      %1675 = vrot.lane.b32.xlu0 %v1627, 20
      %v1676 = vpop.permute.xlu0 %1675
      %1677 = vrot.lane.b32.xlu0 %v1628, 20
      %v1678 = vpop.permute.xlu0 %1677
      %1679 = vrot.lane.b32.xlu0 %v1629, 20
      %v1680 = vpop.permute.xlu0 %1679
      %1681 = vrot.lane.b32.xlu0 %v1630, 20
      %v1682 = vpop.permute.xlu0 %1681
      %1683 = vrot.lane.b32.xlu0 %v1631, 20
      %v1684 = vpop.permute.xlu0 %1683
      %1685 = vrot.lane.b32.xlu0 %v1632, 20
      %v1686 = vpop.permute.xlu0 %1685
      %1687 = vrot.lane.b32.xlu0 %v1633, 20
      %v1688 = vpop.permute.xlu0 %1687
      %1689 = vrot.lane.b32.xlu0 %v1634, 20
      %v1690 = vpop.permute.xlu0 %1689
      %1691 = vrot.lane.b32.xlu0 %v1635, 20
      %v1692 = vpop.permute.xlu0 %1691
      %1693 = vrot.lane.b32.xlu0 %v1636, 20
      %v1694 = vpop.permute.xlu0 %1693
      %1695 = vrot.lane.b32.xlu0 %v1637, 20
      %v1696 = vpop.permute.xlu0 %1695
      %1697 = vrot.lane.b32.xlu0 %v1638, 20
      %v1698 = vpop.permute.xlu0 %1697
      %1699 = vrot.lane.b32.xlu0 %v1639, 20
      %v1700 = vpop.permute.xlu0 %1699
      %1701 = vrot.lane.b32.xlu0 %v1640, 20
      %v1702 = vpop.permute.xlu0 %1701
      %1703 = vrot.lane.b32.xlu0 %v1641, 20
      %v1704 = vpop.permute.xlu0 %1703
      %1705 = vrot.lane.b32.xlu0 %v1642, 20
      %v1706 = vpop.permute.xlu0 %1705
      %vm1739 = vcmask 191648
      %1740 = vst.msk [vmem:[#allocation3] sm:$0xf] %vm1739, %v1644
      %1741 = vst.msk [vmem:[#allocation3 + $0x4] sm:$0xf] %vm1739, %v1646
      %1742 = vst.msk [vmem:[#allocation3 + $0x8] sm:$0xf] %vm1739, %v1648
      %1743 = vst.msk [vmem:[#allocation3 + $0xc] sm:$0xf] %vm1739, %v1650
      %1744 = vst.msk [vmem:[#allocation3 + $0x10] sm:$0xf] %vm1739, %v1652
      %1745 = vst.msk [vmem:[#allocation3 + $0x14] sm:$0xf] %vm1739, %v1654
      %1746 = vst.msk [vmem:[#allocation3 + $0x18] sm:$0xf] %vm1739, %v1656
      %1747 = vst.msk [vmem:[#allocation3 + $0x1c] sm:$0xf] %vm1739, %v1658
      %1748 = vst.msk [vmem:[#allocation3 + $0x20] sm:$0xf] %vm1739, %v1660
      %1749 = vst.msk [vmem:[#allocation3 + $0x24] sm:$0xf] %vm1739, %v1662
      %1750 = vst.msk [vmem:[#allocation3 + $0x28] sm:$0xf] %vm1739, %v1664
      %1751 = vst.msk [vmem:[#allocation3 + $0x2c] sm:$0xf] %vm1739, %v1666
      %1752 = vst.msk [vmem:[#allocation3 + $0x30] sm:$0xf] %vm1739, %v1668
      %1753 = vst.msk [vmem:[#allocation3 + $0x34] sm:$0xf] %vm1739, %v1670
      %1754 = vst.msk [vmem:[#allocation3 + $0x38] sm:$0xf] %vm1739, %v1672
      %1755 = vst.msk [vmem:[#allocation3 + $0x3c] sm:$0xf] %vm1739, %v1674
      %1756 = vst.msk [vmem:[#allocation3 + $0x40] sm:$0xf] %vm1739, %v1676
      %1757 = vst.msk [vmem:[#allocation3 + $0x44] sm:$0xf] %vm1739, %v1678
      %1758 = vst.msk [vmem:[#allocation3 + $0x48] sm:$0xf] %vm1739, %v1680
      %1759 = vst.msk [vmem:[#allocation3 + $0x4c] sm:$0xf] %vm1739, %v1682
      %1760 = vst.msk [vmem:[#allocation3 + $0x50] sm:$0xf] %vm1739, %v1684
      %1761 = vst.msk [vmem:[#allocation3 + $0x54] sm:$0xf] %vm1739, %v1686
      %1762 = vst.msk [vmem:[#allocation3 + $0x58] sm:$0xf] %vm1739, %v1688
      %1763 = vst.msk [vmem:[#allocation3 + $0x5c] sm:$0xf] %vm1739, %v1690
      %1764 = vst.msk [vmem:[#allocation3 + $0x60] sm:$0xf] %vm1739, %v1692
      %1765 = vst.msk [vmem:[#allocation3 + $0x64] sm:$0xf] %vm1739, %v1694
      %1766 = vst.msk [vmem:[#allocation3 + $0x68] sm:$0xf] %vm1739, %v1696
      %1767 = vst.msk [vmem:[#allocation3 + $0x6c] sm:$0xf] %vm1739, %v1698
      %1768 = vst.msk [vmem:[#allocation3 + $0x70] sm:$0xf] %vm1739, %v1700
      %1769 = vst.msk [vmem:[#allocation3 + $0x74] sm:$0xf] %vm1739, %v1702
      %1770 = vst.msk [vmem:[#allocation3 + $0x78] sm:$0xf] %vm1739, %v1704
      %1771 = vst.msk [vmem:[#allocation3 + $0x7c] sm:$0xf] %vm1739, %v1706
      %s1772 = scalar_lea.vmem [#allocation2], 48
      %v1773 = vld [vmem:[%s1772] sm:$0xff]
      %v1774 = vld [vmem:[%s1772 + $0x8] sm:$0xff]
      %v1775 = vld [vmem:[%s1772 + $0x18] sm:$0xff]
      %v1776 = vld [vmem:[%s1772 + $0x20] sm:$0xff]
      %v1777 = vld [vmem:[%s1772 + $0x30] sm:$0xff]
      %v1778 = vld [vmem:[%s1772 + $0x38] sm:$0xff]
      %v1779 = vld [vmem:[%s1772 + $0x48] sm:$0xff]
      %v1780 = vld [vmem:[%s1772 + $0x50] sm:$0xff]
      %v1781 = vld [vmem:[%s1772 + $0x60] sm:$0xff]
      %v1782 = vld [vmem:[%s1772 + $0x68] sm:$0xff]
      %v1783 = vld [vmem:[%s1772 + $0x78] sm:$0xff]
      %v1784 = vld [vmem:[%s1772 + $0x80] sm:$0xff]
      %v1785 = vld [vmem:[%s1772 + $0x90] sm:$0xff]
      %v1786 = vld [vmem:[%s1772 + $0x98] sm:$0xff]
      %v1787 = vld [vmem:[%s1772 + $0xa8] sm:$0xff]
      %v1788 = vld [vmem:[%s1772 + $0xb0] sm:$0xff]
      %v1789 = vld [vmem:[%s1772 + $0xc0] sm:$0xff]
      %v1790 = vld [vmem:[%s1772 + $0xc8] sm:$0xff]
      %v1791 = vld [vmem:[%s1772 + $0xd8] sm:$0xff]
      %v1792 = vld [vmem:[%s1772 + $0xe0] sm:$0xff]
      %v1793 = vld [vmem:[%s1772 + $0xf0] sm:$0xff]
      %v1794 = vld [vmem:[%s1772 + $0xf8] sm:$0xff]
      %v1795 = vld [vmem:[%s1772 + $0x108] sm:$0xff]
      %v1796 = vld [vmem:[%s1772 + $0x110] sm:$0xff]
      %v1797 = vld [vmem:[%s1772 + $0x120] sm:$0xff]
      %v1798 = vld [vmem:[%s1772 + $0x128] sm:$0xff]
      %v1799 = vld [vmem:[%s1772 + $0x138] sm:$0xff]
      %v1800 = vld [vmem:[%s1772 + $0x140] sm:$0xff]
      %v1801 = vld [vmem:[%s1772 + $0x150] sm:$0xff]
      %v1802 = vld [vmem:[%s1772 + $0x158] sm:$0xff]
      %v1803 = vld [vmem:[%s1772 + $0x168] sm:$0xff]
      %v1804 = vld [vmem:[%s1772 + $0x170] sm:$0xff]
      %v1805 = vpack.c.bf16 %v1774, %v1773
      %v1806 = vpack.c.bf16 %v1776, %v1775
      %v1807 = vpack.c.bf16 %v1778, %v1777
      %v1808 = vpack.c.bf16 %v1780, %v1779
      %v1809 = vpack.c.bf16 %v1782, %v1781
      %v1810 = vpack.c.bf16 %v1784, %v1783
      %v1811 = vpack.c.bf16 %v1786, %v1785
      %v1812 = vpack.c.bf16 %v1788, %v1787
      %v1813 = vpack.c.bf16 %v1790, %v1789
      %v1814 = vpack.c.bf16 %v1792, %v1791
      %v1815 = vpack.c.bf16 %v1794, %v1793
      %v1816 = vpack.c.bf16 %v1796, %v1795
      %v1817 = vpack.c.bf16 %v1798, %v1797
      %v1818 = vpack.c.bf16 %v1800, %v1799
      %v1819 = vpack.c.bf16 %v1802, %v1801
      %v1820 = vpack.c.bf16 %v1804, %v1803
      %v1837 = vunpack.c.l.b16 %v1805
      %v1838 = vunpack.c.h.b16 %v1805
      %v1839 = vunpack.c.l.b16 %v1806
      %v1840 = vunpack.c.h.b16 %v1806
      %v1841 = vunpack.c.l.b16 %v1807
      %v1842 = vunpack.c.h.b16 %v1807
      %v1843 = vunpack.c.l.b16 %v1808
      %v1844 = vunpack.c.h.b16 %v1808
      %v1845 = vunpack.c.l.b16 %v1809
      %v1846 = vunpack.c.h.b16 %v1809
      %v1847 = vunpack.c.l.b16 %v1810
      %v1848 = vunpack.c.h.b16 %v1810
      %v1849 = vunpack.c.l.b16 %v1811
      %v1850 = vunpack.c.h.b16 %v1811
      %v1851 = vunpack.c.l.b16 %v1812
      %v1852 = vunpack.c.h.b16 %v1812
      %v1853 = vunpack.c.l.b16 %v1813
      %v1854 = vunpack.c.h.b16 %v1813
      %v1855 = vunpack.c.l.b16 %v1814
      %v1856 = vunpack.c.h.b16 %v1814
      %v1857 = vunpack.c.l.b16 %v1815
      %v1858 = vunpack.c.h.b16 %v1815
      %v1859 = vunpack.c.l.b16 %v1816
      %v1860 = vunpack.c.h.b16 %v1816
      %v1861 = vunpack.c.l.b16 %v1817
      %v1862 = vunpack.c.h.b16 %v1817
      %v1863 = vunpack.c.l.b16 %v1818
      %v1864 = vunpack.c.h.b16 %v1818
      %v1865 = vunpack.c.l.b16 %v1819
      %v1866 = vunpack.c.h.b16 %v1819
      %v1867 = vunpack.c.l.b16 %v1820
      %v1868 = vunpack.c.h.b16 %v1820
      %v1869 = vpack.c.b16 %v1837, %v1837
      %v1870 = vpack.c.b16 %v1838, %v1838
      %v1871 = vpack.c.b16 %v1839, %v1839
      %v1872 = vpack.c.b16 %v1840, %v1840
      %v1873 = vpack.c.b16 %v1841, %v1841
      %v1874 = vpack.c.b16 %v1842, %v1842
      %v1875 = vpack.c.b16 %v1843, %v1843
      %v1876 = vpack.c.b16 %v1844, %v1844
      %v1877 = vpack.c.b16 %v1845, %v1845
      %v1878 = vpack.c.b16 %v1846, %v1846
      %v1879 = vpack.c.b16 %v1847, %v1847
      %v1880 = vpack.c.b16 %v1848, %v1848
      %v1881 = vpack.c.b16 %v1849, %v1849
      %v1882 = vpack.c.b16 %v1850, %v1850
      %v1883 = vpack.c.b16 %v1851, %v1851
      %v1884 = vpack.c.b16 %v1852, %v1852
      %v1885 = vpack.c.b16 %v1853, %v1853
      %v1886 = vpack.c.b16 %v1854, %v1854
      %v1887 = vpack.c.b16 %v1855, %v1855
      %v1888 = vpack.c.b16 %v1856, %v1856
      %v1889 = vpack.c.b16 %v1857, %v1857
      %v1890 = vpack.c.b16 %v1858, %v1858
      %v1891 = vpack.c.b16 %v1859, %v1859
      %v1892 = vpack.c.b16 %v1860, %v1860
      %v1893 = vpack.c.b16 %v1861, %v1861
      %v1894 = vpack.c.b16 %v1862, %v1862
      %v1895 = vpack.c.b16 %v1863, %v1863
      %v1896 = vpack.c.b16 %v1864, %v1864
      %v1897 = vpack.c.b16 %v1865, %v1865
      %v1898 = vpack.c.b16 %v1866, %v1866
      %v1899 = vpack.c.b16 %v1867, %v1867
      %v1900 = vpack.c.b16 %v1868, %v1868
      %1901 = vrot.lane.b32.xlu0 %v1869, 24
      %v1902 = vpop.permute.xlu0 %1901
      %1903 = vrot.lane.b32.xlu0 %v1870, 24
      %v1904 = vpop.permute.xlu0 %1903
      %1905 = vrot.lane.b32.xlu0 %v1871, 24
      %v1906 = vpop.permute.xlu0 %1905
      %1907 = vrot.lane.b32.xlu0 %v1872, 24
      %v1908 = vpop.permute.xlu0 %1907
      %1909 = vrot.lane.b32.xlu0 %v1873, 24
      %v1910 = vpop.permute.xlu0 %1909
      %1911 = vrot.lane.b32.xlu0 %v1874, 24
      %v1912 = vpop.permute.xlu0 %1911
      %1913 = vrot.lane.b32.xlu0 %v1875, 24
      %v1914 = vpop.permute.xlu0 %1913
      %1915 = vrot.lane.b32.xlu0 %v1876, 24
      %v1916 = vpop.permute.xlu0 %1915
      %1917 = vrot.lane.b32.xlu0 %v1877, 24
      %v1918 = vpop.permute.xlu0 %1917
      %1919 = vrot.lane.b32.xlu0 %v1878, 24
      %v1920 = vpop.permute.xlu0 %1919
      %1921 = vrot.lane.b32.xlu0 %v1879, 24
      %v1922 = vpop.permute.xlu0 %1921
      %1923 = vrot.lane.b32.xlu0 %v1880, 24
      %v1924 = vpop.permute.xlu0 %1923
      %1925 = vrot.lane.b32.xlu0 %v1881, 24
      %v1926 = vpop.permute.xlu0 %1925
      %1927 = vrot.lane.b32.xlu0 %v1882, 24
      %v1928 = vpop.permute.xlu0 %1927
      %1929 = vrot.lane.b32.xlu0 %v1883, 24
      %v1930 = vpop.permute.xlu0 %1929
      %1931 = vrot.lane.b32.xlu0 %v1884, 24
      %v1932 = vpop.permute.xlu0 %1931
      %1933 = vrot.lane.b32.xlu0 %v1885, 24
      %v1934 = vpop.permute.xlu0 %1933
      %1935 = vrot.lane.b32.xlu0 %v1886, 24
      %v1936 = vpop.permute.xlu0 %1935
      %1937 = vrot.lane.b32.xlu0 %v1887, 24
      %v1938 = vpop.permute.xlu0 %1937
      %1939 = vrot.lane.b32.xlu0 %v1888, 24
      %v1940 = vpop.permute.xlu0 %1939
      %1941 = vrot.lane.b32.xlu0 %v1889, 24
      %v1942 = vpop.permute.xlu0 %1941
      %1943 = vrot.lane.b32.xlu0 %v1890, 24
      %v1944 = vpop.permute.xlu0 %1943
      %1945 = vrot.lane.b32.xlu0 %v1891, 24
      %v1946 = vpop.permute.xlu0 %1945
      %1947 = vrot.lane.b32.xlu0 %v1892, 24
      %v1948 = vpop.permute.xlu0 %1947
      %1949 = vrot.lane.b32.xlu0 %v1893, 24
      %v1950 = vpop.permute.xlu0 %1949
      %1951 = vrot.lane.b32.xlu0 %v1894, 24
      %v1952 = vpop.permute.xlu0 %1951
      %1953 = vrot.lane.b32.xlu0 %v1895, 24
      %v1954 = vpop.permute.xlu0 %1953
      %1955 = vrot.lane.b32.xlu0 %v1896, 24
      %v1956 = vpop.permute.xlu0 %1955
      %1957 = vrot.lane.b32.xlu0 %v1897, 24
      %v1958 = vpop.permute.xlu0 %1957
      %1959 = vrot.lane.b32.xlu0 %v1898, 24
      %v1960 = vpop.permute.xlu0 %1959
      %1961 = vrot.lane.b32.xlu0 %v1899, 24
      %v1962 = vpop.permute.xlu0 %1961
      %1963 = vrot.lane.b32.xlu0 %v1900, 24
      %v1964 = vpop.permute.xlu0 %1963
      %vm1997 = vcmask 224448
      %1998 = vst.msk [vmem:[#allocation3] sm:$0xf] %vm1997, %v1902
      %1999 = vst.msk [vmem:[#allocation3 + $0x4] sm:$0xf] %vm1997, %v1904
      %2000 = vst.msk [vmem:[#allocation3 + $0x8] sm:$0xf] %vm1997, %v1906
      %2001 = vst.msk [vmem:[#allocation3 + $0xc] sm:$0xf] %vm1997, %v1908
      %2002 = vst.msk [vmem:[#allocation3 + $0x10] sm:$0xf] %vm1997, %v1910
      %2003 = vst.msk [vmem:[#allocation3 + $0x14] sm:$0xf] %vm1997, %v1912
      %2004 = vst.msk [vmem:[#allocation3 + $0x18] sm:$0xf] %vm1997, %v1914
      %2005 = vst.msk [vmem:[#allocation3 + $0x1c] sm:$0xf] %vm1997, %v1916
      %2006 = vst.msk [vmem:[#allocation3 + $0x20] sm:$0xf] %vm1997, %v1918
      %2007 = vst.msk [vmem:[#allocation3 + $0x24] sm:$0xf] %vm1997, %v1920
      %2008 = vst.msk [vmem:[#allocation3 + $0x28] sm:$0xf] %vm1997, %v1922
      %2009 = vst.msk [vmem:[#allocation3 + $0x2c] sm:$0xf] %vm1997, %v1924
      %2010 = vst.msk [vmem:[#allocation3 + $0x30] sm:$0xf] %vm1997, %v1926
      %2011 = vst.msk [vmem:[#allocation3 + $0x34] sm:$0xf] %vm1997, %v1928
      %2012 = vst.msk [vmem:[#allocation3 + $0x38] sm:$0xf] %vm1997, %v1930
      %2013 = vst.msk [vmem:[#allocation3 + $0x3c] sm:$0xf] %vm1997, %v1932
      %2014 = vst.msk [vmem:[#allocation3 + $0x40] sm:$0xf] %vm1997, %v1934
      %2015 = vst.msk [vmem:[#allocation3 + $0x44] sm:$0xf] %vm1997, %v1936
      %2016 = vst.msk [vmem:[#allocation3 + $0x48] sm:$0xf] %vm1997, %v1938
      %2017 = vst.msk [vmem:[#allocation3 + $0x4c] sm:$0xf] %vm1997, %v1940
      %2018 = vst.msk [vmem:[#allocation3 + $0x50] sm:$0xf] %vm1997, %v1942
      %2019 = vst.msk [vmem:[#allocation3 + $0x54] sm:$0xf] %vm1997, %v1944
      %2020 = vst.msk [vmem:[#allocation3 + $0x58] sm:$0xf] %vm1997, %v1946
      %2021 = vst.msk [vmem:[#allocation3 + $0x5c] sm:$0xf] %vm1997, %v1948
      %2022 = vst.msk [vmem:[#allocation3 + $0x60] sm:$0xf] %vm1997, %v1950
      %2023 = vst.msk [vmem:[#allocation3 + $0x64] sm:$0xf] %vm1997, %v1952
      %2024 = vst.msk [vmem:[#allocation3 + $0x68] sm:$0xf] %vm1997, %v1954
      %2025 = vst.msk [vmem:[#allocation3 + $0x6c] sm:$0xf] %vm1997, %v1956
      %2026 = vst.msk [vmem:[#allocation3 + $0x70] sm:$0xf] %vm1997, %v1958
      %2027 = vst.msk [vmem:[#allocation3 + $0x74] sm:$0xf] %vm1997, %v1960
      %2028 = vst.msk [vmem:[#allocation3 + $0x78] sm:$0xf] %vm1997, %v1962
      %2029 = vst.msk [vmem:[#allocation3 + $0x7c] sm:$0xf] %vm1997, %v1964
      %v2030 = vld [vmem:[%s1772 + $0x1] sm:$0xff]
      %v2031 = vld [vmem:[%s1772 + $0x9] sm:$0xff]
      %v2032 = vld [vmem:[%s1772 + $0x19] sm:$0xff]
      %v2033 = vld [vmem:[%s1772 + $0x21] sm:$0xff]
      %v2034 = vld [vmem:[%s1772 + $0x31] sm:$0xff]
      %v2035 = vld [vmem:[%s1772 + $0x39] sm:$0xff]
      %v2036 = vld [vmem:[%s1772 + $0x49] sm:$0xff]
      %v2037 = vld [vmem:[%s1772 + $0x51] sm:$0xff]
      %v2038 = vld [vmem:[%s1772 + $0x61] sm:$0xff]
      %v2039 = vld [vmem:[%s1772 + $0x69] sm:$0xff]
      %v2040 = vld [vmem:[%s1772 + $0x79] sm:$0xff]
      %v2041 = vld [vmem:[%s1772 + $0x81] sm:$0xff]
      %v2042 = vld [vmem:[%s1772 + $0x91] sm:$0xff]
      %v2043 = vld [vmem:[%s1772 + $0x99] sm:$0xff]
      %v2044 = vld [vmem:[%s1772 + $0xa9] sm:$0xff]
      %v2045 = vld [vmem:[%s1772 + $0xb1] sm:$0xff]
      %v2046 = vld [vmem:[%s1772 + $0xc1] sm:$0xff]
      %v2047 = vld [vmem:[%s1772 + $0xc9] sm:$0xff]
      %v2048 = vld [vmem:[%s1772 + $0xd9] sm:$0xff]
      %v2049 = vld [vmem:[%s1772 + $0xe1] sm:$0xff]
      %v2050 = vld [vmem:[%s1772 + $0xf1] sm:$0xff]
      %v2051 = vld [vmem:[%s1772 + $0xf9] sm:$0xff]
      %v2052 = vld [vmem:[%s1772 + $0x109] sm:$0xff]
      %v2053 = vld [vmem:[%s1772 + $0x111] sm:$0xff]
      %v2054 = vld [vmem:[%s1772 + $0x121] sm:$0xff]
      %v2055 = vld [vmem:[%s1772 + $0x129] sm:$0xff]
      %v2056 = vld [vmem:[%s1772 + $0x139] sm:$0xff]
      %v2057 = vld [vmem:[%s1772 + $0x141] sm:$0xff]
      %v2058 = vld [vmem:[%s1772 + $0x151] sm:$0xff]
      %v2059 = vld [vmem:[%s1772 + $0x159] sm:$0xff]
      %v2060 = vld [vmem:[%s1772 + $0x169] sm:$0xff]
      %v2061 = vld [vmem:[%s1772 + $0x171] sm:$0xff]
      %v2062 = vpack.c.bf16 %v2031, %v2030
      %v2063 = vpack.c.bf16 %v2033, %v2032
      %v2064 = vpack.c.bf16 %v2035, %v2034
      %v2065 = vpack.c.bf16 %v2037, %v2036
      %v2066 = vpack.c.bf16 %v2039, %v2038
      %v2067 = vpack.c.bf16 %v2041, %v2040
      %v2068 = vpack.c.bf16 %v2043, %v2042
      %v2069 = vpack.c.bf16 %v2045, %v2044
      %v2070 = vpack.c.bf16 %v2047, %v2046
      %v2071 = vpack.c.bf16 %v2049, %v2048
      %v2072 = vpack.c.bf16 %v2051, %v2050
      %v2073 = vpack.c.bf16 %v2053, %v2052
      %v2074 = vpack.c.bf16 %v2055, %v2054
      %v2075 = vpack.c.bf16 %v2057, %v2056
      %v2076 = vpack.c.bf16 %v2059, %v2058
      %v2077 = vpack.c.bf16 %v2061, %v2060
      %v2094 = vunpack.c.l.b16 %v2062
      %v2095 = vunpack.c.h.b16 %v2062
      %v2096 = vunpack.c.l.b16 %v2063
      %v2097 = vunpack.c.h.b16 %v2063
      %v2098 = vunpack.c.l.b16 %v2064
      %v2099 = vunpack.c.h.b16 %v2064
      %v2100 = vunpack.c.l.b16 %v2065
      %v2101 = vunpack.c.h.b16 %v2065
      %v2102 = vunpack.c.l.b16 %v2066
      %v2103 = vunpack.c.h.b16 %v2066
      %v2104 = vunpack.c.l.b16 %v2067
      %v2105 = vunpack.c.h.b16 %v2067
      %v2106 = vunpack.c.l.b16 %v2068
      %v2107 = vunpack.c.h.b16 %v2068
      %v2108 = vunpack.c.l.b16 %v2069
      %v2109 = vunpack.c.h.b16 %v2069
      %v2110 = vunpack.c.l.b16 %v2070
      %v2111 = vunpack.c.h.b16 %v2070
      %v2112 = vunpack.c.l.b16 %v2071
      %v2113 = vunpack.c.h.b16 %v2071
      %v2114 = vunpack.c.l.b16 %v2072
      %v2115 = vunpack.c.h.b16 %v2072
      %v2116 = vunpack.c.l.b16 %v2073
      %v2117 = vunpack.c.h.b16 %v2073
      %v2118 = vunpack.c.l.b16 %v2074
      %v2119 = vunpack.c.h.b16 %v2074
      %v2120 = vunpack.c.l.b16 %v2075
      %v2121 = vunpack.c.h.b16 %v2075
      %v2122 = vunpack.c.l.b16 %v2076
      %v2123 = vunpack.c.h.b16 %v2076
      %v2124 = vunpack.c.l.b16 %v2077
      %v2125 = vunpack.c.h.b16 %v2077
      %v2126 = vpack.c.b16 %v2094, %v2094
      %v2127 = vpack.c.b16 %v2095, %v2095
      %v2128 = vpack.c.b16 %v2096, %v2096
      %v2129 = vpack.c.b16 %v2097, %v2097
      %v2130 = vpack.c.b16 %v2098, %v2098
      %v2131 = vpack.c.b16 %v2099, %v2099
      %v2132 = vpack.c.b16 %v2100, %v2100
      %v2133 = vpack.c.b16 %v2101, %v2101
      %v2134 = vpack.c.b16 %v2102, %v2102
      %v2135 = vpack.c.b16 %v2103, %v2103
      %v2136 = vpack.c.b16 %v2104, %v2104
      %v2137 = vpack.c.b16 %v2105, %v2105
      %v2138 = vpack.c.b16 %v2106, %v2106
      %v2139 = vpack.c.b16 %v2107, %v2107
      %v2140 = vpack.c.b16 %v2108, %v2108
      %v2141 = vpack.c.b16 %v2109, %v2109
      %v2142 = vpack.c.b16 %v2110, %v2110
      %v2143 = vpack.c.b16 %v2111, %v2111
      %v2144 = vpack.c.b16 %v2112, %v2112
      %v2145 = vpack.c.b16 %v2113, %v2113
      %v2146 = vpack.c.b16 %v2114, %v2114
      %v2147 = vpack.c.b16 %v2115, %v2115
      %v2148 = vpack.c.b16 %v2116, %v2116
      %v2149 = vpack.c.b16 %v2117, %v2117
      %v2150 = vpack.c.b16 %v2118, %v2118
      %v2151 = vpack.c.b16 %v2119, %v2119
      %v2152 = vpack.c.b16 %v2120, %v2120
      %v2153 = vpack.c.b16 %v2121, %v2121
      %v2154 = vpack.c.b16 %v2122, %v2122
      %v2155 = vpack.c.b16 %v2123, %v2123
      %v2156 = vpack.c.b16 %v2124, %v2124
      %v2157 = vpack.c.b16 %v2125, %v2125
      %2158 = vrot.lane.b32.xlu0 %v2126, 28
      %v2159 = vpop.permute.xlu0 %2158
      %2160 = vrot.lane.b32.xlu0 %v2127, 28
      %v2161 = vpop.permute.xlu0 %2160
      %2162 = vrot.lane.b32.xlu0 %v2128, 28
      %v2163 = vpop.permute.xlu0 %2162
      %2164 = vrot.lane.b32.xlu0 %v2129, 28
      %v2165 = vpop.permute.xlu0 %2164
      %2166 = vrot.lane.b32.xlu0 %v2130, 28
      %v2167 = vpop.permute.xlu0 %2166
      %2168 = vrot.lane.b32.xlu0 %v2131, 28
      %v2169 = vpop.permute.xlu0 %2168
      %2170 = vrot.lane.b32.xlu0 %v2132, 28
      %v2171 = vpop.permute.xlu0 %2170
      %2172 = vrot.lane.b32.xlu0 %v2133, 28
      %v2173 = vpop.permute.xlu0 %2172
      %2174 = vrot.lane.b32.xlu0 %v2134, 28
      %v2175 = vpop.permute.xlu0 %2174
      %2176 = vrot.lane.b32.xlu0 %v2135, 28
      %v2177 = vpop.permute.xlu0 %2176
      %2178 = vrot.lane.b32.xlu0 %v2136, 28
      %v2179 = vpop.permute.xlu0 %2178
      %2180 = vrot.lane.b32.xlu0 %v2137, 28
      %v2181 = vpop.permute.xlu0 %2180
      %2182 = vrot.lane.b32.xlu0 %v2138, 28
      %v2183 = vpop.permute.xlu0 %2182
      %2184 = vrot.lane.b32.xlu0 %v2139, 28
      %v2185 = vpop.permute.xlu0 %2184
      %2186 = vrot.lane.b32.xlu0 %v2140, 28
      %v2187 = vpop.permute.xlu0 %2186
      %2188 = vrot.lane.b32.xlu0 %v2141, 28
      %v2189 = vpop.permute.xlu0 %2188
      %2190 = vrot.lane.b32.xlu0 %v2142, 28
      %v2191 = vpop.permute.xlu0 %2190
      %2192 = vrot.lane.b32.xlu0 %v2143, 28
      %v2193 = vpop.permute.xlu0 %2192
      %2194 = vrot.lane.b32.xlu0 %v2144, 28
      %v2195 = vpop.permute.xlu0 %2194
      %2196 = vrot.lane.b32.xlu0 %v2145, 28
      %v2197 = vpop.permute.xlu0 %2196
      %2198 = vrot.lane.b32.xlu0 %v2146, 28
      %v2199 = vpop.permute.xlu0 %2198
      %2200 = vrot.lane.b32.xlu0 %v2147, 28
      %v2201 = vpop.permute.xlu0 %2200
      %2202 = vrot.lane.b32.xlu0 %v2148, 28
      %v2203 = vpop.permute.xlu0 %2202
      %2204 = vrot.lane.b32.xlu0 %v2149, 28
      %v2205 = vpop.permute.xlu0 %2204
      %2206 = vrot.lane.b32.xlu0 %v2150, 28
      %v2207 = vpop.permute.xlu0 %2206
      %2208 = vrot.lane.b32.xlu0 %v2151, 28
      %v2209 = vpop.permute.xlu0 %2208
      %2210 = vrot.lane.b32.xlu0 %v2152, 28
      %v2211 = vpop.permute.xlu0 %2210
      %2212 = vrot.lane.b32.xlu0 %v2153, 28
      %v2213 = vpop.permute.xlu0 %2212
      %2214 = vrot.lane.b32.xlu0 %v2154, 28
      %v2215 = vpop.permute.xlu0 %2214
      %2216 = vrot.lane.b32.xlu0 %v2155, 28
      %v2217 = vpop.permute.xlu0 %2216
      %2218 = vrot.lane.b32.xlu0 %v2156, 28
      %v2219 = vpop.permute.xlu0 %2218
      %2220 = vrot.lane.b32.xlu0 %v2157, 28
      %v2221 = vpop.permute.xlu0 %2220
      %vm2254 = vcmask 257248
      %2255 = vst.msk [vmem:[#allocation3] sm:$0xf] %vm2254, %v2159
      %2256 = vst.msk [vmem:[#allocation3 + $0x4] sm:$0xf] %vm2254, %v2161
      %2257 = vst.msk [vmem:[#allocation3 + $0x8] sm:$0xf] %vm2254, %v2163
      %2258 = vst.msk [vmem:[#allocation3 + $0xc] sm:$0xf] %vm2254, %v2165
      %2259 = vst.msk [vmem:[#allocation3 + $0x10] sm:$0xf] %vm2254, %v2167
      %2260 = vst.msk [vmem:[#allocation3 + $0x14] sm:$0xf] %vm2254, %v2169
      %2261 = vst.msk [vmem:[#allocation3 + $0x18] sm:$0xf] %vm2254, %v2171
      %2262 = vst.msk [vmem:[#allocation3 + $0x1c] sm:$0xf] %vm2254, %v2173
      %2263 = vst.msk [vmem:[#allocation3 + $0x20] sm:$0xf] %vm2254, %v2175
      %2264 = vst.msk [vmem:[#allocation3 + $0x24] sm:$0xf] %vm2254, %v2177
      %2265 = vst.msk [vmem:[#allocation3 + $0x28] sm:$0xf] %vm2254, %v2179
      %2266 = vst.msk [vmem:[#allocation3 + $0x2c] sm:$0xf] %vm2254, %v2181
      %2267 = vst.msk [vmem:[#allocation3 + $0x30] sm:$0xf] %vm2254, %v2183
      %2268 = vst.msk [vmem:[#allocation3 + $0x34] sm:$0xf] %vm2254, %v2185
      %2269 = vst.msk [vmem:[#allocation3 + $0x38] sm:$0xf] %vm2254, %v2187
      %2270 = vst.msk [vmem:[#allocation3 + $0x3c] sm:$0xf] %vm2254, %v2189
      %2271 = vst.msk [vmem:[#allocation3 + $0x40] sm:$0xf] %vm2254, %v2191
      %2272 = vst.msk [vmem:[#allocation3 + $0x44] sm:$0xf] %vm2254, %v2193
      %2273 = vst.msk [vmem:[#allocation3 + $0x48] sm:$0xf] %vm2254, %v2195
      %2274 = vst.msk [vmem:[#allocation3 + $0x4c] sm:$0xf] %vm2254, %v2197
      %2275 = vst.msk [vmem:[#allocation3 + $0x50] sm:$0xf] %vm2254, %v2199
      %2276 = vst.msk [vmem:[#allocation3 + $0x54] sm:$0xf] %vm2254, %v2201
      %2277 = vst.msk [vmem:[#allocation3 + $0x58] sm:$0xf] %vm2254, %v2203
      %2278 = vst.msk [vmem:[#allocation3 + $0x5c] sm:$0xf] %vm2254, %v2205
      %2279 = vst.msk [vmem:[#allocation3 + $0x60] sm:$0xf] %vm2254, %v2207
      %2280 = vst.msk [vmem:[#allocation3 + $0x64] sm:$0xf] %vm2254, %v2209
      %2281 = vst.msk [vmem:[#allocation3 + $0x68] sm:$0xf] %vm2254, %v2211
      %2282 = vst.msk [vmem:[#allocation3 + $0x6c] sm:$0xf] %vm2254, %v2213
      %2283 = vst.msk [vmem:[#allocation3 + $0x70] sm:$0xf] %vm2254, %v2215
      %2284 = vst.msk [vmem:[#allocation3 + $0x74] sm:$0xf] %vm2254, %v2217
      %2285 = vst.msk [vmem:[#allocation3 + $0x78] sm:$0xf] %vm2254, %v2219
      %2286 = vst.msk [vmem:[#allocation3 + $0x7c] sm:$0xf] %vm2254, %v2221
      %v2287 = vld [vmem:[%s1772 + $0x2] sm:$0xff]
      %v2288 = vld [vmem:[%s1772 + $0xa] sm:$0xff]
      %v2289 = vld [vmem:[%s1772 + $0x1a] sm:$0xff]
      %v2290 = vld [vmem:[%s1772 + $0x22] sm:$0xff]
      %v2291 = vld [vmem:[%s1772 + $0x32] sm:$0xff]
      %v2292 = vld [vmem:[%s1772 + $0x3a] sm:$0xff]
      %v2293 = vld [vmem:[%s1772 + $0x4a] sm:$0xff]
      %v2294 = vld [vmem:[%s1772 + $0x52] sm:$0xff]
      %v2295 = vld [vmem:[%s1772 + $0x62] sm:$0xff]
      %v2296 = vld [vmem:[%s1772 + $0x6a] sm:$0xff]
      %v2297 = vld [vmem:[%s1772 + $0x7a] sm:$0xff]
      %v2298 = vld [vmem:[%s1772 + $0x82] sm:$0xff]
      %v2299 = vld [vmem:[%s1772 + $0x92] sm:$0xff]
      %v2300 = vld [vmem:[%s1772 + $0x9a] sm:$0xff]
      %v2301 = vld [vmem:[%s1772 + $0xaa] sm:$0xff]
      %v2302 = vld [vmem:[%s1772 + $0xb2] sm:$0xff]
      %v2303 = vld [vmem:[%s1772 + $0xc2] sm:$0xff]
      %v2304 = vld [vmem:[%s1772 + $0xca] sm:$0xff]
      %v2305 = vld [vmem:[%s1772 + $0xda] sm:$0xff]
      %v2306 = vld [vmem:[%s1772 + $0xe2] sm:$0xff]
      %v2307 = vld [vmem:[%s1772 + $0xf2] sm:$0xff]
      %v2308 = vld [vmem:[%s1772 + $0xfa] sm:$0xff]
      %v2309 = vld [vmem:[%s1772 + $0x10a] sm:$0xff]
      %v2310 = vld [vmem:[%s1772 + $0x112] sm:$0xff]
      %v2311 = vld [vmem:[%s1772 + $0x122] sm:$0xff]
      %v2312 = vld [vmem:[%s1772 + $0x12a] sm:$0xff]
      %v2313 = vld [vmem:[%s1772 + $0x13a] sm:$0xff]
      %v2314 = vld [vmem:[%s1772 + $0x142] sm:$0xff]
      %v2315 = vld [vmem:[%s1772 + $0x152] sm:$0xff]
      %v2316 = vld [vmem:[%s1772 + $0x15a] sm:$0xff]
      %v2317 = vld [vmem:[%s1772 + $0x16a] sm:$0xff]
      %v2318 = vld [vmem:[%s1772 + $0x172] sm:$0xff]
      %v2319 = vpack.c.bf16 %v2288, %v2287
      %v2320 = vpack.c.bf16 %v2290, %v2289
      %v2321 = vpack.c.bf16 %v2292, %v2291
      %v2322 = vpack.c.bf16 %v2294, %v2293
      %v2323 = vpack.c.bf16 %v2296, %v2295
      %v2324 = vpack.c.bf16 %v2298, %v2297
      %v2325 = vpack.c.bf16 %v2300, %v2299
      %v2326 = vpack.c.bf16 %v2302, %v2301
      %v2327 = vpack.c.bf16 %v2304, %v2303
      %v2328 = vpack.c.bf16 %v2306, %v2305
      %v2329 = vpack.c.bf16 %v2308, %v2307
      %v2330 = vpack.c.bf16 %v2310, %v2309
      %v2331 = vpack.c.bf16 %v2312, %v2311
      %v2332 = vpack.c.bf16 %v2314, %v2313
      %v2333 = vpack.c.bf16 %v2316, %v2315
      %v2334 = vpack.c.bf16 %v2318, %v2317
      %v2351 = vunpack.c.l.b16 %v2319
      %v2352 = vunpack.c.h.b16 %v2319
      %v2353 = vunpack.c.l.b16 %v2320
      %v2354 = vunpack.c.h.b16 %v2320
      %v2355 = vunpack.c.l.b16 %v2321
      %v2356 = vunpack.c.h.b16 %v2321
      %v2357 = vunpack.c.l.b16 %v2322
      %v2358 = vunpack.c.h.b16 %v2322
      %v2359 = vunpack.c.l.b16 %v2323
      %v2360 = vunpack.c.h.b16 %v2323
      %v2361 = vunpack.c.l.b16 %v2324
      %v2362 = vunpack.c.h.b16 %v2324
      %v2363 = vunpack.c.l.b16 %v2325
      %v2364 = vunpack.c.h.b16 %v2325
      %v2365 = vunpack.c.l.b16 %v2326
      %v2366 = vunpack.c.h.b16 %v2326
      %v2367 = vunpack.c.l.b16 %v2327
      %v2368 = vunpack.c.h.b16 %v2327
      %v2369 = vunpack.c.l.b16 %v2328
      %v2370 = vunpack.c.h.b16 %v2328
      %v2371 = vunpack.c.l.b16 %v2329
      %v2372 = vunpack.c.h.b16 %v2329
      %v2373 = vunpack.c.l.b16 %v2330
      %v2374 = vunpack.c.h.b16 %v2330
      %v2375 = vunpack.c.l.b16 %v2331
      %v2376 = vunpack.c.h.b16 %v2331
      %v2377 = vunpack.c.l.b16 %v2332
      %v2378 = vunpack.c.h.b16 %v2332
      %v2379 = vunpack.c.l.b16 %v2333
      %v2380 = vunpack.c.h.b16 %v2333
      %v2381 = vunpack.c.l.b16 %v2334
      %v2382 = vunpack.c.h.b16 %v2334
      %v2383 = vpack.c.b16 %v2351, %v2351
      %v2384 = vpack.c.b16 %v2352, %v2352
      %v2385 = vpack.c.b16 %v2353, %v2353
      %v2386 = vpack.c.b16 %v2354, %v2354
      %v2387 = vpack.c.b16 %v2355, %v2355
      %v2388 = vpack.c.b16 %v2356, %v2356
      %v2389 = vpack.c.b16 %v2357, %v2357
      %v2390 = vpack.c.b16 %v2358, %v2358
      %v2391 = vpack.c.b16 %v2359, %v2359
      %v2392 = vpack.c.b16 %v2360, %v2360
      %v2393 = vpack.c.b16 %v2361, %v2361
      %v2394 = vpack.c.b16 %v2362, %v2362
      %v2395 = vpack.c.b16 %v2363, %v2363
      %v2396 = vpack.c.b16 %v2364, %v2364
      %v2397 = vpack.c.b16 %v2365, %v2365
      %v2398 = vpack.c.b16 %v2366, %v2366
      %v2399 = vpack.c.b16 %v2367, %v2367
      %v2400 = vpack.c.b16 %v2368, %v2368
      %v2401 = vpack.c.b16 %v2369, %v2369
      %v2402 = vpack.c.b16 %v2370, %v2370
      %v2403 = vpack.c.b16 %v2371, %v2371
      %v2404 = vpack.c.b16 %v2372, %v2372
      %v2405 = vpack.c.b16 %v2373, %v2373
      %v2406 = vpack.c.b16 %v2374, %v2374
      %v2407 = vpack.c.b16 %v2375, %v2375
      %v2408 = vpack.c.b16 %v2376, %v2376
      %v2409 = vpack.c.b16 %v2377, %v2377
      %v2410 = vpack.c.b16 %v2378, %v2378
      %v2411 = vpack.c.b16 %v2379, %v2379
      %v2412 = vpack.c.b16 %v2380, %v2380
      %v2413 = vpack.c.b16 %v2381, %v2381
      %v2414 = vpack.c.b16 %v2382, %v2382
      %2415 = vrot.lane.b32.xlu0 %v2383, 32
      %v2416 = vpop.permute.xlu0 %2415
      %2417 = vrot.lane.b32.xlu0 %v2384, 32
      %v2418 = vpop.permute.xlu0 %2417
      %2419 = vrot.lane.b32.xlu0 %v2385, 32
      %v2420 = vpop.permute.xlu0 %2419
      %2421 = vrot.lane.b32.xlu0 %v2386, 32
      %v2422 = vpop.permute.xlu0 %2421
      %2423 = vrot.lane.b32.xlu0 %v2387, 32
      %v2424 = vpop.permute.xlu0 %2423
      %2425 = vrot.lane.b32.xlu0 %v2388, 32
      %v2426 = vpop.permute.xlu0 %2425
      %2427 = vrot.lane.b32.xlu0 %v2389, 32
      %v2428 = vpop.permute.xlu0 %2427
      %2429 = vrot.lane.b32.xlu0 %v2390, 32
      %v2430 = vpop.permute.xlu0 %2429
      %2431 = vrot.lane.b32.xlu0 %v2391, 32
      %v2432 = vpop.permute.xlu0 %2431
      %2433 = vrot.lane.b32.xlu0 %v2392, 32
      %v2434 = vpop.permute.xlu0 %2433
      %2435 = vrot.lane.b32.xlu0 %v2393, 32
      %v2436 = vpop.permute.xlu0 %2435
      %2437 = vrot.lane.b32.xlu0 %v2394, 32
      %v2438 = vpop.permute.xlu0 %2437
      %2439 = vrot.lane.b32.xlu0 %v2395, 32
      %v2440 = vpop.permute.xlu0 %2439
      %2441 = vrot.lane.b32.xlu0 %v2396, 32
      %v2442 = vpop.permute.xlu0 %2441
      %2443 = vrot.lane.b32.xlu0 %v2397, 32
      %v2444 = vpop.permute.xlu0 %2443
      %2445 = vrot.lane.b32.xlu0 %v2398, 32
      %v2446 = vpop.permute.xlu0 %2445
      %2447 = vrot.lane.b32.xlu0 %v2399, 32
      %v2448 = vpop.permute.xlu0 %2447
      %2449 = vrot.lane.b32.xlu0 %v2400, 32
      %v2450 = vpop.permute.xlu0 %2449
      %2451 = vrot.lane.b32.xlu0 %v2401, 32
      %v2452 = vpop.permute.xlu0 %2451
      %2453 = vrot.lane.b32.xlu0 %v2402, 32
      %v2454 = vpop.permute.xlu0 %2453
      %2455 = vrot.lane.b32.xlu0 %v2403, 32
      %v2456 = vpop.permute.xlu0 %2455
      %2457 = vrot.lane.b32.xlu0 %v2404, 32
      %v2458 = vpop.permute.xlu0 %2457
      %2459 = vrot.lane.b32.xlu0 %v2405, 32
      %v2460 = vpop.permute.xlu0 %2459
      %2461 = vrot.lane.b32.xlu0 %v2406, 32
      %v2462 = vpop.permute.xlu0 %2461
      %2463 = vrot.lane.b32.xlu0 %v2407, 32
      %v2464 = vpop.permute.xlu0 %2463
      %2465 = vrot.lane.b32.xlu0 %v2408, 32
      %v2466 = vpop.permute.xlu0 %2465
      %2467 = vrot.lane.b32.xlu0 %v2409, 32
      %v2468 = vpop.permute.xlu0 %2467
      %2469 = vrot.lane.b32.xlu0 %v2410, 32
      %v2470 = vpop.permute.xlu0 %2469
      %2471 = vrot.lane.b32.xlu0 %v2411, 32
      %v2472 = vpop.permute.xlu0 %2471
      %2473 = vrot.lane.b32.xlu0 %v2412, 32
      %v2474 = vpop.permute.xlu0 %2473
      %2475 = vrot.lane.b32.xlu0 %v2413, 32
      %v2476 = vpop.permute.xlu0 %2475
      %2477 = vrot.lane.b32.xlu0 %v2414, 32
      %v2478 = vpop.permute.xlu0 %2477
      %vm2511 = vcmask 290048
      %2512 = vst.msk [vmem:[#allocation3] sm:$0xf] %vm2511, %v2416
      %2513 = vst.msk [vmem:[#allocation3 + $0x4] sm:$0xf] %vm2511, %v2418
      %2514 = vst.msk [vmem:[#allocation3 + $0x8] sm:$0xf] %vm2511, %v2420
      %2515 = vst.msk [vmem:[#allocation3 + $0xc] sm:$0xf] %vm2511, %v2422
      %2516 = vst.msk [vmem:[#allocation3 + $0x10] sm:$0xf] %vm2511, %v2424
      %2517 = vst.msk [vmem:[#allocation3 + $0x14] sm:$0xf] %vm2511, %v2426
      %2518 = vst.msk [vmem:[#allocation3 + $0x18] sm:$0xf] %vm2511, %v2428
      %2519 = vst.msk [vmem:[#allocation3 + $0x1c] sm:$0xf] %vm2511, %v2430
      %2520 = vst.msk [vmem:[#allocation3 + $0x20] sm:$0xf] %vm2511, %v2432
      %2521 = vst.msk [vmem:[#allocation3 + $0x24] sm:$0xf] %vm2511, %v2434
      %2522 = vst.msk [vmem:[#allocation3 + $0x28] sm:$0xf] %vm2511, %v2436
      %2523 = vst.msk [vmem:[#allocation3 + $0x2c] sm:$0xf] %vm2511, %v2438
      %2524 = vst.msk [vmem:[#allocation3 + $0x30] sm:$0xf] %vm2511, %v2440
      %2525 = vst.msk [vmem:[#allocation3 + $0x34] sm:$0xf] %vm2511, %v2442
      %2526 = vst.msk [vmem:[#allocation3 + $0x38] sm:$0xf] %vm2511, %v2444
      %2527 = vst.msk [vmem:[#allocation3 + $0x3c] sm:$0xf] %vm2511, %v2446
      %2528 = vst.msk [vmem:[#allocation3 + $0x40] sm:$0xf] %vm2511, %v2448
      %2529 = vst.msk [vmem:[#allocation3 + $0x44] sm:$0xf] %vm2511, %v2450
      %2530 = vst.msk [vmem:[#allocation3 + $0x48] sm:$0xf] %vm2511, %v2452
      %2531 = vst.msk [vmem:[#allocation3 + $0x4c] sm:$0xf] %vm2511, %v2454
      %2532 = vst.msk [vmem:[#allocation3 + $0x50] sm:$0xf] %vm2511, %v2456
      %2533 = vst.msk [vmem:[#allocation3 + $0x54] sm:$0xf] %vm2511, %v2458
      %2534 = vst.msk [vmem:[#allocation3 + $0x58] sm:$0xf] %vm2511, %v2460
      %2535 = vst.msk [vmem:[#allocation3 + $0x5c] sm:$0xf] %vm2511, %v2462
      %2536 = vst.msk [vmem:[#allocation3 + $0x60] sm:$0xf] %vm2511, %v2464
      %2537 = vst.msk [vmem:[#allocation3 + $0x64] sm:$0xf] %vm2511, %v2466
      %2538 = vst.msk [vmem:[#allocation3 + $0x68] sm:$0xf] %vm2511, %v2468
      %2539 = vst.msk [vmem:[#allocation3 + $0x6c] sm:$0xf] %vm2511, %v2470
      %2540 = vst.msk [vmem:[#allocation3 + $0x70] sm:$0xf] %vm2511, %v2472
      %2541 = vst.msk [vmem:[#allocation3 + $0x74] sm:$0xf] %vm2511, %v2474
      %2542 = vst.msk [vmem:[#allocation3 + $0x78] sm:$0xf] %vm2511, %v2476
      %2543 = vst.msk [vmem:[#allocation3 + $0x7c] sm:$0xf] %vm2511, %v2478
      %v2544 = vld [vmem:[#allocation3] sm:$0xf]
      %v2545 = vld [vmem:[#allocation3 + $0x4] sm:$0xf]
      %v2546 = vld [vmem:[#allocation3 + $0x8] sm:$0xf]
      %v2547 = vld [vmem:[#allocation3 + $0xc] sm:$0xf]
      %v2548 = vld [vmem:[#allocation3 + $0x10] sm:$0xf]
      %v2549 = vld [vmem:[#allocation3 + $0x14] sm:$0xf]
      %v2550 = vld [vmem:[#allocation3 + $0x18] sm:$0xf]
      %v2551 = vld [vmem:[#allocation3 + $0x1c] sm:$0xf]
      %v2552 = vld [vmem:[#allocation3 + $0x20] sm:$0xf]
      %v2553 = vld [vmem:[#allocation3 + $0x24] sm:$0xf]
      %v2554 = vld [vmem:[#allocation3 + $0x28] sm:$0xf]
      %v2555 = vld [vmem:[#allocation3 + $0x2c] sm:$0xf]
      %v2556 = vld [vmem:[#allocation3 + $0x30] sm:$0xf]
      %v2557 = vld [vmem:[#allocation3 + $0x34] sm:$0xf]
      %v2558 = vld [vmem:[#allocation3 + $0x38] sm:$0xf]
      %v2559 = vld [vmem:[#allocation3 + $0x3c] sm:$0xf]
      %v2560 = vld [vmem:[#allocation3 + $0x40] sm:$0xf]
      %v2561 = vld [vmem:[#allocation3 + $0x44] sm:$0xf]
      %v2562 = vld [vmem:[#allocation3 + $0x48] sm:$0xf]
      %v2563 = vld [vmem:[#allocation3 + $0x4c] sm:$0xf]
      %v2564 = vld [vmem:[#allocation3 + $0x50] sm:$0xf]
      %v2565 = vld [vmem:[#allocation3 + $0x54] sm:$0xf]
      %v2566 = vld [vmem:[#allocation3 + $0x58] sm:$0xf]
      %v2567 = vld [vmem:[#allocation3 + $0x5c] sm:$0xf]
      %v2568 = vld [vmem:[#allocation3 + $0x60] sm:$0xf]
      %v2569 = vld [vmem:[#allocation3 + $0x64] sm:$0xf]
      %v2570 = vld [vmem:[#allocation3 + $0x68] sm:$0xf]
      %v2571 = vld [vmem:[#allocation3 + $0x6c] sm:$0xf]
      %v2572 = vld [vmem:[#allocation3 + $0x70] sm:$0xf]
      %v2573 = vld [vmem:[#allocation3 + $0x74] sm:$0xf]
      %v2574 = vld [vmem:[#allocation3 + $0x78] sm:$0xf]
      %v2575 = vld [vmem:[#allocation3 + $0x7c] sm:$0xf]
      %v2576 = vld [vmem:[%s1] sm:$0xf]
      %v2577 = vld [vmem:[%s1 + $0x4] sm:$0xf]
      %v2578 = vld [vmem:[%s1 + $0x8] sm:$0xf]
      %v2579 = vld [vmem:[%s1 + $0xc] sm:$0xf]
      %v2580 = vld [vmem:[%s1 + $0x10] sm:$0x3]
      %v2613 = vunpack.c.l.b16 %v2544
      %v2614 = vunpack.c.l.b16 %v2545
      %v2615 = vunpack.c.l.b16 %v2546
      %v2616 = vunpack.c.l.b16 %v2547
      %v2617 = vunpack.c.l.b16 %v2548
      %v2618 = vunpack.c.l.b16 %v2549
      %v2619 = vunpack.c.l.b16 %v2550
      %v2620 = vunpack.c.l.b16 %v2551
      %v2621 = vunpack.c.l.b16 %v2552
      %v2622 = vunpack.c.l.b16 %v2553
      %v2623 = vunpack.c.l.b16 %v2554
      %v2624 = vunpack.c.l.b16 %v2555
      %v2625 = vunpack.c.l.b16 %v2556
      %v2626 = vunpack.c.l.b16 %v2557
      %v2627 = vunpack.c.l.b16 %v2558
      %v2628 = vunpack.c.l.b16 %v2559
      %v2629 = vunpack.c.l.b16 %v2560
      %v2630 = vunpack.c.l.b16 %v2561
      %v2631 = vunpack.c.l.b16 %v2562
      %v2632 = vunpack.c.l.b16 %v2563
      %v2633 = vunpack.c.l.b16 %v2564
      %v2634 = vunpack.c.l.b16 %v2565
      %v2635 = vunpack.c.l.b16 %v2566
      %v2636 = vunpack.c.l.b16 %v2567
      %v2637 = vunpack.c.l.b16 %v2568
      %v2638 = vunpack.c.l.b16 %v2569
      %v2639 = vunpack.c.l.b16 %v2570
      %v2640 = vunpack.c.l.b16 %v2571
      %v2641 = vunpack.c.l.b16 %v2572
      %v2642 = vunpack.c.l.b16 %v2573
      %v2643 = vunpack.c.l.b16 %v2574
      %v2644 = vunpack.c.l.b16 %v2575
      %v2645 = vpack.c.b16 %v2614, %v2613
      %v2646 = vpack.c.b16 %v2616, %v2615
      %v2647 = vpack.c.b16 %v2618, %v2617
      %v2648 = vpack.c.b16 %v2620, %v2619
      %v2649 = vpack.c.b16 %v2622, %v2621
      %v2650 = vpack.c.b16 %v2624, %v2623
      %v2651 = vpack.c.b16 %v2626, %v2625
      %v2652 = vpack.c.b16 %v2628, %v2627
      %v2653 = vpack.c.b16 %v2630, %v2629
      %v2654 = vpack.c.b16 %v2632, %v2631
      %v2655 = vpack.c.b16 %v2634, %v2633
      %v2656 = vpack.c.b16 %v2636, %v2635
      %v2657 = vpack.c.b16 %v2638, %v2637
      %v2658 = vpack.c.b16 %v2640, %v2639
      %v2659 = vpack.c.b16 %v2642, %v2641
      %v2660 = vpack.c.b16 %v2644, %v2643
      %v2666 = vunpack.c.l.b16 %v2576
      %v2667 = vunpack.c.l.b16 %v2577
      %v2668 = vunpack.c.l.b16 %v2578
      %v2669 = vunpack.c.l.b16 %v2579
      %v2670 = vunpack.c.l.b16 %v2580
      %v2671 = vpack.c.b16 %v2667, %v2666
      %v2672 = vpack.c.b16 %v2669, %v2668
      %v2673 = vpack.c.b16 %v2670, %v2670
      %vm2676 = vcmask 293888
      %v2678 = vsel %vm2676, %v2645, 0
      %v2681 = vsel %vm2676, %v2646, 0
      %v2684 = vsel %vm2676, %v2647, 0
      %v2687 = vsel %vm2676, %v2648, 0
      %v2690 = vsel %vm2676, %v2649, 0
      %v2693 = vsel %vm2676, %v2650, 0
      %v2696 = vsel %vm2676, %v2651, 0
      %v2699 = vsel %vm2676, %v2652, 0
      %v2702 = vsel %vm2676, %v2653, 0
      %v2705 = vsel %vm2676, %v2654, 0
      %v2708 = vsel %vm2676, %v2655, 0
      %v2711 = vsel %vm2676, %v2656, 0
      %v2714 = vsel %vm2676, %v2657, 0
      %v2717 = vsel %vm2676, %v2658, 0
      %v2720 = vsel %vm2676, %v2659, 0
      %v2723 = vsel %vm2676, %v2660, 0
      %vm2725 = vcmask 1041408
      %v2727 = vsel %vm2725, %v2673, 0
      %2729 = vmatprep.subr.bf16.mxu0 0
      %2730 = vmatpush1.bf16.msra.mxu0 0
      %2731 = vmatprep.subr.bf16.mxu0 0
      %2732 = vmatpush1.bf16.msra.mxu0 0
      %2733 = vmatprep.subr.bf16.mxu0 0
      %2734 = vmatpush1.bf16.msra.mxu0 0
      %2735 = vmatprep.subr.bf16.mxu0 0
      %2736 = vmatpush1.bf16.msra.mxu0 0
      %2737 = vmatprep.subr.bf16.mxu0 0
      %2738 = vmatpush1.bf16.msra.mxu0 0
      %2739 = vmatprep.subr.bf16.mxu0 0
      %2740 = vmatpush1.bf16.msra.mxu0 %v2727
      %2741 = vmatprep.subr.bf16.mxu0 0
      %2742 = vmatpush1.bf16.msra.mxu0 %v2672
      %2743 = vmatprep.subr.bf16.mxu0 0
      %2744 = vmatpush1.bf16.msra.mxu0 %v2671
      %2745 = vmatprep.subr.bf16.mxu0 0
      %2746 = vmatpush2.bf16.msra.mxu0 0
      %2747 = vmatprep.subr.bf16.mxu0 0
      %2748 = vmatpush2.bf16.msra.mxu0 0
      %2749 = vmatprep.subr.bf16.mxu0 0
      %2750 = vmatpush2.bf16.msra.mxu0 0
      %2751 = vmatprep.subr.bf16.mxu0 0
      %2752 = vmatpush2.bf16.msra.mxu0 0
      %2753 = vmatprep.subr.bf16.mxu0 0
      %2754 = vmatpush2.bf16.msra.mxu0 0
      %2755 = vmatprep.subr.bf16.mxu0 0
      %2756 = vmatpush2.bf16.msra.mxu0 0
      %2757 = vmatprep.subr.bf16.mxu0 0
      %2758 = vmatpush2.bf16.msra.mxu0 0
      %2759 = vmatprep.subr.bf16.mxu0 0
      %2760 = vmatpush2.bf16.msra.mxu0 0
      %2761 = vmatprep.mubr.bf16.mxu0 0
      %2762 = vmatmul.mubr.bf16.gmra.mxu0 %v2678
      %v2763 = vpop.f32.mrf.mxu0
      %v2764 = vadd.f32 0.0, %v2763
      %v2765 = vpop.f32.mrf.mxu0
      %v2766 = vpop.f32.mrf.mxu0
      %v2767 = vadd.f32 0.0, %v2766
      %v2768 = vpop.f32.mrf.mxu0
      %2769 = vmatprep.mubr.bf16.mxu0 0
      %2770 = vmatmul.mubr.bf16.gmra.mxu0 %v2681
      %v2771 = vpop.f32.mrf.mxu0
      %v2772 = vadd.f32 0.0, %v2771
      %v2773 = vpop.f32.mrf.mxu0
      %v2774 = vpop.f32.mrf.mxu0
      %v2775 = vadd.f32 0.0, %v2774
      %v2776 = vpop.f32.mrf.mxu0
      %2777 = vmatprep.mubr.bf16.mxu0 0
      %2778 = vmatmul.mubr.bf16.gmra.mxu0 %v2684
      %v2779 = vpop.f32.mrf.mxu0
      %v2780 = vadd.f32 0.0, %v2779
      %v2781 = vpop.f32.mrf.mxu0
      %v2782 = vpop.f32.mrf.mxu0
      %v2783 = vadd.f32 0.0, %v2782
      %v2784 = vpop.f32.mrf.mxu0
      %2785 = vmatprep.mubr.bf16.mxu0 0
      %2786 = vmatmul.mubr.bf16.gmra.mxu0 %v2687
      %v2787 = vpop.f32.mrf.mxu0
      %v2788 = vadd.f32 0.0, %v2787
      %v2789 = vpop.f32.mrf.mxu0
      %v2790 = vpop.f32.mrf.mxu0
      %v2791 = vadd.f32 0.0, %v2790
      %v2792 = vpop.f32.mrf.mxu0
      %2793 = vmatprep.mubr.bf16.mxu0 0
      %2794 = vmatmul.mubr.bf16.gmra.mxu0 %v2690
      %v2795 = vpop.f32.mrf.mxu0
      %v2796 = vadd.f32 0.0, %v2795
      %v2797 = vpop.f32.mrf.mxu0
      %v2798 = vpop.f32.mrf.mxu0
      %v2799 = vadd.f32 0.0, %v2798
      %v2800 = vpop.f32.mrf.mxu0
      %2801 = vmatprep.mubr.bf16.mxu0 0
      %2802 = vmatmul.mubr.bf16.gmra.mxu0 %v2693
      %v2803 = vpop.f32.mrf.mxu0
      %v2804 = vadd.f32 0.0, %v2803
      %v2805 = vpop.f32.mrf.mxu0
      %v2806 = vpop.f32.mrf.mxu0
      %v2807 = vadd.f32 0.0, %v2806
      %v2808 = vpop.f32.mrf.mxu0
      %2809 = vmatprep.mubr.bf16.mxu0 0
      %2810 = vmatmul.mubr.bf16.gmra.mxu0 %v2696
      %v2811 = vpop.f32.mrf.mxu0
      %v2812 = vadd.f32 0.0, %v2811
      %v2813 = vpop.f32.mrf.mxu0
      %v2814 = vpop.f32.mrf.mxu0
      %v2815 = vadd.f32 0.0, %v2814
      %v2816 = vpop.f32.mrf.mxu0
      %2817 = vmatprep.mubr.bf16.mxu0 0
      %2818 = vmatmul.mubr.bf16.gmra.mxu0 %v2699
      %v2819 = vpop.f32.mrf.mxu0
      %v2820 = vadd.f32 0.0, %v2819
      %v2821 = vpop.f32.mrf.mxu0
      %v2822 = vpop.f32.mrf.mxu0
      %v2823 = vadd.f32 0.0, %v2822
      %v2824 = vpop.f32.mrf.mxu0
      %2825 = vmatprep.mubr.bf16.mxu0 0
      %2826 = vmatmul.mubr.bf16.gmra.mxu0 %v2702
      %v2827 = vpop.f32.mrf.mxu0
      %v2828 = vadd.f32 0.0, %v2827
      %v2829 = vpop.f32.mrf.mxu0
      %v2830 = vpop.f32.mrf.mxu0
      %v2831 = vadd.f32 0.0, %v2830
      %v2832 = vpop.f32.mrf.mxu0
      %2833 = vmatprep.mubr.bf16.mxu0 0
      %2834 = vmatmul.mubr.bf16.gmra.mxu0 %v2705
      %v2835 = vpop.f32.mrf.mxu0
      %v2836 = vadd.f32 0.0, %v2835
      %v2837 = vpop.f32.mrf.mxu0
      %v2838 = vpop.f32.mrf.mxu0
      %v2839 = vadd.f32 0.0, %v2838
      %v2840 = vpop.f32.mrf.mxu0
      %2841 = vmatprep.mubr.bf16.mxu0 0
      %2842 = vmatmul.mubr.bf16.gmra.mxu0 %v2708
      %v2843 = vpop.f32.mrf.mxu0
      %v2844 = vadd.f32 0.0, %v2843
      %v2845 = vpop.f32.mrf.mxu0
      %v2846 = vpop.f32.mrf.mxu0
      %v2847 = vadd.f32 0.0, %v2846
      %v2848 = vpop.f32.mrf.mxu0
      %2849 = vmatprep.mubr.bf16.mxu0 0
      %2850 = vmatmul.mubr.bf16.gmra.mxu0 %v2711
      %v2851 = vpop.f32.mrf.mxu0
      %v2852 = vadd.f32 0.0, %v2851
      %v2853 = vpop.f32.mrf.mxu0
      %v2854 = vpop.f32.mrf.mxu0
      %v2855 = vadd.f32 0.0, %v2854
      %v2856 = vpop.f32.mrf.mxu0
      %2857 = vmatprep.mubr.bf16.mxu0 0
      %2858 = vmatmul.mubr.bf16.gmra.mxu0 %v2714
      %v2859 = vpop.f32.mrf.mxu0
      %v2860 = vadd.f32 0.0, %v2859
      %v2861 = vpop.f32.mrf.mxu0
      %v2862 = vpop.f32.mrf.mxu0
      %v2863 = vadd.f32 0.0, %v2862
      %v2864 = vpop.f32.mrf.mxu0
      %2865 = vmatprep.mubr.bf16.mxu0 0
      %2866 = vmatmul.mubr.bf16.gmra.mxu0 %v2717
      %v2867 = vpop.f32.mrf.mxu0
      %v2868 = vadd.f32 0.0, %v2867
      %v2869 = vpop.f32.mrf.mxu0
      %v2870 = vpop.f32.mrf.mxu0
      %v2871 = vadd.f32 0.0, %v2870
      %v2872 = vpop.f32.mrf.mxu0
      %2873 = vmatprep.mubr.bf16.mxu0 0
      %2874 = vmatmul.mubr.bf16.gmra.mxu0 %v2720
      %v2875 = vpop.f32.mrf.mxu0
      %v2876 = vadd.f32 0.0, %v2875
      %v2877 = vpop.f32.mrf.mxu0
      %v2878 = vpop.f32.mrf.mxu0
      %v2879 = vadd.f32 0.0, %v2878
      %v2880 = vpop.f32.mrf.mxu0
      %2881 = vmatprep.mubr.bf16.mxu0 0
      %2882 = vmatmul.mubr.bf16.gmra.mxu0 %v2723
      %v2883 = vpop.f32.mrf.mxu0
      %v2884 = vadd.f32 0.0, %v2883
      %v2885 = vpop.f32.mrf.mxu0
      %v2886 = vpop.f32.mrf.mxu0
      %v2887 = vadd.f32 0.0, %v2886
      %v2888 = vpop.f32.mrf.mxu0
      %2889 = vdwg.mxu0
      %vm2890 = vcmask 64512
      %2891 = vst.msk [vmem:[%s177] sm:$0xff] %vm2890, %v2764
      %2892 = vst.msk [vmem:[%s177 + $0x8] sm:$0xff] %vm2890, %v2767
      %2893 = vst.msk [vmem:[%s177 + $0x10] sm:$0xff] %vm2890, %v2772
      %2894 = vst.msk [vmem:[%s177 + $0x18] sm:$0xff] %vm2890, %v2775
      %2895 = vst.msk [vmem:[%s177 + $0x20] sm:$0xff] %vm2890, %v2780
      %2896 = vst.msk [vmem:[%s177 + $0x28] sm:$0xff] %vm2890, %v2783
      %2897 = vst.msk [vmem:[%s177 + $0x30] sm:$0xff] %vm2890, %v2788
      %2898 = vst.msk [vmem:[%s177 + $0x38] sm:$0xff] %vm2890, %v2791
      %2899 = vst.msk [vmem:[%s177 + $0x40] sm:$0xff] %vm2890, %v2796
      %2900 = vst.msk [vmem:[%s177 + $0x48] sm:$0xff] %vm2890, %v2799
      %2901 = vst.msk [vmem:[%s177 + $0x50] sm:$0xff] %vm2890, %v2804
      %2902 = vst.msk [vmem:[%s177 + $0x58] sm:$0xff] %vm2890, %v2807
      %2903 = vst.msk [vmem:[%s177 + $0x60] sm:$0xff] %vm2890, %v2812
      %2904 = vst.msk [vmem:[%s177 + $0x68] sm:$0xff] %vm2890, %v2815
      %2905 = vst.msk [vmem:[%s177 + $0x70] sm:$0xff] %vm2890, %v2820
      %2906 = vst.msk [vmem:[%s177 + $0x78] sm:$0xff] %vm2890, %v2823
      %2907 = vst.msk [vmem:[%s177 + $0x80] sm:$0xff] %vm2890, %v2828
      %2908 = vst.msk [vmem:[%s177 + $0x88] sm:$0xff] %vm2890, %v2831
      %2909 = vst.msk [vmem:[%s177 + $0x90] sm:$0xff] %vm2890, %v2836
      %2910 = vst.msk [vmem:[%s177 + $0x98] sm:$0xff] %vm2890, %v2839
      %2911 = vst.msk [vmem:[%s177 + $0xa0] sm:$0xff] %vm2890, %v2844
      %2912 = vst.msk [vmem:[%s177 + $0xa8] sm:$0xff] %vm2890, %v2847
      %2913 = vst.msk [vmem:[%s177 + $0xb0] sm:$0xff] %vm2890, %v2852
      %2914 = vst.msk [vmem:[%s177 + $0xb8] sm:$0xff] %vm2890, %v2855
      %2915 = vst.msk [vmem:[%s177 + $0xc0] sm:$0xff] %vm2890, %v2860
      %2916 = vst.msk [vmem:[%s177 + $0xc8] sm:$0xff] %vm2890, %v2863
      %2917 = vst.msk [vmem:[%s177 + $0xd0] sm:$0xff] %vm2890, %v2868
      %2918 = vst.msk [vmem:[%s177 + $0xd8] sm:$0xff] %vm2890, %v2871
      %2919 = vst.msk [vmem:[%s177 + $0xe0] sm:$0xff] %vm2890, %v2876
      %2920 = vst.msk [vmem:[%s177 + $0xe8] sm:$0xff] %vm2890, %v2879
      %2921 = vst.msk [vmem:[%s177 + $0xf0] sm:$0xff] %vm2890, %v2884
      %2922 = vst.msk [vmem:[%s177 + $0xf8] sm:$0xff] %vm2890, %v2887
      %v2923 = vsel %vm2890, %v2764, 0.0
      %v2924 = vsel %vm2890, %v2767, 0.0
      %v2925 = vadd.f32 %v2923, %v2924
      %v2926 = vsel %vm2890, %v2772, 0.0
      %v2927 = vadd.f32 %v2925, %v2926
      %v2928 = vsel %vm2890, %v2775, 0.0
      %v2929 = vadd.f32 %v2927, %v2928
      %v2930 = vsel %vm2890, %v2780, 0.0
      %v2931 = vadd.f32 %v2929, %v2930
      %v2932 = vsel %vm2890, %v2783, 0.0
      %v2933 = vadd.f32 %v2931, %v2932
      %v2934 = vsel %vm2890, %v2788, 0.0
      %v2935 = vadd.f32 %v2933, %v2934
      %v2936 = vsel %vm2890, %v2791, 0.0
      %v2937 = vadd.f32 %v2935, %v2936
      %v2938 = vsel %vm2890, %v2796, 0.0
      %v2939 = vadd.f32 %v2937, %v2938
      %v2940 = vsel %vm2890, %v2799, 0.0
      %v2941 = vadd.f32 %v2939, %v2940
      %v2942 = vsel %vm2890, %v2804, 0.0
      %v2943 = vadd.f32 %v2941, %v2942
      %v2944 = vsel %vm2890, %v2807, 0.0
      %v2945 = vadd.f32 %v2943, %v2944
      %v2946 = vsel %vm2890, %v2812, 0.0
      %v2947 = vadd.f32 %v2945, %v2946
      %v2948 = vsel %vm2890, %v2815, 0.0
      %v2949 = vadd.f32 %v2947, %v2948
      %v2950 = vsel %vm2890, %v2820, 0.0
      %v2951 = vadd.f32 %v2949, %v2950
      %v2952 = vsel %vm2890, %v2823, 0.0
      %v2953 = vadd.f32 %v2951, %v2952
      %v2954 = vsel %vm2890, %v2828, 0.0
      %v2955 = vadd.f32 %v2953, %v2954
      %v2956 = vsel %vm2890, %v2831, 0.0
      %v2957 = vadd.f32 %v2955, %v2956
      %v2958 = vsel %vm2890, %v2836, 0.0
      %v2959 = vadd.f32 %v2957, %v2958
      %v2960 = vsel %vm2890, %v2839, 0.0
      %v2961 = vadd.f32 %v2959, %v2960
      %v2962 = vsel %vm2890, %v2844, 0.0
      %v2963 = vadd.f32 %v2961, %v2962
      %v2964 = vsel %vm2890, %v2847, 0.0
      %v2965 = vadd.f32 %v2963, %v2964
      %v2966 = vsel %vm2890, %v2852, 0.0
      %v2967 = vadd.f32 %v2965, %v2966
      %v2968 = vsel %vm2890, %v2855, 0.0
      %v2969 = vadd.f32 %v2967, %v2968
      %v2970 = vsel %vm2890, %v2860, 0.0
      %v2971 = vadd.f32 %v2969, %v2970
      %v2972 = vsel %vm2890, %v2863, 0.0
      %v2973 = vadd.f32 %v2971, %v2972
      %v2974 = vsel %vm2890, %v2868, 0.0
      %v2975 = vadd.f32 %v2973, %v2974
      %v2976 = vsel %vm2890, %v2871, 0.0
      %v2977 = vadd.f32 %v2975, %v2976
      %v2978 = vsel %vm2890, %v2876, 0.0
      %v2979 = vadd.f32 %v2977, %v2978
      %v2980 = vsel %vm2890, %v2879, 0.0
      %v2981 = vadd.f32 %v2979, %v2980
      %v2982 = vsel %vm2890, %v2884, 0.0
      %v2983 = vadd.f32 %v2981, %v2982
      %v2984 = vsel %vm2890, %v2887, 0.0
      %v2985 = vadd.f32 %v2983, %v2984
      %v2986 = vrot.slane %v2985, 4
      %v2987 = vadd.f32 %v2985, %v2986
      %v2988 = vrot.slane %v2987, 2
      %v2989 = vadd.f32 %v2987, %v2988
      %v2990 = vrot.slane %v2989, 1
      %v2991 = vadd.f32 %v2989, %v2990
      %vm2992 = vcmask 57344
      %2993 = vst.msk [vmem:[%s181] sm:$0x1] %vm2992, %v2991
      %v2994 = vmul.f32 %v2764, %v2764
      %v2995 = vmul.f32 %v2767, %v2767
      %v2996 = vmul.f32 %v2772, %v2772
      %v2997 = vmul.f32 %v2775, %v2775
      %v2998 = vmul.f32 %v2780, %v2780
      %v2999 = vmul.f32 %v2783, %v2783
      %v3000 = vmul.f32 %v2788, %v2788
      %v3001 = vmul.f32 %v2791, %v2791
      %v3002 = vmul.f32 %v2796, %v2796
      %v3003 = vmul.f32 %v2799, %v2799
      %v3004 = vmul.f32 %v2804, %v2804
      %v3005 = vmul.f32 %v2807, %v2807
      %v3006 = vmul.f32 %v2812, %v2812
      %v3007 = vmul.f32 %v2815, %v2815
      %v3008 = vmul.f32 %v2820, %v2820
      %v3009 = vmul.f32 %v2823, %v2823
      %v3010 = vmul.f32 %v2828, %v2828
      %v3011 = vmul.f32 %v2831, %v2831
      %v3012 = vmul.f32 %v2836, %v2836
      %v3013 = vmul.f32 %v2839, %v2839
      %v3014 = vmul.f32 %v2844, %v2844
      %v3015 = vmul.f32 %v2847, %v2847
      %v3016 = vmul.f32 %v2852, %v2852
      %v3017 = vmul.f32 %v2855, %v2855
      %v3018 = vmul.f32 %v2860, %v2860
      %v3019 = vmul.f32 %v2863, %v2863
      %v3020 = vmul.f32 %v2868, %v2868
      %v3021 = vmul.f32 %v2871, %v2871
      %v3022 = vmul.f32 %v2876, %v2876
      %v3023 = vmul.f32 %v2879, %v2879
      %v3024 = vmul.f32 %v2884, %v2884
      %v3025 = vmul.f32 %v2887, %v2887
      %v3026 = vsel %vm2890, %v2994, 0.0
      %v3027 = vsel %vm2890, %v2995, 0.0
      %v3028 = vadd.f32 %v3026, %v3027
      %v3029 = vsel %vm2890, %v2996, 0.0
      %v3030 = vadd.f32 %v3028, %v3029
      %v3031 = vsel %vm2890, %v2997, 0.0
      %v3032 = vadd.f32 %v3030, %v3031
      %v3033 = vsel %vm2890, %v2998, 0.0
      %v3034 = vadd.f32 %v3032, %v3033
      %v3035 = vsel %vm2890, %v2999, 0.0
      %v3036 = vadd.f32 %v3034, %v3035
      %v3037 = vsel %vm2890, %v3000, 0.0
      %v3038 = vadd.f32 %v3036, %v3037
      %v3039 = vsel %vm2890, %v3001, 0.0
      %v3040 = vadd.f32 %v3038, %v3039
      %v3041 = vsel %vm2890, %v3002, 0.0
      %v3042 = vadd.f32 %v3040, %v3041
      %v3043 = vsel %vm2890, %v3003, 0.0
      %v3044 = vadd.f32 %v3042, %v3043
      %v3045 = vsel %vm2890, %v3004, 0.0
      %v3046 = vadd.f32 %v3044, %v3045
      %v3047 = vsel %vm2890, %v3005, 0.0
      %v3048 = vadd.f32 %v3046, %v3047
      %v3049 = vsel %vm2890, %v3006, 0.0
      %v3050 = vadd.f32 %v3048, %v3049
      %v3051 = vsel %vm2890, %v3007, 0.0
      %v3052 = vadd.f32 %v3050, %v3051
      %v3053 = vsel %vm2890, %v3008, 0.0
      %v3054 = vadd.f32 %v3052, %v3053
      %v3055 = vsel %vm2890, %v3009, 0.0
      %v3056 = vadd.f32 %v3054, %v3055
      %v3057 = vsel %vm2890, %v3010, 0.0
      %v3058 = vadd.f32 %v3056, %v3057
      %v3059 = vsel %vm2890, %v3011, 0.0
      %v3060 = vadd.f32 %v3058, %v3059
      %v3061 = vsel %vm2890, %v3012, 0.0
      %v3062 = vadd.f32 %v3060, %v3061
      %v3063 = vsel %vm2890, %v3013, 0.0
      %v3064 = vadd.f32 %v3062, %v3063
      %v3065 = vsel %vm2890, %v3014, 0.0
      %v3066 = vadd.f32 %v3064, %v3065
      %v3067 = vsel %vm2890, %v3015, 0.0
      %v3068 = vadd.f32 %v3066, %v3067
      %v3069 = vsel %vm2890, %v3016, 0.0
      %v3070 = vadd.f32 %v3068, %v3069
      %v3071 = vsel %vm2890, %v3017, 0.0
      %v3072 = vadd.f32 %v3070, %v3071
      %v3073 = vsel %vm2890, %v3018, 0.0
      %v3074 = vadd.f32 %v3072, %v3073
      %v3075 = vsel %vm2890, %v3019, 0.0
      %v3076 = vadd.f32 %v3074, %v3075
      %v3077 = vsel %vm2890, %v3020, 0.0
      %v3078 = vadd.f32 %v3076, %v3077
      %v3079 = vsel %vm2890, %v3021, 0.0
      %v3080 = vadd.f32 %v3078, %v3079
      %v3081 = vsel %vm2890, %v3022, 0.0
      %v3082 = vadd.f32 %v3080, %v3081
      %v3083 = vsel %vm2890, %v3023, 0.0
      %v3084 = vadd.f32 %v3082, %v3083
      %v3085 = vsel %vm2890, %v3024, 0.0
      %v3086 = vadd.f32 %v3084, %v3085
      %v3087 = vsel %vm2890, %v3025, 0.0
      %v3088 = vadd.f32 %v3086, %v3087
      %v3089 = vrot.slane %v3088, 4
      %v3090 = vadd.f32 %v3088, %v3089
      %v3091 = vrot.slane %v3090, 2
      %v3092 = vadd.f32 %v3090, %v3091
      %v3093 = vrot.slane %v3092, 1
      %v3094 = vadd.f32 %v3092, %v3093
      %3095 = vst.msk [vmem:[%s181 + $0x1] sm:$0x1] %vm2992, %v3094
      %p3096 = scmp.lt.s32.totalorder %s15, 1
      %s3097 = scalar_select %p3096, %s15, 1
      %s3098 = smul.addr %s3097, 32
      %s3099 = smul.addr %s3098, 8
      %s3100 = scalar_lea.vmem %s2, %s3099
      %p3101 = scmp.lt.s32.totalorder %s15, 1
      %s3102 = scalar_select %p3101, %s15, 1
      %s3103 = smul.addr %s3102, 2
      %s3104 = scalar_lea.vmem %s3, %s3103
      // Predicated region
      $region29: #{basic_conv_block.3} parent=27 // pred_check
        %p3105 = pneg %p80
      $region30: #{basic_conv_block.3} parent=27 // pred_check_branch
        %3107 = sbr.rel (%p3105) target = $region32
      $region31: #{basic_conv_block.3} parent=27 // pred_region
        _
      $region32: #{basic_conv_block.3} parent=27 // pred_fallthru
        _
      // Predicated region
      $region33: #{basic_conv_block.3} parent=27 // pred_check
        %p3108 = pneg %p106
      $region34: #{basic_conv_block.3} parent=27 // pred_check_branch
        %3110 = sbr.rel (%p3108) target = $region36
      $region35: #{basic_conv_block.3} parent=27 // pred_region
        _
      $region36: #{basic_conv_block.3} parent=27 // pred_fallthru
        _
    $region28: #{basic_conv_block.3} parent=5 // pred_fallthru
      _
    %p3111 = scmp.le.s32.totalorder 2, %s10
    // Predicated region
    $region37: #{basic_conv_block.3} parent=5 // pred_check
      %p3112 = pneg %p3111
    $region38: #{basic_conv_block.3} parent=5 // pred_check_branch
      %3114 = sbr.rel (%p3112) target = $region40
    $region39: #{basic_conv_block.3} parent=5 // pred_region
      %s3115 = ssub.s32 %s10, 2
      // Predicated region
      $region41: #{basic_conv_block.3} parent=39 // pred_check
        %p3116 = pneg %p86
      $region42: #{basic_conv_block.3} parent=39 // pred_check_branch
        %3118 = sbr.rel (%p3116) target = $region44
      $region43: #{basic_conv_block.3} parent=39 // pred_region
        %p3119 = scmp.lt.s32.totalorder %s16, 1
        %s3120 = scalar_select %p3119, %s16, 1
        %s3121 = smul.addr %s3120, 32
        %s3122 = smul.addr %s3121, 8
        %s3123 = scalar_lea.vmem %s2, %s3122
      $region44: #{basic_conv_block.3} parent=39 // pred_fallthru
        _
      // Predicated region
      $region45: #{basic_conv_block.3} parent=39 // pred_check
        %p3124 = pneg %p112
      $region46: #{basic_conv_block.3} parent=39 // pred_check_branch
        %3126 = sbr.rel (%p3124) target = $region48
      $region47: #{basic_conv_block.3} parent=39 // pred_region
        %p3127 = scmp.lt.s32.totalorder %s16, 1
        %s3128 = scalar_select %p3127, %s16, 1
        %s3129 = smul.addr %s3128, 2
        %s3130 = scalar_lea.vmem %s3, %s3129
      $region48: #{basic_conv_block.3} parent=39 // pred_fallthru
        _
    $region40: #{basic_conv_block.3} parent=5 // pred_fallthru
      _
  $region6: #{basic_conv_block.3} parent=0 // loop_footer
    %s14 = sadd.s32 1, %s10
  $region7: #{basic_conv_block.3} parent=0 // loop_footer_branch
    %9 = sbr.rel target = $region3
  $region8: #{basic_conv_block.3} parent=0 // loop_exit
    _

// kernel: basic_conv_block.4
$region0: #{basic_conv_block.4}
  #allocation0 [shape = 'u32[]', space=smem, size = 0x4, offset = 0x4, fixed_abs, tag = 'smem constant byte address 0x4 - core index']
  #allocation1 [shape = 'u32[144,128]{1,0:T(1,128)}', space=vmem, size = 0x12000, scoped, tag = 'internal scratch']
  #allocation2 [shape = 'f32[1,18,18,8]{3,2,1,0:T(8,128)}', space=vmem, size = 0x36000, scoped, tag = 'scratch operand']
  #allocation3 [shape = 'bf16[1,16,16,72]{3,2,1,0:T(8,128)(2,1)}', space=vmem, size = 0x10000, scoped, tag = 'scratch operand']
  %s0 = inlined_call_operand.vmem [shape: f32[2,16,16,8], index: 0, kind: input, shape index: {}]
  %s1 = inlined_call_operand.vmem [shape: f32[1,8], index: 1, kind: input, shape index: {}]
  %s2 = inlined_call_operand.vmem [shape: f32[1,8], index: 2, kind: input, shape index: {}]
  %s3 = inlined_call_operand.vmem [shape: bf16[72,8], index: 3, kind: input, shape index: {}]
  %s4 = inlined_call_operand.vmem [shape: f32[2,16,16,8], index: 4, kind: output, shape index: {0}]
  %s5 = inlined_call_operand.vmem [shape: f32[2,2,8], index: 5, kind: output, shape index: {1}]
  %6 = xla_tuple %s4, %s5
  %s7 = sld [smem:[#allocation0]]
  $region57: #{basic_conv_block.4} parent=0
    _
  %s9 = ssub.s32 1, %s7
  %s10 = scalar_select 0, %s9, %s7
  loop: start=0, step=1, limit=4
  $region2: #{basic_conv_block.4} parent=0 // loop_pre_header
    _
  $region3: #{basic_conv_block.4} parent=0 // loop_header
    %s12 = sphi 0, %s16
    %p13 = scmp.ge.s32.totalorder %s12, 4
    %s22 = sphi 0, %s24
    %s25 = sphi 0, %s22
    %s26 = sphi 0, %s25
    %s42 = sphi 0, %s26
    %s46 = sphi 0, %s46
    %s48 = sphi 0, %s46
    %s49 = sphi 0, %s48
    %s63 = sphi 0, %s49
    %s67 = sphi 0, %s67
    %s69 = sphi 0, %s67
    %s70 = sphi 0, %s69
    %s84 = sphi 0, %s70
    %s88 = sphi 0, %s88
    %s90 = sphi 0, %s88
    %s91 = sphi 0, %s90
    %s105 = sphi 0, %s91
    %s111 = sphi 0, %s113
    %s114 = sphi 0, %s111
    %s115 = sphi 0, %s114
    %s131 = sphi 0, %s115
    %s137 = sphi 0, %s139
    %s140 = sphi 0, %s137
    %s141 = sphi 0, %s140
    %s157 = sphi 0, %s141
  $region4: #{basic_conv_block.4} parent=0 // loop_header_branch
    %15 = sbr.rel (%p13) target = $region8
  $region5: #{basic_conv_block.4} parent=0 // loop_body
    %s17 = ssub.s32 %s12, 1
    %s18 = ssub.s32 %s12, 2
    %s19 = sadd.s32 %s12, 1
    %s20 = ssub.s32 %s12, %s19
    %p21 = scmp.eq.s32.totalorder %s20, 0
    %s23 = sadd.s32 %s22, 1
    %s24 = scalar_select %p21, %s22, %s23
    %p27 = pneg %p21
    %p28 = scmp.eq.s32.totalorder %s12, 1
    %p29 = por %p27, %p28
    %p30 = scmp.ne.s32.totalorder %s22, %s25
    %p31 = scmp.eq.s32.totalorder %s12, 0
    %p32 = por %p30, %p31
    %p33 = scmp.ne.s32.totalorder %s22, %s25
    %p34 = scmp.eq.s32.totalorder %s17, 1
    %p35 = por %p33, %p34
    %p36 = scmp.ne.s32.totalorder %s25, %s26
    %p37 = scmp.eq.s32.totalorder %s17, 0
    %p38 = por %p36, %p37
    %p39 = scmp.ne.s32.totalorder %s25, %s26
    %p40 = scmp.eq.s32.totalorder %s18, 1
    %p41 = por %p39, %p40
    %p43 = scmp.ne.s32.totalorder %s26, %s42
    %p44 = scmp.eq.s32.totalorder %s18, 0
    %p45 = por %p43, %p44
    %s47 = sadd.s32 %s46, 1
    %p50 = scmp.eq.s32.totalorder %s12, 1
    %p51 = scmp.ne.s32.totalorder %s46, %s48
    %p52 = scmp.eq.s32.totalorder %s12, 0
    %p53 = por %p51, %p52
    %p54 = scmp.ne.s32.totalorder %s46, %s48
    %p55 = scmp.eq.s32.totalorder %s17, 1
    %p56 = por %p54, %p55
    %p57 = scmp.ne.s32.totalorder %s48, %s49
    %p58 = scmp.eq.s32.totalorder %s17, 0
    %p59 = por %p57, %p58
    %p60 = scmp.ne.s32.totalorder %s48, %s49
    %p61 = scmp.eq.s32.totalorder %s18, 1
    %p62 = por %p60, %p61
    %p64 = scmp.ne.s32.totalorder %s49, %s63
    %p65 = scmp.eq.s32.totalorder %s18, 0
    %p66 = por %p64, %p65
    %s68 = sadd.s32 %s67, 1
    %p71 = scmp.eq.s32.totalorder %s12, 1
    %p72 = scmp.ne.s32.totalorder %s67, %s69
    %p73 = scmp.eq.s32.totalorder %s12, 0
    %p74 = por %p72, %p73
    %p75 = scmp.ne.s32.totalorder %s67, %s69
    %p76 = scmp.eq.s32.totalorder %s17, 1
    %p77 = por %p75, %p76
    %p78 = scmp.ne.s32.totalorder %s69, %s70
    %p79 = scmp.eq.s32.totalorder %s17, 0
    %p80 = por %p78, %p79
    %p81 = scmp.ne.s32.totalorder %s69, %s70
    %p82 = scmp.eq.s32.totalorder %s18, 1
    %p83 = por %p81, %p82
    %p85 = scmp.ne.s32.totalorder %s70, %s84
    %p86 = scmp.eq.s32.totalorder %s18, 0
    %p87 = por %p85, %p86
    %s89 = sadd.s32 %s88, 1
    %p92 = scmp.eq.s32.totalorder %s12, 1
    %p93 = scmp.ne.s32.totalorder %s88, %s90
    %p94 = scmp.eq.s32.totalorder %s12, 0
    %p95 = por %p93, %p94
    %p96 = scmp.ne.s32.totalorder %s88, %s90
    %p97 = scmp.eq.s32.totalorder %s17, 1
    %p98 = por %p96, %p97
    %p99 = scmp.ne.s32.totalorder %s90, %s91
    %p100 = scmp.eq.s32.totalorder %s17, 0
    %p101 = por %p99, %p100
    %p102 = scmp.ne.s32.totalorder %s90, %s91
    %p103 = scmp.eq.s32.totalorder %s18, 1
    %p104 = por %p102, %p103
    %p106 = scmp.ne.s32.totalorder %s91, %s105
    %p107 = scmp.eq.s32.totalorder %s18, 0
    %p108 = por %p106, %p107
    %s109 = ssub.s32 %s12, %s19
    %p110 = scmp.eq.s32.totalorder %s109, 0
    %s112 = sadd.s32 %s111, 1
    %s113 = scalar_select %p110, %s111, %s112
    %p116 = pneg %p110
    %p117 = scmp.eq.s32.totalorder %s12, 1
    %p118 = por %p116, %p117
    %p119 = scmp.ne.s32.totalorder %s111, %s114
    %p120 = scmp.eq.s32.totalorder %s12, 0
    %p121 = por %p119, %p120
    %p122 = scmp.ne.s32.totalorder %s111, %s114
    %p123 = scmp.eq.s32.totalorder %s17, 1
    %p124 = por %p122, %p123
    %p125 = scmp.ne.s32.totalorder %s114, %s115
    %p126 = scmp.eq.s32.totalorder %s17, 0
    %p127 = por %p125, %p126
    %p128 = scmp.ne.s32.totalorder %s114, %s115
    %p129 = scmp.eq.s32.totalorder %s18, 1
    %p130 = por %p128, %p129
    %p132 = scmp.ne.s32.totalorder %s115, %s131
    %p133 = scmp.eq.s32.totalorder %s18, 0
    %p134 = por %p132, %p133
    %s135 = ssub.s32 %s12, %s19
    %p136 = scmp.eq.s32.totalorder %s135, 0
    %s138 = sadd.s32 %s137, 1
    %s139 = scalar_select %p136, %s137, %s138
    %p142 = pneg %p136
    %p143 = scmp.eq.s32.totalorder %s12, 1
    %p144 = por %p142, %p143
    %p145 = scmp.ne.s32.totalorder %s137, %s140
    %p146 = scmp.eq.s32.totalorder %s12, 0
    %p147 = por %p145, %p146
    %p148 = scmp.ne.s32.totalorder %s137, %s140
    %p149 = scmp.eq.s32.totalorder %s17, 1
    %p150 = por %p148, %p149
    %p151 = scmp.ne.s32.totalorder %s140, %s141
    %p152 = scmp.eq.s32.totalorder %s17, 0
    %p153 = por %p151, %p152
    %p154 = scmp.ne.s32.totalorder %s140, %s141
    %p155 = scmp.eq.s32.totalorder %s18, 1
    %p156 = por %p154, %p155
    %p158 = scmp.ne.s32.totalorder %s141, %s157
    %p159 = scmp.eq.s32.totalorder %s18, 0
    %p160 = por %p158, %p159
    %p161 = scmp.le.s32.totalorder 1, %s12
    %p162 = scmp.lt.s32.totalorder %s12, 3
    %p163 = pnand %p161, %p162
    %p164 = pneg %p163
    // Predicated region
    $region9: #{basic_conv_block.4} parent=5 // pred_check
      _
    $region10: #{basic_conv_block.4} parent=5 // pred_check_branch
      %166 = sbr.rel (%p163) target = $region12
    $region11: #{basic_conv_block.4} parent=5 // pred_region
      %s167 = ssub.s32 %s12, 1
      // Predicated region
      $region13: #{basic_conv_block.4} parent=11 // pred_check
        %p168 = pneg %p59
      $region14: #{basic_conv_block.4} parent=11 // pred_check_branch
        %170 = sbr.rel (%p168) target = $region16
      $region15: #{basic_conv_block.4} parent=11 // pred_region
        _
      $region16: #{basic_conv_block.4} parent=11 // pred_fallthru
        _
      // Predicated region
      $region17: #{basic_conv_block.4} parent=11 // pred_check
        %p171 = pneg %p80
      $region18: #{basic_conv_block.4} parent=11 // pred_check_branch
        %173 = sbr.rel (%p171) target = $region20
      $region19: #{basic_conv_block.4} parent=11 // pred_region
        _
      $region20: #{basic_conv_block.4} parent=11 // pred_fallthru
        _
      // Predicated region
      $region21: #{basic_conv_block.4} parent=11 // pred_check
        %p174 = pneg %p101
      $region22: #{basic_conv_block.4} parent=11 // pred_check_branch
        %176 = sbr.rel (%p174) target = $region24
      $region23: #{basic_conv_block.4} parent=11 // pred_region
        _
      $region24: #{basic_conv_block.4} parent=11 // pred_fallthru
        _
    $region12: #{basic_conv_block.4} parent=5 // pred_fallthru
      _
    %p177 = scmp.lt.s32.totalorder %s12, 2
    // Predicated region
    $region25: #{basic_conv_block.4} parent=5 // pred_check
      %p178 = pneg %p177
    $region26: #{basic_conv_block.4} parent=5 // pred_check_branch
      %180 = sbr.rel (%p178) target = $region28
    $region27: #{basic_conv_block.4} parent=5 // pred_region
      // Predicated region
      $region29: #{basic_conv_block.4} parent=27 // pred_check
        %p181 = pneg %p32
      $region30: #{basic_conv_block.4} parent=27 // pred_check_branch
        %183 = sbr.rel (%p181) target = $region32
      $region31: #{basic_conv_block.4} parent=27 // pred_region
        %p184 = scmp.lt.s32.totalorder %s12, 1
        %s185 = scalar_select %p184, %s12, 1
        %s186 = smul.addr %s185, 32
        %s187 = smul.addr %s186, 8
        %s188 = scalar_lea.vmem %s0, %s187
      $region32: #{basic_conv_block.4} parent=27 // pred_fallthru
        _
    $region28: #{basic_conv_block.4} parent=5 // pred_fallthru
      _
    %p189 = scmp.le.s32.totalorder 1, %s12
    %p190 = scmp.lt.s32.totalorder %s12, 3
    %p191 = pnand %p189, %p190
    %p192 = pneg %p191
    // Predicated region
    $region33: #{basic_conv_block.4} parent=5 // pred_check
      _
    $region34: #{basic_conv_block.4} parent=5 // pred_check_branch
      %194 = sbr.rel (%p191) target = $region36
    $region35: #{basic_conv_block.4} parent=5 // pred_region
      %s195 = ssub.s32 %s12, 1
      %p196 = scmp.lt.s32.totalorder %s17, 1
      %s197 = scalar_select %p196, %s17, 1
      %s198 = smul.addr %s197, 32
      %s199 = smul.addr %s198, 8
      %s200 = scalar_lea.vmem %s0, %s199
      %p201 = pneg %p38
      %p202 = pneg %p35
      %p203 = pneg %p59
      %p204 = pneg %p56
      %p205 = pneg %p80
      %p206 = pneg %p77
      %p207 = pneg %p101
      %p208 = pneg %p98
      %p209 = pneg %p127
      %p210 = pneg %p124
      %p211 = scmp.lt.s32.totalorder %s17, 1
      %s212 = scalar_select %p211, %s17, 1
      %s213 = smul.addr %s212, 32
      %s214 = smul.addr %s213, 8
      %s215 = scalar_lea.vmem %s4, %s214
      %p216 = pneg %p153
      %p217 = pneg %p150
      %p218 = scmp.lt.s32.totalorder %s17, 1
      %s219 = scalar_select %p218, %s17, 1
      %s220 = smul.addr %s219, 2
      %s221 = scalar_lea.vmem %s5, %s220
      %p222 = scmp.lt.s32.totalorder %s17, 1
      %s223 = scalar_select %p222, %s17, 1
      %s224 = smul.addr %s223, 32
      %s225 = smul.addr %s224, 8
      %s226 = scalar_lea.vmem %s0, %s225
      %p227 = scmp.lt.s32.totalorder %s17, 1
      %s228 = scalar_select %p227, %s17, 1
      %s229 = smul.addr %s228, 32
      %s230 = smul.addr %s229, 8
      %s231 = scalar_lea.vmem %s4, %s230
      %p232 = scmp.lt.s32.totalorder %s17, 1
      %s233 = scalar_select %p232, %s17, 1
      %s234 = smul.addr %s233, 2
      %s235 = scalar_lea.vmem %s5, %s234
      %v237 = vld [vmem:[%s226] sm:$0xff]
      %v238 = vld [vmem:[%s226 + $0x8] sm:$0xff]
      %v239 = vld [vmem:[%s226 + $0x10] sm:$0xff]
      %v240 = vld [vmem:[%s226 + $0x18] sm:$0xff]
      %v241 = vld [vmem:[%s226 + $0x20] sm:$0xff]
      %v242 = vld [vmem:[%s226 + $0x28] sm:$0xff]
      %v243 = vld [vmem:[%s226 + $0x30] sm:$0xff]
      %v244 = vld [vmem:[%s226 + $0x38] sm:$0xff]
      %v245 = vld [vmem:[%s226 + $0x40] sm:$0xff]
      %v246 = vld [vmem:[%s226 + $0x48] sm:$0xff]
      %v247 = vld [vmem:[%s226 + $0x50] sm:$0xff]
      %v248 = vld [vmem:[%s226 + $0x58] sm:$0xff]
      %v249 = vld [vmem:[%s226 + $0x60] sm:$0xff]
      %v250 = vld [vmem:[%s226 + $0x68] sm:$0xff]
      %v251 = vld [vmem:[%s226 + $0x70] sm:$0xff]
      %v252 = vld [vmem:[%s226 + $0x78] sm:$0xff]
      %v253 = vld [vmem:[%s226 + $0x80] sm:$0xff]
      %v254 = vld [vmem:[%s226 + $0x88] sm:$0xff]
      %v255 = vld [vmem:[%s226 + $0x90] sm:$0xff]
      %v256 = vld [vmem:[%s226 + $0x98] sm:$0xff]
      %v257 = vld [vmem:[%s226 + $0xa0] sm:$0xff]
      %v258 = vld [vmem:[%s226 + $0xa8] sm:$0xff]
      %v259 = vld [vmem:[%s226 + $0xb0] sm:$0xff]
      %v260 = vld [vmem:[%s226 + $0xb8] sm:$0xff]
      %v261 = vld [vmem:[%s226 + $0xc0] sm:$0xff]
      %v262 = vld [vmem:[%s226 + $0xc8] sm:$0xff]
      %v263 = vld [vmem:[%s226 + $0xd0] sm:$0xff]
      %v264 = vld [vmem:[%s226 + $0xd8] sm:$0xff]
      %v265 = vld [vmem:[%s226 + $0xe0] sm:$0xff]
      %v266 = vld [vmem:[%s226 + $0xe8] sm:$0xff]
      %v267 = vld [vmem:[%s226 + $0xf0] sm:$0xff]
      %v268 = vld [vmem:[%s226 + $0xf8] sm:$0xff]
      %v269 = vld [vmem:[%s1] sm:$0x1]
      %v271 = vlaneseq
      %v272 = vshrl.u32 %v271, 7
      %v273 = vsub.s32 0, %v272
      %v274 = vrot.slane %v269, %v273
      %v276 = vmul.f32 %v237, %v274
      %v277 = vmul.f32 %v238, %v274
      %v278 = vmul.f32 %v239, %v274
      %v279 = vmul.f32 %v240, %v274
      %v280 = vmul.f32 %v241, %v274
      %v281 = vmul.f32 %v242, %v274
      %v282 = vmul.f32 %v243, %v274
      %v283 = vmul.f32 %v244, %v274
      %v284 = vmul.f32 %v245, %v274
      %v285 = vmul.f32 %v246, %v274
      %v286 = vmul.f32 %v247, %v274
      %v287 = vmul.f32 %v248, %v274
      %v288 = vmul.f32 %v249, %v274
      %v289 = vmul.f32 %v250, %v274
      %v290 = vmul.f32 %v251, %v274
      %v291 = vmul.f32 %v252, %v274
      %v292 = vmul.f32 %v253, %v274
      %v293 = vmul.f32 %v254, %v274
      %v294 = vmul.f32 %v255, %v274
      %v295 = vmul.f32 %v256, %v274
      %v296 = vmul.f32 %v257, %v274
      %v297 = vmul.f32 %v258, %v274
      %v298 = vmul.f32 %v259, %v274
      %v299 = vmul.f32 %v260, %v274
      %v300 = vmul.f32 %v261, %v274
      %v301 = vmul.f32 %v262, %v274
      %v302 = vmul.f32 %v263, %v274
      %v303 = vmul.f32 %v264, %v274
      %v304 = vmul.f32 %v265, %v274
      %v305 = vmul.f32 %v266, %v274
      %v306 = vmul.f32 %v267, %v274
      %v307 = vmul.f32 %v268, %v274
      %v308 = vld [vmem:[%s2] sm:$0x1]
      %v310 = vlaneseq
      %v311 = vshrl.u32 %v310, 7
      %v312 = vsub.s32 0, %v311
      %v313 = vrot.slane %v308, %v312
      %v315 = vadd.f32 %v276, %v313
      %v316 = vadd.f32 %v277, %v313
      %v317 = vadd.f32 %v278, %v313
      %v318 = vadd.f32 %v279, %v313
      %v319 = vadd.f32 %v280, %v313
      %v320 = vadd.f32 %v281, %v313
      %v321 = vadd.f32 %v282, %v313
      %v322 = vadd.f32 %v283, %v313
      %v323 = vadd.f32 %v284, %v313
      %v324 = vadd.f32 %v285, %v313
      %v325 = vadd.f32 %v286, %v313
      %v326 = vadd.f32 %v287, %v313
      %v327 = vadd.f32 %v288, %v313
      %v328 = vadd.f32 %v289, %v313
      %v329 = vadd.f32 %v290, %v313
      %v330 = vadd.f32 %v291, %v313
      %v331 = vadd.f32 %v292, %v313
      %v332 = vadd.f32 %v293, %v313
      %v333 = vadd.f32 %v294, %v313
      %v334 = vadd.f32 %v295, %v313
      %v335 = vadd.f32 %v296, %v313
      %v336 = vadd.f32 %v297, %v313
      %v337 = vadd.f32 %v298, %v313
      %v338 = vadd.f32 %v299, %v313
      %v339 = vadd.f32 %v300, %v313
      %v340 = vadd.f32 %v301, %v313
      %v341 = vadd.f32 %v302, %v313
      %v342 = vadd.f32 %v303, %v313
      %v343 = vadd.f32 %v304, %v313
      %v344 = vadd.f32 %v305, %v313
      %v345 = vadd.f32 %v306, %v313
      %v346 = vadd.f32 %v307, %v313
      %vm347 = vcmp.ge.f32.partialorder %v315, 0.0
      %vm348 = vcmp.ge.f32.partialorder %v316, 0.0
      %vm349 = vcmp.ge.f32.partialorder %v317, 0.0
      %vm350 = vcmp.ge.f32.partialorder %v318, 0.0
      %vm351 = vcmp.ge.f32.partialorder %v319, 0.0
      %vm352 = vcmp.ge.f32.partialorder %v320, 0.0
      %vm353 = vcmp.ge.f32.partialorder %v321, 0.0
      %vm354 = vcmp.ge.f32.partialorder %v322, 0.0
      %vm355 = vcmp.ge.f32.partialorder %v323, 0.0
      %vm356 = vcmp.ge.f32.partialorder %v324, 0.0
      %vm357 = vcmp.ge.f32.partialorder %v325, 0.0
      %vm358 = vcmp.ge.f32.partialorder %v326, 0.0
      %vm359 = vcmp.ge.f32.partialorder %v327, 0.0
      %vm360 = vcmp.ge.f32.partialorder %v328, 0.0
      %vm361 = vcmp.ge.f32.partialorder %v329, 0.0
      %vm362 = vcmp.ge.f32.partialorder %v330, 0.0
      %vm363 = vcmp.ge.f32.partialorder %v331, 0.0
      %vm364 = vcmp.ge.f32.partialorder %v332, 0.0
      %vm365 = vcmp.ge.f32.partialorder %v333, 0.0
      %vm366 = vcmp.ge.f32.partialorder %v334, 0.0
      %vm367 = vcmp.ge.f32.partialorder %v335, 0.0
      %vm368 = vcmp.ge.f32.partialorder %v336, 0.0
      %vm369 = vcmp.ge.f32.partialorder %v337, 0.0
      %vm370 = vcmp.ge.f32.partialorder %v338, 0.0
      %vm371 = vcmp.ge.f32.partialorder %v339, 0.0
      %vm372 = vcmp.ge.f32.partialorder %v340, 0.0
      %vm373 = vcmp.ge.f32.partialorder %v341, 0.0
      %vm374 = vcmp.ge.f32.partialorder %v342, 0.0
      %vm375 = vcmp.ge.f32.partialorder %v343, 0.0
      %vm376 = vcmp.ge.f32.partialorder %v344, 0.0
      %vm377 = vcmp.ge.f32.partialorder %v345, 0.0
      %vm378 = vcmp.ge.f32.partialorder %v346, 0.0
      %v379 = vmul.f32 %v315, 0.01
      %v380 = vmul.f32 %v316, 0.01
      %v381 = vmul.f32 %v317, 0.01
      %v382 = vmul.f32 %v318, 0.01
      %v383 = vmul.f32 %v319, 0.01
      %v384 = vmul.f32 %v320, 0.01
      %v385 = vmul.f32 %v321, 0.01
      %v386 = vmul.f32 %v322, 0.01
      %v387 = vmul.f32 %v323, 0.01
      %v388 = vmul.f32 %v324, 0.01
      %v389 = vmul.f32 %v325, 0.01
      %v390 = vmul.f32 %v326, 0.01
      %v391 = vmul.f32 %v327, 0.01
      %v392 = vmul.f32 %v328, 0.01
      %v393 = vmul.f32 %v329, 0.01
      %v394 = vmul.f32 %v330, 0.01
      %v395 = vmul.f32 %v331, 0.01
      %v396 = vmul.f32 %v332, 0.01
      %v397 = vmul.f32 %v333, 0.01
      %v398 = vmul.f32 %v334, 0.01
      %v399 = vmul.f32 %v335, 0.01
      %v400 = vmul.f32 %v336, 0.01
      %v401 = vmul.f32 %v337, 0.01
      %v402 = vmul.f32 %v338, 0.01
      %v403 = vmul.f32 %v339, 0.01
      %v404 = vmul.f32 %v340, 0.01
      %v405 = vmul.f32 %v341, 0.01
      %v406 = vmul.f32 %v342, 0.01
      %v407 = vmul.f32 %v343, 0.01
      %v408 = vmul.f32 %v344, 0.01
      %v409 = vmul.f32 %v345, 0.01
      %v410 = vmul.f32 %v346, 0.01
      %v411 = vsel %vm347, %v315, %v379
      %v412 = vsel %vm348, %v316, %v380
      %v413 = vsel %vm349, %v317, %v381
      %v414 = vsel %vm350, %v318, %v382
      %v415 = vsel %vm351, %v319, %v383
      %v416 = vsel %vm352, %v320, %v384
      %v417 = vsel %vm353, %v321, %v385
      %v418 = vsel %vm354, %v322, %v386
      %v419 = vsel %vm355, %v323, %v387
      %v420 = vsel %vm356, %v324, %v388
      %v421 = vsel %vm357, %v325, %v389
      %v422 = vsel %vm358, %v326, %v390
      %v423 = vsel %vm359, %v327, %v391
      %v424 = vsel %vm360, %v328, %v392
      %v425 = vsel %vm361, %v329, %v393
      %v426 = vsel %vm362, %v330, %v394
      %v427 = vsel %vm363, %v331, %v395
      %v428 = vsel %vm364, %v332, %v396
      %v429 = vsel %vm365, %v333, %v397
      %v430 = vsel %vm366, %v334, %v398
      %v431 = vsel %vm367, %v335, %v399
      %v432 = vsel %vm368, %v336, %v400
      %v433 = vsel %vm369, %v337, %v401
      %v434 = vsel %vm370, %v338, %v402
      %v435 = vsel %vm371, %v339, %v403
      %v436 = vsel %vm372, %v340, %v404
      %v437 = vsel %vm373, %v341, %v405
      %v438 = vsel %vm374, %v342, %v406
      %v439 = vsel %vm375, %v343, %v407
      %v440 = vsel %vm376, %v344, %v408
      %v441 = vsel %vm377, %v345, %v409
      %v442 = vsel %vm378, %v346, %v410
      %vm443 = vcmask 64512
      %444 = vst.msk [vmem:[#allocation2] sm:$0xff] %vm443, 0.0
      %445 = vst.msk [vmem:[#allocation2 + $0x8] sm:$0xff] %vm443, 0.0
      %vm446 = vcmask 58368
      %447 = vst.msk [vmem:[#allocation2 + $0x10] sm:$0x3] %vm446, 0.0
      %s448 = scalar_lea.vmem [#allocation2], 408
      %449 = vst.msk [vmem:[%s448] sm:$0xff] %vm443, 0.0
      %450 = vst.msk [vmem:[%s448 + $0x8] sm:$0xff] %vm443, 0.0
      %451 = vst.msk [vmem:[%s448 + $0x10] sm:$0x3] %vm446, 0.0
      %vm452 = vcmask 57344
      %453 = vst.msk [vmem:[#allocation2] sm:$0x1] %vm452, 0.0
      %454 = vst.msk [vmem:[#allocation2 + $0x18] sm:$0x1] %vm452, 0.0
      %455 = vst.msk [vmem:[#allocation2 + $0x30] sm:$0x1] %vm452, 0.0
      %456 = vst.msk [vmem:[#allocation2 + $0x48] sm:$0x1] %vm452, 0.0
      %457 = vst.msk [vmem:[#allocation2 + $0x60] sm:$0x1] %vm452, 0.0
      %458 = vst.msk [vmem:[#allocation2 + $0x78] sm:$0x1] %vm452, 0.0
      %459 = vst.msk [vmem:[#allocation2 + $0x90] sm:$0x1] %vm452, 0.0
      %460 = vst.msk [vmem:[#allocation2 + $0xa8] sm:$0x1] %vm452, 0.0
      %461 = vst.msk [vmem:[#allocation2 + $0xc0] sm:$0x1] %vm452, 0.0
      %462 = vst.msk [vmem:[#allocation2 + $0xd8] sm:$0x1] %vm452, 0.0
      %463 = vst.msk [vmem:[#allocation2 + $0xf0] sm:$0x1] %vm452, 0.0
      %464 = vst.msk [vmem:[#allocation2 + $0x108] sm:$0x1] %vm452, 0.0
      %465 = vst.msk [vmem:[#allocation2 + $0x120] sm:$0x1] %vm452, 0.0
      %466 = vst.msk [vmem:[#allocation2 + $0x138] sm:$0x1] %vm452, 0.0
      %467 = vst.msk [vmem:[#allocation2 + $0x150] sm:$0x1] %vm452, 0.0
      %468 = vst.msk [vmem:[#allocation2 + $0x168] sm:$0x1] %vm452, 0.0
      %469 = vst.msk [vmem:[#allocation2 + $0x180] sm:$0x1] %vm452, 0.0
      %470 = vst.msk [vmem:[#allocation2 + $0x198] sm:$0x1] %vm452, 0.0
      %471 = vst.msk [vmem:[#allocation2 + $0x11] sm:$0x1] %vm452, 0.0
      %472 = vst.msk [vmem:[#allocation2 + $0x29] sm:$0x1] %vm452, 0.0
      %473 = vst.msk [vmem:[#allocation2 + $0x41] sm:$0x1] %vm452, 0.0
      %474 = vst.msk [vmem:[#allocation2 + $0x59] sm:$0x1] %vm452, 0.0
      %475 = vst.msk [vmem:[#allocation2 + $0x71] sm:$0x1] %vm452, 0.0
      %476 = vst.msk [vmem:[#allocation2 + $0x89] sm:$0x1] %vm452, 0.0
      %477 = vst.msk [vmem:[#allocation2 + $0xa1] sm:$0x1] %vm452, 0.0
      %478 = vst.msk [vmem:[#allocation2 + $0xb9] sm:$0x1] %vm452, 0.0
      %479 = vst.msk [vmem:[#allocation2 + $0xd1] sm:$0x1] %vm452, 0.0
      %480 = vst.msk [vmem:[#allocation2 + $0xe9] sm:$0x1] %vm452, 0.0
      %481 = vst.msk [vmem:[#allocation2 + $0x101] sm:$0x1] %vm452, 0.0
      %482 = vst.msk [vmem:[#allocation2 + $0x119] sm:$0x1] %vm452, 0.0
      %483 = vst.msk [vmem:[#allocation2 + $0x131] sm:$0x1] %vm452, 0.0
      %484 = vst.msk [vmem:[#allocation2 + $0x149] sm:$0x1] %vm452, 0.0
      %485 = vst.msk [vmem:[#allocation2 + $0x161] sm:$0x1] %vm452, 0.0
      %486 = vst.msk [vmem:[#allocation2 + $0x179] sm:$0x1] %vm452, 0.0
      %487 = vst.msk [vmem:[#allocation2 + $0x191] sm:$0x1] %vm452, 0.0
      %488 = vst.msk [vmem:[#allocation2 + $0x1a9] sm:$0x1] %vm452, 0.0
      %s489 = scalar_lea.vmem [#allocation2], 24
      %490 = vst.msk [vmem:[%s489 + $0x1] sm:$0xff] %vm443, %v411
      %491 = vst.msk [vmem:[%s489 + $0x9] sm:$0xff] %vm443, %v412
      %492 = vst.msk [vmem:[%s489 + $0x19] sm:$0xff] %vm443, %v413
      %493 = vst.msk [vmem:[%s489 + $0x21] sm:$0xff] %vm443, %v414
      %494 = vst.msk [vmem:[%s489 + $0x31] sm:$0xff] %vm443, %v415
      %495 = vst.msk [vmem:[%s489 + $0x39] sm:$0xff] %vm443, %v416
      %496 = vst.msk [vmem:[%s489 + $0x49] sm:$0xff] %vm443, %v417
      %497 = vst.msk [vmem:[%s489 + $0x51] sm:$0xff] %vm443, %v418
      %498 = vst.msk [vmem:[%s489 + $0x61] sm:$0xff] %vm443, %v419
      %499 = vst.msk [vmem:[%s489 + $0x69] sm:$0xff] %vm443, %v420
      %500 = vst.msk [vmem:[%s489 + $0x79] sm:$0xff] %vm443, %v421
      %501 = vst.msk [vmem:[%s489 + $0x81] sm:$0xff] %vm443, %v422
      %502 = vst.msk [vmem:[%s489 + $0x91] sm:$0xff] %vm443, %v423
      %503 = vst.msk [vmem:[%s489 + $0x99] sm:$0xff] %vm443, %v424
      %504 = vst.msk [vmem:[%s489 + $0xa9] sm:$0xff] %vm443, %v425
      %505 = vst.msk [vmem:[%s489 + $0xb1] sm:$0xff] %vm443, %v426
      %506 = vst.msk [vmem:[%s489 + $0xc1] sm:$0xff] %vm443, %v427
      %507 = vst.msk [vmem:[%s489 + $0xc9] sm:$0xff] %vm443, %v428
      %508 = vst.msk [vmem:[%s489 + $0xd9] sm:$0xff] %vm443, %v429
      %509 = vst.msk [vmem:[%s489 + $0xe1] sm:$0xff] %vm443, %v430
      %510 = vst.msk [vmem:[%s489 + $0xf1] sm:$0xff] %vm443, %v431
      %511 = vst.msk [vmem:[%s489 + $0xf9] sm:$0xff] %vm443, %v432
      %512 = vst.msk [vmem:[%s489 + $0x109] sm:$0xff] %vm443, %v433
      %513 = vst.msk [vmem:[%s489 + $0x111] sm:$0xff] %vm443, %v434
      %514 = vst.msk [vmem:[%s489 + $0x121] sm:$0xff] %vm443, %v435
      %515 = vst.msk [vmem:[%s489 + $0x129] sm:$0xff] %vm443, %v436
      %516 = vst.msk [vmem:[%s489 + $0x139] sm:$0xff] %vm443, %v437
      %517 = vst.msk [vmem:[%s489 + $0x141] sm:$0xff] %vm443, %v438
      %518 = vst.msk [vmem:[%s489 + $0x151] sm:$0xff] %vm443, %v439
      %519 = vst.msk [vmem:[%s489 + $0x159] sm:$0xff] %vm443, %v440
      %520 = vst.msk [vmem:[%s489 + $0x169] sm:$0xff] %vm443, %v441
      %521 = vst.msk [vmem:[%s489 + $0x171] sm:$0xff] %vm443, %v442
      %v522 = vld [vmem:[#allocation2] sm:$0xff]
      %v523 = vld [vmem:[#allocation2 + $0x8] sm:$0xff]
      %v524 = vld [vmem:[#allocation2 + $0x18] sm:$0xff]
      %v525 = vld [vmem:[#allocation2 + $0x20] sm:$0xff]
      %v526 = vld [vmem:[#allocation2 + $0x30] sm:$0xff]
      %v527 = vld [vmem:[#allocation2 + $0x38] sm:$0xff]
      %v528 = vld [vmem:[#allocation2 + $0x48] sm:$0xff]
      %v529 = vld [vmem:[#allocation2 + $0x50] sm:$0xff]
      %v530 = vld [vmem:[#allocation2 + $0x60] sm:$0xff]
      %v531 = vld [vmem:[#allocation2 + $0x68] sm:$0xff]
      %v532 = vld [vmem:[#allocation2 + $0x78] sm:$0xff]
      %v533 = vld [vmem:[#allocation2 + $0x80] sm:$0xff]
      %v534 = vld [vmem:[#allocation2 + $0x90] sm:$0xff]
      %v535 = vld [vmem:[#allocation2 + $0x98] sm:$0xff]
      %v536 = vld [vmem:[#allocation2 + $0xa8] sm:$0xff]
      %v537 = vld [vmem:[#allocation2 + $0xb0] sm:$0xff]
      %v538 = vld [vmem:[#allocation2 + $0xc0] sm:$0xff]
      %v539 = vld [vmem:[#allocation2 + $0xc8] sm:$0xff]
      %v540 = vld [vmem:[#allocation2 + $0xd8] sm:$0xff]
      %v541 = vld [vmem:[#allocation2 + $0xe0] sm:$0xff]
      %v542 = vld [vmem:[#allocation2 + $0xf0] sm:$0xff]
      %v543 = vld [vmem:[#allocation2 + $0xf8] sm:$0xff]
      %v544 = vld [vmem:[#allocation2 + $0x108] sm:$0xff]
      %v545 = vld [vmem:[#allocation2 + $0x110] sm:$0xff]
      %v546 = vld [vmem:[#allocation2 + $0x120] sm:$0xff]
      %v547 = vld [vmem:[#allocation2 + $0x128] sm:$0xff]
      %v548 = vld [vmem:[#allocation2 + $0x138] sm:$0xff]
      %v549 = vld [vmem:[#allocation2 + $0x140] sm:$0xff]
      %v550 = vld [vmem:[#allocation2 + $0x150] sm:$0xff]
      %v551 = vld [vmem:[#allocation2 + $0x158] sm:$0xff]
      %v552 = vld [vmem:[#allocation2 + $0x168] sm:$0xff]
      %v553 = vld [vmem:[#allocation2 + $0x170] sm:$0xff]
      %v554 = vpack.c.bf16 %v523, %v522
      %v555 = vpack.c.bf16 %v525, %v524
      %v556 = vpack.c.bf16 %v527, %v526
      %v557 = vpack.c.bf16 %v529, %v528
      %v558 = vpack.c.bf16 %v531, %v530
      %v559 = vpack.c.bf16 %v533, %v532
      %v560 = vpack.c.bf16 %v535, %v534
      %v561 = vpack.c.bf16 %v537, %v536
      %v562 = vpack.c.bf16 %v539, %v538
      %v563 = vpack.c.bf16 %v541, %v540
      %v564 = vpack.c.bf16 %v543, %v542
      %v565 = vpack.c.bf16 %v545, %v544
      %v566 = vpack.c.bf16 %v547, %v546
      %v567 = vpack.c.bf16 %v549, %v548
      %v568 = vpack.c.bf16 %v551, %v550
      %v569 = vpack.c.bf16 %v553, %v552
      %v586 = vunpack.c.l.b16 %v554
      %v587 = vunpack.c.h.b16 %v554
      %v588 = vunpack.c.l.b16 %v555
      %v589 = vunpack.c.h.b16 %v555
      %v590 = vunpack.c.l.b16 %v556
      %v591 = vunpack.c.h.b16 %v556
      %v592 = vunpack.c.l.b16 %v557
      %v593 = vunpack.c.h.b16 %v557
      %v594 = vunpack.c.l.b16 %v558
      %v595 = vunpack.c.h.b16 %v558
      %v596 = vunpack.c.l.b16 %v559
      %v597 = vunpack.c.h.b16 %v559
      %v598 = vunpack.c.l.b16 %v560
      %v599 = vunpack.c.h.b16 %v560
      %v600 = vunpack.c.l.b16 %v561
      %v601 = vunpack.c.h.b16 %v561
      %v602 = vunpack.c.l.b16 %v562
      %v603 = vunpack.c.h.b16 %v562
      %v604 = vunpack.c.l.b16 %v563
      %v605 = vunpack.c.h.b16 %v563
      %v606 = vunpack.c.l.b16 %v564
      %v607 = vunpack.c.h.b16 %v564
      %v608 = vunpack.c.l.b16 %v565
      %v609 = vunpack.c.h.b16 %v565
      %v610 = vunpack.c.l.b16 %v566
      %v611 = vunpack.c.h.b16 %v566
      %v612 = vunpack.c.l.b16 %v567
      %v613 = vunpack.c.h.b16 %v567
      %v614 = vunpack.c.l.b16 %v568
      %v615 = vunpack.c.h.b16 %v568
      %v616 = vunpack.c.l.b16 %v569
      %v617 = vunpack.c.h.b16 %v569
      %v618 = vpack.c.b16 %v586, %v586
      %v619 = vpack.c.b16 %v587, %v587
      %v620 = vpack.c.b16 %v588, %v588
      %v621 = vpack.c.b16 %v589, %v589
      %v622 = vpack.c.b16 %v590, %v590
      %v623 = vpack.c.b16 %v591, %v591
      %v624 = vpack.c.b16 %v592, %v592
      %v625 = vpack.c.b16 %v593, %v593
      %v626 = vpack.c.b16 %v594, %v594
      %v627 = vpack.c.b16 %v595, %v595
      %v628 = vpack.c.b16 %v596, %v596
      %v629 = vpack.c.b16 %v597, %v597
      %v630 = vpack.c.b16 %v598, %v598
      %v631 = vpack.c.b16 %v599, %v599
      %v632 = vpack.c.b16 %v600, %v600
      %v633 = vpack.c.b16 %v601, %v601
      %v634 = vpack.c.b16 %v602, %v602
      %v635 = vpack.c.b16 %v603, %v603
      %v636 = vpack.c.b16 %v604, %v604
      %v637 = vpack.c.b16 %v605, %v605
      %v638 = vpack.c.b16 %v606, %v606
      %v639 = vpack.c.b16 %v607, %v607
      %v640 = vpack.c.b16 %v608, %v608
      %v641 = vpack.c.b16 %v609, %v609
      %v642 = vpack.c.b16 %v610, %v610
      %v643 = vpack.c.b16 %v611, %v611
      %v644 = vpack.c.b16 %v612, %v612
      %v645 = vpack.c.b16 %v613, %v613
      %v646 = vpack.c.b16 %v614, %v614
      %v647 = vpack.c.b16 %v615, %v615
      %v648 = vpack.c.b16 %v616, %v616
      %v649 = vpack.c.b16 %v617, %v617
      %vm682 = vcmask 60416
      %683 = vst.msk [vmem:[#allocation3] sm:$0xf] %vm682, %v618
      %684 = vst.msk [vmem:[#allocation3 + $0x4] sm:$0xf] %vm682, %v619
      %685 = vst.msk [vmem:[#allocation3 + $0x8] sm:$0xf] %vm682, %v620
      %686 = vst.msk [vmem:[#allocation3 + $0xc] sm:$0xf] %vm682, %v621
      %687 = vst.msk [vmem:[#allocation3 + $0x10] sm:$0xf] %vm682, %v622
      %688 = vst.msk [vmem:[#allocation3 + $0x14] sm:$0xf] %vm682, %v623
      %689 = vst.msk [vmem:[#allocation3 + $0x18] sm:$0xf] %vm682, %v624
      %690 = vst.msk [vmem:[#allocation3 + $0x1c] sm:$0xf] %vm682, %v625
      %691 = vst.msk [vmem:[#allocation3 + $0x20] sm:$0xf] %vm682, %v626
      %692 = vst.msk [vmem:[#allocation3 + $0x24] sm:$0xf] %vm682, %v627
      %693 = vst.msk [vmem:[#allocation3 + $0x28] sm:$0xf] %vm682, %v628
      %694 = vst.msk [vmem:[#allocation3 + $0x2c] sm:$0xf] %vm682, %v629
      %695 = vst.msk [vmem:[#allocation3 + $0x30] sm:$0xf] %vm682, %v630
      %696 = vst.msk [vmem:[#allocation3 + $0x34] sm:$0xf] %vm682, %v631
      %697 = vst.msk [vmem:[#allocation3 + $0x38] sm:$0xf] %vm682, %v632
      %698 = vst.msk [vmem:[#allocation3 + $0x3c] sm:$0xf] %vm682, %v633
      %699 = vst.msk [vmem:[#allocation3 + $0x40] sm:$0xf] %vm682, %v634
      %700 = vst.msk [vmem:[#allocation3 + $0x44] sm:$0xf] %vm682, %v635
      %701 = vst.msk [vmem:[#allocation3 + $0x48] sm:$0xf] %vm682, %v636
      %702 = vst.msk [vmem:[#allocation3 + $0x4c] sm:$0xf] %vm682, %v637
      %703 = vst.msk [vmem:[#allocation3 + $0x50] sm:$0xf] %vm682, %v638
      %704 = vst.msk [vmem:[#allocation3 + $0x54] sm:$0xf] %vm682, %v639
      %705 = vst.msk [vmem:[#allocation3 + $0x58] sm:$0xf] %vm682, %v640
      %706 = vst.msk [vmem:[#allocation3 + $0x5c] sm:$0xf] %vm682, %v641
      %707 = vst.msk [vmem:[#allocation3 + $0x60] sm:$0xf] %vm682, %v642
      %708 = vst.msk [vmem:[#allocation3 + $0x64] sm:$0xf] %vm682, %v643
      %709 = vst.msk [vmem:[#allocation3 + $0x68] sm:$0xf] %vm682, %v644
      %710 = vst.msk [vmem:[#allocation3 + $0x6c] sm:$0xf] %vm682, %v645
      %711 = vst.msk [vmem:[#allocation3 + $0x70] sm:$0xf] %vm682, %v646
      %712 = vst.msk [vmem:[#allocation3 + $0x74] sm:$0xf] %vm682, %v647
      %713 = vst.msk [vmem:[#allocation3 + $0x78] sm:$0xf] %vm682, %v648
      %714 = vst.msk [vmem:[#allocation3 + $0x7c] sm:$0xf] %vm682, %v649
      %v715 = vld [vmem:[#allocation2 + $0x1] sm:$0xff]
      %v716 = vld [vmem:[#allocation2 + $0x9] sm:$0xff]
      %v717 = vld [vmem:[#allocation2 + $0x19] sm:$0xff]
      %v718 = vld [vmem:[#allocation2 + $0x21] sm:$0xff]
      %v719 = vld [vmem:[#allocation2 + $0x31] sm:$0xff]
      %v720 = vld [vmem:[#allocation2 + $0x39] sm:$0xff]
      %v721 = vld [vmem:[#allocation2 + $0x49] sm:$0xff]
      %v722 = vld [vmem:[#allocation2 + $0x51] sm:$0xff]
      %v723 = vld [vmem:[#allocation2 + $0x61] sm:$0xff]
      %v724 = vld [vmem:[#allocation2 + $0x69] sm:$0xff]
      %v725 = vld [vmem:[#allocation2 + $0x79] sm:$0xff]
      %v726 = vld [vmem:[#allocation2 + $0x81] sm:$0xff]
      %v727 = vld [vmem:[#allocation2 + $0x91] sm:$0xff]
      %v728 = vld [vmem:[#allocation2 + $0x99] sm:$0xff]
      %v729 = vld [vmem:[#allocation2 + $0xa9] sm:$0xff]
      %v730 = vld [vmem:[#allocation2 + $0xb1] sm:$0xff]
      %v731 = vld [vmem:[#allocation2 + $0xc1] sm:$0xff]
      %v732 = vld [vmem:[#allocation2 + $0xc9] sm:$0xff]
      %v733 = vld [vmem:[#allocation2 + $0xd9] sm:$0xff]
      %v734 = vld [vmem:[#allocation2 + $0xe1] sm:$0xff]
      %v735 = vld [vmem:[#allocation2 + $0xf1] sm:$0xff]
      %v736 = vld [vmem:[#allocation2 + $0xf9] sm:$0xff]
      %v737 = vld [vmem:[#allocation2 + $0x109] sm:$0xff]
      %v738 = vld [vmem:[#allocation2 + $0x111] sm:$0xff]
      %v739 = vld [vmem:[#allocation2 + $0x121] sm:$0xff]
      %v740 = vld [vmem:[#allocation2 + $0x129] sm:$0xff]
      %v741 = vld [vmem:[#allocation2 + $0x139] sm:$0xff]
      %v742 = vld [vmem:[#allocation2 + $0x141] sm:$0xff]
      %v743 = vld [vmem:[#allocation2 + $0x151] sm:$0xff]
      %v744 = vld [vmem:[#allocation2 + $0x159] sm:$0xff]
      %v745 = vld [vmem:[#allocation2 + $0x169] sm:$0xff]
      %v746 = vld [vmem:[#allocation2 + $0x171] sm:$0xff]
      %v747 = vpack.c.bf16 %v716, %v715
      %v748 = vpack.c.bf16 %v718, %v717
      %v749 = vpack.c.bf16 %v720, %v719
      %v750 = vpack.c.bf16 %v722, %v721
      %v751 = vpack.c.bf16 %v724, %v723
      %v752 = vpack.c.bf16 %v726, %v725
      %v753 = vpack.c.bf16 %v728, %v727
      %v754 = vpack.c.bf16 %v730, %v729
      %v755 = vpack.c.bf16 %v732, %v731
      %v756 = vpack.c.bf16 %v734, %v733
      %v757 = vpack.c.bf16 %v736, %v735
      %v758 = vpack.c.bf16 %v738, %v737
      %v759 = vpack.c.bf16 %v740, %v739
      %v760 = vpack.c.bf16 %v742, %v741
      %v761 = vpack.c.bf16 %v744, %v743
      %v762 = vpack.c.bf16 %v746, %v745
      %v779 = vunpack.c.l.b16 %v747
      %v780 = vunpack.c.h.b16 %v747
      %v781 = vunpack.c.l.b16 %v748
      %v782 = vunpack.c.h.b16 %v748
      %v783 = vunpack.c.l.b16 %v749
      %v784 = vunpack.c.h.b16 %v749
      %v785 = vunpack.c.l.b16 %v750
      %v786 = vunpack.c.h.b16 %v750
      %v787 = vunpack.c.l.b16 %v751
      %v788 = vunpack.c.h.b16 %v751
      %v789 = vunpack.c.l.b16 %v752
      %v790 = vunpack.c.h.b16 %v752
      %v791 = vunpack.c.l.b16 %v753
      %v792 = vunpack.c.h.b16 %v753
      %v793 = vunpack.c.l.b16 %v754
      %v794 = vunpack.c.h.b16 %v754
      %v795 = vunpack.c.l.b16 %v755
      %v796 = vunpack.c.h.b16 %v755
      %v797 = vunpack.c.l.b16 %v756
      %v798 = vunpack.c.h.b16 %v756
      %v799 = vunpack.c.l.b16 %v757
      %v800 = vunpack.c.h.b16 %v757
      %v801 = vunpack.c.l.b16 %v758
      %v802 = vunpack.c.h.b16 %v758
      %v803 = vunpack.c.l.b16 %v759
      %v804 = vunpack.c.h.b16 %v759
      %v805 = vunpack.c.l.b16 %v760
      %v806 = vunpack.c.h.b16 %v760
      %v807 = vunpack.c.l.b16 %v761
      %v808 = vunpack.c.h.b16 %v761
      %v809 = vunpack.c.l.b16 %v762
      %v810 = vunpack.c.h.b16 %v762
      %v811 = vpack.c.b16 %v779, %v779
      %v812 = vpack.c.b16 %v780, %v780
      %v813 = vpack.c.b16 %v781, %v781
      %v814 = vpack.c.b16 %v782, %v782
      %v815 = vpack.c.b16 %v783, %v783
      %v816 = vpack.c.b16 %v784, %v784
      %v817 = vpack.c.b16 %v785, %v785
      %v818 = vpack.c.b16 %v786, %v786
      %v819 = vpack.c.b16 %v787, %v787
      %v820 = vpack.c.b16 %v788, %v788
      %v821 = vpack.c.b16 %v789, %v789
      %v822 = vpack.c.b16 %v790, %v790
      %v823 = vpack.c.b16 %v791, %v791
      %v824 = vpack.c.b16 %v792, %v792
      %v825 = vpack.c.b16 %v793, %v793
      %v826 = vpack.c.b16 %v794, %v794
      %v827 = vpack.c.b16 %v795, %v795
      %v828 = vpack.c.b16 %v796, %v796
      %v829 = vpack.c.b16 %v797, %v797
      %v830 = vpack.c.b16 %v798, %v798
      %v831 = vpack.c.b16 %v799, %v799
      %v832 = vpack.c.b16 %v800, %v800
      %v833 = vpack.c.b16 %v801, %v801
      %v834 = vpack.c.b16 %v802, %v802
      %v835 = vpack.c.b16 %v803, %v803
      %v836 = vpack.c.b16 %v804, %v804
      %v837 = vpack.c.b16 %v805, %v805
      %v838 = vpack.c.b16 %v806, %v806
      %v839 = vpack.c.b16 %v807, %v807
      %v840 = vpack.c.b16 %v808, %v808
      %v841 = vpack.c.b16 %v809, %v809
      %v842 = vpack.c.b16 %v810, %v810
      %843 = vrot.lane.b32.xlu0 %v811, 8
      %v844 = vpop.permute.xlu0 %843
      %845 = vrot.lane.b32.xlu0 %v812, 8
      %v846 = vpop.permute.xlu0 %845
      %847 = vrot.lane.b32.xlu0 %v813, 8
      %v848 = vpop.permute.xlu0 %847
      %849 = vrot.lane.b32.xlu0 %v814, 8
      %v850 = vpop.permute.xlu0 %849
      %851 = vrot.lane.b32.xlu0 %v815, 8
      %v852 = vpop.permute.xlu0 %851
      %853 = vrot.lane.b32.xlu0 %v816, 8
      %v854 = vpop.permute.xlu0 %853
      %855 = vrot.lane.b32.xlu0 %v817, 8
      %v856 = vpop.permute.xlu0 %855
      %857 = vrot.lane.b32.xlu0 %v818, 8
      %v858 = vpop.permute.xlu0 %857
      %859 = vrot.lane.b32.xlu0 %v819, 8
      %v860 = vpop.permute.xlu0 %859
      %861 = vrot.lane.b32.xlu0 %v820, 8
      %v862 = vpop.permute.xlu0 %861
      %863 = vrot.lane.b32.xlu0 %v821, 8
      %v864 = vpop.permute.xlu0 %863
      %865 = vrot.lane.b32.xlu0 %v822, 8
      %v866 = vpop.permute.xlu0 %865
      %867 = vrot.lane.b32.xlu0 %v823, 8
      %v868 = vpop.permute.xlu0 %867
      %869 = vrot.lane.b32.xlu0 %v824, 8
      %v870 = vpop.permute.xlu0 %869
      %871 = vrot.lane.b32.xlu0 %v825, 8
      %v872 = vpop.permute.xlu0 %871
      %873 = vrot.lane.b32.xlu0 %v826, 8
      %v874 = vpop.permute.xlu0 %873
      %875 = vrot.lane.b32.xlu0 %v827, 8
      %v876 = vpop.permute.xlu0 %875
      %877 = vrot.lane.b32.xlu0 %v828, 8
      %v878 = vpop.permute.xlu0 %877
      %879 = vrot.lane.b32.xlu0 %v829, 8
      %v880 = vpop.permute.xlu0 %879
      %881 = vrot.lane.b32.xlu0 %v830, 8
      %v882 = vpop.permute.xlu0 %881
      %883 = vrot.lane.b32.xlu0 %v831, 8
      %v884 = vpop.permute.xlu0 %883
      %885 = vrot.lane.b32.xlu0 %v832, 8
      %v886 = vpop.permute.xlu0 %885
      %887 = vrot.lane.b32.xlu0 %v833, 8
      %v888 = vpop.permute.xlu0 %887
      %889 = vrot.lane.b32.xlu0 %v834, 8
      %v890 = vpop.permute.xlu0 %889
      %891 = vrot.lane.b32.xlu0 %v835, 8
      %v892 = vpop.permute.xlu0 %891
      %893 = vrot.lane.b32.xlu0 %v836, 8
      %v894 = vpop.permute.xlu0 %893
      %895 = vrot.lane.b32.xlu0 %v837, 8
      %v896 = vpop.permute.xlu0 %895
      %897 = vrot.lane.b32.xlu0 %v838, 8
      %v898 = vpop.permute.xlu0 %897
      %899 = vrot.lane.b32.xlu0 %v839, 8
      %v900 = vpop.permute.xlu0 %899
      %901 = vrot.lane.b32.xlu0 %v840, 8
      %v902 = vpop.permute.xlu0 %901
      %903 = vrot.lane.b32.xlu0 %v841, 8
      %v904 = vpop.permute.xlu0 %903
      %905 = vrot.lane.b32.xlu0 %v842, 8
      %v906 = vpop.permute.xlu0 %905
      %vm939 = vcmask 126016
      %940 = vst.msk [vmem:[#allocation3] sm:$0xf] %vm939, %v844
      %941 = vst.msk [vmem:[#allocation3 + $0x4] sm:$0xf] %vm939, %v846
      %942 = vst.msk [vmem:[#allocation3 + $0x8] sm:$0xf] %vm939, %v848
      %943 = vst.msk [vmem:[#allocation3 + $0xc] sm:$0xf] %vm939, %v850
      %944 = vst.msk [vmem:[#allocation3 + $0x10] sm:$0xf] %vm939, %v852
      %945 = vst.msk [vmem:[#allocation3 + $0x14] sm:$0xf] %vm939, %v854
      %946 = vst.msk [vmem:[#allocation3 + $0x18] sm:$0xf] %vm939, %v856
      %947 = vst.msk [vmem:[#allocation3 + $0x1c] sm:$0xf] %vm939, %v858
      %948 = vst.msk [vmem:[#allocation3 + $0x20] sm:$0xf] %vm939, %v860
      %949 = vst.msk [vmem:[#allocation3 + $0x24] sm:$0xf] %vm939, %v862
      %950 = vst.msk [vmem:[#allocation3 + $0x28] sm:$0xf] %vm939, %v864
      %951 = vst.msk [vmem:[#allocation3 + $0x2c] sm:$0xf] %vm939, %v866
      %952 = vst.msk [vmem:[#allocation3 + $0x30] sm:$0xf] %vm939, %v868
      %953 = vst.msk [vmem:[#allocation3 + $0x34] sm:$0xf] %vm939, %v870
      %954 = vst.msk [vmem:[#allocation3 + $0x38] sm:$0xf] %vm939, %v872
      %955 = vst.msk [vmem:[#allocation3 + $0x3c] sm:$0xf] %vm939, %v874
      %956 = vst.msk [vmem:[#allocation3 + $0x40] sm:$0xf] %vm939, %v876
      %957 = vst.msk [vmem:[#allocation3 + $0x44] sm:$0xf] %vm939, %v878
      %958 = vst.msk [vmem:[#allocation3 + $0x48] sm:$0xf] %vm939, %v880
      %959 = vst.msk [vmem:[#allocation3 + $0x4c] sm:$0xf] %vm939, %v882
      %960 = vst.msk [vmem:[#allocation3 + $0x50] sm:$0xf] %vm939, %v884
      %961 = vst.msk [vmem:[#allocation3 + $0x54] sm:$0xf] %vm939, %v886
      %962 = vst.msk [vmem:[#allocation3 + $0x58] sm:$0xf] %vm939, %v888
      %963 = vst.msk [vmem:[#allocation3 + $0x5c] sm:$0xf] %vm939, %v890
      %964 = vst.msk [vmem:[#allocation3 + $0x60] sm:$0xf] %vm939, %v892
      %965 = vst.msk [vmem:[#allocation3 + $0x64] sm:$0xf] %vm939, %v894
      %966 = vst.msk [vmem:[#allocation3 + $0x68] sm:$0xf] %vm939, %v896
      %967 = vst.msk [vmem:[#allocation3 + $0x6c] sm:$0xf] %vm939, %v898
      %968 = vst.msk [vmem:[#allocation3 + $0x70] sm:$0xf] %vm939, %v900
      %969 = vst.msk [vmem:[#allocation3 + $0x74] sm:$0xf] %vm939, %v902
      %970 = vst.msk [vmem:[#allocation3 + $0x78] sm:$0xf] %vm939, %v904
      %971 = vst.msk [vmem:[#allocation3 + $0x7c] sm:$0xf] %vm939, %v906
      %v972 = vld [vmem:[#allocation2 + $0x2] sm:$0xff]
      %v973 = vld [vmem:[#allocation2 + $0xa] sm:$0xff]
      %v974 = vld [vmem:[#allocation2 + $0x1a] sm:$0xff]
      %v975 = vld [vmem:[#allocation2 + $0x22] sm:$0xff]
      %v976 = vld [vmem:[#allocation2 + $0x32] sm:$0xff]
      %v977 = vld [vmem:[#allocation2 + $0x3a] sm:$0xff]
      %v978 = vld [vmem:[#allocation2 + $0x4a] sm:$0xff]
      %v979 = vld [vmem:[#allocation2 + $0x52] sm:$0xff]
      %v980 = vld [vmem:[#allocation2 + $0x62] sm:$0xff]
      %v981 = vld [vmem:[#allocation2 + $0x6a] sm:$0xff]
      %v982 = vld [vmem:[#allocation2 + $0x7a] sm:$0xff]
      %v983 = vld [vmem:[#allocation2 + $0x82] sm:$0xff]
      %v984 = vld [vmem:[#allocation2 + $0x92] sm:$0xff]
      %v985 = vld [vmem:[#allocation2 + $0x9a] sm:$0xff]
      %v986 = vld [vmem:[#allocation2 + $0xaa] sm:$0xff]
      %v987 = vld [vmem:[#allocation2 + $0xb2] sm:$0xff]
      %v988 = vld [vmem:[#allocation2 + $0xc2] sm:$0xff]
      %v989 = vld [vmem:[#allocation2 + $0xca] sm:$0xff]
      %v990 = vld [vmem:[#allocation2 + $0xda] sm:$0xff]
      %v991 = vld [vmem:[#allocation2 + $0xe2] sm:$0xff]
      %v992 = vld [vmem:[#allocation2 + $0xf2] sm:$0xff]
      %v993 = vld [vmem:[#allocation2 + $0xfa] sm:$0xff]
      %v994 = vld [vmem:[#allocation2 + $0x10a] sm:$0xff]
      %v995 = vld [vmem:[#allocation2 + $0x112] sm:$0xff]
      %v996 = vld [vmem:[#allocation2 + $0x122] sm:$0xff]
      %v997 = vld [vmem:[#allocation2 + $0x12a] sm:$0xff]
      %v998 = vld [vmem:[#allocation2 + $0x13a] sm:$0xff]
      %v999 = vld [vmem:[#allocation2 + $0x142] sm:$0xff]
      %v1000 = vld [vmem:[#allocation2 + $0x152] sm:$0xff]
      %v1001 = vld [vmem:[#allocation2 + $0x15a] sm:$0xff]
      %v1002 = vld [vmem:[#allocation2 + $0x16a] sm:$0xff]
      %v1003 = vld [vmem:[#allocation2 + $0x172] sm:$0xff]
      %v1004 = vpack.c.bf16 %v973, %v972
      %v1005 = vpack.c.bf16 %v975, %v974
      %v1006 = vpack.c.bf16 %v977, %v976
      %v1007 = vpack.c.bf16 %v979, %v978
      %v1008 = vpack.c.bf16 %v981, %v980
      %v1009 = vpack.c.bf16 %v983, %v982
      %v1010 = vpack.c.bf16 %v985, %v984
      %v1011 = vpack.c.bf16 %v987, %v986
      %v1012 = vpack.c.bf16 %v989, %v988
      %v1013 = vpack.c.bf16 %v991, %v990
      %v1014 = vpack.c.bf16 %v993, %v992
      %v1015 = vpack.c.bf16 %v995, %v994
      %v1016 = vpack.c.bf16 %v997, %v996
      %v1017 = vpack.c.bf16 %v999, %v998
      %v1018 = vpack.c.bf16 %v1001, %v1000
      %v1019 = vpack.c.bf16 %v1003, %v1002
      %v1036 = vunpack.c.l.b16 %v1004
      %v1037 = vunpack.c.h.b16 %v1004
      %v1038 = vunpack.c.l.b16 %v1005
      %v1039 = vunpack.c.h.b16 %v1005
      %v1040 = vunpack.c.l.b16 %v1006
      %v1041 = vunpack.c.h.b16 %v1006
      %v1042 = vunpack.c.l.b16 %v1007
      %v1043 = vunpack.c.h.b16 %v1007
      %v1044 = vunpack.c.l.b16 %v1008
      %v1045 = vunpack.c.h.b16 %v1008
      %v1046 = vunpack.c.l.b16 %v1009
      %v1047 = vunpack.c.h.b16 %v1009
      %v1048 = vunpack.c.l.b16 %v1010
      %v1049 = vunpack.c.h.b16 %v1010
      %v1050 = vunpack.c.l.b16 %v1011
      %v1051 = vunpack.c.h.b16 %v1011
      %v1052 = vunpack.c.l.b16 %v1012
      %v1053 = vunpack.c.h.b16 %v1012
      %v1054 = vunpack.c.l.b16 %v1013
      %v1055 = vunpack.c.h.b16 %v1013
      %v1056 = vunpack.c.l.b16 %v1014
      %v1057 = vunpack.c.h.b16 %v1014
      %v1058 = vunpack.c.l.b16 %v1015
      %v1059 = vunpack.c.h.b16 %v1015
      %v1060 = vunpack.c.l.b16 %v1016
      %v1061 = vunpack.c.h.b16 %v1016
      %v1062 = vunpack.c.l.b16 %v1017
      %v1063 = vunpack.c.h.b16 %v1017
      %v1064 = vunpack.c.l.b16 %v1018
      %v1065 = vunpack.c.h.b16 %v1018
      %v1066 = vunpack.c.l.b16 %v1019
      %v1067 = vunpack.c.h.b16 %v1019
      %v1068 = vpack.c.b16 %v1036, %v1036
      %v1069 = vpack.c.b16 %v1037, %v1037
      %v1070 = vpack.c.b16 %v1038, %v1038
      %v1071 = vpack.c.b16 %v1039, %v1039
      %v1072 = vpack.c.b16 %v1040, %v1040
      %v1073 = vpack.c.b16 %v1041, %v1041
      %v1074 = vpack.c.b16 %v1042, %v1042
      %v1075 = vpack.c.b16 %v1043, %v1043
      %v1076 = vpack.c.b16 %v1044, %v1044
      %v1077 = vpack.c.b16 %v1045, %v1045
      %v1078 = vpack.c.b16 %v1046, %v1046
      %v1079 = vpack.c.b16 %v1047, %v1047
      %v1080 = vpack.c.b16 %v1048, %v1048
      %v1081 = vpack.c.b16 %v1049, %v1049
      %v1082 = vpack.c.b16 %v1050, %v1050
      %v1083 = vpack.c.b16 %v1051, %v1051
      %v1084 = vpack.c.b16 %v1052, %v1052
      %v1085 = vpack.c.b16 %v1053, %v1053
      %v1086 = vpack.c.b16 %v1054, %v1054
      %v1087 = vpack.c.b16 %v1055, %v1055
      %v1088 = vpack.c.b16 %v1056, %v1056
      %v1089 = vpack.c.b16 %v1057, %v1057
      %v1090 = vpack.c.b16 %v1058, %v1058
      %v1091 = vpack.c.b16 %v1059, %v1059
      %v1092 = vpack.c.b16 %v1060, %v1060
      %v1093 = vpack.c.b16 %v1061, %v1061
      %v1094 = vpack.c.b16 %v1062, %v1062
      %v1095 = vpack.c.b16 %v1063, %v1063
      %v1096 = vpack.c.b16 %v1064, %v1064
      %v1097 = vpack.c.b16 %v1065, %v1065
      %v1098 = vpack.c.b16 %v1066, %v1066
      %v1099 = vpack.c.b16 %v1067, %v1067
      %1100 = vrot.lane.b32.xlu0 %v1068, 16
      %v1101 = vpop.permute.xlu0 %1100
      %1102 = vrot.lane.b32.xlu0 %v1069, 16
      %v1103 = vpop.permute.xlu0 %1102
      %1104 = vrot.lane.b32.xlu0 %v1070, 16
      %v1105 = vpop.permute.xlu0 %1104
      %1106 = vrot.lane.b32.xlu0 %v1071, 16
      %v1107 = vpop.permute.xlu0 %1106
      %1108 = vrot.lane.b32.xlu0 %v1072, 16
      %v1109 = vpop.permute.xlu0 %1108
      %1110 = vrot.lane.b32.xlu0 %v1073, 16
      %v1111 = vpop.permute.xlu0 %1110
      %1112 = vrot.lane.b32.xlu0 %v1074, 16
      %v1113 = vpop.permute.xlu0 %1112
      %1114 = vrot.lane.b32.xlu0 %v1075, 16
      %v1115 = vpop.permute.xlu0 %1114
      %1116 = vrot.lane.b32.xlu0 %v1076, 16
      %v1117 = vpop.permute.xlu0 %1116
      %1118 = vrot.lane.b32.xlu0 %v1077, 16
      %v1119 = vpop.permute.xlu0 %1118
      %1120 = vrot.lane.b32.xlu0 %v1078, 16
      %v1121 = vpop.permute.xlu0 %1120
      %1122 = vrot.lane.b32.xlu0 %v1079, 16
      %v1123 = vpop.permute.xlu0 %1122
      %1124 = vrot.lane.b32.xlu0 %v1080, 16
      %v1125 = vpop.permute.xlu0 %1124
      %1126 = vrot.lane.b32.xlu0 %v1081, 16
      %v1127 = vpop.permute.xlu0 %1126
      %1128 = vrot.lane.b32.xlu0 %v1082, 16
      %v1129 = vpop.permute.xlu0 %1128
      %1130 = vrot.lane.b32.xlu0 %v1083, 16
      %v1131 = vpop.permute.xlu0 %1130
      %1132 = vrot.lane.b32.xlu0 %v1084, 16
      %v1133 = vpop.permute.xlu0 %1132
      %1134 = vrot.lane.b32.xlu0 %v1085, 16
      %v1135 = vpop.permute.xlu0 %1134
      %1136 = vrot.lane.b32.xlu0 %v1086, 16
      %v1137 = vpop.permute.xlu0 %1136
      %1138 = vrot.lane.b32.xlu0 %v1087, 16
      %v1139 = vpop.permute.xlu0 %1138
      %1140 = vrot.lane.b32.xlu0 %v1088, 16
      %v1141 = vpop.permute.xlu0 %1140
      %1142 = vrot.lane.b32.xlu0 %v1089, 16
      %v1143 = vpop.permute.xlu0 %1142
      %1144 = vrot.lane.b32.xlu0 %v1090, 16
      %v1145 = vpop.permute.xlu0 %1144
      %1146 = vrot.lane.b32.xlu0 %v1091, 16
      %v1147 = vpop.permute.xlu0 %1146
      %1148 = vrot.lane.b32.xlu0 %v1092, 16
      %v1149 = vpop.permute.xlu0 %1148
      %1150 = vrot.lane.b32.xlu0 %v1093, 16
      %v1151 = vpop.permute.xlu0 %1150
      %1152 = vrot.lane.b32.xlu0 %v1094, 16
      %v1153 = vpop.permute.xlu0 %1152
      %1154 = vrot.lane.b32.xlu0 %v1095, 16
      %v1155 = vpop.permute.xlu0 %1154
      %1156 = vrot.lane.b32.xlu0 %v1096, 16
      %v1157 = vpop.permute.xlu0 %1156
      %1158 = vrot.lane.b32.xlu0 %v1097, 16
      %v1159 = vpop.permute.xlu0 %1158
      %1160 = vrot.lane.b32.xlu0 %v1098, 16
      %v1161 = vpop.permute.xlu0 %1160
      %1162 = vrot.lane.b32.xlu0 %v1099, 16
      %v1163 = vpop.permute.xlu0 %1162
      %vm1196 = vcmask 191616
      %1197 = vst.msk [vmem:[#allocation3] sm:$0xf] %vm1196, %v1101
      %1198 = vst.msk [vmem:[#allocation3 + $0x4] sm:$0xf] %vm1196, %v1103
      %1199 = vst.msk [vmem:[#allocation3 + $0x8] sm:$0xf] %vm1196, %v1105
      %1200 = vst.msk [vmem:[#allocation3 + $0xc] sm:$0xf] %vm1196, %v1107
      %1201 = vst.msk [vmem:[#allocation3 + $0x10] sm:$0xf] %vm1196, %v1109
      %1202 = vst.msk [vmem:[#allocation3 + $0x14] sm:$0xf] %vm1196, %v1111
      %1203 = vst.msk [vmem:[#allocation3 + $0x18] sm:$0xf] %vm1196, %v1113
      %1204 = vst.msk [vmem:[#allocation3 + $0x1c] sm:$0xf] %vm1196, %v1115
      %1205 = vst.msk [vmem:[#allocation3 + $0x20] sm:$0xf] %vm1196, %v1117
      %1206 = vst.msk [vmem:[#allocation3 + $0x24] sm:$0xf] %vm1196, %v1119
      %1207 = vst.msk [vmem:[#allocation3 + $0x28] sm:$0xf] %vm1196, %v1121
      %1208 = vst.msk [vmem:[#allocation3 + $0x2c] sm:$0xf] %vm1196, %v1123
      %1209 = vst.msk [vmem:[#allocation3 + $0x30] sm:$0xf] %vm1196, %v1125
      %1210 = vst.msk [vmem:[#allocation3 + $0x34] sm:$0xf] %vm1196, %v1127
      %1211 = vst.msk [vmem:[#allocation3 + $0x38] sm:$0xf] %vm1196, %v1129
      %1212 = vst.msk [vmem:[#allocation3 + $0x3c] sm:$0xf] %vm1196, %v1131
      %1213 = vst.msk [vmem:[#allocation3 + $0x40] sm:$0xf] %vm1196, %v1133
      %1214 = vst.msk [vmem:[#allocation3 + $0x44] sm:$0xf] %vm1196, %v1135
      %1215 = vst.msk [vmem:[#allocation3 + $0x48] sm:$0xf] %vm1196, %v1137
      %1216 = vst.msk [vmem:[#allocation3 + $0x4c] sm:$0xf] %vm1196, %v1139
      %1217 = vst.msk [vmem:[#allocation3 + $0x50] sm:$0xf] %vm1196, %v1141
      %1218 = vst.msk [vmem:[#allocation3 + $0x54] sm:$0xf] %vm1196, %v1143
      %1219 = vst.msk [vmem:[#allocation3 + $0x58] sm:$0xf] %vm1196, %v1145
      %1220 = vst.msk [vmem:[#allocation3 + $0x5c] sm:$0xf] %vm1196, %v1147
      %1221 = vst.msk [vmem:[#allocation3 + $0x60] sm:$0xf] %vm1196, %v1149
      %1222 = vst.msk [vmem:[#allocation3 + $0x64] sm:$0xf] %vm1196, %v1151
      %1223 = vst.msk [vmem:[#allocation3 + $0x68] sm:$0xf] %vm1196, %v1153
      %1224 = vst.msk [vmem:[#allocation3 + $0x6c] sm:$0xf] %vm1196, %v1155
      %1225 = vst.msk [vmem:[#allocation3 + $0x70] sm:$0xf] %vm1196, %v1157
      %1226 = vst.msk [vmem:[#allocation3 + $0x74] sm:$0xf] %vm1196, %v1159
      %1227 = vst.msk [vmem:[#allocation3 + $0x78] sm:$0xf] %vm1196, %v1161
      %1228 = vst.msk [vmem:[#allocation3 + $0x7c] sm:$0xf] %vm1196, %v1163
      %v1229 = vld [vmem:[%s489] sm:$0xff]
      %v1230 = vld [vmem:[%s489 + $0x8] sm:$0xff]
      %v1231 = vld [vmem:[%s489 + $0x18] sm:$0xff]
      %v1232 = vld [vmem:[%s489 + $0x20] sm:$0xff]
      %v1233 = vld [vmem:[%s489 + $0x30] sm:$0xff]
      %v1234 = vld [vmem:[%s489 + $0x38] sm:$0xff]
      %v1235 = vld [vmem:[%s489 + $0x48] sm:$0xff]
      %v1236 = vld [vmem:[%s489 + $0x50] sm:$0xff]
      %v1237 = vld [vmem:[%s489 + $0x60] sm:$0xff]
      %v1238 = vld [vmem:[%s489 + $0x68] sm:$0xff]
      %v1239 = vld [vmem:[%s489 + $0x78] sm:$0xff]
      %v1240 = vld [vmem:[%s489 + $0x80] sm:$0xff]
      %v1241 = vld [vmem:[%s489 + $0x90] sm:$0xff]
      %v1242 = vld [vmem:[%s489 + $0x98] sm:$0xff]
      %v1243 = vld [vmem:[%s489 + $0xa8] sm:$0xff]
      %v1244 = vld [vmem:[%s489 + $0xb0] sm:$0xff]
      %v1245 = vld [vmem:[%s489 + $0xc0] sm:$0xff]
      %v1246 = vld [vmem:[%s489 + $0xc8] sm:$0xff]
      %v1247 = vld [vmem:[%s489 + $0xd8] sm:$0xff]
      %v1248 = vld [vmem:[%s489 + $0xe0] sm:$0xff]
      %v1249 = vld [vmem:[%s489 + $0xf0] sm:$0xff]
      %v1250 = vld [vmem:[%s489 + $0xf8] sm:$0xff]
      %v1251 = vld [vmem:[%s489 + $0x108] sm:$0xff]
      %v1252 = vld [vmem:[%s489 + $0x110] sm:$0xff]
      %v1253 = vld [vmem:[%s489 + $0x120] sm:$0xff]
      %v1254 = vld [vmem:[%s489 + $0x128] sm:$0xff]
      %v1255 = vld [vmem:[%s489 + $0x138] sm:$0xff]
      %v1256 = vld [vmem:[%s489 + $0x140] sm:$0xff]
      %v1257 = vld [vmem:[%s489 + $0x150] sm:$0xff]
      %v1258 = vld [vmem:[%s489 + $0x158] sm:$0xff]
      %v1259 = vld [vmem:[%s489 + $0x168] sm:$0xff]
      %v1260 = vld [vmem:[%s489 + $0x170] sm:$0xff]
      %v1261 = vpack.c.bf16 %v1230, %v1229
      %v1262 = vpack.c.bf16 %v1232, %v1231
      %v1263 = vpack.c.bf16 %v1234, %v1233
      %v1264 = vpack.c.bf16 %v1236, %v1235
      %v1265 = vpack.c.bf16 %v1238, %v1237
      %v1266 = vpack.c.bf16 %v1240, %v1239
      %v1267 = vpack.c.bf16 %v1242, %v1241
      %v1268 = vpack.c.bf16 %v1244, %v1243
      %v1269 = vpack.c.bf16 %v1246, %v1245
      %v1270 = vpack.c.bf16 %v1248, %v1247
      %v1271 = vpack.c.bf16 %v1250, %v1249
      %v1272 = vpack.c.bf16 %v1252, %v1251
      %v1273 = vpack.c.bf16 %v1254, %v1253
      %v1274 = vpack.c.bf16 %v1256, %v1255
      %v1275 = vpack.c.bf16 %v1258, %v1257
      %v1276 = vpack.c.bf16 %v1260, %v1259
      %v1293 = vunpack.c.l.b16 %v1261
      %v1294 = vunpack.c.h.b16 %v1261
      %v1295 = vunpack.c.l.b16 %v1262
      %v1296 = vunpack.c.h.b16 %v1262
      %v1297 = vunpack.c.l.b16 %v1263
      %v1298 = vunpack.c.h.b16 %v1263
      %v1299 = vunpack.c.l.b16 %v1264
      %v1300 = vunpack.c.h.b16 %v1264
      %v1301 = vunpack.c.l.b16 %v1265
      %v1302 = vunpack.c.h.b16 %v1265
      %v1303 = vunpack.c.l.b16 %v1266
      %v1304 = vunpack.c.h.b16 %v1266
      %v1305 = vunpack.c.l.b16 %v1267
      %v1306 = vunpack.c.h.b16 %v1267
      %v1307 = vunpack.c.l.b16 %v1268
      %v1308 = vunpack.c.h.b16 %v1268
      %v1309 = vunpack.c.l.b16 %v1269
      %v1310 = vunpack.c.h.b16 %v1269
      %v1311 = vunpack.c.l.b16 %v1270
      %v1312 = vunpack.c.h.b16 %v1270
      %v1313 = vunpack.c.l.b16 %v1271
      %v1314 = vunpack.c.h.b16 %v1271
      %v1315 = vunpack.c.l.b16 %v1272
      %v1316 = vunpack.c.h.b16 %v1272
      %v1317 = vunpack.c.l.b16 %v1273
      %v1318 = vunpack.c.h.b16 %v1273
      %v1319 = vunpack.c.l.b16 %v1274
      %v1320 = vunpack.c.h.b16 %v1274
      %v1321 = vunpack.c.l.b16 %v1275
      %v1322 = vunpack.c.h.b16 %v1275
      %v1323 = vunpack.c.l.b16 %v1276
      %v1324 = vunpack.c.h.b16 %v1276
      %v1325 = vpack.c.b16 %v1293, %v1293
      %v1326 = vpack.c.b16 %v1294, %v1294
      %v1327 = vpack.c.b16 %v1295, %v1295
      %v1328 = vpack.c.b16 %v1296, %v1296
      %v1329 = vpack.c.b16 %v1297, %v1297
      %v1330 = vpack.c.b16 %v1298, %v1298
      %v1331 = vpack.c.b16 %v1299, %v1299
      %v1332 = vpack.c.b16 %v1300, %v1300
      %v1333 = vpack.c.b16 %v1301, %v1301
      %v1334 = vpack.c.b16 %v1302, %v1302
      %v1335 = vpack.c.b16 %v1303, %v1303
      %v1336 = vpack.c.b16 %v1304, %v1304
      %v1337 = vpack.c.b16 %v1305, %v1305
      %v1338 = vpack.c.b16 %v1306, %v1306
      %v1339 = vpack.c.b16 %v1307, %v1307
      %v1340 = vpack.c.b16 %v1308, %v1308
      %v1341 = vpack.c.b16 %v1309, %v1309
      %v1342 = vpack.c.b16 %v1310, %v1310
      %v1343 = vpack.c.b16 %v1311, %v1311
      %v1344 = vpack.c.b16 %v1312, %v1312
      %v1345 = vpack.c.b16 %v1313, %v1313
      %v1346 = vpack.c.b16 %v1314, %v1314
      %v1347 = vpack.c.b16 %v1315, %v1315
      %v1348 = vpack.c.b16 %v1316, %v1316
      %v1349 = vpack.c.b16 %v1317, %v1317
      %v1350 = vpack.c.b16 %v1318, %v1318
      %v1351 = vpack.c.b16 %v1319, %v1319
      %v1352 = vpack.c.b16 %v1320, %v1320
      %v1353 = vpack.c.b16 %v1321, %v1321
      %v1354 = vpack.c.b16 %v1322, %v1322
      %v1355 = vpack.c.b16 %v1323, %v1323
      %v1356 = vpack.c.b16 %v1324, %v1324
      %1357 = vrot.lane.b32.xlu0 %v1325, 24
      %v1358 = vpop.permute.xlu0 %1357
      %1359 = vrot.lane.b32.xlu0 %v1326, 24
      %v1360 = vpop.permute.xlu0 %1359
      %1361 = vrot.lane.b32.xlu0 %v1327, 24
      %v1362 = vpop.permute.xlu0 %1361
      %1363 = vrot.lane.b32.xlu0 %v1328, 24
      %v1364 = vpop.permute.xlu0 %1363
      %1365 = vrot.lane.b32.xlu0 %v1329, 24
      %v1366 = vpop.permute.xlu0 %1365
      %1367 = vrot.lane.b32.xlu0 %v1330, 24
      %v1368 = vpop.permute.xlu0 %1367
      %1369 = vrot.lane.b32.xlu0 %v1331, 24
      %v1370 = vpop.permute.xlu0 %1369
      %1371 = vrot.lane.b32.xlu0 %v1332, 24
      %v1372 = vpop.permute.xlu0 %1371
      %1373 = vrot.lane.b32.xlu0 %v1333, 24
      %v1374 = vpop.permute.xlu0 %1373
      %1375 = vrot.lane.b32.xlu0 %v1334, 24
      %v1376 = vpop.permute.xlu0 %1375
      %1377 = vrot.lane.b32.xlu0 %v1335, 24
      %v1378 = vpop.permute.xlu0 %1377
      %1379 = vrot.lane.b32.xlu0 %v1336, 24
      %v1380 = vpop.permute.xlu0 %1379
      %1381 = vrot.lane.b32.xlu0 %v1337, 24
      %v1382 = vpop.permute.xlu0 %1381
      %1383 = vrot.lane.b32.xlu0 %v1338, 24
      %v1384 = vpop.permute.xlu0 %1383
      %1385 = vrot.lane.b32.xlu0 %v1339, 24
      %v1386 = vpop.permute.xlu0 %1385
      %1387 = vrot.lane.b32.xlu0 %v1340, 24
      %v1388 = vpop.permute.xlu0 %1387
      %1389 = vrot.lane.b32.xlu0 %v1341, 24
      %v1390 = vpop.permute.xlu0 %1389
      %1391 = vrot.lane.b32.xlu0 %v1342, 24
      %v1392 = vpop.permute.xlu0 %1391
      %1393 = vrot.lane.b32.xlu0 %v1343, 24
      %v1394 = vpop.permute.xlu0 %1393
      %1395 = vrot.lane.b32.xlu0 %v1344, 24
      %v1396 = vpop.permute.xlu0 %1395
      %1397 = vrot.lane.b32.xlu0 %v1345, 24
      %v1398 = vpop.permute.xlu0 %1397
      %1399 = vrot.lane.b32.xlu0 %v1346, 24
      %v1400 = vpop.permute.xlu0 %1399
      %1401 = vrot.lane.b32.xlu0 %v1347, 24
      %v1402 = vpop.permute.xlu0 %1401
      %1403 = vrot.lane.b32.xlu0 %v1348, 24
      %v1404 = vpop.permute.xlu0 %1403
      %1405 = vrot.lane.b32.xlu0 %v1349, 24
      %v1406 = vpop.permute.xlu0 %1405
      %1407 = vrot.lane.b32.xlu0 %v1350, 24
      %v1408 = vpop.permute.xlu0 %1407
      %1409 = vrot.lane.b32.xlu0 %v1351, 24
      %v1410 = vpop.permute.xlu0 %1409
      %1411 = vrot.lane.b32.xlu0 %v1352, 24
      %v1412 = vpop.permute.xlu0 %1411
      %1413 = vrot.lane.b32.xlu0 %v1353, 24
      %v1414 = vpop.permute.xlu0 %1413
      %1415 = vrot.lane.b32.xlu0 %v1354, 24
      %v1416 = vpop.permute.xlu0 %1415
      %1417 = vrot.lane.b32.xlu0 %v1355, 24
      %v1418 = vpop.permute.xlu0 %1417
      %1419 = vrot.lane.b32.xlu0 %v1356, 24
      %v1420 = vpop.permute.xlu0 %1419
      %vm1453 = vcmask 257216
      %1454 = vst.msk [vmem:[#allocation3] sm:$0xf] %vm1453, %v1358
      %1455 = vst.msk [vmem:[#allocation3 + $0x4] sm:$0xf] %vm1453, %v1360
      %1456 = vst.msk [vmem:[#allocation3 + $0x8] sm:$0xf] %vm1453, %v1362
      %1457 = vst.msk [vmem:[#allocation3 + $0xc] sm:$0xf] %vm1453, %v1364
      %1458 = vst.msk [vmem:[#allocation3 + $0x10] sm:$0xf] %vm1453, %v1366
      %1459 = vst.msk [vmem:[#allocation3 + $0x14] sm:$0xf] %vm1453, %v1368
      %1460 = vst.msk [vmem:[#allocation3 + $0x18] sm:$0xf] %vm1453, %v1370
      %1461 = vst.msk [vmem:[#allocation3 + $0x1c] sm:$0xf] %vm1453, %v1372
      %1462 = vst.msk [vmem:[#allocation3 + $0x20] sm:$0xf] %vm1453, %v1374
      %1463 = vst.msk [vmem:[#allocation3 + $0x24] sm:$0xf] %vm1453, %v1376
      %1464 = vst.msk [vmem:[#allocation3 + $0x28] sm:$0xf] %vm1453, %v1378
      %1465 = vst.msk [vmem:[#allocation3 + $0x2c] sm:$0xf] %vm1453, %v1380
      %1466 = vst.msk [vmem:[#allocation3 + $0x30] sm:$0xf] %vm1453, %v1382
      %1467 = vst.msk [vmem:[#allocation3 + $0x34] sm:$0xf] %vm1453, %v1384
      %1468 = vst.msk [vmem:[#allocation3 + $0x38] sm:$0xf] %vm1453, %v1386
      %1469 = vst.msk [vmem:[#allocation3 + $0x3c] sm:$0xf] %vm1453, %v1388
      %1470 = vst.msk [vmem:[#allocation3 + $0x40] sm:$0xf] %vm1453, %v1390
      %1471 = vst.msk [vmem:[#allocation3 + $0x44] sm:$0xf] %vm1453, %v1392
      %1472 = vst.msk [vmem:[#allocation3 + $0x48] sm:$0xf] %vm1453, %v1394
      %1473 = vst.msk [vmem:[#allocation3 + $0x4c] sm:$0xf] %vm1453, %v1396
      %1474 = vst.msk [vmem:[#allocation3 + $0x50] sm:$0xf] %vm1453, %v1398
      %1475 = vst.msk [vmem:[#allocation3 + $0x54] sm:$0xf] %vm1453, %v1400
      %1476 = vst.msk [vmem:[#allocation3 + $0x58] sm:$0xf] %vm1453, %v1402
      %1477 = vst.msk [vmem:[#allocation3 + $0x5c] sm:$0xf] %vm1453, %v1404
      %1478 = vst.msk [vmem:[#allocation3 + $0x60] sm:$0xf] %vm1453, %v1406
      %1479 = vst.msk [vmem:[#allocation3 + $0x64] sm:$0xf] %vm1453, %v1408
      %1480 = vst.msk [vmem:[#allocation3 + $0x68] sm:$0xf] %vm1453, %v1410
      %1481 = vst.msk [vmem:[#allocation3 + $0x6c] sm:$0xf] %vm1453, %v1412
      %1482 = vst.msk [vmem:[#allocation3 + $0x70] sm:$0xf] %vm1453, %v1414
      %1483 = vst.msk [vmem:[#allocation3 + $0x74] sm:$0xf] %vm1453, %v1416
      %1484 = vst.msk [vmem:[#allocation3 + $0x78] sm:$0xf] %vm1453, %v1418
      %1485 = vst.msk [vmem:[#allocation3 + $0x7c] sm:$0xf] %vm1453, %v1420
      %v1486 = vld [vmem:[%s489 + $0x1] sm:$0xff]
      %v1487 = vld [vmem:[%s489 + $0x9] sm:$0xff]
      %v1488 = vld [vmem:[%s489 + $0x19] sm:$0xff]
      %v1489 = vld [vmem:[%s489 + $0x21] sm:$0xff]
      %v1490 = vld [vmem:[%s489 + $0x31] sm:$0xff]
      %v1491 = vld [vmem:[%s489 + $0x39] sm:$0xff]
      %v1492 = vld [vmem:[%s489 + $0x49] sm:$0xff]
      %v1493 = vld [vmem:[%s489 + $0x51] sm:$0xff]
      %v1494 = vld [vmem:[%s489 + $0x61] sm:$0xff]
      %v1495 = vld [vmem:[%s489 + $0x69] sm:$0xff]
      %v1496 = vld [vmem:[%s489 + $0x79] sm:$0xff]
      %v1497 = vld [vmem:[%s489 + $0x81] sm:$0xff]
      %v1498 = vld [vmem:[%s489 + $0x91] sm:$0xff]
      %v1499 = vld [vmem:[%s489 + $0x99] sm:$0xff]
      %v1500 = vld [vmem:[%s489 + $0xa9] sm:$0xff]
      %v1501 = vld [vmem:[%s489 + $0xb1] sm:$0xff]
      %v1502 = vld [vmem:[%s489 + $0xc1] sm:$0xff]
      %v1503 = vld [vmem:[%s489 + $0xc9] sm:$0xff]
      %v1504 = vld [vmem:[%s489 + $0xd9] sm:$0xff]
      %v1505 = vld [vmem:[%s489 + $0xe1] sm:$0xff]
      %v1506 = vld [vmem:[%s489 + $0xf1] sm:$0xff]
      %v1507 = vld [vmem:[%s489 + $0xf9] sm:$0xff]
      %v1508 = vld [vmem:[%s489 + $0x109] sm:$0xff]
      %v1509 = vld [vmem:[%s489 + $0x111] sm:$0xff]
      %v1510 = vld [vmem:[%s489 + $0x121] sm:$0xff]
      %v1511 = vld [vmem:[%s489 + $0x129] sm:$0xff]
      %v1512 = vld [vmem:[%s489 + $0x139] sm:$0xff]
      %v1513 = vld [vmem:[%s489 + $0x141] sm:$0xff]
      %v1514 = vld [vmem:[%s489 + $0x151] sm:$0xff]
      %v1515 = vld [vmem:[%s489 + $0x159] sm:$0xff]
      %v1516 = vld [vmem:[%s489 + $0x169] sm:$0xff]
      %v1517 = vld [vmem:[%s489 + $0x171] sm:$0xff]
      %v1518 = vpack.c.bf16 %v1487, %v1486
      %v1519 = vpack.c.bf16 %v1489, %v1488
      %v1520 = vpack.c.bf16 %v1491, %v1490
      %v1521 = vpack.c.bf16 %v1493, %v1492
      %v1522 = vpack.c.bf16 %v1495, %v1494
      %v1523 = vpack.c.bf16 %v1497, %v1496
      %v1524 = vpack.c.bf16 %v1499, %v1498
      %v1525 = vpack.c.bf16 %v1501, %v1500
      %v1526 = vpack.c.bf16 %v1503, %v1502
      %v1527 = vpack.c.bf16 %v1505, %v1504
      %v1528 = vpack.c.bf16 %v1507, %v1506
      %v1529 = vpack.c.bf16 %v1509, %v1508
      %v1530 = vpack.c.bf16 %v1511, %v1510
      %v1531 = vpack.c.bf16 %v1513, %v1512
      %v1532 = vpack.c.bf16 %v1515, %v1514
      %v1533 = vpack.c.bf16 %v1517, %v1516
      %v1550 = vunpack.c.l.b16 %v1518
      %v1551 = vunpack.c.h.b16 %v1518
      %v1552 = vunpack.c.l.b16 %v1519
      %v1553 = vunpack.c.h.b16 %v1519
      %v1554 = vunpack.c.l.b16 %v1520
      %v1555 = vunpack.c.h.b16 %v1520
      %v1556 = vunpack.c.l.b16 %v1521
      %v1557 = vunpack.c.h.b16 %v1521
      %v1558 = vunpack.c.l.b16 %v1522
      %v1559 = vunpack.c.h.b16 %v1522
      %v1560 = vunpack.c.l.b16 %v1523
      %v1561 = vunpack.c.h.b16 %v1523
      %v1562 = vunpack.c.l.b16 %v1524
      %v1563 = vunpack.c.h.b16 %v1524
      %v1564 = vunpack.c.l.b16 %v1525
      %v1565 = vunpack.c.h.b16 %v1525
      %v1566 = vunpack.c.l.b16 %v1526
      %v1567 = vunpack.c.h.b16 %v1526
      %v1568 = vunpack.c.l.b16 %v1527
      %v1569 = vunpack.c.h.b16 %v1527
      %v1570 = vunpack.c.l.b16 %v1528
      %v1571 = vunpack.c.h.b16 %v1528
      %v1572 = vunpack.c.l.b16 %v1529
      %v1573 = vunpack.c.h.b16 %v1529
      %v1574 = vunpack.c.l.b16 %v1530
      %v1575 = vunpack.c.h.b16 %v1530
      %v1576 = vunpack.c.l.b16 %v1531
      %v1577 = vunpack.c.h.b16 %v1531
      %v1578 = vunpack.c.l.b16 %v1532
      %v1579 = vunpack.c.h.b16 %v1532
      %v1580 = vunpack.c.l.b16 %v1533
      %v1581 = vunpack.c.h.b16 %v1533
      %v1582 = vpack.c.b16 %v1550, %v1550
      %v1583 = vpack.c.b16 %v1551, %v1551
      %v1584 = vpack.c.b16 %v1552, %v1552
      %v1585 = vpack.c.b16 %v1553, %v1553
      %v1586 = vpack.c.b16 %v1554, %v1554
      %v1587 = vpack.c.b16 %v1555, %v1555
      %v1588 = vpack.c.b16 %v1556, %v1556
      %v1589 = vpack.c.b16 %v1557, %v1557
      %v1590 = vpack.c.b16 %v1558, %v1558
      %v1591 = vpack.c.b16 %v1559, %v1559
      %v1592 = vpack.c.b16 %v1560, %v1560
      %v1593 = vpack.c.b16 %v1561, %v1561
      %v1594 = vpack.c.b16 %v1562, %v1562
      %v1595 = vpack.c.b16 %v1563, %v1563
      %v1596 = vpack.c.b16 %v1564, %v1564
      %v1597 = vpack.c.b16 %v1565, %v1565
      %v1598 = vpack.c.b16 %v1566, %v1566
      %v1599 = vpack.c.b16 %v1567, %v1567
      %v1600 = vpack.c.b16 %v1568, %v1568
      %v1601 = vpack.c.b16 %v1569, %v1569
      %v1602 = vpack.c.b16 %v1570, %v1570
      %v1603 = vpack.c.b16 %v1571, %v1571
      %v1604 = vpack.c.b16 %v1572, %v1572
      %v1605 = vpack.c.b16 %v1573, %v1573
      %v1606 = vpack.c.b16 %v1574, %v1574
      %v1607 = vpack.c.b16 %v1575, %v1575
      %v1608 = vpack.c.b16 %v1576, %v1576
      %v1609 = vpack.c.b16 %v1577, %v1577
      %v1610 = vpack.c.b16 %v1578, %v1578
      %v1611 = vpack.c.b16 %v1579, %v1579
      %v1612 = vpack.c.b16 %v1580, %v1580
      %v1613 = vpack.c.b16 %v1581, %v1581
      %1614 = vrot.lane.b32.xlu0 %v1582, 32
      %v1615 = vpop.permute.xlu0 %1614
      %1616 = vrot.lane.b32.xlu0 %v1583, 32
      %v1617 = vpop.permute.xlu0 %1616
      %1618 = vrot.lane.b32.xlu0 %v1584, 32
      %v1619 = vpop.permute.xlu0 %1618
      %1620 = vrot.lane.b32.xlu0 %v1585, 32
      %v1621 = vpop.permute.xlu0 %1620
      %1622 = vrot.lane.b32.xlu0 %v1586, 32
      %v1623 = vpop.permute.xlu0 %1622
      %1624 = vrot.lane.b32.xlu0 %v1587, 32
      %v1625 = vpop.permute.xlu0 %1624
      %1626 = vrot.lane.b32.xlu0 %v1588, 32
      %v1627 = vpop.permute.xlu0 %1626
      %1628 = vrot.lane.b32.xlu0 %v1589, 32
      %v1629 = vpop.permute.xlu0 %1628
      %1630 = vrot.lane.b32.xlu0 %v1590, 32
      %v1631 = vpop.permute.xlu0 %1630
      %1632 = vrot.lane.b32.xlu0 %v1591, 32
      %v1633 = vpop.permute.xlu0 %1632
      %1634 = vrot.lane.b32.xlu0 %v1592, 32
      %v1635 = vpop.permute.xlu0 %1634
      %1636 = vrot.lane.b32.xlu0 %v1593, 32
      %v1637 = vpop.permute.xlu0 %1636
      %1638 = vrot.lane.b32.xlu0 %v1594, 32
      %v1639 = vpop.permute.xlu0 %1638
      %1640 = vrot.lane.b32.xlu0 %v1595, 32
      %v1641 = vpop.permute.xlu0 %1640
      %1642 = vrot.lane.b32.xlu0 %v1596, 32
      %v1643 = vpop.permute.xlu0 %1642
      %1644 = vrot.lane.b32.xlu0 %v1597, 32
      %v1645 = vpop.permute.xlu0 %1644
      %1646 = vrot.lane.b32.xlu0 %v1598, 32
      %v1647 = vpop.permute.xlu0 %1646
      %1648 = vrot.lane.b32.xlu0 %v1599, 32
      %v1649 = vpop.permute.xlu0 %1648
      %1650 = vrot.lane.b32.xlu0 %v1600, 32
      %v1651 = vpop.permute.xlu0 %1650
      %1652 = vrot.lane.b32.xlu0 %v1601, 32
      %v1653 = vpop.permute.xlu0 %1652
      %1654 = vrot.lane.b32.xlu0 %v1602, 32
      %v1655 = vpop.permute.xlu0 %1654
      %1656 = vrot.lane.b32.xlu0 %v1603, 32
      %v1657 = vpop.permute.xlu0 %1656
      %1658 = vrot.lane.b32.xlu0 %v1604, 32
      %v1659 = vpop.permute.xlu0 %1658
      %1660 = vrot.lane.b32.xlu0 %v1605, 32
      %v1661 = vpop.permute.xlu0 %1660
      %1662 = vrot.lane.b32.xlu0 %v1606, 32
      %v1663 = vpop.permute.xlu0 %1662
      %1664 = vrot.lane.b32.xlu0 %v1607, 32
      %v1665 = vpop.permute.xlu0 %1664
      %1666 = vrot.lane.b32.xlu0 %v1608, 32
      %v1667 = vpop.permute.xlu0 %1666
      %1668 = vrot.lane.b32.xlu0 %v1609, 32
      %v1669 = vpop.permute.xlu0 %1668
      %1670 = vrot.lane.b32.xlu0 %v1610, 32
      %v1671 = vpop.permute.xlu0 %1670
      %1672 = vrot.lane.b32.xlu0 %v1611, 32
      %v1673 = vpop.permute.xlu0 %1672
      %1674 = vrot.lane.b32.xlu0 %v1612, 32
      %v1675 = vpop.permute.xlu0 %1674
      %1676 = vrot.lane.b32.xlu0 %v1613, 32
      %v1677 = vpop.permute.xlu0 %1676
      %vm1710 = vcmask 322816
      %1711 = vst.msk [vmem:[#allocation3] sm:$0xf] %vm1710, %v1615
      %1712 = vst.msk [vmem:[#allocation3 + $0x4] sm:$0xf] %vm1710, %v1617
      %1713 = vst.msk [vmem:[#allocation3 + $0x8] sm:$0xf] %vm1710, %v1619
      %1714 = vst.msk [vmem:[#allocation3 + $0xc] sm:$0xf] %vm1710, %v1621
      %1715 = vst.msk [vmem:[#allocation3 + $0x10] sm:$0xf] %vm1710, %v1623
      %1716 = vst.msk [vmem:[#allocation3 + $0x14] sm:$0xf] %vm1710, %v1625
      %1717 = vst.msk [vmem:[#allocation3 + $0x18] sm:$0xf] %vm1710, %v1627
      %1718 = vst.msk [vmem:[#allocation3 + $0x1c] sm:$0xf] %vm1710, %v1629
      %1719 = vst.msk [vmem:[#allocation3 + $0x20] sm:$0xf] %vm1710, %v1631
      %1720 = vst.msk [vmem:[#allocation3 + $0x24] sm:$0xf] %vm1710, %v1633
      %1721 = vst.msk [vmem:[#allocation3 + $0x28] sm:$0xf] %vm1710, %v1635
      %1722 = vst.msk [vmem:[#allocation3 + $0x2c] sm:$0xf] %vm1710, %v1637
      %1723 = vst.msk [vmem:[#allocation3 + $0x30] sm:$0xf] %vm1710, %v1639
      %1724 = vst.msk [vmem:[#allocation3 + $0x34] sm:$0xf] %vm1710, %v1641
      %1725 = vst.msk [vmem:[#allocation3 + $0x38] sm:$0xf] %vm1710, %v1643
      %1726 = vst.msk [vmem:[#allocation3 + $0x3c] sm:$0xf] %vm1710, %v1645
      %1727 = vst.msk [vmem:[#allocation3 + $0x40] sm:$0xf] %vm1710, %v1647
      %1728 = vst.msk [vmem:[#allocation3 + $0x44] sm:$0xf] %vm1710, %v1649
      %1729 = vst.msk [vmem:[#allocation3 + $0x48] sm:$0xf] %vm1710, %v1651
      %1730 = vst.msk [vmem:[#allocation3 + $0x4c] sm:$0xf] %vm1710, %v1653
      %1731 = vst.msk [vmem:[#allocation3 + $0x50] sm:$0xf] %vm1710, %v1655
      %1732 = vst.msk [vmem:[#allocation3 + $0x54] sm:$0xf] %vm1710, %v1657
      %1733 = vst.msk [vmem:[#allocation3 + $0x58] sm:$0xf] %vm1710, %v1659
      %1734 = vst.msk [vmem:[#allocation3 + $0x5c] sm:$0xf] %vm1710, %v1661
      %1735 = vst.msk [vmem:[#allocation3 + $0x60] sm:$0xf] %vm1710, %v1663
      %1736 = vst.msk [vmem:[#allocation3 + $0x64] sm:$0xf] %vm1710, %v1665
      %1737 = vst.msk [vmem:[#allocation3 + $0x68] sm:$0xf] %vm1710, %v1667
      %1738 = vst.msk [vmem:[#allocation3 + $0x6c] sm:$0xf] %vm1710, %v1669
      %1739 = vst.msk [vmem:[#allocation3 + $0x70] sm:$0xf] %vm1710, %v1671
      %1740 = vst.msk [vmem:[#allocation3 + $0x74] sm:$0xf] %vm1710, %v1673
      %1741 = vst.msk [vmem:[#allocation3 + $0x78] sm:$0xf] %vm1710, %v1675
      %1742 = vst.msk [vmem:[#allocation3 + $0x7c] sm:$0xf] %vm1710, %v1677
      %v1743 = vld [vmem:[%s489 + $0x2] sm:$0xff]
      %v1744 = vld [vmem:[%s489 + $0xa] sm:$0xff]
      %v1745 = vld [vmem:[%s489 + $0x1a] sm:$0xff]
      %v1746 = vld [vmem:[%s489 + $0x22] sm:$0xff]
      %v1747 = vld [vmem:[%s489 + $0x32] sm:$0xff]
      %v1748 = vld [vmem:[%s489 + $0x3a] sm:$0xff]
      %v1749 = vld [vmem:[%s489 + $0x4a] sm:$0xff]
      %v1750 = vld [vmem:[%s489 + $0x52] sm:$0xff]
      %v1751 = vld [vmem:[%s489 + $0x62] sm:$0xff]
      %v1752 = vld [vmem:[%s489 + $0x6a] sm:$0xff]
      %v1753 = vld [vmem:[%s489 + $0x7a] sm:$0xff]
      %v1754 = vld [vmem:[%s489 + $0x82] sm:$0xff]
      %v1755 = vld [vmem:[%s489 + $0x92] sm:$0xff]
      %v1756 = vld [vmem:[%s489 + $0x9a] sm:$0xff]
      %v1757 = vld [vmem:[%s489 + $0xaa] sm:$0xff]
      %v1758 = vld [vmem:[%s489 + $0xb2] sm:$0xff]
      %v1759 = vld [vmem:[%s489 + $0xc2] sm:$0xff]
      %v1760 = vld [vmem:[%s489 + $0xca] sm:$0xff]
      %v1761 = vld [vmem:[%s489 + $0xda] sm:$0xff]
      %v1762 = vld [vmem:[%s489 + $0xe2] sm:$0xff]
      %v1763 = vld [vmem:[%s489 + $0xf2] sm:$0xff]
      %v1764 = vld [vmem:[%s489 + $0xfa] sm:$0xff]
      %v1765 = vld [vmem:[%s489 + $0x10a] sm:$0xff]
      %v1766 = vld [vmem:[%s489 + $0x112] sm:$0xff]
      %v1767 = vld [vmem:[%s489 + $0x122] sm:$0xff]
      %v1768 = vld [vmem:[%s489 + $0x12a] sm:$0xff]
      %v1769 = vld [vmem:[%s489 + $0x13a] sm:$0xff]
      %v1770 = vld [vmem:[%s489 + $0x142] sm:$0xff]
      %v1771 = vld [vmem:[%s489 + $0x152] sm:$0xff]
      %v1772 = vld [vmem:[%s489 + $0x15a] sm:$0xff]
      %v1773 = vld [vmem:[%s489 + $0x16a] sm:$0xff]
      %v1774 = vld [vmem:[%s489 + $0x172] sm:$0xff]
      %v1775 = vpack.c.bf16 %v1744, %v1743
      %v1776 = vpack.c.bf16 %v1746, %v1745
      %v1777 = vpack.c.bf16 %v1748, %v1747
      %v1778 = vpack.c.bf16 %v1750, %v1749
      %v1779 = vpack.c.bf16 %v1752, %v1751
      %v1780 = vpack.c.bf16 %v1754, %v1753
      %v1781 = vpack.c.bf16 %v1756, %v1755
      %v1782 = vpack.c.bf16 %v1758, %v1757
      %v1783 = vpack.c.bf16 %v1760, %v1759
      %v1784 = vpack.c.bf16 %v1762, %v1761
      %v1785 = vpack.c.bf16 %v1764, %v1763
      %v1786 = vpack.c.bf16 %v1766, %v1765
      %v1787 = vpack.c.bf16 %v1768, %v1767
      %v1788 = vpack.c.bf16 %v1770, %v1769
      %v1789 = vpack.c.bf16 %v1772, %v1771
      %v1790 = vpack.c.bf16 %v1774, %v1773
      %v1807 = vunpack.c.l.b16 %v1775
      %v1808 = vunpack.c.h.b16 %v1775
      %v1809 = vunpack.c.l.b16 %v1776
      %v1810 = vunpack.c.h.b16 %v1776
      %v1811 = vunpack.c.l.b16 %v1777
      %v1812 = vunpack.c.h.b16 %v1777
      %v1813 = vunpack.c.l.b16 %v1778
      %v1814 = vunpack.c.h.b16 %v1778
      %v1815 = vunpack.c.l.b16 %v1779
      %v1816 = vunpack.c.h.b16 %v1779
      %v1817 = vunpack.c.l.b16 %v1780
      %v1818 = vunpack.c.h.b16 %v1780
      %v1819 = vunpack.c.l.b16 %v1781
      %v1820 = vunpack.c.h.b16 %v1781
      %v1821 = vunpack.c.l.b16 %v1782
      %v1822 = vunpack.c.h.b16 %v1782
      %v1823 = vunpack.c.l.b16 %v1783
      %v1824 = vunpack.c.h.b16 %v1783
      %v1825 = vunpack.c.l.b16 %v1784
      %v1826 = vunpack.c.h.b16 %v1784
      %v1827 = vunpack.c.l.b16 %v1785
      %v1828 = vunpack.c.h.b16 %v1785
      %v1829 = vunpack.c.l.b16 %v1786
      %v1830 = vunpack.c.h.b16 %v1786
      %v1831 = vunpack.c.l.b16 %v1787
      %v1832 = vunpack.c.h.b16 %v1787
      %v1833 = vunpack.c.l.b16 %v1788
      %v1834 = vunpack.c.h.b16 %v1788
      %v1835 = vunpack.c.l.b16 %v1789
      %v1836 = vunpack.c.h.b16 %v1789
      %v1837 = vunpack.c.l.b16 %v1790
      %v1838 = vunpack.c.h.b16 %v1790
      %v1839 = vpack.c.b16 %v1807, %v1807
      %v1840 = vpack.c.b16 %v1808, %v1808
      %v1841 = vpack.c.b16 %v1809, %v1809
      %v1842 = vpack.c.b16 %v1810, %v1810
      %v1843 = vpack.c.b16 %v1811, %v1811
      %v1844 = vpack.c.b16 %v1812, %v1812
      %v1845 = vpack.c.b16 %v1813, %v1813
      %v1846 = vpack.c.b16 %v1814, %v1814
      %v1847 = vpack.c.b16 %v1815, %v1815
      %v1848 = vpack.c.b16 %v1816, %v1816
      %v1849 = vpack.c.b16 %v1817, %v1817
      %v1850 = vpack.c.b16 %v1818, %v1818
      %v1851 = vpack.c.b16 %v1819, %v1819
      %v1852 = vpack.c.b16 %v1820, %v1820
      %v1853 = vpack.c.b16 %v1821, %v1821
      %v1854 = vpack.c.b16 %v1822, %v1822
      %v1855 = vpack.c.b16 %v1823, %v1823
      %v1856 = vpack.c.b16 %v1824, %v1824
      %v1857 = vpack.c.b16 %v1825, %v1825
      %v1858 = vpack.c.b16 %v1826, %v1826
      %v1859 = vpack.c.b16 %v1827, %v1827
      %v1860 = vpack.c.b16 %v1828, %v1828
      %v1861 = vpack.c.b16 %v1829, %v1829
      %v1862 = vpack.c.b16 %v1830, %v1830
      %v1863 = vpack.c.b16 %v1831, %v1831
      %v1864 = vpack.c.b16 %v1832, %v1832
      %v1865 = vpack.c.b16 %v1833, %v1833
      %v1866 = vpack.c.b16 %v1834, %v1834
      %v1867 = vpack.c.b16 %v1835, %v1835
      %v1868 = vpack.c.b16 %v1836, %v1836
      %v1869 = vpack.c.b16 %v1837, %v1837
      %v1870 = vpack.c.b16 %v1838, %v1838
      %1871 = vrot.lane.b32.xlu0 %v1839, 40
      %v1872 = vpop.permute.xlu0 %1871
      %1873 = vrot.lane.b32.xlu0 %v1840, 40
      %v1874 = vpop.permute.xlu0 %1873
      %1875 = vrot.lane.b32.xlu0 %v1841, 40
      %v1876 = vpop.permute.xlu0 %1875
      %1877 = vrot.lane.b32.xlu0 %v1842, 40
      %v1878 = vpop.permute.xlu0 %1877
      %1879 = vrot.lane.b32.xlu0 %v1843, 40
      %v1880 = vpop.permute.xlu0 %1879
      %1881 = vrot.lane.b32.xlu0 %v1844, 40
      %v1882 = vpop.permute.xlu0 %1881
      %1883 = vrot.lane.b32.xlu0 %v1845, 40
      %v1884 = vpop.permute.xlu0 %1883
      %1885 = vrot.lane.b32.xlu0 %v1846, 40
      %v1886 = vpop.permute.xlu0 %1885
      %1887 = vrot.lane.b32.xlu0 %v1847, 40
      %v1888 = vpop.permute.xlu0 %1887
      %1889 = vrot.lane.b32.xlu0 %v1848, 40
      %v1890 = vpop.permute.xlu0 %1889
      %1891 = vrot.lane.b32.xlu0 %v1849, 40
      %v1892 = vpop.permute.xlu0 %1891
      %1893 = vrot.lane.b32.xlu0 %v1850, 40
      %v1894 = vpop.permute.xlu0 %1893
      %1895 = vrot.lane.b32.xlu0 %v1851, 40
      %v1896 = vpop.permute.xlu0 %1895
      %1897 = vrot.lane.b32.xlu0 %v1852, 40
      %v1898 = vpop.permute.xlu0 %1897
      %1899 = vrot.lane.b32.xlu0 %v1853, 40
      %v1900 = vpop.permute.xlu0 %1899
      %1901 = vrot.lane.b32.xlu0 %v1854, 40
      %v1902 = vpop.permute.xlu0 %1901
      %1903 = vrot.lane.b32.xlu0 %v1855, 40
      %v1904 = vpop.permute.xlu0 %1903
      %1905 = vrot.lane.b32.xlu0 %v1856, 40
      %v1906 = vpop.permute.xlu0 %1905
      %1907 = vrot.lane.b32.xlu0 %v1857, 40
      %v1908 = vpop.permute.xlu0 %1907
      %1909 = vrot.lane.b32.xlu0 %v1858, 40
      %v1910 = vpop.permute.xlu0 %1909
      %1911 = vrot.lane.b32.xlu0 %v1859, 40
      %v1912 = vpop.permute.xlu0 %1911
      %1913 = vrot.lane.b32.xlu0 %v1860, 40
      %v1914 = vpop.permute.xlu0 %1913
      %1915 = vrot.lane.b32.xlu0 %v1861, 40
      %v1916 = vpop.permute.xlu0 %1915
      %1917 = vrot.lane.b32.xlu0 %v1862, 40
      %v1918 = vpop.permute.xlu0 %1917
      %1919 = vrot.lane.b32.xlu0 %v1863, 40
      %v1920 = vpop.permute.xlu0 %1919
      %1921 = vrot.lane.b32.xlu0 %v1864, 40
      %v1922 = vpop.permute.xlu0 %1921
      %1923 = vrot.lane.b32.xlu0 %v1865, 40
      %v1924 = vpop.permute.xlu0 %1923
      %1925 = vrot.lane.b32.xlu0 %v1866, 40
      %v1926 = vpop.permute.xlu0 %1925
      %1927 = vrot.lane.b32.xlu0 %v1867, 40
      %v1928 = vpop.permute.xlu0 %1927
      %1929 = vrot.lane.b32.xlu0 %v1868, 40
      %v1930 = vpop.permute.xlu0 %1929
      %1931 = vrot.lane.b32.xlu0 %v1869, 40
      %v1932 = vpop.permute.xlu0 %1931
      %1933 = vrot.lane.b32.xlu0 %v1870, 40
      %v1934 = vpop.permute.xlu0 %1933
      %vm1967 = vcmask 388416
      %1968 = vst.msk [vmem:[#allocation3] sm:$0xf] %vm1967, %v1872
      %1969 = vst.msk [vmem:[#allocation3 + $0x4] sm:$0xf] %vm1967, %v1874
      %1970 = vst.msk [vmem:[#allocation3 + $0x8] sm:$0xf] %vm1967, %v1876
      %1971 = vst.msk [vmem:[#allocation3 + $0xc] sm:$0xf] %vm1967, %v1878
      %1972 = vst.msk [vmem:[#allocation3 + $0x10] sm:$0xf] %vm1967, %v1880
      %1973 = vst.msk [vmem:[#allocation3 + $0x14] sm:$0xf] %vm1967, %v1882
      %1974 = vst.msk [vmem:[#allocation3 + $0x18] sm:$0xf] %vm1967, %v1884
      %1975 = vst.msk [vmem:[#allocation3 + $0x1c] sm:$0xf] %vm1967, %v1886
      %1976 = vst.msk [vmem:[#allocation3 + $0x20] sm:$0xf] %vm1967, %v1888
      %1977 = vst.msk [vmem:[#allocation3 + $0x24] sm:$0xf] %vm1967, %v1890
      %1978 = vst.msk [vmem:[#allocation3 + $0x28] sm:$0xf] %vm1967, %v1892
      %1979 = vst.msk [vmem:[#allocation3 + $0x2c] sm:$0xf] %vm1967, %v1894
      %1980 = vst.msk [vmem:[#allocation3 + $0x30] sm:$0xf] %vm1967, %v1896
      %1981 = vst.msk [vmem:[#allocation3 + $0x34] sm:$0xf] %vm1967, %v1898
      %1982 = vst.msk [vmem:[#allocation3 + $0x38] sm:$0xf] %vm1967, %v1900
      %1983 = vst.msk [vmem:[#allocation3 + $0x3c] sm:$0xf] %vm1967, %v1902
      %1984 = vst.msk [vmem:[#allocation3 + $0x40] sm:$0xf] %vm1967, %v1904
      %1985 = vst.msk [vmem:[#allocation3 + $0x44] sm:$0xf] %vm1967, %v1906
      %1986 = vst.msk [vmem:[#allocation3 + $0x48] sm:$0xf] %vm1967, %v1908
      %1987 = vst.msk [vmem:[#allocation3 + $0x4c] sm:$0xf] %vm1967, %v1910
      %1988 = vst.msk [vmem:[#allocation3 + $0x50] sm:$0xf] %vm1967, %v1912
      %1989 = vst.msk [vmem:[#allocation3 + $0x54] sm:$0xf] %vm1967, %v1914
      %1990 = vst.msk [vmem:[#allocation3 + $0x58] sm:$0xf] %vm1967, %v1916
      %1991 = vst.msk [vmem:[#allocation3 + $0x5c] sm:$0xf] %vm1967, %v1918
      %1992 = vst.msk [vmem:[#allocation3 + $0x60] sm:$0xf] %vm1967, %v1920
      %1993 = vst.msk [vmem:[#allocation3 + $0x64] sm:$0xf] %vm1967, %v1922
      %1994 = vst.msk [vmem:[#allocation3 + $0x68] sm:$0xf] %vm1967, %v1924
      %1995 = vst.msk [vmem:[#allocation3 + $0x6c] sm:$0xf] %vm1967, %v1926
      %1996 = vst.msk [vmem:[#allocation3 + $0x70] sm:$0xf] %vm1967, %v1928
      %1997 = vst.msk [vmem:[#allocation3 + $0x74] sm:$0xf] %vm1967, %v1930
      %1998 = vst.msk [vmem:[#allocation3 + $0x78] sm:$0xf] %vm1967, %v1932
      %1999 = vst.msk [vmem:[#allocation3 + $0x7c] sm:$0xf] %vm1967, %v1934
      %s2000 = scalar_lea.vmem [#allocation2], 48
      %v2001 = vld [vmem:[%s2000] sm:$0xff]
      %v2002 = vld [vmem:[%s2000 + $0x8] sm:$0xff]
      %v2003 = vld [vmem:[%s2000 + $0x18] sm:$0xff]
      %v2004 = vld [vmem:[%s2000 + $0x20] sm:$0xff]
      %v2005 = vld [vmem:[%s2000 + $0x30] sm:$0xff]
      %v2006 = vld [vmem:[%s2000 + $0x38] sm:$0xff]
      %v2007 = vld [vmem:[%s2000 + $0x48] sm:$0xff]
      %v2008 = vld [vmem:[%s2000 + $0x50] sm:$0xff]
      %v2009 = vld [vmem:[%s2000 + $0x60] sm:$0xff]
      %v2010 = vld [vmem:[%s2000 + $0x68] sm:$0xff]
      %v2011 = vld [vmem:[%s2000 + $0x78] sm:$0xff]
      %v2012 = vld [vmem:[%s2000 + $0x80] sm:$0xff]
      %v2013 = vld [vmem:[%s2000 + $0x90] sm:$0xff]
      %v2014 = vld [vmem:[%s2000 + $0x98] sm:$0xff]
      %v2015 = vld [vmem:[%s2000 + $0xa8] sm:$0xff]
      %v2016 = vld [vmem:[%s2000 + $0xb0] sm:$0xff]
      %v2017 = vld [vmem:[%s2000 + $0xc0] sm:$0xff]
      %v2018 = vld [vmem:[%s2000 + $0xc8] sm:$0xff]
      %v2019 = vld [vmem:[%s2000 + $0xd8] sm:$0xff]
      %v2020 = vld [vmem:[%s2000 + $0xe0] sm:$0xff]
      %v2021 = vld [vmem:[%s2000 + $0xf0] sm:$0xff]
      %v2022 = vld [vmem:[%s2000 + $0xf8] sm:$0xff]
      %v2023 = vld [vmem:[%s2000 + $0x108] sm:$0xff]
      %v2024 = vld [vmem:[%s2000 + $0x110] sm:$0xff]
      %v2025 = vld [vmem:[%s2000 + $0x120] sm:$0xff]
      %v2026 = vld [vmem:[%s2000 + $0x128] sm:$0xff]
      %v2027 = vld [vmem:[%s2000 + $0x138] sm:$0xff]
      %v2028 = vld [vmem:[%s2000 + $0x140] sm:$0xff]
      %v2029 = vld [vmem:[%s2000 + $0x150] sm:$0xff]
      %v2030 = vld [vmem:[%s2000 + $0x158] sm:$0xff]
      %v2031 = vld [vmem:[%s2000 + $0x168] sm:$0xff]
      %v2032 = vld [vmem:[%s2000 + $0x170] sm:$0xff]
      %v2033 = vpack.c.bf16 %v2002, %v2001
      %v2034 = vpack.c.bf16 %v2004, %v2003
      %v2035 = vpack.c.bf16 %v2006, %v2005
      %v2036 = vpack.c.bf16 %v2008, %v2007
      %v2037 = vpack.c.bf16 %v2010, %v2009
      %v2038 = vpack.c.bf16 %v2012, %v2011
      %v2039 = vpack.c.bf16 %v2014, %v2013
      %v2040 = vpack.c.bf16 %v2016, %v2015
      %v2041 = vpack.c.bf16 %v2018, %v2017
      %v2042 = vpack.c.bf16 %v2020, %v2019
      %v2043 = vpack.c.bf16 %v2022, %v2021
      %v2044 = vpack.c.bf16 %v2024, %v2023
      %v2045 = vpack.c.bf16 %v2026, %v2025
      %v2046 = vpack.c.bf16 %v2028, %v2027
      %v2047 = vpack.c.bf16 %v2030, %v2029
      %v2048 = vpack.c.bf16 %v2032, %v2031
      %v2065 = vunpack.c.l.b16 %v2033
      %v2066 = vunpack.c.h.b16 %v2033
      %v2067 = vunpack.c.l.b16 %v2034
      %v2068 = vunpack.c.h.b16 %v2034
      %v2069 = vunpack.c.l.b16 %v2035
      %v2070 = vunpack.c.h.b16 %v2035
      %v2071 = vunpack.c.l.b16 %v2036
      %v2072 = vunpack.c.h.b16 %v2036
      %v2073 = vunpack.c.l.b16 %v2037
      %v2074 = vunpack.c.h.b16 %v2037
      %v2075 = vunpack.c.l.b16 %v2038
      %v2076 = vunpack.c.h.b16 %v2038
      %v2077 = vunpack.c.l.b16 %v2039
      %v2078 = vunpack.c.h.b16 %v2039
      %v2079 = vunpack.c.l.b16 %v2040
      %v2080 = vunpack.c.h.b16 %v2040
      %v2081 = vunpack.c.l.b16 %v2041
      %v2082 = vunpack.c.h.b16 %v2041
      %v2083 = vunpack.c.l.b16 %v2042
      %v2084 = vunpack.c.h.b16 %v2042
      %v2085 = vunpack.c.l.b16 %v2043
      %v2086 = vunpack.c.h.b16 %v2043
      %v2087 = vunpack.c.l.b16 %v2044
      %v2088 = vunpack.c.h.b16 %v2044
      %v2089 = vunpack.c.l.b16 %v2045
      %v2090 = vunpack.c.h.b16 %v2045
      %v2091 = vunpack.c.l.b16 %v2046
      %v2092 = vunpack.c.h.b16 %v2046
      %v2093 = vunpack.c.l.b16 %v2047
      %v2094 = vunpack.c.h.b16 %v2047
      %v2095 = vunpack.c.l.b16 %v2048
      %v2096 = vunpack.c.h.b16 %v2048
      %v2097 = vpack.c.b16 %v2065, %v2065
      %v2098 = vpack.c.b16 %v2066, %v2066
      %v2099 = vpack.c.b16 %v2067, %v2067
      %v2100 = vpack.c.b16 %v2068, %v2068
      %v2101 = vpack.c.b16 %v2069, %v2069
      %v2102 = vpack.c.b16 %v2070, %v2070
      %v2103 = vpack.c.b16 %v2071, %v2071
      %v2104 = vpack.c.b16 %v2072, %v2072
      %v2105 = vpack.c.b16 %v2073, %v2073
      %v2106 = vpack.c.b16 %v2074, %v2074
      %v2107 = vpack.c.b16 %v2075, %v2075
      %v2108 = vpack.c.b16 %v2076, %v2076
      %v2109 = vpack.c.b16 %v2077, %v2077
      %v2110 = vpack.c.b16 %v2078, %v2078
      %v2111 = vpack.c.b16 %v2079, %v2079
      %v2112 = vpack.c.b16 %v2080, %v2080
      %v2113 = vpack.c.b16 %v2081, %v2081
      %v2114 = vpack.c.b16 %v2082, %v2082
      %v2115 = vpack.c.b16 %v2083, %v2083
      %v2116 = vpack.c.b16 %v2084, %v2084
      %v2117 = vpack.c.b16 %v2085, %v2085
      %v2118 = vpack.c.b16 %v2086, %v2086
      %v2119 = vpack.c.b16 %v2087, %v2087
      %v2120 = vpack.c.b16 %v2088, %v2088
      %v2121 = vpack.c.b16 %v2089, %v2089
      %v2122 = vpack.c.b16 %v2090, %v2090
      %v2123 = vpack.c.b16 %v2091, %v2091
      %v2124 = vpack.c.b16 %v2092, %v2092
      %v2125 = vpack.c.b16 %v2093, %v2093
      %v2126 = vpack.c.b16 %v2094, %v2094
      %v2127 = vpack.c.b16 %v2095, %v2095
      %v2128 = vpack.c.b16 %v2096, %v2096
      %2129 = vrot.lane.b32.xlu0 %v2097, 48
      %v2130 = vpop.permute.xlu0 %2129
      %2131 = vrot.lane.b32.xlu0 %v2098, 48
      %v2132 = vpop.permute.xlu0 %2131
      %2133 = vrot.lane.b32.xlu0 %v2099, 48
      %v2134 = vpop.permute.xlu0 %2133
      %2135 = vrot.lane.b32.xlu0 %v2100, 48
      %v2136 = vpop.permute.xlu0 %2135
      %2137 = vrot.lane.b32.xlu0 %v2101, 48
      %v2138 = vpop.permute.xlu0 %2137
      %2139 = vrot.lane.b32.xlu0 %v2102, 48
      %v2140 = vpop.permute.xlu0 %2139
      %2141 = vrot.lane.b32.xlu0 %v2103, 48
      %v2142 = vpop.permute.xlu0 %2141
      %2143 = vrot.lane.b32.xlu0 %v2104, 48
      %v2144 = vpop.permute.xlu0 %2143
      %2145 = vrot.lane.b32.xlu0 %v2105, 48
      %v2146 = vpop.permute.xlu0 %2145
      %2147 = vrot.lane.b32.xlu0 %v2106, 48
      %v2148 = vpop.permute.xlu0 %2147
      %2149 = vrot.lane.b32.xlu0 %v2107, 48
      %v2150 = vpop.permute.xlu0 %2149
      %2151 = vrot.lane.b32.xlu0 %v2108, 48
      %v2152 = vpop.permute.xlu0 %2151
      %2153 = vrot.lane.b32.xlu0 %v2109, 48
      %v2154 = vpop.permute.xlu0 %2153
      %2155 = vrot.lane.b32.xlu0 %v2110, 48
      %v2156 = vpop.permute.xlu0 %2155
      %2157 = vrot.lane.b32.xlu0 %v2111, 48
      %v2158 = vpop.permute.xlu0 %2157
      %2159 = vrot.lane.b32.xlu0 %v2112, 48
      %v2160 = vpop.permute.xlu0 %2159
      %2161 = vrot.lane.b32.xlu0 %v2113, 48
      %v2162 = vpop.permute.xlu0 %2161
      %2163 = vrot.lane.b32.xlu0 %v2114, 48
      %v2164 = vpop.permute.xlu0 %2163
      %2165 = vrot.lane.b32.xlu0 %v2115, 48
      %v2166 = vpop.permute.xlu0 %2165
      %2167 = vrot.lane.b32.xlu0 %v2116, 48
      %v2168 = vpop.permute.xlu0 %2167
      %2169 = vrot.lane.b32.xlu0 %v2117, 48
      %v2170 = vpop.permute.xlu0 %2169
      %2171 = vrot.lane.b32.xlu0 %v2118, 48
      %v2172 = vpop.permute.xlu0 %2171
      %2173 = vrot.lane.b32.xlu0 %v2119, 48
      %v2174 = vpop.permute.xlu0 %2173
      %2175 = vrot.lane.b32.xlu0 %v2120, 48
      %v2176 = vpop.permute.xlu0 %2175
      %2177 = vrot.lane.b32.xlu0 %v2121, 48
      %v2178 = vpop.permute.xlu0 %2177
      %2179 = vrot.lane.b32.xlu0 %v2122, 48
      %v2180 = vpop.permute.xlu0 %2179
      %2181 = vrot.lane.b32.xlu0 %v2123, 48
      %v2182 = vpop.permute.xlu0 %2181
      %2183 = vrot.lane.b32.xlu0 %v2124, 48
      %v2184 = vpop.permute.xlu0 %2183
      %2185 = vrot.lane.b32.xlu0 %v2125, 48
      %v2186 = vpop.permute.xlu0 %2185
      %2187 = vrot.lane.b32.xlu0 %v2126, 48
      %v2188 = vpop.permute.xlu0 %2187
      %2189 = vrot.lane.b32.xlu0 %v2127, 48
      %v2190 = vpop.permute.xlu0 %2189
      %2191 = vrot.lane.b32.xlu0 %v2128, 48
      %v2192 = vpop.permute.xlu0 %2191
      %vm2225 = vcmask 454016
      %2226 = vst.msk [vmem:[#allocation3] sm:$0xf] %vm2225, %v2130
      %2227 = vst.msk [vmem:[#allocation3 + $0x4] sm:$0xf] %vm2225, %v2132
      %2228 = vst.msk [vmem:[#allocation3 + $0x8] sm:$0xf] %vm2225, %v2134
      %2229 = vst.msk [vmem:[#allocation3 + $0xc] sm:$0xf] %vm2225, %v2136
      %2230 = vst.msk [vmem:[#allocation3 + $0x10] sm:$0xf] %vm2225, %v2138
      %2231 = vst.msk [vmem:[#allocation3 + $0x14] sm:$0xf] %vm2225, %v2140
      %2232 = vst.msk [vmem:[#allocation3 + $0x18] sm:$0xf] %vm2225, %v2142
      %2233 = vst.msk [vmem:[#allocation3 + $0x1c] sm:$0xf] %vm2225, %v2144
      %2234 = vst.msk [vmem:[#allocation3 + $0x20] sm:$0xf] %vm2225, %v2146
      %2235 = vst.msk [vmem:[#allocation3 + $0x24] sm:$0xf] %vm2225, %v2148
      %2236 = vst.msk [vmem:[#allocation3 + $0x28] sm:$0xf] %vm2225, %v2150
      %2237 = vst.msk [vmem:[#allocation3 + $0x2c] sm:$0xf] %vm2225, %v2152
      %2238 = vst.msk [vmem:[#allocation3 + $0x30] sm:$0xf] %vm2225, %v2154
      %2239 = vst.msk [vmem:[#allocation3 + $0x34] sm:$0xf] %vm2225, %v2156
      %2240 = vst.msk [vmem:[#allocation3 + $0x38] sm:$0xf] %vm2225, %v2158
      %2241 = vst.msk [vmem:[#allocation3 + $0x3c] sm:$0xf] %vm2225, %v2160
      %2242 = vst.msk [vmem:[#allocation3 + $0x40] sm:$0xf] %vm2225, %v2162
      %2243 = vst.msk [vmem:[#allocation3 + $0x44] sm:$0xf] %vm2225, %v2164
      %2244 = vst.msk [vmem:[#allocation3 + $0x48] sm:$0xf] %vm2225, %v2166
      %2245 = vst.msk [vmem:[#allocation3 + $0x4c] sm:$0xf] %vm2225, %v2168
      %2246 = vst.msk [vmem:[#allocation3 + $0x50] sm:$0xf] %vm2225, %v2170
      %2247 = vst.msk [vmem:[#allocation3 + $0x54] sm:$0xf] %vm2225, %v2172
      %2248 = vst.msk [vmem:[#allocation3 + $0x58] sm:$0xf] %vm2225, %v2174
      %2249 = vst.msk [vmem:[#allocation3 + $0x5c] sm:$0xf] %vm2225, %v2176
      %2250 = vst.msk [vmem:[#allocation3 + $0x60] sm:$0xf] %vm2225, %v2178
      %2251 = vst.msk [vmem:[#allocation3 + $0x64] sm:$0xf] %vm2225, %v2180
      %2252 = vst.msk [vmem:[#allocation3 + $0x68] sm:$0xf] %vm2225, %v2182
      %2253 = vst.msk [vmem:[#allocation3 + $0x6c] sm:$0xf] %vm2225, %v2184
      %2254 = vst.msk [vmem:[#allocation3 + $0x70] sm:$0xf] %vm2225, %v2186
      %2255 = vst.msk [vmem:[#allocation3 + $0x74] sm:$0xf] %vm2225, %v2188
      %2256 = vst.msk [vmem:[#allocation3 + $0x78] sm:$0xf] %vm2225, %v2190
      %2257 = vst.msk [vmem:[#allocation3 + $0x7c] sm:$0xf] %vm2225, %v2192
      %v2258 = vld [vmem:[%s2000 + $0x1] sm:$0xff]
      %v2259 = vld [vmem:[%s2000 + $0x9] sm:$0xff]
      %v2260 = vld [vmem:[%s2000 + $0x19] sm:$0xff]
      %v2261 = vld [vmem:[%s2000 + $0x21] sm:$0xff]
      %v2262 = vld [vmem:[%s2000 + $0x31] sm:$0xff]
      %v2263 = vld [vmem:[%s2000 + $0x39] sm:$0xff]
      %v2264 = vld [vmem:[%s2000 + $0x49] sm:$0xff]
      %v2265 = vld [vmem:[%s2000 + $0x51] sm:$0xff]
      %v2266 = vld [vmem:[%s2000 + $0x61] sm:$0xff]
      %v2267 = vld [vmem:[%s2000 + $0x69] sm:$0xff]
      %v2268 = vld [vmem:[%s2000 + $0x79] sm:$0xff]
      %v2269 = vld [vmem:[%s2000 + $0x81] sm:$0xff]
      %v2270 = vld [vmem:[%s2000 + $0x91] sm:$0xff]
      %v2271 = vld [vmem:[%s2000 + $0x99] sm:$0xff]
      %v2272 = vld [vmem:[%s2000 + $0xa9] sm:$0xff]
      %v2273 = vld [vmem:[%s2000 + $0xb1] sm:$0xff]
      %v2274 = vld [vmem:[%s2000 + $0xc1] sm:$0xff]
      %v2275 = vld [vmem:[%s2000 + $0xc9] sm:$0xff]
      %v2276 = vld [vmem:[%s2000 + $0xd9] sm:$0xff]
      %v2277 = vld [vmem:[%s2000 + $0xe1] sm:$0xff]
      %v2278 = vld [vmem:[%s2000 + $0xf1] sm:$0xff]
      %v2279 = vld [vmem:[%s2000 + $0xf9] sm:$0xff]
      %v2280 = vld [vmem:[%s2000 + $0x109] sm:$0xff]
      %v2281 = vld [vmem:[%s2000 + $0x111] sm:$0xff]
      %v2282 = vld [vmem:[%s2000 + $0x121] sm:$0xff]
      %v2283 = vld [vmem:[%s2000 + $0x129] sm:$0xff]
      %v2284 = vld [vmem:[%s2000 + $0x139] sm:$0xff]
      %v2285 = vld [vmem:[%s2000 + $0x141] sm:$0xff]
      %v2286 = vld [vmem:[%s2000 + $0x151] sm:$0xff]
      %v2287 = vld [vmem:[%s2000 + $0x159] sm:$0xff]
      %v2288 = vld [vmem:[%s2000 + $0x169] sm:$0xff]
      %v2289 = vld [vmem:[%s2000 + $0x171] sm:$0xff]
      %v2290 = vpack.c.bf16 %v2259, %v2258
      %v2291 = vpack.c.bf16 %v2261, %v2260
      %v2292 = vpack.c.bf16 %v2263, %v2262
      %v2293 = vpack.c.bf16 %v2265, %v2264
      %v2294 = vpack.c.bf16 %v2267, %v2266
      %v2295 = vpack.c.bf16 %v2269, %v2268
      %v2296 = vpack.c.bf16 %v2271, %v2270
      %v2297 = vpack.c.bf16 %v2273, %v2272
      %v2298 = vpack.c.bf16 %v2275, %v2274
      %v2299 = vpack.c.bf16 %v2277, %v2276
      %v2300 = vpack.c.bf16 %v2279, %v2278
      %v2301 = vpack.c.bf16 %v2281, %v2280
      %v2302 = vpack.c.bf16 %v2283, %v2282
      %v2303 = vpack.c.bf16 %v2285, %v2284
      %v2304 = vpack.c.bf16 %v2287, %v2286
      %v2305 = vpack.c.bf16 %v2289, %v2288
      %v2322 = vunpack.c.l.b16 %v2290
      %v2323 = vunpack.c.h.b16 %v2290
      %v2324 = vunpack.c.l.b16 %v2291
      %v2325 = vunpack.c.h.b16 %v2291
      %v2326 = vunpack.c.l.b16 %v2292
      %v2327 = vunpack.c.h.b16 %v2292
      %v2328 = vunpack.c.l.b16 %v2293
      %v2329 = vunpack.c.h.b16 %v2293
      %v2330 = vunpack.c.l.b16 %v2294
      %v2331 = vunpack.c.h.b16 %v2294
      %v2332 = vunpack.c.l.b16 %v2295
      %v2333 = vunpack.c.h.b16 %v2295
      %v2334 = vunpack.c.l.b16 %v2296
      %v2335 = vunpack.c.h.b16 %v2296
      %v2336 = vunpack.c.l.b16 %v2297
      %v2337 = vunpack.c.h.b16 %v2297
      %v2338 = vunpack.c.l.b16 %v2298
      %v2339 = vunpack.c.h.b16 %v2298
      %v2340 = vunpack.c.l.b16 %v2299
      %v2341 = vunpack.c.h.b16 %v2299
      %v2342 = vunpack.c.l.b16 %v2300
      %v2343 = vunpack.c.h.b16 %v2300
      %v2344 = vunpack.c.l.b16 %v2301
      %v2345 = vunpack.c.h.b16 %v2301
      %v2346 = vunpack.c.l.b16 %v2302
      %v2347 = vunpack.c.h.b16 %v2302
      %v2348 = vunpack.c.l.b16 %v2303
      %v2349 = vunpack.c.h.b16 %v2303
      %v2350 = vunpack.c.l.b16 %v2304
      %v2351 = vunpack.c.h.b16 %v2304
      %v2352 = vunpack.c.l.b16 %v2305
      %v2353 = vunpack.c.h.b16 %v2305
      %v2354 = vpack.c.b16 %v2322, %v2322
      %v2355 = vpack.c.b16 %v2323, %v2323
      %v2356 = vpack.c.b16 %v2324, %v2324
      %v2357 = vpack.c.b16 %v2325, %v2325
      %v2358 = vpack.c.b16 %v2326, %v2326
      %v2359 = vpack.c.b16 %v2327, %v2327
      %v2360 = vpack.c.b16 %v2328, %v2328
      %v2361 = vpack.c.b16 %v2329, %v2329
      %v2362 = vpack.c.b16 %v2330, %v2330
      %v2363 = vpack.c.b16 %v2331, %v2331
      %v2364 = vpack.c.b16 %v2332, %v2332
      %v2365 = vpack.c.b16 %v2333, %v2333
      %v2366 = vpack.c.b16 %v2334, %v2334
      %v2367 = vpack.c.b16 %v2335, %v2335
      %v2368 = vpack.c.b16 %v2336, %v2336
      %v2369 = vpack.c.b16 %v2337, %v2337
      %v2370 = vpack.c.b16 %v2338, %v2338
      %v2371 = vpack.c.b16 %v2339, %v2339
      %v2372 = vpack.c.b16 %v2340, %v2340
      %v2373 = vpack.c.b16 %v2341, %v2341
      %v2374 = vpack.c.b16 %v2342, %v2342
      %v2375 = vpack.c.b16 %v2343, %v2343
      %v2376 = vpack.c.b16 %v2344, %v2344
      %v2377 = vpack.c.b16 %v2345, %v2345
      %v2378 = vpack.c.b16 %v2346, %v2346
      %v2379 = vpack.c.b16 %v2347, %v2347
      %v2380 = vpack.c.b16 %v2348, %v2348
      %v2381 = vpack.c.b16 %v2349, %v2349
      %v2382 = vpack.c.b16 %v2350, %v2350
      %v2383 = vpack.c.b16 %v2351, %v2351
      %v2384 = vpack.c.b16 %v2352, %v2352
      %v2385 = vpack.c.b16 %v2353, %v2353
      %2386 = vrot.lane.b32.xlu0 %v2354, 56
      %v2387 = vpop.permute.xlu0 %2386
      %2388 = vrot.lane.b32.xlu0 %v2355, 56
      %v2389 = vpop.permute.xlu0 %2388
      %2390 = vrot.lane.b32.xlu0 %v2356, 56
      %v2391 = vpop.permute.xlu0 %2390
      %2392 = vrot.lane.b32.xlu0 %v2357, 56
      %v2393 = vpop.permute.xlu0 %2392
      %2394 = vrot.lane.b32.xlu0 %v2358, 56
      %v2395 = vpop.permute.xlu0 %2394
      %2396 = vrot.lane.b32.xlu0 %v2359, 56
      %v2397 = vpop.permute.xlu0 %2396
      %2398 = vrot.lane.b32.xlu0 %v2360, 56
      %v2399 = vpop.permute.xlu0 %2398
      %2400 = vrot.lane.b32.xlu0 %v2361, 56
      %v2401 = vpop.permute.xlu0 %2400
      %2402 = vrot.lane.b32.xlu0 %v2362, 56
      %v2403 = vpop.permute.xlu0 %2402
      %2404 = vrot.lane.b32.xlu0 %v2363, 56
      %v2405 = vpop.permute.xlu0 %2404
      %2406 = vrot.lane.b32.xlu0 %v2364, 56
      %v2407 = vpop.permute.xlu0 %2406
      %2408 = vrot.lane.b32.xlu0 %v2365, 56
      %v2409 = vpop.permute.xlu0 %2408
      %2410 = vrot.lane.b32.xlu0 %v2366, 56
      %v2411 = vpop.permute.xlu0 %2410
      %2412 = vrot.lane.b32.xlu0 %v2367, 56
      %v2413 = vpop.permute.xlu0 %2412
      %2414 = vrot.lane.b32.xlu0 %v2368, 56
      %v2415 = vpop.permute.xlu0 %2414
      %2416 = vrot.lane.b32.xlu0 %v2369, 56
      %v2417 = vpop.permute.xlu0 %2416
      %2418 = vrot.lane.b32.xlu0 %v2370, 56
      %v2419 = vpop.permute.xlu0 %2418
      %2420 = vrot.lane.b32.xlu0 %v2371, 56
      %v2421 = vpop.permute.xlu0 %2420
      %2422 = vrot.lane.b32.xlu0 %v2372, 56
      %v2423 = vpop.permute.xlu0 %2422
      %2424 = vrot.lane.b32.xlu0 %v2373, 56
      %v2425 = vpop.permute.xlu0 %2424
      %2426 = vrot.lane.b32.xlu0 %v2374, 56
      %v2427 = vpop.permute.xlu0 %2426
      %2428 = vrot.lane.b32.xlu0 %v2375, 56
      %v2429 = vpop.permute.xlu0 %2428
      %2430 = vrot.lane.b32.xlu0 %v2376, 56
      %v2431 = vpop.permute.xlu0 %2430
      %2432 = vrot.lane.b32.xlu0 %v2377, 56
      %v2433 = vpop.permute.xlu0 %2432
      %2434 = vrot.lane.b32.xlu0 %v2378, 56
      %v2435 = vpop.permute.xlu0 %2434
      %2436 = vrot.lane.b32.xlu0 %v2379, 56
      %v2437 = vpop.permute.xlu0 %2436
      %2438 = vrot.lane.b32.xlu0 %v2380, 56
      %v2439 = vpop.permute.xlu0 %2438
      %2440 = vrot.lane.b32.xlu0 %v2381, 56
      %v2441 = vpop.permute.xlu0 %2440
      %2442 = vrot.lane.b32.xlu0 %v2382, 56
      %v2443 = vpop.permute.xlu0 %2442
      %2444 = vrot.lane.b32.xlu0 %v2383, 56
      %v2445 = vpop.permute.xlu0 %2444
      %2446 = vrot.lane.b32.xlu0 %v2384, 56
      %v2447 = vpop.permute.xlu0 %2446
      %2448 = vrot.lane.b32.xlu0 %v2385, 56
      %v2449 = vpop.permute.xlu0 %2448
      %vm2482 = vcmask 519616
      %2483 = vst.msk [vmem:[#allocation3] sm:$0xf] %vm2482, %v2387
      %2484 = vst.msk [vmem:[#allocation3 + $0x4] sm:$0xf] %vm2482, %v2389
      %2485 = vst.msk [vmem:[#allocation3 + $0x8] sm:$0xf] %vm2482, %v2391
      %2486 = vst.msk [vmem:[#allocation3 + $0xc] sm:$0xf] %vm2482, %v2393
      %2487 = vst.msk [vmem:[#allocation3 + $0x10] sm:$0xf] %vm2482, %v2395
      %2488 = vst.msk [vmem:[#allocation3 + $0x14] sm:$0xf] %vm2482, %v2397
      %2489 = vst.msk [vmem:[#allocation3 + $0x18] sm:$0xf] %vm2482, %v2399
      %2490 = vst.msk [vmem:[#allocation3 + $0x1c] sm:$0xf] %vm2482, %v2401
      %2491 = vst.msk [vmem:[#allocation3 + $0x20] sm:$0xf] %vm2482, %v2403
      %2492 = vst.msk [vmem:[#allocation3 + $0x24] sm:$0xf] %vm2482, %v2405
      %2493 = vst.msk [vmem:[#allocation3 + $0x28] sm:$0xf] %vm2482, %v2407
      %2494 = vst.msk [vmem:[#allocation3 + $0x2c] sm:$0xf] %vm2482, %v2409
      %2495 = vst.msk [vmem:[#allocation3 + $0x30] sm:$0xf] %vm2482, %v2411
      %2496 = vst.msk [vmem:[#allocation3 + $0x34] sm:$0xf] %vm2482, %v2413
      %2497 = vst.msk [vmem:[#allocation3 + $0x38] sm:$0xf] %vm2482, %v2415
      %2498 = vst.msk [vmem:[#allocation3 + $0x3c] sm:$0xf] %vm2482, %v2417
      %2499 = vst.msk [vmem:[#allocation3 + $0x40] sm:$0xf] %vm2482, %v2419
      %2500 = vst.msk [vmem:[#allocation3 + $0x44] sm:$0xf] %vm2482, %v2421
      %2501 = vst.msk [vmem:[#allocation3 + $0x48] sm:$0xf] %vm2482, %v2423
      %2502 = vst.msk [vmem:[#allocation3 + $0x4c] sm:$0xf] %vm2482, %v2425
      %2503 = vst.msk [vmem:[#allocation3 + $0x50] sm:$0xf] %vm2482, %v2427
      %2504 = vst.msk [vmem:[#allocation3 + $0x54] sm:$0xf] %vm2482, %v2429
      %2505 = vst.msk [vmem:[#allocation3 + $0x58] sm:$0xf] %vm2482, %v2431
      %2506 = vst.msk [vmem:[#allocation3 + $0x5c] sm:$0xf] %vm2482, %v2433
      %2507 = vst.msk [vmem:[#allocation3 + $0x60] sm:$0xf] %vm2482, %v2435
      %2508 = vst.msk [vmem:[#allocation3 + $0x64] sm:$0xf] %vm2482, %v2437
      %2509 = vst.msk [vmem:[#allocation3 + $0x68] sm:$0xf] %vm2482, %v2439
      %2510 = vst.msk [vmem:[#allocation3 + $0x6c] sm:$0xf] %vm2482, %v2441
      %2511 = vst.msk [vmem:[#allocation3 + $0x70] sm:$0xf] %vm2482, %v2443
      %2512 = vst.msk [vmem:[#allocation3 + $0x74] sm:$0xf] %vm2482, %v2445
      %2513 = vst.msk [vmem:[#allocation3 + $0x78] sm:$0xf] %vm2482, %v2447
      %2514 = vst.msk [vmem:[#allocation3 + $0x7c] sm:$0xf] %vm2482, %v2449
      %v2515 = vld [vmem:[%s2000 + $0x2] sm:$0xff]
      %v2516 = vld [vmem:[%s2000 + $0xa] sm:$0xff]
      %v2517 = vld [vmem:[%s2000 + $0x1a] sm:$0xff]
      %v2518 = vld [vmem:[%s2000 + $0x22] sm:$0xff]
      %v2519 = vld [vmem:[%s2000 + $0x32] sm:$0xff]
      %v2520 = vld [vmem:[%s2000 + $0x3a] sm:$0xff]
      %v2521 = vld [vmem:[%s2000 + $0x4a] sm:$0xff]
      %v2522 = vld [vmem:[%s2000 + $0x52] sm:$0xff]
      %v2523 = vld [vmem:[%s2000 + $0x62] sm:$0xff]
      %v2524 = vld [vmem:[%s2000 + $0x6a] sm:$0xff]
      %v2525 = vld [vmem:[%s2000 + $0x7a] sm:$0xff]
      %v2526 = vld [vmem:[%s2000 + $0x82] sm:$0xff]
      %v2527 = vld [vmem:[%s2000 + $0x92] sm:$0xff]
      %v2528 = vld [vmem:[%s2000 + $0x9a] sm:$0xff]
      %v2529 = vld [vmem:[%s2000 + $0xaa] sm:$0xff]
      %v2530 = vld [vmem:[%s2000 + $0xb2] sm:$0xff]
      %v2531 = vld [vmem:[%s2000 + $0xc2] sm:$0xff]
      %v2532 = vld [vmem:[%s2000 + $0xca] sm:$0xff]
      %v2533 = vld [vmem:[%s2000 + $0xda] sm:$0xff]
      %v2534 = vld [vmem:[%s2000 + $0xe2] sm:$0xff]
      %v2535 = vld [vmem:[%s2000 + $0xf2] sm:$0xff]
      %v2536 = vld [vmem:[%s2000 + $0xfa] sm:$0xff]
      %v2537 = vld [vmem:[%s2000 + $0x10a] sm:$0xff]
      %v2538 = vld [vmem:[%s2000 + $0x112] sm:$0xff]
      %v2539 = vld [vmem:[%s2000 + $0x122] sm:$0xff]
      %v2540 = vld [vmem:[%s2000 + $0x12a] sm:$0xff]
      %v2541 = vld [vmem:[%s2000 + $0x13a] sm:$0xff]
      %v2542 = vld [vmem:[%s2000 + $0x142] sm:$0xff]
      %v2543 = vld [vmem:[%s2000 + $0x152] sm:$0xff]
      %v2544 = vld [vmem:[%s2000 + $0x15a] sm:$0xff]
      %v2545 = vld [vmem:[%s2000 + $0x16a] sm:$0xff]
      %v2546 = vld [vmem:[%s2000 + $0x172] sm:$0xff]
      %v2547 = vpack.c.bf16 %v2516, %v2515
      %v2548 = vpack.c.bf16 %v2518, %v2517
      %v2549 = vpack.c.bf16 %v2520, %v2519
      %v2550 = vpack.c.bf16 %v2522, %v2521
      %v2551 = vpack.c.bf16 %v2524, %v2523
      %v2552 = vpack.c.bf16 %v2526, %v2525
      %v2553 = vpack.c.bf16 %v2528, %v2527
      %v2554 = vpack.c.bf16 %v2530, %v2529
      %v2555 = vpack.c.bf16 %v2532, %v2531
      %v2556 = vpack.c.bf16 %v2534, %v2533
      %v2557 = vpack.c.bf16 %v2536, %v2535
      %v2558 = vpack.c.bf16 %v2538, %v2537
      %v2559 = vpack.c.bf16 %v2540, %v2539
      %v2560 = vpack.c.bf16 %v2542, %v2541
      %v2561 = vpack.c.bf16 %v2544, %v2543
      %v2562 = vpack.c.bf16 %v2546, %v2545
      %v2579 = vunpack.c.l.b16 %v2547
      %v2580 = vunpack.c.h.b16 %v2547
      %v2581 = vunpack.c.l.b16 %v2548
      %v2582 = vunpack.c.h.b16 %v2548
      %v2583 = vunpack.c.l.b16 %v2549
      %v2584 = vunpack.c.h.b16 %v2549
      %v2585 = vunpack.c.l.b16 %v2550
      %v2586 = vunpack.c.h.b16 %v2550
      %v2587 = vunpack.c.l.b16 %v2551
      %v2588 = vunpack.c.h.b16 %v2551
      %v2589 = vunpack.c.l.b16 %v2552
      %v2590 = vunpack.c.h.b16 %v2552
      %v2591 = vunpack.c.l.b16 %v2553
      %v2592 = vunpack.c.h.b16 %v2553
      %v2593 = vunpack.c.l.b16 %v2554
      %v2594 = vunpack.c.h.b16 %v2554
      %v2595 = vunpack.c.l.b16 %v2555
      %v2596 = vunpack.c.h.b16 %v2555
      %v2597 = vunpack.c.l.b16 %v2556
      %v2598 = vunpack.c.h.b16 %v2556
      %v2599 = vunpack.c.l.b16 %v2557
      %v2600 = vunpack.c.h.b16 %v2557
      %v2601 = vunpack.c.l.b16 %v2558
      %v2602 = vunpack.c.h.b16 %v2558
      %v2603 = vunpack.c.l.b16 %v2559
      %v2604 = vunpack.c.h.b16 %v2559
      %v2605 = vunpack.c.l.b16 %v2560
      %v2606 = vunpack.c.h.b16 %v2560
      %v2607 = vunpack.c.l.b16 %v2561
      %v2608 = vunpack.c.h.b16 %v2561
      %v2609 = vunpack.c.l.b16 %v2562
      %v2610 = vunpack.c.h.b16 %v2562
      %v2611 = vpack.c.b16 %v2579, %v2579
      %v2612 = vpack.c.b16 %v2580, %v2580
      %v2613 = vpack.c.b16 %v2581, %v2581
      %v2614 = vpack.c.b16 %v2582, %v2582
      %v2615 = vpack.c.b16 %v2583, %v2583
      %v2616 = vpack.c.b16 %v2584, %v2584
      %v2617 = vpack.c.b16 %v2585, %v2585
      %v2618 = vpack.c.b16 %v2586, %v2586
      %v2619 = vpack.c.b16 %v2587, %v2587
      %v2620 = vpack.c.b16 %v2588, %v2588
      %v2621 = vpack.c.b16 %v2589, %v2589
      %v2622 = vpack.c.b16 %v2590, %v2590
      %v2623 = vpack.c.b16 %v2591, %v2591
      %v2624 = vpack.c.b16 %v2592, %v2592
      %v2625 = vpack.c.b16 %v2593, %v2593
      %v2626 = vpack.c.b16 %v2594, %v2594
      %v2627 = vpack.c.b16 %v2595, %v2595
      %v2628 = vpack.c.b16 %v2596, %v2596
      %v2629 = vpack.c.b16 %v2597, %v2597
      %v2630 = vpack.c.b16 %v2598, %v2598
      %v2631 = vpack.c.b16 %v2599, %v2599
      %v2632 = vpack.c.b16 %v2600, %v2600
      %v2633 = vpack.c.b16 %v2601, %v2601
      %v2634 = vpack.c.b16 %v2602, %v2602
      %v2635 = vpack.c.b16 %v2603, %v2603
      %v2636 = vpack.c.b16 %v2604, %v2604
      %v2637 = vpack.c.b16 %v2605, %v2605
      %v2638 = vpack.c.b16 %v2606, %v2606
      %v2639 = vpack.c.b16 %v2607, %v2607
      %v2640 = vpack.c.b16 %v2608, %v2608
      %v2641 = vpack.c.b16 %v2609, %v2609
      %v2642 = vpack.c.b16 %v2610, %v2610
      %2643 = vrot.lane.b32.xlu0 %v2611, 64
      %v2644 = vpop.permute.xlu0 %2643
      %2645 = vrot.lane.b32.xlu0 %v2612, 64
      %v2646 = vpop.permute.xlu0 %2645
      %2647 = vrot.lane.b32.xlu0 %v2613, 64
      %v2648 = vpop.permute.xlu0 %2647
      %2649 = vrot.lane.b32.xlu0 %v2614, 64
      %v2650 = vpop.permute.xlu0 %2649
      %2651 = vrot.lane.b32.xlu0 %v2615, 64
      %v2652 = vpop.permute.xlu0 %2651
      %2653 = vrot.lane.b32.xlu0 %v2616, 64
      %v2654 = vpop.permute.xlu0 %2653
      %2655 = vrot.lane.b32.xlu0 %v2617, 64
      %v2656 = vpop.permute.xlu0 %2655
      %2657 = vrot.lane.b32.xlu0 %v2618, 64
      %v2658 = vpop.permute.xlu0 %2657
      %2659 = vrot.lane.b32.xlu0 %v2619, 64
      %v2660 = vpop.permute.xlu0 %2659
      %2661 = vrot.lane.b32.xlu0 %v2620, 64
      %v2662 = vpop.permute.xlu0 %2661
      %2663 = vrot.lane.b32.xlu0 %v2621, 64
      %v2664 = vpop.permute.xlu0 %2663
      %2665 = vrot.lane.b32.xlu0 %v2622, 64
      %v2666 = vpop.permute.xlu0 %2665
      %2667 = vrot.lane.b32.xlu0 %v2623, 64
      %v2668 = vpop.permute.xlu0 %2667
      %2669 = vrot.lane.b32.xlu0 %v2624, 64
      %v2670 = vpop.permute.xlu0 %2669
      %2671 = vrot.lane.b32.xlu0 %v2625, 64
      %v2672 = vpop.permute.xlu0 %2671
      %2673 = vrot.lane.b32.xlu0 %v2626, 64
      %v2674 = vpop.permute.xlu0 %2673
      %2675 = vrot.lane.b32.xlu0 %v2627, 64
      %v2676 = vpop.permute.xlu0 %2675
      %2677 = vrot.lane.b32.xlu0 %v2628, 64
      %v2678 = vpop.permute.xlu0 %2677
      %2679 = vrot.lane.b32.xlu0 %v2629, 64
      %v2680 = vpop.permute.xlu0 %2679
      %2681 = vrot.lane.b32.xlu0 %v2630, 64
      %v2682 = vpop.permute.xlu0 %2681
      %2683 = vrot.lane.b32.xlu0 %v2631, 64
      %v2684 = vpop.permute.xlu0 %2683
      %2685 = vrot.lane.b32.xlu0 %v2632, 64
      %v2686 = vpop.permute.xlu0 %2685
      %2687 = vrot.lane.b32.xlu0 %v2633, 64
      %v2688 = vpop.permute.xlu0 %2687
      %2689 = vrot.lane.b32.xlu0 %v2634, 64
      %v2690 = vpop.permute.xlu0 %2689
      %2691 = vrot.lane.b32.xlu0 %v2635, 64
      %v2692 = vpop.permute.xlu0 %2691
      %2693 = vrot.lane.b32.xlu0 %v2636, 64
      %v2694 = vpop.permute.xlu0 %2693
      %2695 = vrot.lane.b32.xlu0 %v2637, 64
      %v2696 = vpop.permute.xlu0 %2695
      %2697 = vrot.lane.b32.xlu0 %v2638, 64
      %v2698 = vpop.permute.xlu0 %2697
      %2699 = vrot.lane.b32.xlu0 %v2639, 64
      %v2700 = vpop.permute.xlu0 %2699
      %2701 = vrot.lane.b32.xlu0 %v2640, 64
      %v2702 = vpop.permute.xlu0 %2701
      %2703 = vrot.lane.b32.xlu0 %v2641, 64
      %v2704 = vpop.permute.xlu0 %2703
      %2705 = vrot.lane.b32.xlu0 %v2642, 64
      %v2706 = vpop.permute.xlu0 %2705
      %vm2739 = vcmask 585216
      %2740 = vst.msk [vmem:[#allocation3] sm:$0xf] %vm2739, %v2644
      %2741 = vst.msk [vmem:[#allocation3 + $0x4] sm:$0xf] %vm2739, %v2646
      %2742 = vst.msk [vmem:[#allocation3 + $0x8] sm:$0xf] %vm2739, %v2648
      %2743 = vst.msk [vmem:[#allocation3 + $0xc] sm:$0xf] %vm2739, %v2650
      %2744 = vst.msk [vmem:[#allocation3 + $0x10] sm:$0xf] %vm2739, %v2652
      %2745 = vst.msk [vmem:[#allocation3 + $0x14] sm:$0xf] %vm2739, %v2654
      %2746 = vst.msk [vmem:[#allocation3 + $0x18] sm:$0xf] %vm2739, %v2656
      %2747 = vst.msk [vmem:[#allocation3 + $0x1c] sm:$0xf] %vm2739, %v2658
      %2748 = vst.msk [vmem:[#allocation3 + $0x20] sm:$0xf] %vm2739, %v2660
      %2749 = vst.msk [vmem:[#allocation3 + $0x24] sm:$0xf] %vm2739, %v2662
      %2750 = vst.msk [vmem:[#allocation3 + $0x28] sm:$0xf] %vm2739, %v2664
      %2751 = vst.msk [vmem:[#allocation3 + $0x2c] sm:$0xf] %vm2739, %v2666
      %2752 = vst.msk [vmem:[#allocation3 + $0x30] sm:$0xf] %vm2739, %v2668
      %2753 = vst.msk [vmem:[#allocation3 + $0x34] sm:$0xf] %vm2739, %v2670
      %2754 = vst.msk [vmem:[#allocation3 + $0x38] sm:$0xf] %vm2739, %v2672
      %2755 = vst.msk [vmem:[#allocation3 + $0x3c] sm:$0xf] %vm2739, %v2674
      %2756 = vst.msk [vmem:[#allocation3 + $0x40] sm:$0xf] %vm2739, %v2676
      %2757 = vst.msk [vmem:[#allocation3 + $0x44] sm:$0xf] %vm2739, %v2678
      %2758 = vst.msk [vmem:[#allocation3 + $0x48] sm:$0xf] %vm2739, %v2680
      %2759 = vst.msk [vmem:[#allocation3 + $0x4c] sm:$0xf] %vm2739, %v2682
      %2760 = vst.msk [vmem:[#allocation3 + $0x50] sm:$0xf] %vm2739, %v2684
      %2761 = vst.msk [vmem:[#allocation3 + $0x54] sm:$0xf] %vm2739, %v2686
      %2762 = vst.msk [vmem:[#allocation3 + $0x58] sm:$0xf] %vm2739, %v2688
      %2763 = vst.msk [vmem:[#allocation3 + $0x5c] sm:$0xf] %vm2739, %v2690
      %2764 = vst.msk [vmem:[#allocation3 + $0x60] sm:$0xf] %vm2739, %v2692
      %2765 = vst.msk [vmem:[#allocation3 + $0x64] sm:$0xf] %vm2739, %v2694
      %2766 = vst.msk [vmem:[#allocation3 + $0x68] sm:$0xf] %vm2739, %v2696
      %2767 = vst.msk [vmem:[#allocation3 + $0x6c] sm:$0xf] %vm2739, %v2698
      %2768 = vst.msk [vmem:[#allocation3 + $0x70] sm:$0xf] %vm2739, %v2700
      %2769 = vst.msk [vmem:[#allocation3 + $0x74] sm:$0xf] %vm2739, %v2702
      %2770 = vst.msk [vmem:[#allocation3 + $0x78] sm:$0xf] %vm2739, %v2704
      %2771 = vst.msk [vmem:[#allocation3 + $0x7c] sm:$0xf] %vm2739, %v2706
      %v2772 = vld [vmem:[#allocation3] sm:$0xf]
      %v2773 = vld [vmem:[#allocation3 + $0x4] sm:$0xf]
      %v2774 = vld [vmem:[#allocation3 + $0x8] sm:$0xf]
      %v2775 = vld [vmem:[#allocation3 + $0xc] sm:$0xf]
      %v2776 = vld [vmem:[#allocation3 + $0x10] sm:$0xf]
      %v2777 = vld [vmem:[#allocation3 + $0x14] sm:$0xf]
      %v2778 = vld [vmem:[#allocation3 + $0x18] sm:$0xf]
      %v2779 = vld [vmem:[#allocation3 + $0x1c] sm:$0xf]
      %v2780 = vld [vmem:[#allocation3 + $0x20] sm:$0xf]
      %v2781 = vld [vmem:[#allocation3 + $0x24] sm:$0xf]
      %v2782 = vld [vmem:[#allocation3 + $0x28] sm:$0xf]
      %v2783 = vld [vmem:[#allocation3 + $0x2c] sm:$0xf]
      %v2784 = vld [vmem:[#allocation3 + $0x30] sm:$0xf]
      %v2785 = vld [vmem:[#allocation3 + $0x34] sm:$0xf]
      %v2786 = vld [vmem:[#allocation3 + $0x38] sm:$0xf]
      %v2787 = vld [vmem:[#allocation3 + $0x3c] sm:$0xf]
      %v2788 = vld [vmem:[#allocation3 + $0x40] sm:$0xf]
      %v2789 = vld [vmem:[#allocation3 + $0x44] sm:$0xf]
      %v2790 = vld [vmem:[#allocation3 + $0x48] sm:$0xf]
      %v2791 = vld [vmem:[#allocation3 + $0x4c] sm:$0xf]
      %v2792 = vld [vmem:[#allocation3 + $0x50] sm:$0xf]
      %v2793 = vld [vmem:[#allocation3 + $0x54] sm:$0xf]
      %v2794 = vld [vmem:[#allocation3 + $0x58] sm:$0xf]
      %v2795 = vld [vmem:[#allocation3 + $0x5c] sm:$0xf]
      %v2796 = vld [vmem:[#allocation3 + $0x60] sm:$0xf]
      %v2797 = vld [vmem:[#allocation3 + $0x64] sm:$0xf]
      %v2798 = vld [vmem:[#allocation3 + $0x68] sm:$0xf]
      %v2799 = vld [vmem:[#allocation3 + $0x6c] sm:$0xf]
      %v2800 = vld [vmem:[#allocation3 + $0x70] sm:$0xf]
      %v2801 = vld [vmem:[#allocation3 + $0x74] sm:$0xf]
      %v2802 = vld [vmem:[#allocation3 + $0x78] sm:$0xf]
      %v2803 = vld [vmem:[#allocation3 + $0x7c] sm:$0xf]
      %v2804 = vld [vmem:[%s3] sm:$0xf]
      %v2805 = vld [vmem:[%s3 + $0x4] sm:$0xf]
      %v2806 = vld [vmem:[%s3 + $0x8] sm:$0xf]
      %v2807 = vld [vmem:[%s3 + $0xc] sm:$0xf]
      %v2808 = vld [vmem:[%s3 + $0x10] sm:$0xf]
      %v2809 = vld [vmem:[%s3 + $0x14] sm:$0xf]
      %v2810 = vld [vmem:[%s3 + $0x18] sm:$0xf]
      %v2811 = vld [vmem:[%s3 + $0x1c] sm:$0xf]
      %v2812 = vld [vmem:[%s3 + $0x20] sm:$0xf]
      %v2845 = vunpack.c.l.b16 %v2772
      %v2846 = vunpack.c.l.b16 %v2773
      %v2847 = vunpack.c.l.b16 %v2774
      %v2848 = vunpack.c.l.b16 %v2775
      %v2849 = vunpack.c.l.b16 %v2776
      %v2850 = vunpack.c.l.b16 %v2777
      %v2851 = vunpack.c.l.b16 %v2778
      %v2852 = vunpack.c.l.b16 %v2779
      %v2853 = vunpack.c.l.b16 %v2780
      %v2854 = vunpack.c.l.b16 %v2781
      %v2855 = vunpack.c.l.b16 %v2782
      %v2856 = vunpack.c.l.b16 %v2783
      %v2857 = vunpack.c.l.b16 %v2784
      %v2858 = vunpack.c.l.b16 %v2785
      %v2859 = vunpack.c.l.b16 %v2786
      %v2860 = vunpack.c.l.b16 %v2787
      %v2861 = vunpack.c.l.b16 %v2788
      %v2862 = vunpack.c.l.b16 %v2789
      %v2863 = vunpack.c.l.b16 %v2790
      %v2864 = vunpack.c.l.b16 %v2791
      %v2865 = vunpack.c.l.b16 %v2792
      %v2866 = vunpack.c.l.b16 %v2793
      %v2867 = vunpack.c.l.b16 %v2794
      %v2868 = vunpack.c.l.b16 %v2795
      %v2869 = vunpack.c.l.b16 %v2796
      %v2870 = vunpack.c.l.b16 %v2797
      %v2871 = vunpack.c.l.b16 %v2798
      %v2872 = vunpack.c.l.b16 %v2799
      %v2873 = vunpack.c.l.b16 %v2800
      %v2874 = vunpack.c.l.b16 %v2801
      %v2875 = vunpack.c.l.b16 %v2802
      %v2876 = vunpack.c.l.b16 %v2803
      %v2877 = vpack.c.b16 %v2846, %v2845
      %v2878 = vpack.c.b16 %v2848, %v2847
      %v2879 = vpack.c.b16 %v2850, %v2849
      %v2880 = vpack.c.b16 %v2852, %v2851
      %v2881 = vpack.c.b16 %v2854, %v2853
      %v2882 = vpack.c.b16 %v2856, %v2855
      %v2883 = vpack.c.b16 %v2858, %v2857
      %v2884 = vpack.c.b16 %v2860, %v2859
      %v2885 = vpack.c.b16 %v2862, %v2861
      %v2886 = vpack.c.b16 %v2864, %v2863
      %v2887 = vpack.c.b16 %v2866, %v2865
      %v2888 = vpack.c.b16 %v2868, %v2867
      %v2889 = vpack.c.b16 %v2870, %v2869
      %v2890 = vpack.c.b16 %v2872, %v2871
      %v2891 = vpack.c.b16 %v2874, %v2873
      %v2892 = vpack.c.b16 %v2876, %v2875
      %v2902 = vunpack.c.l.b16 %v2804
      %v2903 = vunpack.c.l.b16 %v2805
      %v2904 = vunpack.c.l.b16 %v2806
      %v2905 = vunpack.c.l.b16 %v2807
      %v2906 = vunpack.c.l.b16 %v2808
      %v2907 = vunpack.c.l.b16 %v2809
      %v2908 = vunpack.c.l.b16 %v2810
      %v2909 = vunpack.c.l.b16 %v2811
      %v2910 = vunpack.c.l.b16 %v2812
      %v2911 = vpack.c.b16 %v2903, %v2902
      %v2912 = vpack.c.b16 %v2905, %v2904
      %v2913 = vpack.c.b16 %v2907, %v2906
      %v2914 = vpack.c.b16 %v2909, %v2908
      %v2915 = vpack.c.b16 %v2910, %v2910
      %vm2920 = vcmask 588800
      %v2922 = vsel %vm2920, %v2877, 0
      %v2925 = vsel %vm2920, %v2878, 0
      %v2928 = vsel %vm2920, %v2879, 0
      %v2931 = vsel %vm2920, %v2880, 0
      %v2934 = vsel %vm2920, %v2881, 0
      %v2937 = vsel %vm2920, %v2882, 0
      %v2940 = vsel %vm2920, %v2883, 0
      %v2943 = vsel %vm2920, %v2884, 0
      %v2946 = vsel %vm2920, %v2885, 0
      %v2949 = vsel %vm2920, %v2886, 0
      %v2952 = vsel %vm2920, %v2887, 0
      %v2955 = vsel %vm2920, %v2888, 0
      %v2958 = vsel %vm2920, %v2889, 0
      %v2961 = vsel %vm2920, %v2890, 0
      %v2964 = vsel %vm2920, %v2891, 0
      %v2967 = vsel %vm2920, %v2892, 0
      %vm2969 = vcmask 1043456
      %v2971 = vsel %vm2969, %v2915, 0
      %2973 = vmatprep.subr.bf16.mxu0 0
      %2974 = vmatpush1.bf16.msra.mxu0 0
      %2975 = vmatprep.subr.bf16.mxu0 0
      %2976 = vmatpush1.bf16.msra.mxu0 0
      %2977 = vmatprep.subr.bf16.mxu0 0
      %2978 = vmatpush1.bf16.msra.mxu0 0
      %2979 = vmatprep.subr.bf16.mxu0 0
      %2980 = vmatpush1.bf16.msra.mxu0 %v2971
      %2981 = vmatprep.subr.bf16.mxu0 0
      %2982 = vmatpush1.bf16.msra.mxu0 %v2914
      %2983 = vmatprep.subr.bf16.mxu0 0
      %2984 = vmatpush1.bf16.msra.mxu0 %v2913
      %2985 = vmatprep.subr.bf16.mxu0 0
      %2986 = vmatpush1.bf16.msra.mxu0 %v2912
      %2987 = vmatprep.subr.bf16.mxu0 0
      %2988 = vmatpush1.bf16.msra.mxu0 %v2911
      %2989 = vmatprep.subr.bf16.mxu0 0
      %2990 = vmatpush2.bf16.msra.mxu0 0
      %2991 = vmatprep.subr.bf16.mxu0 0
      %2992 = vmatpush2.bf16.msra.mxu0 0
      %2993 = vmatprep.subr.bf16.mxu0 0
      %2994 = vmatpush2.bf16.msra.mxu0 0
      %2995 = vmatprep.subr.bf16.mxu0 0
      %2996 = vmatpush2.bf16.msra.mxu0 0
      %2997 = vmatprep.subr.bf16.mxu0 0
      %2998 = vmatpush2.bf16.msra.mxu0 0
      %2999 = vmatprep.subr.bf16.mxu0 0
      %3000 = vmatpush2.bf16.msra.mxu0 0
      %3001 = vmatprep.subr.bf16.mxu0 0
      %3002 = vmatpush2.bf16.msra.mxu0 0
      %3003 = vmatprep.subr.bf16.mxu0 0
      %3004 = vmatpush2.bf16.msra.mxu0 0
      %3005 = vmatprep.mubr.bf16.mxu0 0
      %3006 = vmatmul.mubr.bf16.gmra.mxu0 %v2922
      %v3007 = vpop.f32.mrf.mxu0
      %v3008 = vadd.f32 0.0, %v3007
      %v3009 = vpop.f32.mrf.mxu0
      %v3010 = vpop.f32.mrf.mxu0
      %v3011 = vadd.f32 0.0, %v3010
      %v3012 = vpop.f32.mrf.mxu0
      %3013 = vmatprep.mubr.bf16.mxu0 0
      %3014 = vmatmul.mubr.bf16.gmra.mxu0 %v2925
      %v3015 = vpop.f32.mrf.mxu0
      %v3016 = vadd.f32 0.0, %v3015
      %v3017 = vpop.f32.mrf.mxu0
      %v3018 = vpop.f32.mrf.mxu0
      %v3019 = vadd.f32 0.0, %v3018
      %v3020 = vpop.f32.mrf.mxu0
      %3021 = vmatprep.mubr.bf16.mxu0 0
      %3022 = vmatmul.mubr.bf16.gmra.mxu0 %v2928
      %v3023 = vpop.f32.mrf.mxu0
      %v3024 = vadd.f32 0.0, %v3023
      %v3025 = vpop.f32.mrf.mxu0
      %v3026 = vpop.f32.mrf.mxu0
      %v3027 = vadd.f32 0.0, %v3026
      %v3028 = vpop.f32.mrf.mxu0
      %3029 = vmatprep.mubr.bf16.mxu0 0
      %3030 = vmatmul.mubr.bf16.gmra.mxu0 %v2931
      %v3031 = vpop.f32.mrf.mxu0
      %v3032 = vadd.f32 0.0, %v3031
      %v3033 = vpop.f32.mrf.mxu0
      %v3034 = vpop.f32.mrf.mxu0
      %v3035 = vadd.f32 0.0, %v3034
      %v3036 = vpop.f32.mrf.mxu0
      %3037 = vmatprep.mubr.bf16.mxu0 0
      %3038 = vmatmul.mubr.bf16.gmra.mxu0 %v2934
      %v3039 = vpop.f32.mrf.mxu0
      %v3040 = vadd.f32 0.0, %v3039
      %v3041 = vpop.f32.mrf.mxu0
      %v3042 = vpop.f32.mrf.mxu0
      %v3043 = vadd.f32 0.0, %v3042
      %v3044 = vpop.f32.mrf.mxu0
      %3045 = vmatprep.mubr.bf16.mxu0 0
      %3046 = vmatmul.mubr.bf16.gmra.mxu0 %v2937
      %v3047 = vpop.f32.mrf.mxu0
      %v3048 = vadd.f32 0.0, %v3047
      %v3049 = vpop.f32.mrf.mxu0
      %v3050 = vpop.f32.mrf.mxu0
      %v3051 = vadd.f32 0.0, %v3050
      %v3052 = vpop.f32.mrf.mxu0
      %3053 = vmatprep.mubr.bf16.mxu0 0
      %3054 = vmatmul.mubr.bf16.gmra.mxu0 %v2940
      %v3055 = vpop.f32.mrf.mxu0
      %v3056 = vadd.f32 0.0, %v3055
      %v3057 = vpop.f32.mrf.mxu0
      %v3058 = vpop.f32.mrf.mxu0
      %v3059 = vadd.f32 0.0, %v3058
      %v3060 = vpop.f32.mrf.mxu0
      %3061 = vmatprep.mubr.bf16.mxu0 0
      %3062 = vmatmul.mubr.bf16.gmra.mxu0 %v2943
      %v3063 = vpop.f32.mrf.mxu0
      %v3064 = vadd.f32 0.0, %v3063
      %v3065 = vpop.f32.mrf.mxu0
      %v3066 = vpop.f32.mrf.mxu0
      %v3067 = vadd.f32 0.0, %v3066
      %v3068 = vpop.f32.mrf.mxu0
      %3069 = vmatprep.mubr.bf16.mxu0 0
      %3070 = vmatmul.mubr.bf16.gmra.mxu0 %v2946
      %v3071 = vpop.f32.mrf.mxu0
      %v3072 = vadd.f32 0.0, %v3071
      %v3073 = vpop.f32.mrf.mxu0
      %v3074 = vpop.f32.mrf.mxu0
      %v3075 = vadd.f32 0.0, %v3074
      %v3076 = vpop.f32.mrf.mxu0
      %3077 = vmatprep.mubr.bf16.mxu0 0
      %3078 = vmatmul.mubr.bf16.gmra.mxu0 %v2949
      %v3079 = vpop.f32.mrf.mxu0
      %v3080 = vadd.f32 0.0, %v3079
      %v3081 = vpop.f32.mrf.mxu0
      %v3082 = vpop.f32.mrf.mxu0
      %v3083 = vadd.f32 0.0, %v3082
      %v3084 = vpop.f32.mrf.mxu0
      %3085 = vmatprep.mubr.bf16.mxu0 0
      %3086 = vmatmul.mubr.bf16.gmra.mxu0 %v2952
      %v3087 = vpop.f32.mrf.mxu0
      %v3088 = vadd.f32 0.0, %v3087
      %v3089 = vpop.f32.mrf.mxu0
      %v3090 = vpop.f32.mrf.mxu0
      %v3091 = vadd.f32 0.0, %v3090
      %v3092 = vpop.f32.mrf.mxu0
      %3093 = vmatprep.mubr.bf16.mxu0 0
      %3094 = vmatmul.mubr.bf16.gmra.mxu0 %v2955
      %v3095 = vpop.f32.mrf.mxu0
      %v3096 = vadd.f32 0.0, %v3095
      %v3097 = vpop.f32.mrf.mxu0
      %v3098 = vpop.f32.mrf.mxu0
      %v3099 = vadd.f32 0.0, %v3098
      %v3100 = vpop.f32.mrf.mxu0
      %3101 = vmatprep.mubr.bf16.mxu0 0
      %3102 = vmatmul.mubr.bf16.gmra.mxu0 %v2958
      %v3103 = vpop.f32.mrf.mxu0
      %v3104 = vadd.f32 0.0, %v3103
      %v3105 = vpop.f32.mrf.mxu0
      %v3106 = vpop.f32.mrf.mxu0
      %v3107 = vadd.f32 0.0, %v3106
      %v3108 = vpop.f32.mrf.mxu0
      %3109 = vmatprep.mubr.bf16.mxu0 0
      %3110 = vmatmul.mubr.bf16.gmra.mxu0 %v2961
      %v3111 = vpop.f32.mrf.mxu0
      %v3112 = vadd.f32 0.0, %v3111
      %v3113 = vpop.f32.mrf.mxu0
      %v3114 = vpop.f32.mrf.mxu0
      %v3115 = vadd.f32 0.0, %v3114
      %v3116 = vpop.f32.mrf.mxu0
      %3117 = vmatprep.mubr.bf16.mxu0 0
      %3118 = vmatmul.mubr.bf16.gmra.mxu0 %v2964
      %v3119 = vpop.f32.mrf.mxu0
      %v3120 = vadd.f32 0.0, %v3119
      %v3121 = vpop.f32.mrf.mxu0
      %v3122 = vpop.f32.mrf.mxu0
      %v3123 = vadd.f32 0.0, %v3122
      %v3124 = vpop.f32.mrf.mxu0
      %3125 = vmatprep.mubr.bf16.mxu0 0
      %3126 = vmatmul.mubr.bf16.gmra.mxu0 %v2967
      %v3127 = vpop.f32.mrf.mxu0
      %v3128 = vadd.f32 0.0, %v3127
      %v3129 = vpop.f32.mrf.mxu0
      %v3130 = vpop.f32.mrf.mxu0
      %v3131 = vadd.f32 0.0, %v3130
      %v3132 = vpop.f32.mrf.mxu0
      %3133 = vdwg.mxu0
      %3134 = vst.msk [vmem:[%s231] sm:$0xff] %vm443, %v3008
      %3135 = vst.msk [vmem:[%s231 + $0x8] sm:$0xff] %vm443, %v3011
      %3136 = vst.msk [vmem:[%s231 + $0x10] sm:$0xff] %vm443, %v3016
      %3137 = vst.msk [vmem:[%s231 + $0x18] sm:$0xff] %vm443, %v3019
      %3138 = vst.msk [vmem:[%s231 + $0x20] sm:$0xff] %vm443, %v3024
      %3139 = vst.msk [vmem:[%s231 + $0x28] sm:$0xff] %vm443, %v3027
      %3140 = vst.msk [vmem:[%s231 + $0x30] sm:$0xff] %vm443, %v3032
      %3141 = vst.msk [vmem:[%s231 + $0x38] sm:$0xff] %vm443, %v3035
      %3142 = vst.msk [vmem:[%s231 + $0x40] sm:$0xff] %vm443, %v3040
      %3143 = vst.msk [vmem:[%s231 + $0x48] sm:$0xff] %vm443, %v3043
      %3144 = vst.msk [vmem:[%s231 + $0x50] sm:$0xff] %vm443, %v3048
      %3145 = vst.msk [vmem:[%s231 + $0x58] sm:$0xff] %vm443, %v3051
      %3146 = vst.msk [vmem:[%s231 + $0x60] sm:$0xff] %vm443, %v3056
      %3147 = vst.msk [vmem:[%s231 + $0x68] sm:$0xff] %vm443, %v3059
      %3148 = vst.msk [vmem:[%s231 + $0x70] sm:$0xff] %vm443, %v3064
      %3149 = vst.msk [vmem:[%s231 + $0x78] sm:$0xff] %vm443, %v3067
      %3150 = vst.msk [vmem:[%s231 + $0x80] sm:$0xff] %vm443, %v3072
      %3151 = vst.msk [vmem:[%s231 + $0x88] sm:$0xff] %vm443, %v3075
      %3152 = vst.msk [vmem:[%s231 + $0x90] sm:$0xff] %vm443, %v3080
      %3153 = vst.msk [vmem:[%s231 + $0x98] sm:$0xff] %vm443, %v3083
      %3154 = vst.msk [vmem:[%s231 + $0xa0] sm:$0xff] %vm443, %v3088
      %3155 = vst.msk [vmem:[%s231 + $0xa8] sm:$0xff] %vm443, %v3091
      %3156 = vst.msk [vmem:[%s231 + $0xb0] sm:$0xff] %vm443, %v3096
      %3157 = vst.msk [vmem:[%s231 + $0xb8] sm:$0xff] %vm443, %v3099
      %3158 = vst.msk [vmem:[%s231 + $0xc0] sm:$0xff] %vm443, %v3104
      %3159 = vst.msk [vmem:[%s231 + $0xc8] sm:$0xff] %vm443, %v3107
      %3160 = vst.msk [vmem:[%s231 + $0xd0] sm:$0xff] %vm443, %v3112
      %3161 = vst.msk [vmem:[%s231 + $0xd8] sm:$0xff] %vm443, %v3115
      %3162 = vst.msk [vmem:[%s231 + $0xe0] sm:$0xff] %vm443, %v3120
      %3163 = vst.msk [vmem:[%s231 + $0xe8] sm:$0xff] %vm443, %v3123
      %3164 = vst.msk [vmem:[%s231 + $0xf0] sm:$0xff] %vm443, %v3128
      %3165 = vst.msk [vmem:[%s231 + $0xf8] sm:$0xff] %vm443, %v3131
      %v3166 = vsel %vm443, %v3008, 0.0
      %v3167 = vsel %vm443, %v3011, 0.0
      %v3168 = vadd.f32 %v3166, %v3167
      %v3169 = vsel %vm443, %v3016, 0.0
      %v3170 = vadd.f32 %v3168, %v3169
      %v3171 = vsel %vm443, %v3019, 0.0
      %v3172 = vadd.f32 %v3170, %v3171
      %v3173 = vsel %vm443, %v3024, 0.0
      %v3174 = vadd.f32 %v3172, %v3173
      %v3175 = vsel %vm443, %v3027, 0.0
      %v3176 = vadd.f32 %v3174, %v3175
      %v3177 = vsel %vm443, %v3032, 0.0
      %v3178 = vadd.f32 %v3176, %v3177
      %v3179 = vsel %vm443, %v3035, 0.0
      %v3180 = vadd.f32 %v3178, %v3179
      %v3181 = vsel %vm443, %v3040, 0.0
      %v3182 = vadd.f32 %v3180, %v3181
      %v3183 = vsel %vm443, %v3043, 0.0
      %v3184 = vadd.f32 %v3182, %v3183
      %v3185 = vsel %vm443, %v3048, 0.0
      %v3186 = vadd.f32 %v3184, %v3185
      %v3187 = vsel %vm443, %v3051, 0.0
      %v3188 = vadd.f32 %v3186, %v3187
      %v3189 = vsel %vm443, %v3056, 0.0
      %v3190 = vadd.f32 %v3188, %v3189
      %v3191 = vsel %vm443, %v3059, 0.0
      %v3192 = vadd.f32 %v3190, %v3191
      %v3193 = vsel %vm443, %v3064, 0.0
      %v3194 = vadd.f32 %v3192, %v3193
      %v3195 = vsel %vm443, %v3067, 0.0
      %v3196 = vadd.f32 %v3194, %v3195
      %v3197 = vsel %vm443, %v3072, 0.0
      %v3198 = vadd.f32 %v3196, %v3197
      %v3199 = vsel %vm443, %v3075, 0.0
      %v3200 = vadd.f32 %v3198, %v3199
      %v3201 = vsel %vm443, %v3080, 0.0
      %v3202 = vadd.f32 %v3200, %v3201
      %v3203 = vsel %vm443, %v3083, 0.0
      %v3204 = vadd.f32 %v3202, %v3203
      %v3205 = vsel %vm443, %v3088, 0.0
      %v3206 = vadd.f32 %v3204, %v3205
      %v3207 = vsel %vm443, %v3091, 0.0
      %v3208 = vadd.f32 %v3206, %v3207
      %v3209 = vsel %vm443, %v3096, 0.0
      %v3210 = vadd.f32 %v3208, %v3209
      %v3211 = vsel %vm443, %v3099, 0.0
      %v3212 = vadd.f32 %v3210, %v3211
      %v3213 = vsel %vm443, %v3104, 0.0
      %v3214 = vadd.f32 %v3212, %v3213
      %v3215 = vsel %vm443, %v3107, 0.0
      %v3216 = vadd.f32 %v3214, %v3215
      %v3217 = vsel %vm443, %v3112, 0.0
      %v3218 = vadd.f32 %v3216, %v3217
      %v3219 = vsel %vm443, %v3115, 0.0
      %v3220 = vadd.f32 %v3218, %v3219
      %v3221 = vsel %vm443, %v3120, 0.0
      %v3222 = vadd.f32 %v3220, %v3221
      %v3223 = vsel %vm443, %v3123, 0.0
      %v3224 = vadd.f32 %v3222, %v3223
      %v3225 = vsel %vm443, %v3128, 0.0
      %v3226 = vadd.f32 %v3224, %v3225
      %v3227 = vsel %vm443, %v3131, 0.0
      %v3228 = vadd.f32 %v3226, %v3227
      %v3229 = vrot.slane %v3228, 4
      %v3230 = vadd.f32 %v3228, %v3229
      %v3231 = vrot.slane %v3230, 2
      %v3232 = vadd.f32 %v3230, %v3231
      %v3233 = vrot.slane %v3232, 1
      %v3234 = vadd.f32 %v3232, %v3233
      %3235 = vst.msk [vmem:[%s235] sm:$0x1] %vm452, %v3234
      %v3236 = vmul.f32 %v3008, %v3008
      %v3237 = vmul.f32 %v3011, %v3011
      %v3238 = vmul.f32 %v3016, %v3016
      %v3239 = vmul.f32 %v3019, %v3019
      %v3240 = vmul.f32 %v3024, %v3024
      %v3241 = vmul.f32 %v3027, %v3027
      %v3242 = vmul.f32 %v3032, %v3032
      %v3243 = vmul.f32 %v3035, %v3035
      %v3244 = vmul.f32 %v3040, %v3040
      %v3245 = vmul.f32 %v3043, %v3043
      %v3246 = vmul.f32 %v3048, %v3048
      %v3247 = vmul.f32 %v3051, %v3051
      %v3248 = vmul.f32 %v3056, %v3056
      %v3249 = vmul.f32 %v3059, %v3059
      %v3250 = vmul.f32 %v3064, %v3064
      %v3251 = vmul.f32 %v3067, %v3067
      %v3252 = vmul.f32 %v3072, %v3072
      %v3253 = vmul.f32 %v3075, %v3075
      %v3254 = vmul.f32 %v3080, %v3080
      %v3255 = vmul.f32 %v3083, %v3083
      %v3256 = vmul.f32 %v3088, %v3088
      %v3257 = vmul.f32 %v3091, %v3091
      %v3258 = vmul.f32 %v3096, %v3096
      %v3259 = vmul.f32 %v3099, %v3099
      %v3260 = vmul.f32 %v3104, %v3104
      %v3261 = vmul.f32 %v3107, %v3107
      %v3262 = vmul.f32 %v3112, %v3112
      %v3263 = vmul.f32 %v3115, %v3115
      %v3264 = vmul.f32 %v3120, %v3120
      %v3265 = vmul.f32 %v3123, %v3123
      %v3266 = vmul.f32 %v3128, %v3128
      %v3267 = vmul.f32 %v3131, %v3131
      %v3268 = vsel %vm443, %v3236, 0.0
      %v3269 = vsel %vm443, %v3237, 0.0
      %v3270 = vadd.f32 %v3268, %v3269
      %v3271 = vsel %vm443, %v3238, 0.0
      %v3272 = vadd.f32 %v3270, %v3271
      %v3273 = vsel %vm443, %v3239, 0.0
      %v3274 = vadd.f32 %v3272, %v3273
      %v3275 = vsel %vm443, %v3240, 0.0
      %v3276 = vadd.f32 %v3274, %v3275
      %v3277 = vsel %vm443, %v3241, 0.0
      %v3278 = vadd.f32 %v3276, %v3277
      %v3279 = vsel %vm443, %v3242, 0.0
      %v3280 = vadd.f32 %v3278, %v3279
      %v3281 = vsel %vm443, %v3243, 0.0
      %v3282 = vadd.f32 %v3280, %v3281
      %v3283 = vsel %vm443, %v3244, 0.0
      %v3284 = vadd.f32 %v3282, %v3283
      %v3285 = vsel %vm443, %v3245, 0.0
      %v3286 = vadd.f32 %v3284, %v3285
      %v3287 = vsel %vm443, %v3246, 0.0
      %v3288 = vadd.f32 %v3286, %v3287
      %v3289 = vsel %vm443, %v3247, 0.0
      %v3290 = vadd.f32 %v3288, %v3289
      %v3291 = vsel %vm443, %v3248, 0.0
      %v3292 = vadd.f32 %v3290, %v3291
      %v3293 = vsel %vm443, %v3249, 0.0
      %v3294 = vadd.f32 %v3292, %v3293
      %v3295 = vsel %vm443, %v3250, 0.0
      %v3296 = vadd.f32 %v3294, %v3295
      %v3297 = vsel %vm443, %v3251, 0.0
      %v3298 = vadd.f32 %v3296, %v3297
      %v3299 = vsel %vm443, %v3252, 0.0
      %v3300 = vadd.f32 %v3298, %v3299
      %v3301 = vsel %vm443, %v3253, 0.0
      %v3302 = vadd.f32 %v3300, %v3301
      %v3303 = vsel %vm443, %v3254, 0.0
      %v3304 = vadd.f32 %v3302, %v3303
      %v3305 = vsel %vm443, %v3255, 0.0
      %v3306 = vadd.f32 %v3304, %v3305
      %v3307 = vsel %vm443, %v3256, 0.0
      %v3308 = vadd.f32 %v3306, %v3307
      %v3309 = vsel %vm443, %v3257, 0.0
      %v3310 = vadd.f32 %v3308, %v3309
      %v3311 = vsel %vm443, %v3258, 0.0
      %v3312 = vadd.f32 %v3310, %v3311
      %v3313 = vsel %vm443, %v3259, 0.0
      %v3314 = vadd.f32 %v3312, %v3313
      %v3315 = vsel %vm443, %v3260, 0.0
      %v3316 = vadd.f32 %v3314, %v3315
      %v3317 = vsel %vm443, %v3261, 0.0
      %v3318 = vadd.f32 %v3316, %v3317
      %v3319 = vsel %vm443, %v3262, 0.0
      %v3320 = vadd.f32 %v3318, %v3319
      %v3321 = vsel %vm443, %v3263, 0.0
      %v3322 = vadd.f32 %v3320, %v3321
      %v3323 = vsel %vm443, %v3264, 0.0
      %v3324 = vadd.f32 %v3322, %v3323
      %v3325 = vsel %vm443, %v3265, 0.0
      %v3326 = vadd.f32 %v3324, %v3325
      %v3327 = vsel %vm443, %v3266, 0.0
      %v3328 = vadd.f32 %v3326, %v3327
      %v3329 = vsel %vm443, %v3267, 0.0
      %v3330 = vadd.f32 %v3328, %v3329
      %v3331 = vrot.slane %v3330, 4
      %v3332 = vadd.f32 %v3330, %v3331
      %v3333 = vrot.slane %v3332, 2
      %v3334 = vadd.f32 %v3332, %v3333
      %v3335 = vrot.slane %v3334, 1
      %v3336 = vadd.f32 %v3334, %v3335
      %3337 = vst.msk [vmem:[%s235 + $0x1] sm:$0x1] %vm452, %v3336
      %p3338 = scmp.lt.s32.totalorder %s17, 1
      %s3339 = scalar_select %p3338, %s17, 1
      %s3340 = smul.addr %s3339, 32
      %s3341 = smul.addr %s3340, 8
      %s3342 = scalar_lea.vmem %s4, %s3341
      %p3343 = scmp.lt.s32.totalorder %s17, 1
      %s3344 = scalar_select %p3343, %s17, 1
      %s3345 = smul.addr %s3344, 2
      %s3346 = scalar_lea.vmem %s5, %s3345
      // Predicated region
      $region37: #{basic_conv_block.4} parent=35 // pred_check
        %p3347 = pneg %p124
      $region38: #{basic_conv_block.4} parent=35 // pred_check_branch
        %3349 = sbr.rel (%p3347) target = $region40
      $region39: #{basic_conv_block.4} parent=35 // pred_region
        _
      $region40: #{basic_conv_block.4} parent=35 // pred_fallthru
        _
      // Predicated region
      $region41: #{basic_conv_block.4} parent=35 // pred_check
        %p3350 = pneg %p150
      $region42: #{basic_conv_block.4} parent=35 // pred_check_branch
        %3352 = sbr.rel (%p3350) target = $region44
      $region43: #{basic_conv_block.4} parent=35 // pred_region
        _
      $region44: #{basic_conv_block.4} parent=35 // pred_fallthru
        _
    $region36: #{basic_conv_block.4} parent=5 // pred_fallthru
      _
    %p3353 = scmp.le.s32.totalorder 2, %s12
    // Predicated region
    $region45: #{basic_conv_block.4} parent=5 // pred_check
      %p3354 = pneg %p3353
    $region46: #{basic_conv_block.4} parent=5 // pred_check_branch
      %3356 = sbr.rel (%p3354) target = $region48
    $region47: #{basic_conv_block.4} parent=5 // pred_region
      %s3357 = ssub.s32 %s12, 2
      // Predicated region
      $region49: #{basic_conv_block.4} parent=47 // pred_check
        %p3358 = pneg %p130
      $region50: #{basic_conv_block.4} parent=47 // pred_check_branch
        %3360 = sbr.rel (%p3358) target = $region52
      $region51: #{basic_conv_block.4} parent=47 // pred_region
        %p3361 = scmp.lt.s32.totalorder %s18, 1
        %s3362 = scalar_select %p3361, %s18, 1
        %s3363 = smul.addr %s3362, 32
        %s3364 = smul.addr %s3363, 8
        %s3365 = scalar_lea.vmem %s4, %s3364
      $region52: #{basic_conv_block.4} parent=47 // pred_fallthru
        _
      // Predicated region
      $region53: #{basic_conv_block.4} parent=47 // pred_check
        %p3366 = pneg %p156
      $region54: #{basic_conv_block.4} parent=47 // pred_check_branch
        %3368 = sbr.rel (%p3366) target = $region56
      $region55: #{basic_conv_block.4} parent=47 // pred_region
        %p3369 = scmp.lt.s32.totalorder %s18, 1
        %s3370 = scalar_select %p3369, %s18, 1
        %s3371 = smul.addr %s3370, 2
        %s3372 = scalar_lea.vmem %s5, %s3371
      $region56: #{basic_conv_block.4} parent=47 // pred_fallthru
        _
    $region48: #{basic_conv_block.4} parent=5 // pred_fallthru
      _
  $region6: #{basic_conv_block.4} parent=0 // loop_footer
    %s16 = sadd.s32 1, %s12
  $region7: #{basic_conv_block.4} parent=0 // loop_footer_branch
    %11 = sbr.rel target = $region3
  $region8: #{basic_conv_block.4} parent=0 // loop_exit
    _

</llo_original>
